<compile_context>
chip_gen: v6e
topology: v6e:2x2x1
jax: 0.10.0
libtpu: 0.0.40
codegen_flags: <defaults>
</compile_context>

<pallas_src>
import functools

import jax
import jax.numpy as jnp
from jax import lax
from jax.experimental import pallas as pl
from jax.experimental.pallas import tpu as pltpu

VMEM_LIMIT_BYTES = 32 * 1024 * 1024


# -----------------------------------------------------------------------------
# In-kernel helpers (values already resident in VMEM / vregs)
# -----------------------------------------------------------------------------
def _layer_norm(x, gamma, beta, eps=1e-5):
    """LayerNorm over last dim, fp32, residual already added by caller."""
    mean = jnp.mean(x, axis=-1, keepdims=True)
    var = jnp.mean(jnp.square(x - mean), axis=-1, keepdims=True)
    return (x - mean) * lax.rsqrt(var + eps) * gamma + beta


def _linear(x_f32, w_bf16, b_f32):
    """bf16 MXU matmul with fp32 accumulation + fp32 bias."""
    return jnp.dot(x_f32.astype(jnp.bfloat16), w_bf16,
                   preferred_element_type=jnp.float32) + b_f32


def _ffn(x, w1, b1, w2, b2):
    h = jnp.maximum(_linear(x, w1, b1), 0.0)
    return _linear(h, w2, b2)


def _mha(q, k, v, heads, *, causal):
    """q: (Tq, E), k/v: (Tk, E) -> (Tq, E).

    One batched contraction over all heads (head batch dim) for both the
    score and P@V matmuls.  Softmax / masking stay fp32.
    """
    tq, e = q.shape
    tk = k.shape[0]
    dh = e // heads
    scale = 1.0 / (dh ** 0.5)

    qh = jnp.swapaxes(q.reshape(tq, heads, dh), 0, 1).astype(jnp.bfloat16)
    kh = jnp.swapaxes(k.reshape(tk, heads, dh), 0, 1).astype(jnp.bfloat16)
    vh = jnp.swapaxes(v.reshape(tk, heads, dh), 0, 1).astype(jnp.bfloat16)

    s = jnp.einsum("hqd,hkd->hqk", qh, kh,
                   preferred_element_type=jnp.float32) * scale
    if causal:
        row = lax.broadcasted_iota(jnp.int32, (tq, tk), 0)
        col = lax.broadcasted_iota(jnp.int32, (tq, tk), 1)
        s = jnp.where((col <= row)[None, :, :], s, -1e30)

    m = jnp.max(s, axis=-1, keepdims=True)
    p = jnp.exp(s - m)
    denom = jnp.sum(p, axis=-1, keepdims=True)
    o = jnp.einsum("hqk,hkd->hqd", p.astype(jnp.bfloat16), vh,
                   preferred_element_type=jnp.float32)
    o = o * pl.reciprocal(denom, approx=True)          # EUP slot
    return jnp.swapaxes(o, 0, 1).reshape(tq, e)


# -----------------------------------------------------------------------------
# Fused stack kernels (grid = (batch, depth); depth axis carries activation)
# -----------------------------------------------------------------------------
def _encoder_stack_kernel(x_ref,
                          wqkv_ref, bqkv_ref, wo_ref, bo_ref,
                          ln1g_ref, ln1b_ref,
                          w1_ref, b1_ref, w2_ref, b2_ref,
                          ln2g_ref, ln2b_ref,
                          o_ref, x_scr, *, heads):
    d = pl.program_id(1)

    @pl.when(d == 0)
    def _():
        x_scr[...] = x_ref[0]

    x = x_scr[...]                                        # (T, E) fp32
    e = x.shape[-1]

    qkv = _linear(x, wqkv_ref[0], bqkv_ref[0])            # (T, 3E)
    a = _mha(qkv[:, :e], qkv[:, e:2 * e], qkv[:, 2 * e:], heads, causal=False)
    a = _linear(a, wo_ref[0], bo_ref[0])
    h1 = _layer_norm(a + x, ln1g_ref[0], ln1b_ref[0])

    f = _ffn(h1, w1_ref[0], b1_ref[0], w2_ref[0], b2_ref[0])
    out = _layer_norm(f + h1, ln2g_ref[0], ln2b_ref[0])
    x_scr[...] = out

    @pl.when(d == pl.num_programs(1) - 1)
    def _():
        o_ref[0] = out.astype(o_ref.dtype)


def _decoder_stack_kernel(y_ref, ctx_ref,
                          s_wqkv_ref, s_bqkv_ref, s_wo_ref, s_bo_ref,
                          ln1g_ref, ln1b_ref,
                          c_wq_ref, c_bq_ref, c_wkv_ref, c_bkv_ref,
                          c_wo_ref, c_bo_ref,
                          ln2g_ref, ln2b_ref,
                          w1_ref, b1_ref, w2_ref, b2_ref,
                          ln3g_ref, ln3b_ref,
                          wp_ref, bp_ref,
                          o_ref, y_scr, *, heads):
    d = pl.program_id(1)

    @pl.when(d == 0)
    def _():
        y_scr[...] = y_ref[0]

    y = y_scr[...]                                        # (Tt, E)
    ctx = ctx_ref[0]                                      # (Ts, E)
    e = y.shape[-1]

    # Masked self-attention.
    qkv = _linear(y, s_wqkv_ref[0], s_bqkv_ref[0])
    a = _mha(qkv[:, :e], qkv[:, e:2 * e], qkv[:, 2 * e:], heads, causal=True)
    a = _linear(a, s_wo_ref[0], s_bo_ref[0])
    y1 = _layer_norm(a + y, ln1g_ref[0], ln1b_ref[0])

    # Cross-attention against encoder context.
    q = _linear(y1, c_wq_ref[0], c_bq_ref[0])
    kv = _linear(ctx, c_wkv_ref[0], c_bkv_ref[0])
    a = _mha(q, kv[:, :e], kv[:, e:], heads, causal=False)
    a = _linear(a, c_wo_ref[0], c_bo_ref[0])
    y2 = _layer_norm(a + y1, ln2g_ref[0], ln2b_ref[0])

    # FFN.
    f = _ffn(y2, w1_ref[0], b1_ref[0], w2_ref[0], b2_ref[0])
    y3 = _layer_norm(f + y2, ln3g_ref[0], ln3b_ref[0])
    y_scr[...] = y3

    # Final layer: fold toProbs in (lane-dense, vocab padded to 128 lanes).
    @pl.when(d == pl.num_programs(1) - 1)
    def _():
        o_ref[0] = _linear(y3, wp_ref[...], bp_ref[...]).astype(o_ref.dtype)


# -----------------------------------------------------------------------------
# pallas_call wrappers
# -----------------------------------------------------------------------------
_ENC_KEYS = ("wqkv", "bqkv", "wo", "bo", "ln1_g", "ln1_b",
             "w1", "b1", "w2", "b2", "ln2_g", "ln2_b")
_DEC_KEYS = ("s_wqkv", "s_bqkv", "s_wo", "s_bo", "ln1_g", "ln1_b",
             "c_wq", "c_bq", "c_wkv", "c_bkv", "c_wo", "c_bo",
             "ln2_g", "ln2_b", "w1", "b1", "w2", "b2", "ln3_g", "ln3_b")


def _depth_spec(arr):
    # Depth-stacked (depth, R, C) weight; select layer by the depth grid axis.
    return pl.BlockSpec((1,) + arr.shape[1:], lambda i, d: (d, 0, 0))


def encoder_stack(x, p, heads):
    b, t, e = x.shape
    depth = p["wqkv"].shape[0]
    return pl.pallas_call(
        functools.partial(_encoder_stack_kernel, heads=heads),
        out_shape=jax.ShapeDtypeStruct((b, t, e), jnp.float32),
        grid=(b, depth),
        in_specs=[pl.BlockSpec((1, t, e), lambda i, d: (i, 0, 0))]
                 + [_depth_spec(p[k]) for k in _ENC_KEYS],
        out_specs=pl.BlockSpec((1, t, e), lambda i, d: (i, 0, 0)),
        scratch_shapes=[pltpu.VMEM((t, e), jnp.float32)],
        compiler_params=pltpu.CompilerParams(
            dimension_semantics=("parallel", "arbitrary"),
            vmem_limit_bytes=VMEM_LIMIT_BYTES),
    )(x, *(p[k] for k in _ENC_KEYS))


def decoder_stack(y, context, p, w_probs, b_probs, heads):
    b, tt, e = y.shape
    ts = context.shape[1]
    depth = p["s_wqkv"].shape[0]
    vp = w_probs.shape[1]
    return pl.pallas_call(
        functools.partial(_decoder_stack_kernel, heads=heads),
        out_shape=jax.ShapeDtypeStruct((b, tt, vp), jnp.float32),
        grid=(b, depth),
        in_specs=[pl.BlockSpec((1, tt, e), lambda i, d: (i, 0, 0)),
                  pl.BlockSpec((1, ts, e), lambda i, d: (i, 0, 0))]
                 + [_depth_spec(p[k]) for k in _DEC_KEYS]
                 + [pl.BlockSpec((e, vp), lambda i, d: (0, 0)),
                    pl.BlockSpec((1, vp), lambda i, d: (0, 0))],
        out_specs=pl.BlockSpec((1, tt, vp), lambda i, d: (i, 0, 0)),
        scratch_shapes=[pltpu.VMEM((tt, e), jnp.float32)],
        compiler_params=pltpu.CompilerParams(
            dimension_semantics=("parallel", "arbitrary"),
            vmem_limit_bytes=VMEM_LIMIT_BYTES),
    )(y, context, *(p[k] for k in _DEC_KEYS), w_probs, b_probs)


# -----------------------------------------------------------------------------
# Forward pass (embedding gathers stay in plain JAX)
# -----------------------------------------------------------------------------
def sum_transformer_forward(params, source, target, *, enc_heads, dec_heads,
                            vocab):
    tok = params["token_embedding"]      # (vocab, emb)
    pos = params["pos_embedding"]        # (max_len, emb)

    t_s = source.shape[1]
    t_t = target.shape[1]
    x = tok[source] + pos[:t_s][None, :, :]
    y = tok[target] + pos[:t_t][None, :, :]

    context = encoder_stack(x, params["encoder"], enc_heads)
    logits_padded = decoder_stack(y, context, params["decoder"],
                                  params["w_probs"], params["b_probs"],
                                  dec_heads)
    return logits_padded[..., :vocab]    # drop the zero lane padding


# -----------------------------------------------------------------------------
# Parameter init (per-layer, fp32) + packing (depth-stacked, bf16 weights)
# -----------------------------------------------------------------------------
def _init_linear(key, fan_in, fan_out):
    w = jax.random.normal(key, (fan_in, fan_out), jnp.float32) * 0.05
    b = jnp.zeros((1, fan_out), jnp.float32)
    return w, b


def _init_encoder_block(key, emb, hidden):
    kqkv, ko, k1, k2 = jax.random.split(key, 4)
    wqkv, bqkv = _init_linear(kqkv, emb, 3 * emb)
    wo, bo = _init_linear(ko, emb, emb)
    w1, b1 = _init_linear(k1, emb, hidden)
    w2, b2 = _init_linear(k2, hidden, emb)
    ones = jnp.ones((1, emb), jnp.float32)
    zeros = jnp.zeros((1, emb), jnp.float32)
    return dict(wqkv=wqkv, bqkv=bqkv, wo=wo, bo=bo,
                w1=w1, b1=b1, w2=w2, b2=b2,
                ln1_g=ones, ln1_b=zeros, ln2_g=ones, ln2_b=zeros)


def _init_decoder_block(key, emb, hidden):
    ksq, kso, kcq, kckv, kco, k1, k2 = jax.random.split(key, 7)
    s_wqkv, s_bqkv = _init_linear(ksq, emb, 3 * emb)
    s_wo, s_bo = _init_linear(kso, emb, emb)
    c_wq, c_bq = _init_linear(kcq, emb, emb)
    c_wkv, c_bkv = _init_linear(kckv, emb, 2 * emb)
    c_wo, c_bo = _init_linear(kco, emb, emb)
    w1, b1 = _init_linear(k1, emb, hidden)
    w2, b2 = _init_linear(k2, hidden, emb)
    ones = jnp.ones((1, emb), jnp.float32)
    zeros = jnp.zeros((1, emb), jnp.float32)
    return dict(s_wqkv=s_wqkv, s_bqkv=s_bqkv, s_wo=s_wo, s_bo=s_bo,
                c_wq=c_wq, c_bq=c_bq, c_wkv=c_wkv, c_bkv=c_bkv,
                c_wo=c_wo, c_bo=c_bo,
                w1=w1, b1=b1, w2=w2, b2=b2,
                ln1_g=ones, ln1_b=zeros, ln2_g=ones, ln2_b=zeros,
                ln3_g=ones, ln3_b=zeros)


_ENC_BF16 = frozenset({"wqkv", "wo", "w1", "w2"})
_DEC_BF16 = frozenset({"s_wqkv", "s_wo", "c_wq", "c_wkv", "c_wo", "w1", "w2"})


def _stack_layers(layers, bf16_keys):
    out = {}
    for k in layers[0]:
        stacked = jnp.stack([layer[k] for layer in layers], axis=0)
        if k in bf16_keys:
            stacked = stacked.astype(jnp.bfloat16)
        out[k] = stacked
    return out


def _pad_lanes(a, n_pad):
    pad = n_pad - a.shape[-1]
    if pad > 0:
        a = jnp.pad(a, [(0, 0)] * (a.ndim - 1) + [(0, pad)])
    return a


def init_params(key, *, emb, vocab, max_len, enc_hidden, enc_depth,
                dec_hidden, dec_depth):
    keys = jax.random.split(key, 3 + enc_depth + dec_depth)
    tok = jax.random.normal(keys[0], (vocab, emb), jnp.float32) * 0.05
    pos = jax.random.normal(keys[1], (max_len, emb), jnp.float32) * 0.05
    wp, bp = _init_linear(keys[2], emb, vocab)

    enc_layers = [_init_encoder_block(keys[3 + i], emb, enc_hidden)
                  for i in range(enc_depth)]
    dec_layers = [_init_decoder_block(keys[3 + enc_depth + i], emb, dec_hidden)
                  for i in range(dec_depth)]

    vocab_pad = ((vocab + 127) // 128) * 128     # lane-dense logits store
    return {
        "token_embedding": tok,
        "pos_embedding": pos,
        "encoder": _stack_layers(enc_layers, _ENC_BF16),
        "decoder": _stack_layers(dec_layers, _DEC_BF16),
        "w_probs": _pad_lanes(wp, vocab_pad).astype(jnp.bfloat16),
        "b_probs": _pad_lanes(bp, vocab_pad),
    }


# -----------------------------------------------------------------------------
if __name__ == "__main__":
    EMB = 32
    VOCAB = 64
    MAX_LEN = 16
    ENC_HEADS = 4
    ENC_HIDDEN = 64
    ENC_DEPTH = 2
    DEC_HEADS = 4
    DEC_HIDDEN = 64
    DEC_DEPTH = 2
    BATCH = 2
    T_SRC = 16
    T_TGT = 8

    assert EMB % ENC_HEADS == 0 and EMB % DEC_HEADS == 0

    root = jax.random.PRNGKey(0)
    k_params, k_src, k_tgt = jax.random.split(root, 3)

    params = init_params(
        k_params, emb=EMB, vocab=VOCAB, max_len=MAX_LEN,
        enc_hidden=ENC_HIDDEN, enc_depth=ENC_DEPTH,
        dec_hidden=DEC_HIDDEN, dec_depth=DEC_DEPTH,
    )

    source = jax.random.randint(k_src, (BATCH, T_SRC), 0, VOCAB, dtype=jnp.int32)
    target = jax.random.randint(k_tgt, (BATCH, T_TGT), 0, VOCAB, dtype=jnp.int32)

    fwd = jax.jit(functools.partial(
        sum_transformer_forward,
        enc_heads=ENC_HEADS, dec_heads=DEC_HEADS, vocab=VOCAB))
    logits = fwd(params, source, target)
    logits = jax.block_until_ready(logits)

    assert logits.shape == (BATCH, T_TGT, VOCAB), logits.shape
    assert jnp.all(jnp.isfinite(logits))
    print("KERNEL_OK")
</pallas_src>

<mosaic_0001>
module attributes {stable_mosaic.version = 11 : i64} {
  func.func @_encoder_stack_kernel(%arg0: i32, %arg1: i32, %arg2: memref<1x16x32xf32, #tpu.memory_space<vmem>>, %arg3: memref<1x32x96xbf16, #tpu.memory_space<vmem>>, %arg4: memref<1x1x96xf32, #tpu.memory_space<vmem>>, %arg5: memref<1x32x32xbf16, #tpu.memory_space<vmem>>, %arg6: memref<1x1x32xf32, #tpu.memory_space<vmem>>, %arg7: memref<1x1x32xf32, #tpu.memory_space<vmem>>, %arg8: memref<1x1x32xf32, #tpu.memory_space<vmem>>, %arg9: memref<1x32x64xbf16, #tpu.memory_space<vmem>>, %arg10: memref<1x1x64xf32, #tpu.memory_space<vmem>>, %arg11: memref<1x64x32xbf16, #tpu.memory_space<vmem>>, %arg12: memref<1x1x32xf32, #tpu.memory_space<vmem>>, %arg13: memref<1x1x32xf32, #tpu.memory_space<vmem>>, %arg14: memref<1x1x32xf32, #tpu.memory_space<vmem>>, %arg15: memref<1x16x32xf32, #tpu.memory_space<vmem>>, %arg16: memref<16x32xf32, #tpu.memory_space<vmem>>) attributes {dimension_semantics = [#tpu.dimension_semantics<parallel>, #tpu.dimension_semantics<arbitrary>], iteration_bounds = array<i64: 2, 2>, scalar_prefetch = 0 : i64, scratch_operands = 1 : i64, tpu.core_type = #tpu.core_type<tc>, window_params = [{transform_indices = @transform_0, window_bounds = array<i64: 1, 16, 32>}, {transform_indices = @transform_1, window_bounds = array<i64: 1, 32, 96>}, {transform_indices = @transform_2, window_bounds = array<i64: 1, 1, 96>}, {transform_indices = @transform_3, window_bounds = array<i64: 1, 32, 32>}, {transform_indices = @transform_4, window_bounds = array<i64: 1, 1, 32>}, {transform_indices = @transform_5, window_bounds = array<i64: 1, 1, 32>}, {transform_indices = @transform_6, window_bounds = array<i64: 1, 1, 32>}, {transform_indices = @transform_7, window_bounds = array<i64: 1, 32, 64>}, {transform_indices = @transform_8, window_bounds = array<i64: 1, 1, 64>}, {transform_indices = @transform_9, window_bounds = array<i64: 1, 64, 32>}, {transform_indices = @transform_10, window_bounds = array<i64: 1, 1, 32>}, {transform_indices = @transform_11, window_bounds = array<i64: 1, 1, 32>}, {transform_indices = @transform_12, window_bounds = array<i64: 1, 1, 32>}, {transform_indices = @transform_13, window_bounds = array<i64: 1, 16, 32>}]} {
    %c0_i32 = arith.constant 0 : i32
    %0 = arith.cmpi eq, %arg1, %c0_i32 : i32
    %1 = arith.extui %0 : i1 to i32
    %c0_i32_0 = arith.constant 0 : i32
    %2 = arith.cmpi ne, %1, %c0_i32_0 : i32
    scf.if %2 {
      %c0_60 = arith.constant 0 : index
      %c0_61 = arith.constant 0 : index
      %c0_62 = arith.constant 0 : index
      %125 = vector.load %arg2[%c0_60, %c0_61, %c0_62] : memref<1x16x32xf32, #tpu.memory_space<vmem>>, vector<1x16x32xf32>
      %126 = vector.shape_cast %125 : vector<1x16x32xf32> to vector<16x32xf32>
      %c0_63 = arith.constant 0 : index
      %c0_64 = arith.constant 0 : index
      %127 = vector.load %arg16[%c0_63, %c0_64] : memref<16x32xf32, #tpu.memory_space<vmem>>, vector<16x32xf32>
      tpu.vector_store %arg16[%c0_63, %c0_64], %126 {strides = array<i32>} : memref<16x32xf32, #tpu.memory_space<vmem>>, vector<16x32xf32>,
    } else {
    }
    %c0 = arith.constant 0 : index
    %c0_1 = arith.constant 0 : index
    %3 = vector.load %arg16[%c0, %c0_1] : memref<16x32xf32, #tpu.memory_space<vmem>>, vector<16x32xf32>
    %c0_2 = arith.constant 0 : index
    %c0_3 = arith.constant 0 : index
    %c0_4 = arith.constant 0 : index
    %4 = vector.load %arg3[%c0_2, %c0_3, %c0_4] : memref<1x32x96xbf16, #tpu.memory_space<vmem>>, vector<1x32x96xbf16>
    %5 = vector.shape_cast %4 : vector<1x32x96xbf16> to vector<32x96xbf16>
    %c0_5 = arith.constant 0 : index
    %c0_6 = arith.constant 0 : index
    %c0_7 = arith.constant 0 : index
    %6 = vector.load %arg4[%c0_5, %c0_6, %c0_7] : memref<1x1x96xf32, #tpu.memory_space<vmem>>, vector<1x1x96xf32>
    %7 = vector.shape_cast %6 : vector<1x1x96xf32> to vector<1x96xf32>
    %8 = arith.truncf %3 : vector<16x32xf32> to vector<16x32xbf16>
    %cst = arith.constant dense<0.000000e+00> : vector<16x96xf32>
    %9 = tpu.matmul %8, %5, %cst {dimension_numbers = #tpu.dot_dimension_numbers<[1], [0], [0], [1], [0, 0, 1, 1], [], []>} : vector<16x32xbf16>, vector<32x96xbf16>, vector<16x96xf32> -> vector<16x96xf32>
    %10 = vector.broadcast %7 : vector<1x96xf32> to vector<16x96xf32>
    %11 = arith.addf %9, %10 : vector<16x96xf32>
    %12 = vector.extract_strided_slice %11 {offsets = [0, 0], sizes = [16, 32], strides = [1, 1]} : vector<16x96xf32> to vector<16x32xf32>
    %13 = vector.extract_strided_slice %11 {offsets = [0, 32], sizes = [16, 32], strides = [1, 1]} : vector<16x96xf32> to vector<16x32xf32>
    %14 = vector.extract_strided_slice %11 {offsets = [0, 64], sizes = [16, 32], strides = [1, 1]} : vector<16x96xf32> to vector<16x32xf32>
    %15 = vector.shape_cast %12 : vector<16x32xf32> to vector<16x4x8xf32>
    %16 = tpu.transpose %15, [1, 0, 2] : vector<16x4x8xf32> -> vector<4x16x8xf32>
    %17 = arith.truncf %16 : vector<4x16x8xf32> to vector<4x16x8xbf16>
    %18 = vector.shape_cast %13 : vector<16x32xf32> to vector<16x4x8xf32>
    %19 = tpu.transpose %18, [1, 0, 2] : vector<16x4x8xf32> -> vector<4x16x8xf32>
    %20 = arith.truncf %19 : vector<4x16x8xf32> to vector<4x16x8xbf16>
    %21 = vector.shape_cast %14 : vector<16x32xf32> to vector<16x4x8xf32>
    %22 = tpu.transpose %21, [1, 0, 2] : vector<16x4x8xf32> -> vector<4x16x8xf32>
    %23 = arith.truncf %22 : vector<4x16x8xf32> to vector<4x16x8xbf16>
    "tpu.trace_start"() <{level = 10 : i32, message = "hqd,hkd->hqk"}> : () -> ()
    %cst_8 = arith.constant dense<0.000000e+00> : vector<4x16x16xf32>
    %24 = tpu.matmul %17, %20, %cst_8 {dimension_numbers = #tpu.dot_dimension_numbers<[2], [2], [1], [1], [0, 0, 0, 1, 1, 1], [0], [0]>} : vector<4x16x8xbf16>, vector<4x16x8xbf16>, vector<4x16x16xf32> -> vector<4x16x16xf32>
    "tpu.trace_stop"() : () -> ()
    %cst_9 = arith.constant 0.353553385 : f32
    %25 = vector.broadcast %cst_9 : f32 to vector<4x16x16xf32>
    %26 = arith.mulf %24, %25 : vector<4x16x16xf32>
    %cst_10 = arith.constant dense<0xFF800000> : vector<4x16xf32>
    %27 = vector.multi_reduction <maximumf>, %26, %cst_10 [2] : vector<4x16x16xf32> to vector<4x16xf32>
    %28 = vector.shape_cast %27 : vector<4x16xf32> to vector<4x16x1xf32>
    %29 = vector.broadcast %28 : vector<4x16x1xf32> to vector<4x16x16xf32>
    %30 = arith.subf %26, %29 : vector<4x16x16xf32>
    %31 = math.exp %30 : vector<4x16x16xf32>
    %cst_11 = arith.constant dense<0.000000e+00> : vector<4x16xf32>
    %32 = vector.multi_reduction <add>, %31, %cst_11 [2] : vector<4x16x16xf32> to vector<4x16xf32>
    %33 = vector.shape_cast %32 : vector<4x16xf32> to vector<4x16x1xf32>
    %34 = arith.truncf %31 : vector<4x16x16xf32> to vector<4x16x16xbf16>
    "tpu.trace_start"() <{level = 10 : i32, message = "hqk,hkd->hqd"}> : () -> ()
    %cst_12 = arith.constant dense<0.000000e+00> : vector<4x16x8xf32>
    %35 = tpu.matmul %34, %23, %cst_12 {dimension_numbers = #tpu.dot_dimension_numbers<[2], [1], [1], [2], [0, 0, 0, 1, 1, 2], [0], [0]>} : vector<4x16x16xbf16>, vector<4x16x8xbf16>, vector<4x16x8xf32> -> vector<4x16x8xf32>
    "tpu.trace_stop"() : () -> ()
    %36 = tpu.reciprocal %33 {approx = true} : vector<4x16x1xf32> -> vector<4x16x1xf32>
    %37 = vector.broadcast %36 : vector<4x16x1xf32> to vector<4x16x8xf32>
    %38 = arith.mulf %35, %37 : vector<4x16x8xf32>
    %39 = tpu.transpose %38, [1, 0, 2] : vector<4x16x8xf32> -> vector<16x4x8xf32>
    %40 = vector.shape_cast %39 : vector<16x4x8xf32> to vector<16x32xf32>
    %c0_13 = arith.constant 0 : index
    %c0_14 = arith.constant 0 : index
    %c0_15 = arith.constant 0 : index
    %41 = vector.load %arg5[%c0_13, %c0_14, %c0_15] : memref<1x32x32xbf16, #tpu.memory_space<vmem>>, vector<1x32x32xbf16>
    %42 = vector.shape_cast %41 : vector<1x32x32xbf16> to vector<32x32xbf16>
    %c0_16 = arith.constant 0 : index
    %c0_17 = arith.constant 0 : index
    %c0_18 = arith.constant 0 : index
    %43 = vector.load %arg6[%c0_16, %c0_17, %c0_18] : memref<1x1x32xf32, #tpu.memory_space<vmem>>, vector<1x1x32xf32>
    %44 = vector.shape_cast %43 : vector<1x1x32xf32> to vector<1x32xf32>
    %45 = arith.truncf %40 : vector<16x32xf32> to vector<16x32xbf16>
    %cst_19 = arith.constant dense<0.000000e+00> : vector<16x32xf32>
    %46 = tpu.matmul %45, %42, %cst_19 {dimension_numbers = #tpu.dot_dimension_numbers<[1], [0], [0], [1], [0, 0, 1, 1], [], []>} : vector<16x32xbf16>, vector<32x32xbf16>, vector<16x32xf32> -> vector<16x32xf32>
    %47 = vector.broadcast %44 : vector<1x32xf32> to vector<16x32xf32>
    %48 = arith.addf %46, %47 : vector<16x32xf32>
    %49 = arith.addf %48, %3 : vector<16x32xf32>
    %c0_20 = arith.constant 0 : index
    %c0_21 = arith.constant 0 : index
    %c0_22 = arith.constant 0 : index
    %50 = vector.load %arg7[%c0_20, %c0_21, %c0_22] : memref<1x1x32xf32, #tpu.memory_space<vmem>>, vector<1x1x32xf32>
    %51 = vector.shape_cast %50 : vector<1x1x32xf32> to vector<1x32xf32>
    %c0_23 = arith.constant 0 : index
    %c0_24 = arith.constant 0 : index
    %c0_25 = arith.constant 0 : index
    %52 = vector.load %arg8[%c0_23, %c0_24, %c0_25] : memref<1x1x32xf32, #tpu.memory_space<vmem>>, vector<1x1x32xf32>
    %53 = vector.shape_cast %52 : vector<1x1x32xf32> to vector<1x32xf32>
    %cst_26 = arith.constant dense<0.000000e+00> : vector<16xf32>
    %54 = vector.multi_reduction <add>, %49, %cst_26 [1] : vector<16x32xf32> to vector<16xf32>
    %55 = vector.shape_cast %54 : vector<16xf32> to vector<16x1xf32>
    %cst_27 = arith.constant 3.200000e+01 : f32
    %56 = vector.broadcast %cst_27 : f32 to vector<16x1xf32>
    %57 = arith.divf %55, %56 : vector<16x1xf32>
    %58 = vector.broadcast %57 : vector<16x1xf32> to vector<16x32xf32>
    %59 = arith.subf %49, %58 : vector<16x32xf32>
    %60 = arith.mulf %59, %59 : vector<16x32xf32>
    %cst_28 = arith.constant dense<0.000000e+00> : vector<16xf32>
    %61 = vector.multi_reduction <add>, %60, %cst_28 [1] : vector<16x32xf32> to vector<16xf32>
    %62 = vector.shape_cast %61 : vector<16xf32> to vector<16x1xf32>
    %cst_29 = arith.constant 3.200000e+01 : f32
    %63 = vector.broadcast %cst_29 : f32 to vector<16x1xf32>
    %64 = arith.divf %62, %63 : vector<16x1xf32>
    %65 = vector.broadcast %57 : vector<16x1xf32> to vector<16x32xf32>
    %66 = arith.subf %49, %65 : vector<16x32xf32>
    %cst_30 = arith.constant 9.99999974E-6 : f32
    %67 = vector.broadcast %cst_30 : f32 to vector<16x1xf32>
    %68 = arith.addf %64, %67 : vector<16x1xf32>
    %69 = math.rsqrt %68 : vector<16x1xf32>
    %70 = vector.broadcast %69 : vector<16x1xf32> to vector<16x32xf32>
    %71 = arith.mulf %66, %70 : vector<16x32xf32>
    %72 = vector.broadcast %51 : vector<1x32xf32> to vector<16x32xf32>
    %73 = arith.mulf %71, %72 : vector<16x32xf32>
    %74 = vector.broadcast %53 : vector<1x32xf32> to vector<16x32xf32>
    %75 = arith.addf %73, %74 : vector<16x32xf32>
    %c0_31 = arith.constant 0 : index
    %c0_32 = arith.constant 0 : index
    %c0_33 = arith.constant 0 : index
    %76 = vector.load %arg9[%c0_31, %c0_32, %c0_33] : memref<1x32x64xbf16, #tpu.memory_space<vmem>>, vector<1x32x64xbf16>
    %77 = vector.shape_cast %76 : vector<1x32x64xbf16> to vector<32x64xbf16>
    %c0_34 = arith.constant 0 : index
    %c0_35 = arith.constant 0 : index
    %c0_36 = arith.constant 0 : index
    %78 = vector.load %arg10[%c0_34, %c0_35, %c0_36] : memref<1x1x64xf32, #tpu.memory_space<vmem>>, vector<1x1x64xf32>
    %79 = vector.shape_cast %78 : vector<1x1x64xf32> to vector<1x64xf32>
    %c0_37 = arith.constant 0 : index
    %c0_38 = arith.constant 0 : index
    %c0_39 = arith.constant 0 : index
    %80 = vector.load %arg11[%c0_37, %c0_38, %c0_39] : memref<1x64x32xbf16, #tpu.memory_space<vmem>>, vector<1x64x32xbf16>
    %81 = vector.shape_cast %80 : vector<1x64x32xbf16> to vector<64x32xbf16>
    %c0_40 = arith.constant 0 : index
    %c0_41 = arith.constant 0 : index
    %c0_42 = arith.constant 0 : index
    %82 = vector.load %arg12[%c0_40, %c0_41, %c0_42] : memref<1x1x32xf32, #tpu.memory_space<vmem>>, vector<1x1x32xf32>
    %83 = vector.shape_cast %82 : vector<1x1x32xf32> to vector<1x32xf32>
    %84 = arith.truncf %75 : vector<16x32xf32> to vector<16x32xbf16>
    %cst_43 = arith.constant dense<0.000000e+00> : vector<16x64xf32>
    %85 = tpu.matmul %84, %77, %cst_43 {dimension_numbers = #tpu.dot_dimension_numbers<[1], [0], [0], [1], [0, 0, 1, 1], [], []>} : vector<16x32xbf16>, vector<32x64xbf16>, vector<16x64xf32> -> vector<16x64xf32>
    %86 = vector.broadcast %79 : vector<1x64xf32> to vector<16x64xf32>
    %87 = arith.addf %85, %86 : vector<16x64xf32>
    %cst_44 = arith.constant 0.000000e+00 : f32
    %88 = vector.broadcast %cst_44 : f32 to vector<16x64xf32>
    %89 = arith.maximumf %87, %88 : vector<16x64xf32>
    %90 = arith.truncf %89 : vector<16x64xf32> to vector<16x64xbf16>
    %cst_45 = arith.constant dense<0.000000e+00> : vector<16x32xf32>
    %91 = tpu.matmul %90, %81, %cst_45 {dimension_numbers = #tpu.dot_dimension_numbers<[1], [0], [0], [1], [0, 0, 1, 1], [], []>} : vector<16x64xbf16>, vector<64x32xbf16>, vector<16x32xf32> -> vector<16x32xf32>
    %92 = vector.broadcast %83 : vector<1x32xf32> to vector<16x32xf32>
    %93 = arith.addf %91, %92 : vector<16x32xf32>
    %94 = arith.addf %93, %75 : vector<16x32xf32>
    %c0_46 = arith.constant 0 : index
    %c0_47 = arith.constant 0 : index
    %c0_48 = arith.constant 0 : index
    %95 = vector.load %arg13[%c0_46, %c0_47, %c0_48] : memref<1x1x32xf32, #tpu.memory_space<vmem>>, vector<1x1x32xf32>
    %96 = vector.shape_cast %95 : vector<1x1x32xf32> to vector<1x32xf32>
    %c0_49 = arith.constant 0 : index
    %c0_50 = arith.constant 0 : index
    %c0_51 = arith.constant 0 : index
    %97 = vector.load %arg14[%c0_49, %c0_50, %c0_51] : memref<1x1x32xf32, #tpu.memory_space<vmem>>, vector<1x1x32xf32>
    %98 = vector.shape_cast %97 : vector<1x1x32xf32> to vector<1x32xf32>
    %cst_52 = arith.constant dense<0.000000e+00> : vector<16xf32>
    %99 = vector.multi_reduction <add>, %94, %cst_52 [1] : vector<16x32xf32> to vector<16xf32>
    %100 = vector.shape_cast %99 : vector<16xf32> to vector<16x1xf32>
    %cst_53 = arith.constant 3.200000e+01 : f32
    %101 = vector.broadcast %cst_53 : f32 to vector<16x1xf32>
    %102 = arith.divf %100, %101 : vector<16x1xf32>
    %103 = vector.broadcast %102 : vector<16x1xf32> to vector<16x32xf32>
    %104 = arith.subf %94, %103 : vector<16x32xf32>
    %105 = arith.mulf %104, %104 : vector<16x32xf32>
    %cst_54 = arith.constant dense<0.000000e+00> : vector<16xf32>
    %106 = vector.multi_reduction <add>, %105, %cst_54 [1] : vector<16x32xf32> to vector<16xf32>
    %107 = vector.shape_cast %106 : vector<16xf32> to vector<16x1xf32>
    %cst_55 = arith.constant 3.200000e+01 : f32
    %108 = vector.broadcast %cst_55 : f32 to vector<16x1xf32>
    %109 = arith.divf %107, %108 : vector<16x1xf32>
    %110 = vector.broadcast %102 : vector<16x1xf32> to vector<16x32xf32>
    %111 = arith.subf %94, %110 : vector<16x32xf32>
    %cst_56 = arith.constant 9.99999974E-6 : f32
    %112 = vector.broadcast %cst_56 : f32 to vector<16x1xf32>
    %113 = arith.addf %109, %112 : vector<16x1xf32>
    %114 = math.rsqrt %113 : vector<16x1xf32>
    %115 = vector.broadcast %114 : vector<16x1xf32> to vector<16x32xf32>
    %116 = arith.mulf %111, %115 : vector<16x32xf32>
    %117 = vector.broadcast %96 : vector<1x32xf32> to vector<16x32xf32>
    %118 = arith.mulf %116, %117 : vector<16x32xf32>
    %119 = vector.broadcast %98 : vector<1x32xf32> to vector<16x32xf32>
    %120 = arith.addf %118, %119 : vector<16x32xf32>
    %c0_57 = arith.constant 0 : index
    %c0_58 = arith.constant 0 : index
    %121 = vector.load %arg16[%c0_57, %c0_58] : memref<16x32xf32, #tpu.memory_space<vmem>>, vector<16x32xf32>
    tpu.vector_store %arg16[%c0_57, %c0_58], %120 {strides = array<i32>} : memref<16x32xf32, #tpu.memory_space<vmem>>, vector<16x32xf32>,
    %c1_i32 = arith.constant 1 : i32
    %122 = arith.cmpi eq, %arg1, %c1_i32 : i32
    %123 = arith.extui %122 : i1 to i32
    %c0_i32_59 = arith.constant 0 : i32
    %124 = arith.cmpi ne, %123, %c0_i32_59 : i32
    scf.if %124 {
      %c0_60 = arith.constant 0 : index
      %c0_61 = arith.constant 0 : index
      %c0_62 = arith.constant 0 : index
      %125 = vector.load %arg15[%c0_60, %c0_61, %c0_62] : memref<1x16x32xf32, #tpu.memory_space<vmem>>, vector<1x16x32xf32>
      %126 = vector.shape_cast %125 : vector<1x16x32xf32> to vector<16x32xf32>
      %127 = vector.shape_cast %120 : vector<16x32xf32> to vector<1x16x32xf32>
      tpu.vector_store %arg15[%c0_60, %c0_61, %c0_62], %127 {strides = array<i32>} : memref<1x16x32xf32, #tpu.memory_space<vmem>>, vector<1x16x32xf32>,
    } else {
    }
    return
  }
  func.func @transform_0(%arg0: i32, %arg1: i32) -> (i32, i32, i32) {
    %c0_i32 = arith.constant 0 : i32
    %c0_i32_0 = arith.constant 0 : i32
    %c0_i32_1 = arith.constant 0 : i32
    return %arg0, %c0_i32, %c0_i32_0 : i32, i32, i32
  }
  func.func @transform_1(%arg0: i32, %arg1: i32) -> (i32, i32, i32) {
    %c0_i32 = arith.constant 0 : i32
    %c0_i32_0 = arith.constant 0 : i32
    %c0_i32_1 = arith.constant 0 : i32
    return %arg1, %c0_i32, %c0_i32_0 : i32, i32, i32
  }
  func.func @transform_2(%arg0: i32, %arg1: i32) -> (i32, i32, i32) {
    %c0_i32 = arith.constant 0 : i32
    %c0_i32_0 = arith.constant 0 : i32
    %c0_i32_1 = arith.constant 0 : i32
    return %arg1, %c0_i32, %c0_i32_0 : i32, i32, i32
  }
  func.func @transform_3(%arg0: i32, %arg1: i32) -> (i32, i32, i32) {
    %c0_i32 = arith.constant 0 : i32
    %c0_i32_0 = arith.constant 0 : i32
    %c0_i32_1 = arith.constant 0 : i32
    return %arg1, %c0_i32, %c0_i32_0 : i32, i32, i32
  }
  func.func @transform_4(%arg0: i32, %arg1: i32) -> (i32, i32, i32) {
    %c0_i32 = arith.constant 0 : i32
    %c0_i32_0 = arith.constant 0 : i32
    %c0_i32_1 = arith.constant 0 : i32
    return %arg1, %c0_i32, %c0_i32_0 : i32, i32, i32
  }
  func.func @transform_5(%arg0: i32, %arg1: i32) -> (i32, i32, i32) {
    %c0_i32 = arith.constant 0 : i32
    %c0_i32_0 = arith.constant 0 : i32
    %c0_i32_1 = arith.constant 0 : i32
    return %arg1, %c0_i32, %c0_i32_0 : i32, i32, i32
  }
  func.func @transform_6(%arg0: i32, %arg1: i32) -> (i32, i32, i32) {
    %c0_i32 = arith.constant 0 : i32
    %c0_i32_0 = arith.constant 0 : i32
    %c0_i32_1 = arith.constant 0 : i32
    return %arg1, %c0_i32, %c0_i32_0 : i32, i32, i32
  }
  func.func @transform_7(%arg0: i32, %arg1: i32) -> (i32, i32, i32) {
    %c0_i32 = arith.constant 0 : i32
    %c0_i32_0 = arith.constant 0 : i32
    %c0_i32_1 = arith.constant 0 : i32
    return %arg1, %c0_i32, %c0_i32_0 : i32, i32, i32
  }
  func.func @transform_8(%arg0: i32, %arg1: i32) -> (i32, i32, i32) {
    %c0_i32 = arith.constant 0 : i32
    %c0_i32_0 = arith.constant 0 : i32
    %c0_i32_1 = arith.constant 0 : i32
    return %arg1, %c0_i32, %c0_i32_0 : i32, i32, i32
  }
  func.func @transform_9(%arg0: i32, %arg1: i32) -> (i32, i32, i32) {
    %c0_i32 = arith.constant 0 : i32
    %c0_i32_0 = arith.constant 0 : i32
    %c0_i32_1 = arith.constant 0 : i32
    return %arg1, %c0_i32, %c0_i32_0 : i32, i32, i32
  }
  func.func @transform_10(%arg0: i32, %arg1: i32) -> (i32, i32, i32) {
    %c0_i32 = arith.constant 0 : i32
    %c0_i32_0 = arith.constant 0 : i32
    %c0_i32_1 = arith.constant 0 : i32
    return %arg1, %c0_i32, %c0_i32_0 : i32, i32, i32
  }
  func.func @transform_11(%arg0: i32, %arg1: i32) -> (i32, i32, i32) {
    %c0_i32 = arith.constant 0 : i32
    %c0_i32_0 = arith.constant 0 : i32
    %c0_i32_1 = arith.constant 0 : i32
    return %arg1, %c0_i32, %c0_i32_0 : i32, i32, i32
  }
  func.func @transform_12(%arg0: i32, %arg1: i32) -> (i32, i32, i32) {
    %c0_i32 = arith.constant 0 : i32
    %c0_i32_0 = arith.constant 0 : i32
    %c0_i32_1 = arith.constant 0 : i32
    return %arg1, %c0_i32, %c0_i32_0 : i32, i32, i32
  }
  func.func @transform_13(%arg0: i32, %arg1: i32) -> (i32, i32, i32) {
    %c0_i32 = arith.constant 0 : i32
    %c0_i32_0 = arith.constant 0 : i32
    %c0_i32_1 = arith.constant 0 : i32
    return %arg0, %c0_i32, %c0_i32_0 : i32, i32, i32
  }
}

module attributes {stable_mosaic.version = 11 : i64} {
  func.func @_decoder_stack_kernel(%arg0: i32, %arg1: i32, %arg2: memref<1x8x32xf32, #tpu.memory_space<vmem>>, %arg3: memref<1x16x32xf32, #tpu.memory_space<vmem>>, %arg4: memref<1x32x96xbf16, #tpu.memory_space<vmem>>, %arg5: memref<1x1x96xf32, #tpu.memory_space<vmem>>, %arg6: memref<1x32x32xbf16, #tpu.memory_space<vmem>>, %arg7: memref<1x1x32xf32, #tpu.memory_space<vmem>>, %arg8: memref<1x1x32xf32, #tpu.memory_space<vmem>>, %arg9: memref<1x1x32xf32, #tpu.memory_space<vmem>>, %arg10: memref<1x32x32xbf16, #tpu.memory_space<vmem>>, %arg11: memref<1x1x32xf32, #tpu.memory_space<vmem>>, %arg12: memref<1x32x64xbf16, #tpu.memory_space<vmem>>, %arg13: memref<1x1x64xf32, #tpu.memory_space<vmem>>, %arg14: memref<1x32x32xbf16, #tpu.memory_space<vmem>>, %arg15: memref<1x1x32xf32, #tpu.memory_space<vmem>>, %arg16: memref<1x1x32xf32, #tpu.memory_space<vmem>>, %arg17: memref<1x1x32xf32, #tpu.memory_space<vmem>>, %arg18: memref<1x32x64xbf16, #tpu.memory_space<vmem>>, %arg19: memref<1x1x64xf32, #tpu.memory_space<vmem>>, %arg20: memref<1x64x32xbf16, #tpu.memory_space<vmem>>, %arg21: memref<1x1x32xf32, #tpu.memory_space<vmem>>, %arg22: memref<1x1x32xf32, #tpu.memory_space<vmem>>, %arg23: memref<1x1x32xf32, #tpu.memory_space<vmem>>, %arg24: memref<32x128xbf16, #tpu.memory_space<vmem>>, %arg25: memref<1x128xf32, #tpu.memory_space<vmem>>, %arg26: memref<1x8x128xf32, #tpu.memory_space<vmem>>, %arg27: memref<8x32xf32, #tpu.memory_space<vmem>>) attributes {dimension_semantics = [#tpu.dimension_semantics<parallel>, #tpu.dimension_semantics<arbitrary>], iteration_bounds = array<i64: 2, 2>, scalar_prefetch = 0 : i64, scratch_operands = 1 : i64, tpu.core_type = #tpu.core_type<tc>, window_params = [{transform_indices = @transform_0, window_bounds = array<i64: 1, 8, 32>}, {transform_indices = @transform_1, window_bounds = array<i64: 1, 16, 32>}, {transform_indices = @transform_2, window_bounds = array<i64: 1, 32, 96>}, {transform_indices = @transform_3, window_bounds = array<i64: 1, 1, 96>}, {transform_indices = @transform_4, window_bounds = array<i64: 1, 32, 32>}, {transform_indices = @transform_5, window_bounds = array<i64: 1, 1, 32>}, {transform_indices = @transform_6, window_bounds = array<i64: 1, 1, 32>}, {transform_indices = @transform_7, window_bounds = array<i64: 1, 1, 32>}, {transform_indices = @transform_8, window_bounds = array<i64: 1, 32, 32>}, {transform_indices = @transform_9, window_bounds = array<i64: 1, 1, 32>}, {transform_indices = @transform_10, window_bounds = array<i64: 1, 32, 64>}, {transform_indices = @transform_11, window_bounds = array<i64: 1, 1, 64>}, {transform_indices = @transform_12, window_bounds = array<i64: 1, 32, 32>}, {transform_indices = @transform_13, window_bounds = array<i64: 1, 1, 32>}, {transform_indices = @transform_14, window_bounds = array<i64: 1, 1, 32>}, {transform_indices = @transform_15, window_bounds = array<i64: 1, 1, 32>}, {transform_indices = @transform_16, window_bounds = array<i64: 1, 32, 64>}, {transform_indices = @transform_17, window_bounds = array<i64: 1, 1, 64>}, {transform_indices = @transform_18, window_bounds = array<i64: 1, 64, 32>}, {transform_indices = @transform_19, window_bounds = array<i64: 1, 1, 32>}, {transform_indices = @transform_20, window_bounds = array<i64: 1, 1, 32>}, {transform_indices = @transform_21, window_bounds = array<i64: 1, 1, 32>}, {pipeline_mode = #tpu.pipeline_mode<synchronous>, transform_indices = @transform_22, window_bounds = array<i64: 32, 128>}, {pipeline_mode = #tpu.pipeline_mode<synchronous>, transform_indices = @transform_23, window_bounds = array<i64: 1, 128>}, {transform_indices = @transform_24, window_bounds = array<i64: 1, 8, 128>}]} {
    %c0_i32 = arith.constant 0 : i32
    %0 = arith.cmpi eq, %arg1, %c0_i32 : i32
    %1 = arith.extui %0 : i1 to i32
    %c0_i32_0 = arith.constant 0 : i32
    %2 = arith.cmpi ne, %1, %c0_i32_0 : i32
    scf.if %2 {
      %c0_101 = arith.constant 0 : index
      %c0_102 = arith.constant 0 : index
      %c0_103 = arith.constant 0 : index
      %214 = vector.load %arg2[%c0_101, %c0_102, %c0_103] : memref<1x8x32xf32, #tpu.memory_space<vmem>>, vector<1x8x32xf32>
      %215 = vector.shape_cast %214 : vector<1x8x32xf32> to vector<8x32xf32>
      %c0_104 = arith.constant 0 : index
      %c0_105 = arith.constant 0 : index
      %216 = vector.load %arg27[%c0_104, %c0_105] : memref<8x32xf32, #tpu.memory_space<vmem>>, vector<8x32xf32>
      tpu.vector_store %arg27[%c0_104, %c0_105], %215 {strides = array<i32>} : memref<8x32xf32, #tpu.memory_space<vmem>>, vector<8x32xf32>,
    } else {
    }
    %c0 = arith.constant 0 : index
    %c0_1 = arith.constant 0 : index
    %3 = vector.load %arg27[%c0, %c0_1] : memref<8x32xf32, #tpu.memory_space<vmem>>, vector<8x32xf32>
    %c0_2 = arith.constant 0 : index
    %c0_3 = arith.constant 0 : index
    %c0_4 = arith.constant 0 : index
    %4 = vector.load %arg3[%c0_2, %c0_3, %c0_4] : memref<1x16x32xf32, #tpu.memory_space<vmem>>, vector<1x16x32xf32>
    %5 = vector.shape_cast %4 : vector<1x16x32xf32> to vector<16x32xf32>
    %c0_5 = arith.constant 0 : index
    %c0_6 = arith.constant 0 : index
    %c0_7 = arith.constant 0 : index
    %6 = vector.load %arg4[%c0_5, %c0_6, %c0_7] : memref<1x32x96xbf16, #tpu.memory_space<vmem>>, vector<1x32x96xbf16>
    %7 = vector.shape_cast %6 : vector<1x32x96xbf16> to vector<32x96xbf16>
    %c0_8 = arith.constant 0 : index
    %c0_9 = arith.constant 0 : index
    %c0_10 = arith.constant 0 : index
    %8 = vector.load %arg5[%c0_8, %c0_9, %c0_10] : memref<1x1x96xf32, #tpu.memory_space<vmem>>, vector<1x1x96xf32>
    %9 = vector.shape_cast %8 : vector<1x1x96xf32> to vector<1x96xf32>
    %10 = arith.truncf %3 : vector<8x32xf32> to vector<8x32xbf16>
    %cst = arith.constant dense<0.000000e+00> : vector<8x96xf32>
    %11 = tpu.matmul %10, %7, %cst {dimension_numbers = #tpu.dot_dimension_numbers<[1], [0], [0], [1], [0, 0, 1, 1], [], []>} : vector<8x32xbf16>, vector<32x96xbf16>, vector<8x96xf32> -> vector<8x96xf32>
    %12 = vector.broadcast %9 : vector<1x96xf32> to vector<8x96xf32>
    %13 = arith.addf %11, %12 : vector<8x96xf32>
    %14 = vector.extract_strided_slice %13 {offsets = [0, 0], sizes = [8, 32], strides = [1, 1]} : vector<8x96xf32> to vector<8x32xf32>
    %15 = vector.extract_strided_slice %13 {offsets = [0, 32], sizes = [8, 32], strides = [1, 1]} : vector<8x96xf32> to vector<8x32xf32>
    %16 = vector.extract_strided_slice %13 {offsets = [0, 64], sizes = [8, 32], strides = [1, 1]} : vector<8x96xf32> to vector<8x32xf32>
    %17 = vector.shape_cast %14 : vector<8x32xf32> to vector<8x4x8xf32>
    %18 = tpu.transpose %17, [1, 0, 2] : vector<8x4x8xf32> -> vector<4x8x8xf32>
    %19 = arith.truncf %18 : vector<4x8x8xf32> to vector<4x8x8xbf16>
    %20 = vector.shape_cast %15 : vector<8x32xf32> to vector<8x4x8xf32>
    %21 = tpu.transpose %20, [1, 0, 2] : vector<8x4x8xf32> -> vector<4x8x8xf32>
    %22 = arith.truncf %21 : vector<4x8x8xf32> to vector<4x8x8xbf16>
    %23 = vector.shape_cast %16 : vector<8x32xf32> to vector<8x4x8xf32>
    %24 = tpu.transpose %23, [1, 0, 2] : vector<8x4x8xf32> -> vector<4x8x8xf32>
    %25 = arith.truncf %24 : vector<4x8x8xf32> to vector<4x8x8xbf16>
    "tpu.trace_start"() <{level = 10 : i32, message = "hqd,hkd->hqk"}> : () -> ()
    %cst_11 = arith.constant dense<0.000000e+00> : vector<4x8x8xf32>
    %26 = tpu.matmul %19, %22, %cst_11 {dimension_numbers = #tpu.dot_dimension_numbers<[2], [2], [1], [1], [0, 0, 0, 1, 1, 1], [0], [0]>} : vector<4x8x8xbf16>, vector<4x8x8xbf16>, vector<4x8x8xf32> -> vector<4x8x8xf32>
    "tpu.trace_stop"() : () -> ()
    %cst_12 = arith.constant 0.353553385 : f32
    %27 = vector.broadcast %cst_12 : f32 to vector<4x8x8xf32>
    %28 = arith.mulf %26, %27 : vector<4x8x8xf32>
    %29 = tpu.iota {dimensions = array<i32: 0>} : vector<8x8xi32>
    %30 = tpu.iota {dimensions = array<i32: 1>} : vector<8x8xi32>
    %31 = arith.cmpi sle, %30, %29 : vector<8x8xi32>
    %32 = vector.shape_cast %31 : vector<8x8xi1> to vector<1x8x8xi1>
    %cst_13 = arith.constant -1.000000e+30 : f32
    %33 = vector.shape_cast %32 : vector<1x8x8xi1> to vector<1x8x8xi1>
    %34 = vector.broadcast %33 : vector<1x8x8xi1> to vector<4x8x8xi1>
    %35 = vector.broadcast %cst_13 : f32 to vector<4x8x8xf32>
    %36 = arith.select %34, %28, %35 : vector<4x8x8xi1>, vector<4x8x8xf32>
    %cst_14 = arith.constant dense<0xFF800000> : vector<4x8xf32>
    %37 = vector.multi_reduction <maximumf>, %36, %cst_14 [2] : vector<4x8x8xf32> to vector<4x8xf32>
    %38 = vector.shape_cast %37 : vector<4x8xf32> to vector<4x8x1xf32>
    %39 = vector.broadcast %38 : vector<4x8x1xf32> to vector<4x8x8xf32>
    %40 = arith.subf %36, %39 : vector<4x8x8xf32>
    %41 = math.exp %40 : vector<4x8x8xf32>
    %cst_15 = arith.constant dense<0.000000e+00> : vector<4x8xf32>
    %42 = vector.multi_reduction <add>, %41, %cst_15 [2] : vector<4x8x8xf32> to vector<4x8xf32>
    %43 = vector.shape_cast %42 : vector<4x8xf32> to vector<4x8x1xf32>
    %44 = arith.truncf %41 : vector<4x8x8xf32> to vector<4x8x8xbf16>
    "tpu.trace_start"() <{level = 10 : i32, message = "hqk,hkd->hqd"}> : () -> ()
    %cst_16 = arith.constant dense<0.000000e+00> : vector<4x8x8xf32>
    %45 = tpu.matmul %44, %25, %cst_16 {dimension_numbers = #tpu.dot_dimension_numbers<[2], [1], [1], [2], [0, 0, 0, 1, 1, 2], [0], [0]>} : vector<4x8x8xbf16>, vector<4x8x8xbf16>, vector<4x8x8xf32> -> vector<4x8x8xf32>
    "tpu.trace_stop"() : () -> ()
    %46 = tpu.reciprocal %43 {approx = true} : vector<4x8x1xf32> -> vector<4x8x1xf32>
    %47 = vector.broadcast %46 : vector<4x8x1xf32> to vector<4x8x8xf32>
    %48 = arith.mulf %45, %47 : vector<4x8x8xf32>
    %49 = tpu.transpose %48, [1, 0, 2] : vector<4x8x8xf32> -> vector<8x4x8xf32>
    %50 = vector.shape_cast %49 : vector<8x4x8xf32> to vector<8x32xf32>
    %c0_17 = arith.constant 0 : index
    %c0_18 = arith.constant 0 : index
    %c0_19 = arith.constant 0 : index
    %51 = vector.load %arg6[%c0_17, %c0_18, %c0_19] : memref<1x32x32xbf16, #tpu.memory_space<vmem>>, vector<1x32x32xbf16>
    %52 = vector.shape_cast %51 : vector<1x32x32xbf16> to vector<32x32xbf16>
    %c0_20 = arith.constant 0 : index
    %c0_21 = arith.constant 0 : index
    %c0_22 = arith.constant 0 : index
    %53 = vector.load %arg7[%c0_20, %c0_21, %c0_22] : memref<1x1x32xf32, #tpu.memory_space<vmem>>, vector<1x1x32xf32>
    %54 = vector.shape_cast %53 : vector<1x1x32xf32> to vector<1x32xf32>
    %55 = arith.truncf %50 : vector<8x32xf32> to vector<8x32xbf16>
    %cst_23 = arith.constant dense<0.000000e+00> : vector<8x32xf32>
    %56 = tpu.matmul %55, %52, %cst_23 {dimension_numbers = #tpu.dot_dimension_numbers<[1], [0], [0], [1], [0, 0, 1, 1], [], []>} : vector<8x32xbf16>, vector<32x32xbf16>, vector<8x32xf32> -> vector<8x32xf32>
    %57 = vector.broadcast %54 : vector<1x32xf32> to vector<8x32xf32>
    %58 = arith.addf %56, %57 : vector<8x32xf32>
    %59 = arith.addf %58, %3 : vector<8x32xf32>
    %c0_24 = arith.constant 0 : index
    %c0_25 = arith.constant 0 : index
    %c0_26 = arith.constant 0 : index
    %60 = vector.load %arg8[%c0_24, %c0_25, %c0_26] : memref<1x1x32xf32, #tpu.memory_space<vmem>>, vector<1x1x32xf32>
    %61 = vector.shape_cast %60 : vector<1x1x32xf32> to vector<1x32xf32>
    %c0_27 = arith.constant 0 : index
    %c0_28 = arith.constant 0 : index
    %c0_29 = arith.constant 0 : index
    %62 = vector.load %arg9[%c0_27, %c0_28, %c0_29] : memref<1x1x32xf32, #tpu.memory_space<vmem>>, vector<1x1x32xf32>
    %63 = vector.shape_cast %62 : vector<1x1x32xf32> to vector<1x32xf32>
    %cst_30 = arith.constant dense<0.000000e+00> : vector<8xf32>
    %64 = vector.multi_reduction <add>, %59, %cst_30 [1] : vector<8x32xf32> to vector<8xf32>
    %65 = vector.shape_cast %64 : vector<8xf32> to vector<8x1xf32>
    %cst_31 = arith.constant 3.200000e+01 : f32
    %66 = vector.broadcast %cst_31 : f32 to vector<8x1xf32>
    %67 = arith.divf %65, %66 : vector<8x1xf32>
    %68 = vector.broadcast %67 : vector<8x1xf32> to vector<8x32xf32>
    %69 = arith.subf %59, %68 : vector<8x32xf32>
    %70 = arith.mulf %69, %69 : vector<8x32xf32>
    %cst_32 = arith.constant dense<0.000000e+00> : vector<8xf32>
    %71 = vector.multi_reduction <add>, %70, %cst_32 [1] : vector<8x32xf32> to vector<8xf32>
    %72 = vector.shape_cast %71 : vector<8xf32> to vector<8x1xf32>
    %cst_33 = arith.constant 3.200000e+01 : f32
    %73 = vector.broadcast %cst_33 : f32 to vector<8x1xf32>
    %74 = arith.divf %72, %73 : vector<8x1xf32>
    %75 = vector.broadcast %67 : vector<8x1xf32> to vector<8x32xf32>
    %76 = arith.subf %59, %75 : vector<8x32xf32>
    %cst_34 = arith.constant 9.99999974E-6 : f32
    %77 = vector.broadcast %cst_34 : f32 to vector<8x1xf32>
    %78 = arith.addf %74, %77 : vector<8x1xf32>
    %79 = math.rsqrt %78 : vector<8x1xf32>
    %80 = vector.broadcast %79 : vector<8x1xf32> to vector<8x32xf32>
    %81 = arith.mulf %76, %80 : vector<8x32xf32>
    %82 = vector.broadcast %61 : vector<1x32xf32> to vector<8x32xf32>
    %83 = arith.mulf %81, %82 : vector<8x32xf32>
    %84 = vector.broadcast %63 : vector<1x32xf32> to vector<8x32xf32>
    %85 = arith.addf %83, %84 : vector<8x32xf32>
    %c0_35 = arith.constant 0 : index
    %c0_36 = arith.constant 0 : index
    %c0_37 = arith.constant 0 : index
    %86 = vector.load %arg10[%c0_35, %c0_36, %c0_37] : memref<1x32x32xbf16, #tpu.memory_space<vmem>>, vector<1x32x32xbf16>
    %87 = vector.shape_cast %86 : vector<1x32x32xbf16> to vector<32x32xbf16>
    %c0_38 = arith.constant 0 : index
    %c0_39 = arith.constant 0 : index
    %c0_40 = arith.constant 0 : index
    %88 = vector.load %arg11[%c0_38, %c0_39, %c0_40] : memref<1x1x32xf32, #tpu.memory_space<vmem>>, vector<1x1x32xf32>
    %89 = vector.shape_cast %88 : vector<1x1x32xf32> to vector<1x32xf32>
    %90 = arith.truncf %85 : vector<8x32xf32> to vector<8x32xbf16>
    %cst_41 = arith.constant dense<0.000000e+00> : vector<8x32xf32>
    %91 = tpu.matmul %90, %87, %cst_41 {dimension_numbers = #tpu.dot_dimension_numbers<[1], [0], [0], [1], [0, 0, 1, 1], [], []>} : vector<8x32xbf16>, vector<32x32xbf16>, vector<8x32xf32> -> vector<8x32xf32>
    %92 = vector.broadcast %89 : vector<1x32xf32> to vector<8x32xf32>
    %93 = arith.addf %91, %92 : vector<8x32xf32>
    %c0_42 = arith.constant 0 : index
    %c0_43 = arith.constant 0 : index
    %c0_44 = arith.constant 0 : index
    %94 = vector.load %arg12[%c0_42, %c0_43, %c0_44] : memref<1x32x64xbf16, #tpu.memory_space<vmem>>, vector<1x32x64xbf16>
    %95 = vector.shape_cast %94 : vector<1x32x64xbf16> to vector<32x64xbf16>
    %c0_45 = arith.constant 0 : index
    %c0_46 = arith.constant 0 : index
    %c0_47 = arith.constant 0 : index
    %96 = vector.load %arg13[%c0_45, %c0_46, %c0_47] : memref<1x1x64xf32, #tpu.memory_space<vmem>>, vector<1x1x64xf32>
    %97 = vector.shape_cast %96 : vector<1x1x64xf32> to vector<1x64xf32>
    %98 = arith.truncf %5 : vector<16x32xf32> to vector<16x32xbf16>
    %cst_48 = arith.constant dense<0.000000e+00> : vector<16x64xf32>
    %99 = tpu.matmul %98, %95, %cst_48 {dimension_numbers = #tpu.dot_dimension_numbers<[1], [0], [0], [1], [0, 0, 1, 1], [], []>} : vector<16x32xbf16>, vector<32x64xbf16>, vector<16x64xf32> -> vector<16x64xf32>
    %100 = vector.broadcast %97 : vector<1x64xf32> to vector<16x64xf32>
    %101 = arith.addf %99, %100 : vector<16x64xf32>
    %102 = vector.extract_strided_slice %101 {offsets = [0, 0], sizes = [16, 32], strides = [1, 1]} : vector<16x64xf32> to vector<16x32xf32>
    %103 = vector.extract_strided_slice %101 {offsets = [0, 32], sizes = [16, 32], strides = [1, 1]} : vector<16x64xf32> to vector<16x32xf32>
    %104 = vector.shape_cast %93 : vector<8x32xf32> to vector<8x4x8xf32>
    %105 = tpu.transpose %104, [1, 0, 2] : vector<8x4x8xf32> -> vector<4x8x8xf32>
    %106 = arith.truncf %105 : vector<4x8x8xf32> to vector<4x8x8xbf16>
    %107 = vector.shape_cast %102 : vector<16x32xf32> to vector<16x4x8xf32>
    %108 = tpu.transpose %107, [1, 0, 2] : vector<16x4x8xf32> -> vector<4x16x8xf32>
    %109 = arith.truncf %108 : vector<4x16x8xf32> to vector<4x16x8xbf16>
    %110 = vector.shape_cast %103 : vector<16x32xf32> to vector<16x4x8xf32>
    %111 = tpu.transpose %110, [1, 0, 2] : vector<16x4x8xf32> -> vector<4x16x8xf32>
    %112 = arith.truncf %111 : vector<4x16x8xf32> to vector<4x16x8xbf16>
    "tpu.trace_start"() <{level = 10 : i32, message = "hqd,hkd->hqk"}> : () -> ()
    %cst_49 = arith.constant dense<0.000000e+00> : vector<4x8x16xf32>
    %113 = tpu.matmul %106, %109, %cst_49 {dimension_numbers = #tpu.dot_dimension_numbers<[2], [2], [1], [1], [0, 0, 0, 1, 1, 1], [0], [0]>} : vector<4x8x8xbf16>, vector<4x16x8xbf16>, vector<4x8x16xf32> -> vector<4x8x16xf32>
    "tpu.trace_stop"() : () -> ()
    %cst_50 = arith.constant 0.353553385 : f32
    %114 = vector.broadcast %cst_50 : f32 to vector<4x8x16xf32>
    %115 = arith.mulf %113, %114 : vector<4x8x16xf32>
    %cst_51 = arith.constant dense<0xFF800000> : vector<4x8xf32>
    %116 = vector.multi_reduction <maximumf>, %115, %cst_51 [2] : vector<4x8x16xf32> to vector<4x8xf32>
    %117 = vector.shape_cast %116 : vector<4x8xf32> to vector<4x8x1xf32>
    %118 = vector.broadcast %117 : vector<4x8x1xf32> to vector<4x8x16xf32>
    %119 = arith.subf %115, %118 : vector<4x8x16xf32>
    %120 = math.exp %119 : vector<4x8x16xf32>
    %cst_52 = arith.constant dense<0.000000e+00> : vector<4x8xf32>
    %121 = vector.multi_reduction <add>, %120, %cst_52 [2] : vector<4x8x16xf32> to vector<4x8xf32>
    %122 = vector.shape_cast %121 : vector<4x8xf32> to vector<4x8x1xf32>
    %123 = arith.truncf %120 : vector<4x8x16xf32> to vector<4x8x16xbf16>
    "tpu.trace_start"() <{level = 10 : i32, message = "hqk,hkd->hqd"}> : () -> ()
    %cst_53 = arith.constant dense<0.000000e+00> : vector<4x8x8xf32>
    %124 = tpu.matmul %123, %112, %cst_53 {dimension_numbers = #tpu.dot_dimension_numbers<[2], [1], [1], [2], [0, 0, 0, 1, 1, 2], [0], [0]>} : vector<4x8x16xbf16>, vector<4x16x8xbf16>, vector<4x8x8xf32> -> vector<4x8x8xf32>
    "tpu.trace_stop"() : () -> ()
    %125 = tpu.reciprocal %122 {approx = true} : vector<4x8x1xf32> -> vector<4x8x1xf32>
    %126 = vector.broadcast %125 : vector<4x8x1xf32> to vector<4x8x8xf32>
    %127 = arith.mulf %124, %126 : vector<4x8x8xf32>
    %128 = tpu.transpose %127, [1, 0, 2] : vector<4x8x8xf32> -> vector<8x4x8xf32>
    %129 = vector.shape_cast %128 : vector<8x4x8xf32> to vector<8x32xf32>
    %c0_54 = arith.constant 0 : index
    %c0_55 = arith.constant 0 : index
    %c0_56 = arith.constant 0 : index
    %130 = vector.load %arg14[%c0_54, %c0_55, %c0_56] : memref<1x32x32xbf16, #tpu.memory_space<vmem>>, vector<1x32x32xbf16>
    %131 = vector.shape_cast %130 : vector<1x32x32xbf16> to vector<32x32xbf16>
    %c0_57 = arith.constant 0 : index
    %c0_58 = arith.constant 0 : index
    %c0_59 = arith.constant 0 : index
    %132 = vector.load %arg15[%c0_57, %c0_58, %c0_59] : memref<1x1x32xf32, #tpu.memory_space<vmem>>, vector<1x1x32xf32>
    %133 = vector.shape_cast %132 : vector<1x1x32xf32> to vector<1x32xf32>
    %134 = arith.truncf %129 : vector<8x32xf32> to vector<8x32xbf16>
    %cst_60 = arith.constant dense<0.000000e+00> : vector<8x32xf32>
    %135 = tpu.matmul %134, %131, %cst_60 {dimension_numbers = #tpu.dot_dimension_numbers<[1], [0], [0], [1], [0, 0, 1, 1], [], []>} : vector<8x32xbf16>, vector<32x32xbf16>, vector<8x32xf32> -> vector<8x32xf32>
    %136 = vector.broadcast %133 : vector<1x32xf32> to vector<8x32xf32>
    %137 = arith.addf %135, %136 : vector<8x32xf32>
    %138 = arith.addf %137, %85 : vector<8x32xf32>
    %c0_61 = arith.constant 0 : index
    %c0_62 = arith.constant 0 : index
    %c0_63 = arith.constant 0 : index
    %139 = vector.load %arg16[%c0_61, %c0_62, %c0_63] : memref<1x1x32xf32, #tpu.memory_space<vmem>>, vector<1x1x32xf32>
    %140 = vector.shape_cast %139 : vector<1x1x32xf32> to vector<1x32xf32>
    %c0_64 = arith.constant 0 : index
    %c0_65 = arith.constant 0 : index
    %c0_66 = arith.constant 0 : index
    %141 = vector.load %arg17[%c0_64, %c0_65, %c0_66] : memref<1x1x32xf32, #tpu.memory_space<vmem>>, vector<1x1x32xf32>
    %142 = vector.shape_cast %141 : vector<1x1x32xf32> to vector<1x32xf32>
    %cst_67 = arith.constant dense<0.000000e+00> : vector<8xf32>
    %143 = vector.multi_reduction <add>, %138, %cst_67 [1] : vector<8x32xf32> to vector<8xf32>
    %144 = vector.shape_cast %143 : vector<8xf32> to vector<8x1xf32>
    %cst_68 = arith.constant 3.200000e+01 : f32
    %145 = vector.broadcast %cst_68 : f32 to vector<8x1xf32>
    %146 = arith.divf %144, %145 : vector<8x1xf32>
    %147 = vector.broadcast %146 : vector<8x1xf32> to vector<8x32xf32>
    %148 = arith.subf %138, %147 : vector<8x32xf32>
    %149 = arith.mulf %148, %148 : vector<8x32xf32>
    %cst_69 = arith.constant dense<0.000000e+00> : vector<8xf32>
    %150 = vector.multi_reduction <add>, %149, %cst_69 [1] : vector<8x32xf32> to vector<8xf32>
    %151 = vector.shape_cast %150 : vector<8xf32> to vector<8x1xf32>
    %cst_70 = arith.constant 3.200000e+01 : f32
    %152 = vector.broadcast %cst_70 : f32 to vector<8x1xf32>
    %153 = arith.divf %151, %152 : vector<8x1xf32>
    %154 = vector.broadcast %146 : vector<8x1xf32> to vector<8x32xf32>
    %155 = arith.subf %138, %154 : vector<8x32xf32>
    %cst_71 = arith.constant 9.99999974E-6 : f32
    %156 = vector.broadcast %cst_71 : f32 to vector<8x1xf32>
    %157 = arith.addf %153, %156 : vector<8x1xf32>
    %158 = math.rsqrt %157 : vector<8x1xf32>
    %159 = vector.broadcast %158 : vector<8x1xf32> to vector<8x32xf32>
    %160 = arith.mulf %155, %159 : vector<8x32xf32>
    %161 = vector.broadcast %140 : vector<1x32xf32> to vector<8x32xf32>
    %162 = arith.mulf %160, %161 : vector<8x32xf32>
    %163 = vector.broadcast %142 : vector<1x32xf32> to vector<8x32xf32>
    %164 = arith.addf %162, %163 : vector<8x32xf32>
    %c0_72 = arith.constant 0 : index
    %c0_73 = arith.constant 0 : index
    %c0_74 = arith.constant 0 : index
    %165 = vector.load %arg18[%c0_72, %c0_73, %c0_74] : memref<1x32x64xbf16, #tpu.memory_space<vmem>>, vector<1x32x64xbf16>
    %166 = vector.shape_cast %165 : vector<1x32x64xbf16> to vector<32x64xbf16>
    %c0_75 = arith.constant 0 : index
    %c0_76 = arith.constant 0 : index
    %c0_77 = arith.constant 0 : index
    %167 = vector.load %arg19[%c0_75, %c0_76, %c0_77] : memref<1x1x64xf32, #tpu.memory_space<vmem>>, vector<1x1x64xf32>
    %168 = vector.shape_cast %167 : vector<1x1x64xf32> to vector<1x64xf32>
    %c0_78 = arith.constant 0 : index
    %c0_79 = arith.constant 0 : index
    %c0_80 = arith.constant 0 : index
    %169 = vector.load %arg20[%c0_78, %c0_79, %c0_80] : memref<1x64x32xbf16, #tpu.memory_space<vmem>>, vector<1x64x32xbf16>
    %170 = vector.shape_cast %169 : vector<1x64x32xbf16> to vector<64x32xbf16>
    %c0_81 = arith.constant 0 : index
    %c0_82 = arith.constant 0 : index
    %c0_83 = arith.constant 0 : index
    %171 = vector.load %arg21[%c0_81, %c0_82, %c0_83] : memref<1x1x32xf32, #tpu.memory_space<vmem>>, vector<1x1x32xf32>
    %172 = vector.shape_cast %171 : vector<1x1x32xf32> to vector<1x32xf32>
    %173 = arith.truncf %164 : vector<8x32xf32> to vector<8x32xbf16>
    %cst_84 = arith.constant dense<0.000000e+00> : vector<8x64xf32>
    %174 = tpu.matmul %173, %166, %cst_84 {dimension_numbers = #tpu.dot_dimension_numbers<[1], [0], [0], [1], [0, 0, 1, 1], [], []>} : vector<8x32xbf16>, vector<32x64xbf16>, vector<8x64xf32> -> vector<8x64xf32>
    %175 = vector.broadcast %168 : vector<1x64xf32> to vector<8x64xf32>
    %176 = arith.addf %174, %175 : vector<8x64xf32>
    %cst_85 = arith.constant 0.000000e+00 : f32
    %177 = vector.broadcast %cst_85 : f32 to vector<8x64xf32>
    %178 = arith.maximumf %176, %177 : vector<8x64xf32>
    %179 = arith.truncf %178 : vector<8x64xf32> to vector<8x64xbf16>
    %cst_86 = arith.constant dense<0.000000e+00> : vector<8x32xf32>
    %180 = tpu.matmul %179, %170, %cst_86 {dimension_numbers = #tpu.dot_dimension_numbers<[1], [0], [0], [1], [0, 0, 1, 1], [], []>} : vector<8x64xbf16>, vector<64x32xbf16>, vector<8x32xf32> -> vector<8x32xf32>
    %181 = vector.broadcast %172 : vector<1x32xf32> to vector<8x32xf32>
    %182 = arith.addf %180, %181 : vector<8x32xf32>
    %183 = arith.addf %182, %164 : vector<8x32xf32>
    %c0_87 = arith.constant 0 : index
    %c0_88 = arith.constant 0 : index
    %c0_89 = arith.constant 0 : index
    %184 = vector.load %arg22[%c0_87, %c0_88, %c0_89] : memref<1x1x32xf32, #tpu.memory_space<vmem>>, vector<1x1x32xf32>
    %185 = vector.shape_cast %184 : vector<1x1x32xf32> to vector<1x32xf32>
    %c0_90 = arith.constant 0 : index
    %c0_91 = arith.constant 0 : index
    %c0_92 = arith.constant 0 : index
    %186 = vector.load %arg23[%c0_90, %c0_91, %c0_92] : memref<1x1x32xf32, #tpu.memory_space<vmem>>, vector<1x1x32xf32>
    %187 = vector.shape_cast %186 : vector<1x1x32xf32> to vector<1x32xf32>
    %cst_93 = arith.constant dense<0.000000e+00> : vector<8xf32>
    %188 = vector.multi_reduction <add>, %183, %cst_93 [1] : vector<8x32xf32> to vector<8xf32>
    %189 = vector.shape_cast %188 : vector<8xf32> to vector<8x1xf32>
    %cst_94 = arith.constant 3.200000e+01 : f32
    %190 = vector.broadcast %cst_94 : f32 to vector<8x1xf32>
    %191 = arith.divf %189, %190 : vector<8x1xf32>
    %192 = vector.broadcast %191 : vector<8x1xf32> to vector<8x32xf32>
    %193 = arith.subf %183, %192 : vector<8x32xf32>
    %194 = arith.mulf %193, %193 : vector<8x32xf32>
    %cst_95 = arith.constant dense<0.000000e+00> : vector<8xf32>
    %195 = vector.multi_reduction <add>, %194, %cst_95 [1] : vector<8x32xf32> to vector<8xf32>
    %196 = vector.shape_cast %195 : vector<8xf32> to vector<8x1xf32>
    %cst_96 = arith.constant 3.200000e+01 : f32
    %197 = vector.broadcast %cst_96 : f32 to vector<8x1xf32>
    %198 = arith.divf %196, %197 : vector<8x1xf32>
    %199 = vector.broadcast %191 : vector<8x1xf32> to vector<8x32xf32>
    %200 = arith.subf %183, %199 : vector<8x32xf32>
    %cst_97 = arith.constant 9.99999974E-6 : f32
    %201 = vector.broadcast %cst_97 : f32 to vector<8x1xf32>
    %202 = arith.addf %198, %201 : vector<8x1xf32>
    %203 = math.rsqrt %202 : vector<8x1xf32>
    %204 = vector.broadcast %203 : vector<8x1xf32> to vector<8x32xf32>
    %205 = arith.mulf %200, %204 : vector<8x32xf32>
    %206 = vector.broadcast %185 : vector<1x32xf32> to vector<8x32xf32>
    %207 = arith.mulf %205, %206 : vector<8x32xf32>
    %208 = vector.broadcast %187 : vector<1x32xf32> to vector<8x32xf32>
    %209 = arith.addf %207, %208 : vector<8x32xf32>
    %c0_98 = arith.constant 0 : index
    %c0_99 = arith.constant 0 : index
    %210 = vector.load %arg27[%c0_98, %c0_99] : memref<8x32xf32, #tpu.memory_space<vmem>>, vector<8x32xf32>
    tpu.vector_store %arg27[%c0_98, %c0_99], %209 {strides = array<i32>} : memref<8x32xf32, #tpu.memory_space<vmem>>, vector<8x32xf32>,
    %c1_i32 = arith.constant 1 : i32
    %211 = arith.cmpi eq, %arg1, %c1_i32 : i32
    %212 = arith.extui %211 : i1 to i32
    %c0_i32_100 = arith.constant 0 : i32
    %213 = arith.cmpi ne, %212, %c0_i32_100 : i32
    scf.if %213 {
      %c0_101 = arith.constant 0 : index
      %c0_102 = arith.constant 0 : index
      %214 = vector.load %arg24[%c0_101, %c0_102] : memref<32x128xbf16, #tpu.memory_space<vmem>>, vector<32x128xbf16>
      %c0_103 = arith.constant 0 : index
      %c0_104 = arith.constant 0 : index
      %215 = vector.load %arg25[%c0_103, %c0_104] : memref<1x128xf32, #tpu.memory_space<vmem>>, vector<1x128xf32>
      %216 = arith.truncf %209 : vector<8x32xf32> to vector<8x32xbf16>
      %cst_105 = arith.constant dense<0.000000e+00> : vector<8x128xf32>
      %217 = tpu.matmul %216, %214, %cst_105 {dimension_numbers = #tpu.dot_dimension_numbers<[1], [0], [0], [1], [0, 0, 1, 1], [], []>} : vector<8x32xbf16>, vector<32x128xbf16>, vector<8x128xf32> -> vector<8x128xf32>
      %218 = vector.broadcast %215 : vector<1x128xf32> to vector<8x128xf32>
      %219 = arith.addf %217, %218 : vector<8x128xf32>
      %c0_106 = arith.constant 0 : index
      %c0_107 = arith.constant 0 : index
      %c0_108 = arith.constant 0 : index
      %220 = vector.load %arg26[%c0_106, %c0_107, %c0_108] : memref<1x8x128xf32, #tpu.memory_space<vmem>>, vector<1x8x128xf32>
      %221 = vector.shape_cast %220 : vector<1x8x128xf32> to vector<8x128xf32>
      %222 = vector.shape_cast %219 : vector<8x128xf32> to vector<1x8x128xf32>
      tpu.vector_store %arg26[%c0_106, %c0_107, %c0_108], %222 {strides = array<i32>} : memref<1x8x128xf32, #tpu.memory_space<vmem>>, vector<1x8x128xf32>,
    } else {
    }
    return
  }
  func.func @transform_0(%arg0: i32, %arg1: i32) -> (i32, i32, i32) {
    %c0_i32 = arith.constant 0 : i32
    %c0_i32_0 = arith.constant 0 : i32
    %c0_i32_1 = arith.constant 0 : i32
    return %arg0, %c0_i32, %c0_i32_0 : i32, i32, i32
  }
  func.func @transform_1(%arg0: i32, %arg1: i32) -> (i32, i32, i32) {
    %c0_i32 = arith.constant 0 : i32
    %c0_i32_0 = arith.constant 0 : i32
    %c0_i32_1 = arith.constant 0 : i32
    return %arg0, %c0_i32, %c0_i32_0 : i32, i32, i32
  }
  func.func @transform_2(%arg0: i32, %arg1: i32) -> (i32, i32, i32) {
    %c0_i32 = arith.constant 0 : i32
    %c0_i32_0 = arith.constant 0 : i32
    %c0_i32_1 = arith.constant 0 : i32
    return %arg1, %c0_i32, %c0_i32_0 : i32, i32, i32
  }
  func.func @transform_3(%arg0: i32, %arg1: i32) -> (i32, i32, i32) {
    %c0_i32 = arith.constant 0 : i32
    %c0_i32_0 = arith.constant 0 : i32
    %c0_i32_1 = arith.constant 0 : i32
    return %arg1, %c0_i32, %c0_i32_0 : i32, i32, i32
  }
  func.func @transform_4(%arg0: i32, %arg1: i32) -> (i32, i32, i32) {
    %c0_i32 = arith.constant 0 : i32
    %c0_i32_0 = arith.constant 0 : i32
    %c0_i32_1 = arith.constant 0 : i32
    return %arg1, %c0_i32, %c0_i32_0 : i32, i32, i32
  }
  func.func @transform_5(%arg0: i32, %arg1: i32) -> (i32, i32, i32) {
    %c0_i32 = arith.constant 0 : i32
    %c0_i32_0 = arith.constant 0 : i32
    %c0_i32_1 = arith.constant 0 : i32
    return %arg1, %c0_i32, %c0_i32_0 : i32, i32, i32
  }
  func.func @transform_6(%arg0: i32, %arg1: i32) -> (i32, i32, i32) {
    %c0_i32 = arith.constant 0 : i32
    %c0_i32_0 = arith.constant 0 : i32
    %c0_i32_1 = arith.constant 0 : i32
    return %arg1, %c0_i32, %c0_i32_0 : i32, i32, i32
  }
  func.func @transform_7(%arg0: i32, %arg1: i32) -> (i32, i32, i32) {
    %c0_i32 = arith.constant 0 : i32
    %c0_i32_0 = arith.constant 0 : i32
    %c0_i32_1 = arith.constant 0 : i32
    return %arg1, %c0_i32, %c0_i32_0 : i32, i32, i32
  }
  func.func @transform_8(%arg0: i32, %arg1: i32) -> (i32, i32, i32) {
    %c0_i32 = arith.constant 0 : i32
    %c0_i32_0 = arith.constant 0 : i32
    %c0_i32_1 = arith.constant 0 : i32
    return %arg1, %c0_i32, %c0_i32_0 : i32, i32, i32
  }
  func.func @transform_9(%arg0: i32, %arg1: i32) -> (i32, i32, i32) {
    %c0_i32 = arith.constant 0 : i32
    %c0_i32_0 = arith.constant 0 : i32
    %c0_i32_1 = arith.constant 0 : i32
    return %arg1, %c0_i32, %c0_i32_0 : i32, i32, i32
  }
  func.func @transform_10(%arg0: i32, %arg1: i32) -> (i32, i32, i32) {
    %c0_i32 = arith.constant 0 : i32
    %c0_i32_0 = arith.constant 0 : i32
    %c0_i32_1 = arith.constant 0 : i32
    return %arg1, %c0_i32, %c0_i32_0 : i32, i32, i32
  }
  func.func @transform_11(%arg0: i32, %arg1: i32) -> (i32, i32, i32) {
    %c0_i32 = arith.constant 0 : i32
    %c0_i32_0 = arith.constant 0 : i32
    %c0_i32_1 = arith.constant 0 : i32
    return %arg1, %c0_i32, %c0_i32_0 : i32, i32, i32
  }
  func.func @transform_12(%arg0: i32, %arg1: i32) -> (i32, i32, i32) {
    %c0_i32 = arith.constant 0 : i32
    %c0_i32_0 = arith.constant 0 : i32
    %c0_i32_1 = arith.constant 0 : i32
    return %arg1, %c0_i32, %c0_i32_0 : i32, i32, i32
  }
  func.func @transform_13(%arg0: i32, %arg1: i32) -> (i32, i32, i32) {
    %c0_i32 = arith.constant 0 : i32
    %c0_i32_0 = arith.constant 0 : i32
    %c0_i32_1 = arith.constant 0 : i32
    return %arg1, %c0_i32, %c0_i32_0 : i32, i32, i32
  }
  func.func @transform_14(%arg0: i32, %arg1: i32) -> (i32, i32, i32) {
    %c0_i32 = arith.constant 0 : i32
    %c0_i32_0 = arith.constant 0 : i32
    %c0_i32_1 = arith.constant 0 : i32
    return %arg1, %c0_i32, %c0_i32_0 : i32, i32, i32
  }
  func.func @transform_15(%arg0: i32, %arg1: i32) -> (i32, i32, i32) {
    %c0_i32 = arith.constant 0 : i32
    %c0_i32_0 = arith.constant 0 : i32
    %c0_i32_1 = arith.constant 0 : i32
    return %arg1, %c0_i32, %c0_i32_0 : i32, i32, i32
  }
  func.func @transform_16(%arg0: i32, %arg1: i32) -> (i32, i32, i32) {
    %c0_i32 = arith.constant 0 : i32
    %c0_i32_0 = arith.constant 0 : i32
    %c0_i32_1 = arith.constant 0 : i32
    return %arg1, %c0_i32, %c0_i32_0 : i32, i32, i32
  }
  func.func @transform_17(%arg0: i32, %arg1: i32) -> (i32, i32, i32) {
    %c0_i32 = arith.constant 0 : i32
    %c0_i32_0 = arith.constant 0 : i32
    %c0_i32_1 = arith.constant 0 : i32
    return %arg1, %c0_i32, %c0_i32_0 : i32, i32, i32
  }
  func.func @transform_18(%arg0: i32, %arg1: i32) -> (i32, i32, i32) {
    %c0_i32 = arith.constant 0 : i32
    %c0_i32_0 = arith.constant 0 : i32
    %c0_i32_1 = arith.constant 0 : i32
    return %arg1, %c0_i32, %c0_i32_0 : i32, i32, i32
  }
  func.func @transform_19(%arg0: i32, %arg1: i32) -> (i32, i32, i32) {
    %c0_i32 = arith.constant 0 : i32
    %c0_i32_0 = arith.constant 0 : i32
    %c0_i32_1 = arith.constant 0 : i32
    return %arg1, %c0_i32, %c0_i32_0 : i32, i32, i32
  }
  func.func @transform_20(%arg0: i32, %arg1: i32) -> (i32, i32, i32) {
    %c0_i32 = arith.constant 0 : i32
    %c0_i32_0 = arith.constant 0 : i32
    %c0_i32_1 = arith.constant 0 : i32
    return %arg1, %c0_i32, %c0_i32_0 : i32, i32, i32
  }
  func.func @transform_21(%arg0: i32, %arg1: i32) -> (i32, i32, i32) {
    %c0_i32 = arith.constant 0 : i32
    %c0_i32_0 = arith.constant 0 : i32
    %c0_i32_1 = arith.constant 0 : i32
    return %arg1, %c0_i32, %c0_i32_0 : i32, i32, i32
  }
  func.func @transform_22(%arg0: i32, %arg1: i32) -> (i32, i32) {
    %c0_i32 = arith.constant 0 : i32
    %c0_i32_0 = arith.constant 0 : i32
    %c0_i32_1 = arith.constant 0 : i32
    return %c0_i32, %c0_i32_0 : i32, i32
  }
  func.func @transform_23(%arg0: i32, %arg1: i32) -> (i32, i32) {
    %c0_i32 = arith.constant 0 : i32
    %c0_i32_0 = arith.constant 0 : i32
    %c0_i32_1 = arith.constant 0 : i32
    return %c0_i32, %c0_i32_0 : i32, i32
  }
  func.func @transform_24(%arg0: i32, %arg1: i32) -> (i32, i32, i32) {
    %c0_i32 = arith.constant 0 : i32
    %c0_i32_0 = arith.constant 0 : i32
    %c0_i32_1 = arith.constant 0 : i32
    return %arg0, %c0_i32, %c0_i32_0 : i32, i32, i32
  }
}

</mosaic_0001>

<llo_original>
// kernel: sum_transformer_forward.2
$region0: #{sum_transformer_forward.2}
  #allocation0 [shape = 'u32[]', space=smem, size = 0x4, offset = 0x4, fixed_abs, tag = 'smem constant byte address 0x4 - core index']
  #allocation1 [shape = 'u32[144,128]{1,0:T(1,128)}', space=vmem, size = 0x12000, scoped, tag = 'internal scratch']
  #allocation2 [shape = 'f32[16,32]{1,0:T(8,128)}', space=vmem, size = 0x2000, scoped, tag = 'scratch operand']
  %s0 = inlined_call_operand.vmem [shape: f32[2,16,32], index: 0, kind: input, shape index: {}]
  %s1 = inlined_call_operand.vmem [shape: bf16[2,32,96], index: 1, kind: input, shape index: {}]
  %s2 = inlined_call_operand.vmem [shape: f32[2,1,96], index: 2, kind: input, shape index: {}]
  %s3 = inlined_call_operand.vmem [shape: bf16[2,32,32], index: 3, kind: input, shape index: {}]
  %s4 = inlined_call_operand.vmem [shape: f32[2,1,32], index: 4, kind: input, shape index: {}]
  %s5 = inlined_call_operand.vmem [shape: f32[2,1,32], index: 5, kind: input, shape index: {}]
  %s6 = inlined_call_operand.vmem [shape: f32[2,1,32], index: 6, kind: input, shape index: {}]
  %s7 = inlined_call_operand.vmem [shape: bf16[2,32,64], index: 7, kind: input, shape index: {}]
  %s8 = inlined_call_operand.vmem [shape: f32[2,1,64], index: 8, kind: input, shape index: {}]
  %s9 = inlined_call_operand.vmem [shape: bf16[2,64,32], index: 9, kind: input, shape index: {}]
  %s10 = inlined_call_operand.vmem [shape: f32[2,1,32], index: 10, kind: input, shape index: {}]
  %s11 = inlined_call_operand.vmem [shape: f32[2,1,32], index: 11, kind: input, shape index: {}]
  %s12 = inlined_call_operand.vmem [shape: f32[2,1,32], index: 12, kind: input, shape index: {}]
  %s13 = inlined_call_operand.vmem [shape: f32[2,16,32], index: 13, kind: output, shape index: {}]
  %s14 = sld [smem:[#allocation0]]
  $region93: #{sum_transformer_forward.2} parent=0
    _
  %s16 = ssub.s32 1, %s14
  %s17 = scalar_select 0, %s16, %s14
  loop: start=0, step=1, limit=6
  $region2: #{sum_transformer_forward.2} parent=0 // loop_pre_header
    _
  $region3: #{sum_transformer_forward.2} parent=0 // loop_header
    %s19 = sphi 0, %s23
    %p20 = scmp.ge.s32.totalorder %s19, 6
    %s26 = sphi 0, %s38
    %s27 = sphi 0, %s34
    %s28 = sphi 0, %s26
    %s29 = sphi 0, %s27
    %s30 = sphi 0, %s28
    %s31 = sphi 0, %s29
    %s41 = sphi 0, %s43
    %s44 = sphi 0, %s41
    %s45 = sphi 0, %s44
    %s61 = sphi 0, %s45
    %s67 = sphi 0, %s69
    %s70 = sphi 0, %s67
    %s71 = sphi 0, %s70
    %s87 = sphi 0, %s71
    %s93 = sphi 0, %s95
    %s96 = sphi 0, %s93
    %s97 = sphi 0, %s96
    %s113 = sphi 0, %s97
    %s119 = sphi 0, %s121
    %s122 = sphi 0, %s119
    %s123 = sphi 0, %s122
    %s139 = sphi 0, %s123
    %s145 = sphi 0, %s147
    %s148 = sphi 0, %s145
    %s149 = sphi 0, %s148
    %s165 = sphi 0, %s149
    %s171 = sphi 0, %s173
    %s174 = sphi 0, %s171
    %s175 = sphi 0, %s174
    %s191 = sphi 0, %s175
    %s197 = sphi 0, %s199
    %s200 = sphi 0, %s197
    %s201 = sphi 0, %s200
    %s217 = sphi 0, %s201
    %s223 = sphi 0, %s225
    %s226 = sphi 0, %s223
    %s227 = sphi 0, %s226
    %s243 = sphi 0, %s227
    %s249 = sphi 0, %s251
    %s252 = sphi 0, %s249
    %s253 = sphi 0, %s252
    %s269 = sphi 0, %s253
    %s275 = sphi 0, %s277
    %s278 = sphi 0, %s275
    %s279 = sphi 0, %s278
    %s295 = sphi 0, %s279
    %s301 = sphi 0, %s303
    %s304 = sphi 0, %s301
    %s305 = sphi 0, %s304
    %s321 = sphi 0, %s305
    %s327 = sphi 0, %s329
    %s330 = sphi 0, %s327
    %s331 = sphi 0, %s330
    %s347 = sphi 0, %s331
    %s353 = sphi 0, %s355
    %s356 = sphi 0, %s353
    %s357 = sphi 0, %s356
    %s373 = sphi 0, %s357
    %s379 = sphi 0, %s381
    %s382 = sphi 0, %s379
    %s383 = sphi 0, %s382
    %s399 = sphi 0, %s383
  $region4: #{sum_transformer_forward.2} parent=0 // loop_header_branch
    %22 = sbr.rel (%p20) target = $region8
  $region5: #{sum_transformer_forward.2} parent=0 // loop_body
    %s24 = ssub.s32 %s19, 1
    %s25 = ssub.s32 %s19, 2
    %s32 = sadd.s32 1, %s27
    %p33 = scmp.ge.s32.totalorder %s32, 2
    %s34 = scalar_select %p33, 0, %s32
    %s35 = sadd.s32 1, %s26
    %s36 = scalar_select %p33, %s35, %s26
    %p37 = scmp.ge.s32.totalorder %s36, 2
    %s38 = scalar_select %p37, 0, %s36
    %s39 = ssub.s32 %s26, %s38
    %p40 = scmp.eq.s32.totalorder %s39, 0
    %s42 = sadd.s32 %s41, 1
    %s43 = scalar_select %p40, %s41, %s42
    %p46 = pneg %p40
    %p47 = scmp.eq.s32.totalorder %s19, 3
    %p48 = por %p46, %p47
    %p49 = scmp.ne.s32.totalorder %s41, %s44
    %p50 = scmp.eq.s32.totalorder %s19, 0
    %p51 = por %p49, %p50
    %p52 = scmp.ne.s32.totalorder %s41, %s44
    %p53 = scmp.eq.s32.totalorder %s24, 3
    %p54 = por %p52, %p53
    %p55 = scmp.ne.s32.totalorder %s44, %s45
    %p56 = scmp.eq.s32.totalorder %s24, 0
    %p57 = por %p55, %p56
    %p58 = scmp.ne.s32.totalorder %s44, %s45
    %p59 = scmp.eq.s32.totalorder %s25, 3
    %p60 = por %p58, %p59
    %p62 = scmp.ne.s32.totalorder %s45, %s61
    %p63 = scmp.eq.s32.totalorder %s25, 0
    %p64 = por %p62, %p63
    %s65 = ssub.s32 %s27, %s34
    %p66 = scmp.eq.s32.totalorder %s65, 0
    %s68 = sadd.s32 %s67, 1
    %s69 = scalar_select %p66, %s67, %s68
    %p72 = pneg %p66
    %p73 = scmp.eq.s32.totalorder %s19, 3
    %p74 = por %p72, %p73
    %p75 = scmp.ne.s32.totalorder %s67, %s70
    %p76 = scmp.eq.s32.totalorder %s19, 0
    %p77 = por %p75, %p76
    %p78 = scmp.ne.s32.totalorder %s67, %s70
    %p79 = scmp.eq.s32.totalorder %s24, 3
    %p80 = por %p78, %p79
    %p81 = scmp.ne.s32.totalorder %s70, %s71
    %p82 = scmp.eq.s32.totalorder %s24, 0
    %p83 = por %p81, %p82
    %p84 = scmp.ne.s32.totalorder %s70, %s71
    %p85 = scmp.eq.s32.totalorder %s25, 3
    %p86 = por %p84, %p85
    %p88 = scmp.ne.s32.totalorder %s71, %s87
    %p89 = scmp.eq.s32.totalorder %s25, 0
    %p90 = por %p88, %p89
    %s91 = ssub.s32 %s27, %s34
    %p92 = scmp.eq.s32.totalorder %s91, 0
    %s94 = sadd.s32 %s93, 1
    %s95 = scalar_select %p92, %s93, %s94
    %p98 = pneg %p92
    %p99 = scmp.eq.s32.totalorder %s19, 3
    %p100 = por %p98, %p99
    %p101 = scmp.ne.s32.totalorder %s93, %s96
    %p102 = scmp.eq.s32.totalorder %s19, 0
    %p103 = por %p101, %p102
    %p104 = scmp.ne.s32.totalorder %s93, %s96
    %p105 = scmp.eq.s32.totalorder %s24, 3
    %p106 = por %p104, %p105
    %p107 = scmp.ne.s32.totalorder %s96, %s97
    %p108 = scmp.eq.s32.totalorder %s24, 0
    %p109 = por %p107, %p108
    %p110 = scmp.ne.s32.totalorder %s96, %s97
    %p111 = scmp.eq.s32.totalorder %s25, 3
    %p112 = por %p110, %p111
    %p114 = scmp.ne.s32.totalorder %s97, %s113
    %p115 = scmp.eq.s32.totalorder %s25, 0
    %p116 = por %p114, %p115
    %s117 = ssub.s32 %s27, %s34
    %p118 = scmp.eq.s32.totalorder %s117, 0
    %s120 = sadd.s32 %s119, 1
    %s121 = scalar_select %p118, %s119, %s120
    %p124 = pneg %p118
    %p125 = scmp.eq.s32.totalorder %s19, 3
    %p126 = por %p124, %p125
    %p127 = scmp.ne.s32.totalorder %s119, %s122
    %p128 = scmp.eq.s32.totalorder %s19, 0
    %p129 = por %p127, %p128
    %p130 = scmp.ne.s32.totalorder %s119, %s122
    %p131 = scmp.eq.s32.totalorder %s24, 3
    %p132 = por %p130, %p131
    %p133 = scmp.ne.s32.totalorder %s122, %s123
    %p134 = scmp.eq.s32.totalorder %s24, 0
    %p135 = por %p133, %p134
    %p136 = scmp.ne.s32.totalorder %s122, %s123
    %p137 = scmp.eq.s32.totalorder %s25, 3
    %p138 = por %p136, %p137
    %p140 = scmp.ne.s32.totalorder %s123, %s139
    %p141 = scmp.eq.s32.totalorder %s25, 0
    %p142 = por %p140, %p141
    %s143 = ssub.s32 %s27, %s34
    %p144 = scmp.eq.s32.totalorder %s143, 0
    %s146 = sadd.s32 %s145, 1
    %s147 = scalar_select %p144, %s145, %s146
    %p150 = pneg %p144
    %p151 = scmp.eq.s32.totalorder %s19, 3
    %p152 = por %p150, %p151
    %p153 = scmp.ne.s32.totalorder %s145, %s148
    %p154 = scmp.eq.s32.totalorder %s19, 0
    %p155 = por %p153, %p154
    %p156 = scmp.ne.s32.totalorder %s145, %s148
    %p157 = scmp.eq.s32.totalorder %s24, 3
    %p158 = por %p156, %p157
    %p159 = scmp.ne.s32.totalorder %s148, %s149
    %p160 = scmp.eq.s32.totalorder %s24, 0
    %p161 = por %p159, %p160
    %p162 = scmp.ne.s32.totalorder %s148, %s149
    %p163 = scmp.eq.s32.totalorder %s25, 3
    %p164 = por %p162, %p163
    %p166 = scmp.ne.s32.totalorder %s149, %s165
    %p167 = scmp.eq.s32.totalorder %s25, 0
    %p168 = por %p166, %p167
    %s169 = ssub.s32 %s27, %s34
    %p170 = scmp.eq.s32.totalorder %s169, 0
    %s172 = sadd.s32 %s171, 1
    %s173 = scalar_select %p170, %s171, %s172
    %p176 = pneg %p170
    %p177 = scmp.eq.s32.totalorder %s19, 3
    %p178 = por %p176, %p177
    %p179 = scmp.ne.s32.totalorder %s171, %s174
    %p180 = scmp.eq.s32.totalorder %s19, 0
    %p181 = por %p179, %p180
    %p182 = scmp.ne.s32.totalorder %s171, %s174
    %p183 = scmp.eq.s32.totalorder %s24, 3
    %p184 = por %p182, %p183
    %p185 = scmp.ne.s32.totalorder %s174, %s175
    %p186 = scmp.eq.s32.totalorder %s24, 0
    %p187 = por %p185, %p186
    %p188 = scmp.ne.s32.totalorder %s174, %s175
    %p189 = scmp.eq.s32.totalorder %s25, 3
    %p190 = por %p188, %p189
    %p192 = scmp.ne.s32.totalorder %s175, %s191
    %p193 = scmp.eq.s32.totalorder %s25, 0
    %p194 = por %p192, %p193
    %s195 = ssub.s32 %s27, %s34
    %p196 = scmp.eq.s32.totalorder %s195, 0
    %s198 = sadd.s32 %s197, 1
    %s199 = scalar_select %p196, %s197, %s198
    %p202 = pneg %p196
    %p203 = scmp.eq.s32.totalorder %s19, 3
    %p204 = por %p202, %p203
    %p205 = scmp.ne.s32.totalorder %s197, %s200
    %p206 = scmp.eq.s32.totalorder %s19, 0
    %p207 = por %p205, %p206
    %p208 = scmp.ne.s32.totalorder %s197, %s200
    %p209 = scmp.eq.s32.totalorder %s24, 3
    %p210 = por %p208, %p209
    %p211 = scmp.ne.s32.totalorder %s200, %s201
    %p212 = scmp.eq.s32.totalorder %s24, 0
    %p213 = por %p211, %p212
    %p214 = scmp.ne.s32.totalorder %s200, %s201
    %p215 = scmp.eq.s32.totalorder %s25, 3
    %p216 = por %p214, %p215
    %p218 = scmp.ne.s32.totalorder %s201, %s217
    %p219 = scmp.eq.s32.totalorder %s25, 0
    %p220 = por %p218, %p219
    %s221 = ssub.s32 %s27, %s34
    %p222 = scmp.eq.s32.totalorder %s221, 0
    %s224 = sadd.s32 %s223, 1
    %s225 = scalar_select %p222, %s223, %s224
    %p228 = pneg %p222
    %p229 = scmp.eq.s32.totalorder %s19, 3
    %p230 = por %p228, %p229
    %p231 = scmp.ne.s32.totalorder %s223, %s226
    %p232 = scmp.eq.s32.totalorder %s19, 0
    %p233 = por %p231, %p232
    %p234 = scmp.ne.s32.totalorder %s223, %s226
    %p235 = scmp.eq.s32.totalorder %s24, 3
    %p236 = por %p234, %p235
    %p237 = scmp.ne.s32.totalorder %s226, %s227
    %p238 = scmp.eq.s32.totalorder %s24, 0
    %p239 = por %p237, %p238
    %p240 = scmp.ne.s32.totalorder %s226, %s227
    %p241 = scmp.eq.s32.totalorder %s25, 3
    %p242 = por %p240, %p241
    %p244 = scmp.ne.s32.totalorder %s227, %s243
    %p245 = scmp.eq.s32.totalorder %s25, 0
    %p246 = por %p244, %p245
    %s247 = ssub.s32 %s27, %s34
    %p248 = scmp.eq.s32.totalorder %s247, 0
    %s250 = sadd.s32 %s249, 1
    %s251 = scalar_select %p248, %s249, %s250
    %p254 = pneg %p248
    %p255 = scmp.eq.s32.totalorder %s19, 3
    %p256 = por %p254, %p255
    %p257 = scmp.ne.s32.totalorder %s249, %s252
    %p258 = scmp.eq.s32.totalorder %s19, 0
    %p259 = por %p257, %p258
    %p260 = scmp.ne.s32.totalorder %s249, %s252
    %p261 = scmp.eq.s32.totalorder %s24, 3
    %p262 = por %p260, %p261
    %p263 = scmp.ne.s32.totalorder %s252, %s253
    %p264 = scmp.eq.s32.totalorder %s24, 0
    %p265 = por %p263, %p264
    %p266 = scmp.ne.s32.totalorder %s252, %s253
    %p267 = scmp.eq.s32.totalorder %s25, 3
    %p268 = por %p266, %p267
    %p270 = scmp.ne.s32.totalorder %s253, %s269
    %p271 = scmp.eq.s32.totalorder %s25, 0
    %p272 = por %p270, %p271
    %s273 = ssub.s32 %s27, %s34
    %p274 = scmp.eq.s32.totalorder %s273, 0
    %s276 = sadd.s32 %s275, 1
    %s277 = scalar_select %p274, %s275, %s276
    %p280 = pneg %p274
    %p281 = scmp.eq.s32.totalorder %s19, 3
    %p282 = por %p280, %p281
    %p283 = scmp.ne.s32.totalorder %s275, %s278
    %p284 = scmp.eq.s32.totalorder %s19, 0
    %p285 = por %p283, %p284
    %p286 = scmp.ne.s32.totalorder %s275, %s278
    %p287 = scmp.eq.s32.totalorder %s24, 3
    %p288 = por %p286, %p287
    %p289 = scmp.ne.s32.totalorder %s278, %s279
    %p290 = scmp.eq.s32.totalorder %s24, 0
    %p291 = por %p289, %p290
    %p292 = scmp.ne.s32.totalorder %s278, %s279
    %p293 = scmp.eq.s32.totalorder %s25, 3
    %p294 = por %p292, %p293
    %p296 = scmp.ne.s32.totalorder %s279, %s295
    %p297 = scmp.eq.s32.totalorder %s25, 0
    %p298 = por %p296, %p297
    %s299 = ssub.s32 %s27, %s34
    %p300 = scmp.eq.s32.totalorder %s299, 0
    %s302 = sadd.s32 %s301, 1
    %s303 = scalar_select %p300, %s301, %s302
    %p306 = pneg %p300
    %p307 = scmp.eq.s32.totalorder %s19, 3
    %p308 = por %p306, %p307
    %p309 = scmp.ne.s32.totalorder %s301, %s304
    %p310 = scmp.eq.s32.totalorder %s19, 0
    %p311 = por %p309, %p310
    %p312 = scmp.ne.s32.totalorder %s301, %s304
    %p313 = scmp.eq.s32.totalorder %s24, 3
    %p314 = por %p312, %p313
    %p315 = scmp.ne.s32.totalorder %s304, %s305
    %p316 = scmp.eq.s32.totalorder %s24, 0
    %p317 = por %p315, %p316
    %p318 = scmp.ne.s32.totalorder %s304, %s305
    %p319 = scmp.eq.s32.totalorder %s25, 3
    %p320 = por %p318, %p319
    %p322 = scmp.ne.s32.totalorder %s305, %s321
    %p323 = scmp.eq.s32.totalorder %s25, 0
    %p324 = por %p322, %p323
    %s325 = ssub.s32 %s27, %s34
    %p326 = scmp.eq.s32.totalorder %s325, 0
    %s328 = sadd.s32 %s327, 1
    %s329 = scalar_select %p326, %s327, %s328
    %p332 = pneg %p326
    %p333 = scmp.eq.s32.totalorder %s19, 3
    %p334 = por %p332, %p333
    %p335 = scmp.ne.s32.totalorder %s327, %s330
    %p336 = scmp.eq.s32.totalorder %s19, 0
    %p337 = por %p335, %p336
    %p338 = scmp.ne.s32.totalorder %s327, %s330
    %p339 = scmp.eq.s32.totalorder %s24, 3
    %p340 = por %p338, %p339
    %p341 = scmp.ne.s32.totalorder %s330, %s331
    %p342 = scmp.eq.s32.totalorder %s24, 0
    %p343 = por %p341, %p342
    %p344 = scmp.ne.s32.totalorder %s330, %s331
    %p345 = scmp.eq.s32.totalorder %s25, 3
    %p346 = por %p344, %p345
    %p348 = scmp.ne.s32.totalorder %s331, %s347
    %p349 = scmp.eq.s32.totalorder %s25, 0
    %p350 = por %p348, %p349
    %s351 = ssub.s32 %s27, %s34
    %p352 = scmp.eq.s32.totalorder %s351, 0
    %s354 = sadd.s32 %s353, 1
    %s355 = scalar_select %p352, %s353, %s354
    %p358 = pneg %p352
    %p359 = scmp.eq.s32.totalorder %s19, 3
    %p360 = por %p358, %p359
    %p361 = scmp.ne.s32.totalorder %s353, %s356
    %p362 = scmp.eq.s32.totalorder %s19, 0
    %p363 = por %p361, %p362
    %p364 = scmp.ne.s32.totalorder %s353, %s356
    %p365 = scmp.eq.s32.totalorder %s24, 3
    %p366 = por %p364, %p365
    %p367 = scmp.ne.s32.totalorder %s356, %s357
    %p368 = scmp.eq.s32.totalorder %s24, 0
    %p369 = por %p367, %p368
    %p370 = scmp.ne.s32.totalorder %s356, %s357
    %p371 = scmp.eq.s32.totalorder %s25, 3
    %p372 = por %p370, %p371
    %p374 = scmp.ne.s32.totalorder %s357, %s373
    %p375 = scmp.eq.s32.totalorder %s25, 0
    %p376 = por %p374, %p375
    %s377 = ssub.s32 %s26, %s38
    %p378 = scmp.eq.s32.totalorder %s377, 0
    %s380 = sadd.s32 %s379, 1
    %s381 = scalar_select %p378, %s379, %s380
    %p384 = pneg %p378
    %p385 = scmp.eq.s32.totalorder %s19, 3
    %p386 = por %p384, %p385
    %p387 = scmp.ne.s32.totalorder %s379, %s382
    %p388 = scmp.eq.s32.totalorder %s19, 0
    %p389 = por %p387, %p388
    %p390 = scmp.ne.s32.totalorder %s379, %s382
    %p391 = scmp.eq.s32.totalorder %s24, 3
    %p392 = por %p390, %p391
    %p393 = scmp.ne.s32.totalorder %s382, %s383
    %p394 = scmp.eq.s32.totalorder %s24, 0
    %p395 = por %p393, %p394
    %p396 = scmp.ne.s32.totalorder %s382, %s383
    %p397 = scmp.eq.s32.totalorder %s25, 3
    %p398 = por %p396, %p397
    %p400 = scmp.ne.s32.totalorder %s383, %s399
    %p401 = scmp.eq.s32.totalorder %s25, 0
    %p402 = por %p400, %p401
    %p403 = scmp.le.s32.totalorder 1, %s19
    %p404 = scmp.lt.s32.totalorder %s19, 5
    %p405 = pnand %p403, %p404
    %p406 = pneg %p405
    // Predicated region
    $region9: #{sum_transformer_forward.2} parent=5 // pred_check
      _
    $region10: #{sum_transformer_forward.2} parent=5 // pred_check_branch
      %408 = sbr.rel (%p405) target = $region12
    $region11: #{sum_transformer_forward.2} parent=5 // pred_region
      %s409 = ssub.s32 %s19, 1
    $region12: #{sum_transformer_forward.2} parent=5 // pred_fallthru
      _
    %p410 = scmp.lt.s32.totalorder %s19, 4
    // Predicated region
    $region13: #{sum_transformer_forward.2} parent=5 // pred_check
      %p411 = pneg %p410
    $region14: #{sum_transformer_forward.2} parent=5 // pred_check_branch
      %413 = sbr.rel (%p411) target = $region16
    $region15: #{sum_transformer_forward.2} parent=5 // pred_region
      // Predicated region
      $region17: #{sum_transformer_forward.2} parent=15 // pred_check
        %p414 = pneg %p51
      $region18: #{sum_transformer_forward.2} parent=15 // pred_check_branch
        %416 = sbr.rel (%p414) target = $region20
      $region19: #{sum_transformer_forward.2} parent=15 // pred_region
        %p417 = scmp.lt.s32.totalorder %s26, 1
        %s418 = scalar_select %p417, %s26, 1
        %s419 = smul.addr %s418, 2
        %s420 = smul.addr %s419, 8
        %s421 = scalar_lea.vmem %s0, %s420
      $region20: #{sum_transformer_forward.2} parent=15 // pred_fallthru
        _
      // Predicated region
      $region21: #{sum_transformer_forward.2} parent=15 // pred_check
        %p422 = pneg %p77
      $region22: #{sum_transformer_forward.2} parent=15 // pred_check_branch
        %424 = sbr.rel (%p422) target = $region24
      $region23: #{sum_transformer_forward.2} parent=15 // pred_region
        %p425 = scmp.lt.s32.totalorder %s27, 1
        %s426 = scalar_select %p425, %s27, 1
        %s427 = smul.addr %s426, 4
        %s428 = smul.addr %s427, 4
        %s429 = scalar_lea.vmem %s1, %s428
      $region24: #{sum_transformer_forward.2} parent=15 // pred_fallthru
        _
      // Predicated region
      $region25: #{sum_transformer_forward.2} parent=15 // pred_check
        %p430 = pneg %p103
      $region26: #{sum_transformer_forward.2} parent=15 // pred_check_branch
        %432 = sbr.rel (%p430) target = $region28
      $region27: #{sum_transformer_forward.2} parent=15 // pred_region
        %p433 = scmp.lt.s32.totalorder %s27, 1
        %s434 = scalar_select %p433, %s27, 1
        %s435 = scalar_lea.vmem %s2, %s434
      $region28: #{sum_transformer_forward.2} parent=15 // pred_fallthru
        _
      // Predicated region
      $region29: #{sum_transformer_forward.2} parent=15 // pred_check
        %p436 = pneg %p129
      $region30: #{sum_transformer_forward.2} parent=15 // pred_check_branch
        %438 = sbr.rel (%p436) target = $region32
      $region31: #{sum_transformer_forward.2} parent=15 // pred_region
        %p439 = scmp.lt.s32.totalorder %s27, 1
        %s440 = scalar_select %p439, %s27, 1
        %s441 = smul.addr %s440, 4
        %s442 = smul.addr %s441, 4
        %s443 = scalar_lea.vmem %s3, %s442
      $region32: #{sum_transformer_forward.2} parent=15 // pred_fallthru
        _
      // Predicated region
      $region33: #{sum_transformer_forward.2} parent=15 // pred_check
        %p444 = pneg %p155
      $region34: #{sum_transformer_forward.2} parent=15 // pred_check_branch
        %446 = sbr.rel (%p444) target = $region36
      $region35: #{sum_transformer_forward.2} parent=15 // pred_region
        %p447 = scmp.lt.s32.totalorder %s27, 1
        %s448 = scalar_select %p447, %s27, 1
        %s449 = scalar_lea.vmem %s4, %s448
      $region36: #{sum_transformer_forward.2} parent=15 // pred_fallthru
        _
      // Predicated region
      $region37: #{sum_transformer_forward.2} parent=15 // pred_check
        %p450 = pneg %p181
      $region38: #{sum_transformer_forward.2} parent=15 // pred_check_branch
        %452 = sbr.rel (%p450) target = $region40
      $region39: #{sum_transformer_forward.2} parent=15 // pred_region
        %p453 = scmp.lt.s32.totalorder %s27, 1
        %s454 = scalar_select %p453, %s27, 1
        %s455 = scalar_lea.vmem %s5, %s454
      $region40: #{sum_transformer_forward.2} parent=15 // pred_fallthru
        _
      // Predicated region
      $region41: #{sum_transformer_forward.2} parent=15 // pred_check
        %p456 = pneg %p207
      $region42: #{sum_transformer_forward.2} parent=15 // pred_check_branch
        %458 = sbr.rel (%p456) target = $region44
      $region43: #{sum_transformer_forward.2} parent=15 // pred_region
        %p459 = scmp.lt.s32.totalorder %s27, 1
        %s460 = scalar_select %p459, %s27, 1
        %s461 = scalar_lea.vmem %s6, %s460
      $region44: #{sum_transformer_forward.2} parent=15 // pred_fallthru
        _
      // Predicated region
      $region45: #{sum_transformer_forward.2} parent=15 // pred_check
        %p462 = pneg %p233
      $region46: #{sum_transformer_forward.2} parent=15 // pred_check_branch
        %464 = sbr.rel (%p462) target = $region48
      $region47: #{sum_transformer_forward.2} parent=15 // pred_region
        %p465 = scmp.lt.s32.totalorder %s27, 1
        %s466 = scalar_select %p465, %s27, 1
        %s467 = smul.addr %s466, 4
        %s468 = smul.addr %s467, 4
        %s469 = scalar_lea.vmem %s7, %s468
      $region48: #{sum_transformer_forward.2} parent=15 // pred_fallthru
        _
      // Predicated region
      $region49: #{sum_transformer_forward.2} parent=15 // pred_check
        %p470 = pneg %p259
      $region50: #{sum_transformer_forward.2} parent=15 // pred_check_branch
        %472 = sbr.rel (%p470) target = $region52
      $region51: #{sum_transformer_forward.2} parent=15 // pred_region
        %p473 = scmp.lt.s32.totalorder %s27, 1
        %s474 = scalar_select %p473, %s27, 1
        %s475 = scalar_lea.vmem %s8, %s474
      $region52: #{sum_transformer_forward.2} parent=15 // pred_fallthru
        _
      // Predicated region
      $region53: #{sum_transformer_forward.2} parent=15 // pred_check
        %p476 = pneg %p285
      $region54: #{sum_transformer_forward.2} parent=15 // pred_check_branch
        %478 = sbr.rel (%p476) target = $region56
      $region55: #{sum_transformer_forward.2} parent=15 // pred_region
        %p479 = scmp.lt.s32.totalorder %s27, 1
        %s480 = scalar_select %p479, %s27, 1
        %s481 = smul.addr %s480, 8
        %s482 = smul.addr %s481, 4
        %s483 = scalar_lea.vmem %s9, %s482
      $region56: #{sum_transformer_forward.2} parent=15 // pred_fallthru
        _
      // Predicated region
      $region57: #{sum_transformer_forward.2} parent=15 // pred_check
        %p484 = pneg %p311
      $region58: #{sum_transformer_forward.2} parent=15 // pred_check_branch
        %486 = sbr.rel (%p484) target = $region60
      $region59: #{sum_transformer_forward.2} parent=15 // pred_region
        %p487 = scmp.lt.s32.totalorder %s27, 1
        %s488 = scalar_select %p487, %s27, 1
        %s489 = scalar_lea.vmem %s10, %s488
      $region60: #{sum_transformer_forward.2} parent=15 // pred_fallthru
        _
      // Predicated region
      $region61: #{sum_transformer_forward.2} parent=15 // pred_check
        %p490 = pneg %p337
      $region62: #{sum_transformer_forward.2} parent=15 // pred_check_branch
        %492 = sbr.rel (%p490) target = $region64
      $region63: #{sum_transformer_forward.2} parent=15 // pred_region
        %p493 = scmp.lt.s32.totalorder %s27, 1
        %s494 = scalar_select %p493, %s27, 1
        %s495 = scalar_lea.vmem %s11, %s494
      $region64: #{sum_transformer_forward.2} parent=15 // pred_fallthru
        _
      // Predicated region
      $region65: #{sum_transformer_forward.2} parent=15 // pred_check
        %p496 = pneg %p363
      $region66: #{sum_transformer_forward.2} parent=15 // pred_check_branch
        %498 = sbr.rel (%p496) target = $region68
      $region67: #{sum_transformer_forward.2} parent=15 // pred_region
        %p499 = scmp.lt.s32.totalorder %s27, 1
        %s500 = scalar_select %p499, %s27, 1
        %s501 = scalar_lea.vmem %s12, %s500
      $region68: #{sum_transformer_forward.2} parent=15 // pred_fallthru
        _
    $region16: #{sum_transformer_forward.2} parent=5 // pred_fallthru
      _
    %p502 = scmp.le.s32.totalorder 1, %s19
    %p503 = scmp.lt.s32.totalorder %s19, 5
    %p504 = pnand %p502, %p503
    %p505 = pneg %p504
    // Predicated region
    $region69: #{sum_transformer_forward.2} parent=5 // pred_check
      _
    $region70: #{sum_transformer_forward.2} parent=5 // pred_check_branch
      %507 = sbr.rel (%p504) target = $region72
    $region71: #{sum_transformer_forward.2} parent=5 // pred_region
      %s508 = ssub.s32 %s19, 1
      %p509 = scmp.lt.s32.totalorder %s28, 1
      %s510 = scalar_select %p509, %s28, 1
      %s511 = smul.addr %s510, 2
      %s512 = smul.addr %s511, 8
      %s513 = scalar_lea.vmem %s0, %s512
      %p514 = pneg %p57
      %p515 = pneg %p54
      %p516 = scmp.lt.s32.totalorder %s29, 1
      %s517 = scalar_select %p516, %s29, 1
      %s518 = smul.addr %s517, 4
      %s519 = smul.addr %s518, 4
      %s520 = scalar_lea.vmem %s1, %s519
      %p521 = pneg %p83
      %p522 = pneg %p80
      %p523 = scmp.lt.s32.totalorder %s29, 1
      %s524 = scalar_select %p523, %s29, 1
      %s525 = scalar_lea.vmem %s2, %s524
      %p526 = pneg %p109
      %p527 = pneg %p106
      %p528 = scmp.lt.s32.totalorder %s29, 1
      %s529 = scalar_select %p528, %s29, 1
      %s530 = smul.addr %s529, 4
      %s531 = smul.addr %s530, 4
      %s532 = scalar_lea.vmem %s3, %s531
      %p533 = pneg %p135
      %p534 = pneg %p132
      %p535 = scmp.lt.s32.totalorder %s29, 1
      %s536 = scalar_select %p535, %s29, 1
      %s537 = scalar_lea.vmem %s4, %s536
      %p538 = pneg %p161
      %p539 = pneg %p158
      %p540 = scmp.lt.s32.totalorder %s29, 1
      %s541 = scalar_select %p540, %s29, 1
      %s542 = scalar_lea.vmem %s5, %s541
      %p543 = pneg %p187
      %p544 = pneg %p184
      %p545 = scmp.lt.s32.totalorder %s29, 1
      %s546 = scalar_select %p545, %s29, 1
      %s547 = scalar_lea.vmem %s6, %s546
      %p548 = pneg %p213
      %p549 = pneg %p210
      %p550 = scmp.lt.s32.totalorder %s29, 1
      %s551 = scalar_select %p550, %s29, 1
      %s552 = smul.addr %s551, 4
      %s553 = smul.addr %s552, 4
      %s554 = scalar_lea.vmem %s7, %s553
      %p555 = pneg %p239
      %p556 = pneg %p236
      %p557 = scmp.lt.s32.totalorder %s29, 1
      %s558 = scalar_select %p557, %s29, 1
      %s559 = scalar_lea.vmem %s8, %s558
      %p560 = pneg %p265
      %p561 = pneg %p262
      %p562 = scmp.lt.s32.totalorder %s29, 1
      %s563 = scalar_select %p562, %s29, 1
      %s564 = smul.addr %s563, 8
      %s565 = smul.addr %s564, 4
      %s566 = scalar_lea.vmem %s9, %s565
      %p567 = pneg %p291
      %p568 = pneg %p288
      %p569 = scmp.lt.s32.totalorder %s29, 1
      %s570 = scalar_select %p569, %s29, 1
      %s571 = scalar_lea.vmem %s10, %s570
      %p572 = pneg %p317
      %p573 = pneg %p314
      %p574 = scmp.lt.s32.totalorder %s29, 1
      %s575 = scalar_select %p574, %s29, 1
      %s576 = scalar_lea.vmem %s11, %s575
      %p577 = pneg %p343
      %p578 = pneg %p340
      %p579 = scmp.lt.s32.totalorder %s29, 1
      %s580 = scalar_select %p579, %s29, 1
      %s581 = scalar_lea.vmem %s12, %s580
      %p582 = pneg %p369
      %p583 = pneg %p366
      %p584 = pneg %p395
      %p585 = pneg %p392
      %p586 = scmp.lt.s32.totalorder %s28, 1
      %s587 = scalar_select %p586, %s28, 1
      %s588 = smul.addr %s587, 2
      %s589 = smul.addr %s588, 8
      %s590 = scalar_lea.vmem %s13, %s589
      %p591 = scmp.lt.s32.totalorder %s28, 1
      %s592 = scalar_select %p591, %s28, 1
      %s593 = smul.addr %s592, 2
      %s594 = smul.addr %s593, 8
      %s595 = scalar_lea.vmem %s0, %s594
      %p596 = scmp.lt.s32.totalorder %s29, 1
      %s597 = scalar_select %p596, %s29, 1
      %s598 = smul.addr %s597, 4
      %s599 = smul.addr %s598, 4
      %s600 = scalar_lea.vmem %s1, %s599
      %p601 = scmp.lt.s32.totalorder %s29, 1
      %s602 = scalar_select %p601, %s29, 1
      %s603 = scalar_lea.vmem %s2, %s602
      %p604 = scmp.lt.s32.totalorder %s29, 1
      %s605 = scalar_select %p604, %s29, 1
      %s606 = smul.addr %s605, 4
      %s607 = smul.addr %s606, 4
      %s608 = scalar_lea.vmem %s3, %s607
      %p609 = scmp.lt.s32.totalorder %s29, 1
      %s610 = scalar_select %p609, %s29, 1
      %s611 = scalar_lea.vmem %s4, %s610
      %p612 = scmp.lt.s32.totalorder %s29, 1
      %s613 = scalar_select %p612, %s29, 1
      %s614 = scalar_lea.vmem %s5, %s613
      %p615 = scmp.lt.s32.totalorder %s29, 1
      %s616 = scalar_select %p615, %s29, 1
      %s617 = scalar_lea.vmem %s6, %s616
      %p618 = scmp.lt.s32.totalorder %s29, 1
      %s619 = scalar_select %p618, %s29, 1
      %s620 = smul.addr %s619, 4
      %s621 = smul.addr %s620, 4
      %s622 = scalar_lea.vmem %s7, %s621
      %p623 = scmp.lt.s32.totalorder %s29, 1
      %s624 = scalar_select %p623, %s29, 1
      %s625 = scalar_lea.vmem %s8, %s624
      %p626 = scmp.lt.s32.totalorder %s29, 1
      %s627 = scalar_select %p626, %s29, 1
      %s628 = smul.addr %s627, 8
      %s629 = smul.addr %s628, 4
      %s630 = scalar_lea.vmem %s9, %s629
      %p631 = scmp.lt.s32.totalorder %s29, 1
      %s632 = scalar_select %p631, %s29, 1
      %s633 = scalar_lea.vmem %s10, %s632
      %p634 = scmp.lt.s32.totalorder %s29, 1
      %s635 = scalar_select %p634, %s29, 1
      %s636 = scalar_lea.vmem %s11, %s635
      %p637 = scmp.lt.s32.totalorder %s29, 1
      %s638 = scalar_select %p637, %s29, 1
      %s639 = scalar_lea.vmem %s12, %s638
      %p640 = scmp.lt.s32.totalorder %s28, 1
      %s641 = scalar_select %p640, %s28, 1
      %s642 = smul.addr %s641, 2
      %s643 = smul.addr %s642, 8
      %s644 = scalar_lea.vmem %s13, %s643
      %p646 = scmp.eq.s32.totalorder %s29, 0
      // Predicated region
      $region73: #{sum_transformer_forward.2} parent=71 // pred_check
        %p647 = pneg %p646
      $region74: #{sum_transformer_forward.2} parent=71 // pred_check_branch
        %649 = sbr.rel (%p647) target = $region76
      $region75: #{sum_transformer_forward.2} parent=71 // pred_region
        %v650 = vld [vmem:[%s595] sm:$0xff]
        %v651 = vld [vmem:[%s595 + $0x8] sm:$0xff]
        %vm652 = vcmask 261120
        %653 = vst.msk [vmem:[#allocation2] sm:$0xff] %vm652, %v650
        %654 = vst.msk [vmem:[#allocation2 + $0x8] sm:$0xff] %vm652, %v651
      $region76: #{sum_transformer_forward.2} parent=71 // pred_fallthru
        _
      %v655 = vld [vmem:[#allocation2] sm:$0xff]
      %v656 = vld [vmem:[#allocation2 + $0x8] sm:$0xff]
      %v657 = vld [vmem:[%s600] sm:$0xf]
      %v658 = vld [vmem:[%s600 + $0x4] sm:$0xf]
      %v659 = vld [vmem:[%s600 + $0x8] sm:$0xf]
      %v660 = vld [vmem:[%s600 + $0xc] sm:$0xf]
      %v661 = vld [vmem:[%s603] sm:$0x1]
      %v662 = vpack.c.bf16 %v656, %v655
      %v664 = vlaneseq
      %v665 = vshrl.u32 %v664, 7
      %v666 = vsub.s32 0, %v665
      %v667 = vrot.slane %v661, %v666
      %v673 = vunpack.c.l.b16 %v657
      %v674 = vunpack.c.l.b16 %v658
      %v675 = vunpack.c.l.b16 %v659
      %v676 = vunpack.c.l.b16 %v660
      %v677 = vpack.c.b16 %v674, %v673
      %v678 = vpack.c.b16 %v676, %v675
      %vm681 = vcmask 261120
      %v683 = vsel %vm681, %v662, 0
      %685 = vmatprep.subr.bf16.mxu0 0
      %686 = vmatpush1.bf16.msra.mxu0 0
      %687 = vmatprep.subr.bf16.mxu0 0
      %688 = vmatpush1.bf16.msra.mxu0 0
      %689 = vmatprep.subr.bf16.mxu0 0
      %690 = vmatpush1.bf16.msra.mxu0 0
      %691 = vmatprep.subr.bf16.mxu0 0
      %692 = vmatpush1.bf16.msra.mxu0 0
      %693 = vmatprep.subr.bf16.mxu0 0
      %694 = vmatpush1.bf16.msra.mxu0 0
      %695 = vmatprep.subr.bf16.mxu0 0
      %696 = vmatpush1.bf16.msra.mxu0 0
      %697 = vmatprep.subr.bf16.mxu0 0
      %698 = vmatpush1.bf16.msra.mxu0 %v678
      %699 = vmatprep.subr.bf16.mxu0 0
      %700 = vmatpush1.bf16.msra.mxu0 %v677
      %701 = vmatprep.subr.bf16.mxu0 0
      %702 = vmatpush2.bf16.msra.mxu0 0
      %703 = vmatprep.subr.bf16.mxu0 0
      %704 = vmatpush2.bf16.msra.mxu0 0
      %705 = vmatprep.subr.bf16.mxu0 0
      %706 = vmatpush2.bf16.msra.mxu0 0
      %707 = vmatprep.subr.bf16.mxu0 0
      %708 = vmatpush2.bf16.msra.mxu0 0
      %709 = vmatprep.subr.bf16.mxu0 0
      %710 = vmatpush2.bf16.msra.mxu0 0
      %711 = vmatprep.subr.bf16.mxu0 0
      %712 = vmatpush2.bf16.msra.mxu0 0
      %713 = vmatprep.subr.bf16.mxu0 0
      %714 = vmatpush2.bf16.msra.mxu0 0
      %715 = vmatprep.subr.bf16.mxu0 0
      %716 = vmatpush2.bf16.msra.mxu0 0
      %717 = vmatprep.mubr.bf16.mxu0 0
      %718 = vmatmul.mubr.bf16.gmra.mxu0 %v683
      %v719 = vpop.f32.mrf.mxu0
      %v720 = vadd.f32 %v667, %v719
      %v721 = vpop.f32.mrf.mxu0
      %v722 = vpop.f32.mrf.mxu0
      %v723 = vadd.f32 %v667, %v722
      %v724 = vpop.f32.mrf.mxu0
      %725 = vdwg.mxu0
      %728 = vrot.lane.b32.xlu0 %v720, 120
      %v729 = vpop.permute.xlu0 %728
      %730 = vrot.lane.b32.xlu0 %v723, 120
      %v731 = vpop.permute.xlu0 %730
      %734 = vrot.lane.b32.xlu0 %v720, 112
      %v735 = vpop.permute.xlu0 %734
      %736 = vrot.lane.b32.xlu0 %v723, 112
      %v737 = vpop.permute.xlu0 %736
      %740 = vrot.lane.b32.xlu0 %v720, 104
      %v741 = vpop.permute.xlu0 %740
      %742 = vrot.lane.b32.xlu0 %v723, 104
      %v743 = vpop.permute.xlu0 %742
      %v746 = vcombine.low %v720, %v735
      %v747 = vcombine.high %v720, %v735
      %v749 = vunpack.c.l.s4 1983009808
      %v750 = vunpack.c.0.s8 %v749
      %v751 = vlaneseq
      %v752 = vshrl.u32 %v751, 7
      %v753 = vsub.s32 %v750, %v752
      %v754 = vrot.slane %v746, %v753
      %v756 = vunpack.c.l.s4 1983009808
      %v757 = vunpack.c.0.s8 %v756
      %v758 = vlaneseq
      %v759 = vshrl.u32 %v758, 7
      %v760 = vsub.s32 %v757, %v759
      %v761 = vrot.slane %v747, %v760
      %v762 = vcombine.low %v729, %v741
      %v763 = vcombine.high %v729, %v741
      %v765 = vunpack.c.l.s4 1983009808
      %v766 = vunpack.c.0.s8 %v765
      %v767 = vlaneseq
      %v768 = vshrl.u32 %v767, 7
      %v769 = vsub.s32 %v766, %v768
      %v770 = vrot.slane %v762, %v769
      %v772 = vunpack.c.l.s4 1983009808
      %v773 = vunpack.c.0.s8 %v772
      %v774 = vlaneseq
      %v775 = vshrl.u32 %v774, 7
      %v776 = vsub.s32 %v773, %v775
      %v777 = vrot.slane %v763, %v776
      %v778 = vcombine.low %v754, %v770
      %v779 = vcombine.high %v754, %v770
      %v781 = vunpack.c.l.s4 1934713408
      %v782 = vunpack.c.0.s8 %v781
      %v783 = vlaneseq
      %v784 = vshrl.u32 %v783, 7
      %v785 = vsub.s32 %v782, %v784
      %v786 = vrot.slane %v778, %v785
      %v788 = vunpack.c.l.s4 1934713408
      %v789 = vunpack.c.0.s8 %v788
      %v790 = vlaneseq
      %v791 = vshrl.u32 %v790, 7
      %v792 = vsub.s32 %v789, %v791
      %v793 = vrot.slane %v779, %v792
      %v794 = vcombine.low %v761, %v777
      %v795 = vcombine.high %v761, %v777
      %v797 = vunpack.c.l.s4 1934713408
      %v798 = vunpack.c.0.s8 %v797
      %v799 = vlaneseq
      %v800 = vshrl.u32 %v799, 7
      %v801 = vsub.s32 %v798, %v800
      %v802 = vrot.slane %v794, %v801
      %v804 = vunpack.c.l.s4 1934713408
      %v805 = vunpack.c.0.s8 %v804
      %v806 = vlaneseq
      %v807 = vshrl.u32 %v806, 7
      %v808 = vsub.s32 %v805, %v807
      %v809 = vrot.slane %v795, %v808
      %v810 = vcombine.high %v786, 0.0
      %v811 = vcombine.high %v793, 0.0
      %v812 = vcombine.high %v802, 0.0
      %v813 = vcombine.high %v809, 0.0
      %v814 = vcombine.low %v723, %v737
      %v815 = vcombine.high %v723, %v737
      %v817 = vunpack.c.l.s4 1983009808
      %v818 = vunpack.c.0.s8 %v817
      %v819 = vlaneseq
      %v820 = vshrl.u32 %v819, 7
      %v821 = vsub.s32 %v818, %v820
      %v822 = vrot.slane %v814, %v821
      %v824 = vunpack.c.l.s4 1983009808
      %v825 = vunpack.c.0.s8 %v824
      %v826 = vlaneseq
      %v827 = vshrl.u32 %v826, 7
      %v828 = vsub.s32 %v825, %v827
      %v829 = vrot.slane %v815, %v828
      %v830 = vcombine.low %v731, %v743
      %v831 = vcombine.high %v731, %v743
      %v833 = vunpack.c.l.s4 1983009808
      %v834 = vunpack.c.0.s8 %v833
      %v835 = vlaneseq
      %v836 = vshrl.u32 %v835, 7
      %v837 = vsub.s32 %v834, %v836
      %v838 = vrot.slane %v830, %v837
      %v840 = vunpack.c.l.s4 1983009808
      %v841 = vunpack.c.0.s8 %v840
      %v842 = vlaneseq
      %v843 = vshrl.u32 %v842, 7
      %v844 = vsub.s32 %v841, %v843
      %v845 = vrot.slane %v831, %v844
      %v846 = vcombine.low %v822, %v838
      %v847 = vcombine.high %v822, %v838
      %v849 = vunpack.c.l.s4 1934713408
      %v850 = vunpack.c.0.s8 %v849
      %v851 = vlaneseq
      %v852 = vshrl.u32 %v851, 7
      %v853 = vsub.s32 %v850, %v852
      %v854 = vrot.slane %v846, %v853
      %v856 = vunpack.c.l.s4 1934713408
      %v857 = vunpack.c.0.s8 %v856
      %v858 = vlaneseq
      %v859 = vshrl.u32 %v858, 7
      %v860 = vsub.s32 %v857, %v859
      %v861 = vrot.slane %v847, %v860
      %v862 = vcombine.low %v829, %v845
      %v863 = vcombine.high %v829, %v845
      %v865 = vunpack.c.l.s4 1934713408
      %v866 = vunpack.c.0.s8 %v865
      %v867 = vlaneseq
      %v868 = vshrl.u32 %v867, 7
      %v869 = vsub.s32 %v866, %v868
      %v870 = vrot.slane %v862, %v869
      %v872 = vunpack.c.l.s4 1934713408
      %v873 = vunpack.c.0.s8 %v872
      %v874 = vlaneseq
      %v875 = vshrl.u32 %v874, 7
      %v876 = vsub.s32 %v873, %v875
      %v877 = vrot.slane %v863, %v876
      %v878 = vcombine.high %v854, 0.0
      %v879 = vcombine.high %v861, 0.0
      %v880 = vcombine.high %v870, 0.0
      %v881 = vcombine.high %v877, 0.0
      %v882 = vcombine.low %v786, %v793
      %v884 = vunpack.c.l.s4 1983009808
      %v885 = vunpack.c.0.s8 %v884
      %v886 = vlaneseq
      %v887 = vshrl.u32 %v886, 7
      %v888 = vsub.s32 %v885, %v887
      %v889 = vrot.slane %v882, %v888
      %v890 = vcombine.low %v810, %v811
      %v892 = vunpack.c.l.s4 1983009808
      %v893 = vunpack.c.0.s8 %v892
      %v894 = vlaneseq
      %v895 = vshrl.u32 %v894, 7
      %v896 = vsub.s32 %v893, %v895
      %v897 = vrot.slane %v890, %v896
      %v898 = vcombine.low %v802, %v809
      %v900 = vunpack.c.l.s4 1983009808
      %v901 = vunpack.c.0.s8 %v900
      %v902 = vlaneseq
      %v903 = vshrl.u32 %v902, 7
      %v904 = vsub.s32 %v901, %v903
      %v905 = vrot.slane %v898, %v904
      %v906 = vcombine.low %v812, %v813
      %v908 = vunpack.c.l.s4 1983009808
      %v909 = vunpack.c.0.s8 %v908
      %v910 = vlaneseq
      %v911 = vshrl.u32 %v910, 7
      %v912 = vsub.s32 %v909, %v911
      %v913 = vrot.slane %v906, %v912
      %v914 = vcombine.low %v889, %v897
      %v915 = vcombine.high %v889, %v897
      %v917 = vunpack.c.l.s4 1934713408
      %v918 = vunpack.c.0.s8 %v917
      %v919 = vlaneseq
      %v920 = vshrl.u32 %v919, 7
      %v921 = vsub.s32 %v918, %v920
      %v922 = vrot.slane %v914, %v921
      %v924 = vunpack.c.l.s4 1934713408
      %v925 = vunpack.c.0.s8 %v924
      %v926 = vlaneseq
      %v927 = vshrl.u32 %v926, 7
      %v928 = vsub.s32 %v925, %v927
      %v929 = vrot.slane %v915, %v928
      %v930 = vcombine.low %v905, %v913
      %v931 = vcombine.high %v905, %v913
      %v933 = vunpack.c.l.s4 1934713408
      %v934 = vunpack.c.0.s8 %v933
      %v935 = vlaneseq
      %v936 = vshrl.u32 %v935, 7
      %v937 = vsub.s32 %v934, %v936
      %v938 = vrot.slane %v930, %v937
      %v940 = vunpack.c.l.s4 1934713408
      %v941 = vunpack.c.0.s8 %v940
      %v942 = vlaneseq
      %v943 = vshrl.u32 %v942, 7
      %v944 = vsub.s32 %v941, %v943
      %v945 = vrot.slane %v931, %v944
      %v946 = vcombine.low %v922, %v938
      %v947 = vcombine.high %v922, %v938
      %v948 = vcombine.low %v929, %v945
      %v949 = vcombine.high %v929, %v945
      %v950 = vcombine.low %v854, %v861
      %v952 = vunpack.c.l.s4 1983009808
      %v953 = vunpack.c.0.s8 %v952
      %v954 = vlaneseq
      %v955 = vshrl.u32 %v954, 7
      %v956 = vsub.s32 %v953, %v955
      %v957 = vrot.slane %v950, %v956
      %v958 = vcombine.low %v878, %v879
      %v960 = vunpack.c.l.s4 1983009808
      %v961 = vunpack.c.0.s8 %v960
      %v962 = vlaneseq
      %v963 = vshrl.u32 %v962, 7
      %v964 = vsub.s32 %v961, %v963
      %v965 = vrot.slane %v958, %v964
      %v966 = vcombine.low %v870, %v877
      %v968 = vunpack.c.l.s4 1983009808
      %v969 = vunpack.c.0.s8 %v968
      %v970 = vlaneseq
      %v971 = vshrl.u32 %v970, 7
      %v972 = vsub.s32 %v969, %v971
      %v973 = vrot.slane %v966, %v972
      %v974 = vcombine.low %v880, %v881
      %v976 = vunpack.c.l.s4 1983009808
      %v977 = vunpack.c.0.s8 %v976
      %v978 = vlaneseq
      %v979 = vshrl.u32 %v978, 7
      %v980 = vsub.s32 %v977, %v979
      %v981 = vrot.slane %v974, %v980
      %v982 = vcombine.low %v957, %v965
      %v983 = vcombine.high %v957, %v965
      %v985 = vunpack.c.l.s4 1934713408
      %v986 = vunpack.c.0.s8 %v985
      %v987 = vlaneseq
      %v988 = vshrl.u32 %v987, 7
      %v989 = vsub.s32 %v986, %v988
      %v990 = vrot.slane %v982, %v989
      %v992 = vunpack.c.l.s4 1934713408
      %v993 = vunpack.c.0.s8 %v992
      %v994 = vlaneseq
      %v995 = vshrl.u32 %v994, 7
      %v996 = vsub.s32 %v993, %v995
      %v997 = vrot.slane %v983, %v996
      %v998 = vcombine.low %v973, %v981
      %v999 = vcombine.high %v973, %v981
      %v1001 = vunpack.c.l.s4 1934713408
      %v1002 = vunpack.c.0.s8 %v1001
      %v1003 = vlaneseq
      %v1004 = vshrl.u32 %v1003, 7
      %v1005 = vsub.s32 %v1002, %v1004
      %v1006 = vrot.slane %v998, %v1005
      %v1008 = vunpack.c.l.s4 1934713408
      %v1009 = vunpack.c.0.s8 %v1008
      %v1010 = vlaneseq
      %v1011 = vshrl.u32 %v1010, 7
      %v1012 = vsub.s32 %v1009, %v1011
      %v1013 = vrot.slane %v999, %v1012
      %v1014 = vcombine.low %v990, %v1006
      %v1015 = vcombine.high %v990, %v1006
      %v1016 = vcombine.low %v997, %v1013
      %v1017 = vcombine.high %v997, %v1013
      %v1018 = vpack.c.bf16 %v1014, %v946
      %v1019 = vpack.c.bf16 %v1015, %v947
      %v1020 = vpack.c.bf16 %v1016, %v948
      %v1021 = vpack.c.bf16 %v1017, %v949
      %1022 = vrot.lane.b32.xlu0 %v720, 96
      %v1023 = vpop.permute.xlu0 %1022
      %1024 = vrot.lane.b32.xlu0 %v723, 96
      %v1025 = vpop.permute.xlu0 %1024
      %1026 = vrot.lane.b32.xlu0 %v729, 96
      %v1027 = vpop.permute.xlu0 %1026
      %1028 = vrot.lane.b32.xlu0 %v731, 96
      %v1029 = vpop.permute.xlu0 %1028
      %1030 = vrot.lane.b32.xlu0 %v735, 96
      %v1031 = vpop.permute.xlu0 %1030
      %1032 = vrot.lane.b32.xlu0 %v737, 96
      %v1033 = vpop.permute.xlu0 %1032
      %1034 = vrot.lane.b32.xlu0 %v741, 96
      %v1035 = vpop.permute.xlu0 %1034
      %1036 = vrot.lane.b32.xlu0 %v743, 96
      %v1037 = vpop.permute.xlu0 %1036
      %v1046 = vcombine.low %v1023, %v1031
      %v1047 = vcombine.high %v1023, %v1031
      %v1049 = vunpack.c.l.s4 1983009808
      %v1050 = vunpack.c.0.s8 %v1049
      %v1051 = vlaneseq
      %v1052 = vshrl.u32 %v1051, 7
      %v1053 = vsub.s32 %v1050, %v1052
      %v1054 = vrot.slane %v1046, %v1053
      %v1056 = vunpack.c.l.s4 1983009808
      %v1057 = vunpack.c.0.s8 %v1056
      %v1058 = vlaneseq
      %v1059 = vshrl.u32 %v1058, 7
      %v1060 = vsub.s32 %v1057, %v1059
      %v1061 = vrot.slane %v1047, %v1060
      %v1062 = vcombine.low %v1027, %v1035
      %v1063 = vcombine.high %v1027, %v1035
      %v1065 = vunpack.c.l.s4 1983009808
      %v1066 = vunpack.c.0.s8 %v1065
      %v1067 = vlaneseq
      %v1068 = vshrl.u32 %v1067, 7
      %v1069 = vsub.s32 %v1066, %v1068
      %v1070 = vrot.slane %v1062, %v1069
      %v1072 = vunpack.c.l.s4 1983009808
      %v1073 = vunpack.c.0.s8 %v1072
      %v1074 = vlaneseq
      %v1075 = vshrl.u32 %v1074, 7
      %v1076 = vsub.s32 %v1073, %v1075
      %v1077 = vrot.slane %v1063, %v1076
      %v1078 = vcombine.low %v1054, %v1070
      %v1079 = vcombine.high %v1054, %v1070
      %v1081 = vunpack.c.l.s4 1934713408
      %v1082 = vunpack.c.0.s8 %v1081
      %v1083 = vlaneseq
      %v1084 = vshrl.u32 %v1083, 7
      %v1085 = vsub.s32 %v1082, %v1084
      %v1086 = vrot.slane %v1078, %v1085
      %v1088 = vunpack.c.l.s4 1934713408
      %v1089 = vunpack.c.0.s8 %v1088
      %v1090 = vlaneseq
      %v1091 = vshrl.u32 %v1090, 7
      %v1092 = vsub.s32 %v1089, %v1091
      %v1093 = vrot.slane %v1079, %v1092
      %v1094 = vcombine.low %v1061, %v1077
      %v1095 = vcombine.high %v1061, %v1077
      %v1097 = vunpack.c.l.s4 1934713408
      %v1098 = vunpack.c.0.s8 %v1097
      %v1099 = vlaneseq
      %v1100 = vshrl.u32 %v1099, 7
      %v1101 = vsub.s32 %v1098, %v1100
      %v1102 = vrot.slane %v1094, %v1101
      %v1104 = vunpack.c.l.s4 1934713408
      %v1105 = vunpack.c.0.s8 %v1104
      %v1106 = vlaneseq
      %v1107 = vshrl.u32 %v1106, 7
      %v1108 = vsub.s32 %v1105, %v1107
      %v1109 = vrot.slane %v1095, %v1108
      %v1110 = vcombine.high %v1086, 0.0
      %v1111 = vcombine.high %v1093, 0.0
      %v1112 = vcombine.high %v1102, 0.0
      %v1113 = vcombine.high %v1109, 0.0
      %v1114 = vcombine.low %v1025, %v1033
      %v1115 = vcombine.high %v1025, %v1033
      %v1117 = vunpack.c.l.s4 1983009808
      %v1118 = vunpack.c.0.s8 %v1117
      %v1119 = vlaneseq
      %v1120 = vshrl.u32 %v1119, 7
      %v1121 = vsub.s32 %v1118, %v1120
      %v1122 = vrot.slane %v1114, %v1121
      %v1124 = vunpack.c.l.s4 1983009808
      %v1125 = vunpack.c.0.s8 %v1124
      %v1126 = vlaneseq
      %v1127 = vshrl.u32 %v1126, 7
      %v1128 = vsub.s32 %v1125, %v1127
      %v1129 = vrot.slane %v1115, %v1128
      %v1130 = vcombine.low %v1029, %v1037
      %v1131 = vcombine.high %v1029, %v1037
      %v1133 = vunpack.c.l.s4 1983009808
      %v1134 = vunpack.c.0.s8 %v1133
      %v1135 = vlaneseq
      %v1136 = vshrl.u32 %v1135, 7
      %v1137 = vsub.s32 %v1134, %v1136
      %v1138 = vrot.slane %v1130, %v1137
      %v1140 = vunpack.c.l.s4 1983009808
      %v1141 = vunpack.c.0.s8 %v1140
      %v1142 = vlaneseq
      %v1143 = vshrl.u32 %v1142, 7
      %v1144 = vsub.s32 %v1141, %v1143
      %v1145 = vrot.slane %v1131, %v1144
      %v1146 = vcombine.low %v1122, %v1138
      %v1147 = vcombine.high %v1122, %v1138
      %v1149 = vunpack.c.l.s4 1934713408
      %v1150 = vunpack.c.0.s8 %v1149
      %v1151 = vlaneseq
      %v1152 = vshrl.u32 %v1151, 7
      %v1153 = vsub.s32 %v1150, %v1152
      %v1154 = vrot.slane %v1146, %v1153
      %v1156 = vunpack.c.l.s4 1934713408
      %v1157 = vunpack.c.0.s8 %v1156
      %v1158 = vlaneseq
      %v1159 = vshrl.u32 %v1158, 7
      %v1160 = vsub.s32 %v1157, %v1159
      %v1161 = vrot.slane %v1147, %v1160
      %v1162 = vcombine.low %v1129, %v1145
      %v1163 = vcombine.high %v1129, %v1145
      %v1165 = vunpack.c.l.s4 1934713408
      %v1166 = vunpack.c.0.s8 %v1165
      %v1167 = vlaneseq
      %v1168 = vshrl.u32 %v1167, 7
      %v1169 = vsub.s32 %v1166, %v1168
      %v1170 = vrot.slane %v1162, %v1169
      %v1172 = vunpack.c.l.s4 1934713408
      %v1173 = vunpack.c.0.s8 %v1172
      %v1174 = vlaneseq
      %v1175 = vshrl.u32 %v1174, 7
      %v1176 = vsub.s32 %v1173, %v1175
      %v1177 = vrot.slane %v1163, %v1176
      %v1178 = vcombine.high %v1154, 0.0
      %v1179 = vcombine.high %v1161, 0.0
      %v1180 = vcombine.high %v1170, 0.0
      %v1181 = vcombine.high %v1177, 0.0
      %v1182 = vcombine.low %v1086, %v1093
      %v1184 = vunpack.c.l.s4 1983009808
      %v1185 = vunpack.c.0.s8 %v1184
      %v1186 = vlaneseq
      %v1187 = vshrl.u32 %v1186, 7
      %v1188 = vsub.s32 %v1185, %v1187
      %v1189 = vrot.slane %v1182, %v1188
      %v1190 = vcombine.low %v1110, %v1111
      %v1192 = vunpack.c.l.s4 1983009808
      %v1193 = vunpack.c.0.s8 %v1192
      %v1194 = vlaneseq
      %v1195 = vshrl.u32 %v1194, 7
      %v1196 = vsub.s32 %v1193, %v1195
      %v1197 = vrot.slane %v1190, %v1196
      %v1198 = vcombine.low %v1102, %v1109
      %v1200 = vunpack.c.l.s4 1983009808
      %v1201 = vunpack.c.0.s8 %v1200
      %v1202 = vlaneseq
      %v1203 = vshrl.u32 %v1202, 7
      %v1204 = vsub.s32 %v1201, %v1203
      %v1205 = vrot.slane %v1198, %v1204
      %v1206 = vcombine.low %v1112, %v1113
      %v1208 = vunpack.c.l.s4 1983009808
      %v1209 = vunpack.c.0.s8 %v1208
      %v1210 = vlaneseq
      %v1211 = vshrl.u32 %v1210, 7
      %v1212 = vsub.s32 %v1209, %v1211
      %v1213 = vrot.slane %v1206, %v1212
      %v1214 = vcombine.low %v1189, %v1197
      %v1215 = vcombine.high %v1189, %v1197
      %v1217 = vunpack.c.l.s4 1934713408
      %v1218 = vunpack.c.0.s8 %v1217
      %v1219 = vlaneseq
      %v1220 = vshrl.u32 %v1219, 7
      %v1221 = vsub.s32 %v1218, %v1220
      %v1222 = vrot.slane %v1214, %v1221
      %v1224 = vunpack.c.l.s4 1934713408
      %v1225 = vunpack.c.0.s8 %v1224
      %v1226 = vlaneseq
      %v1227 = vshrl.u32 %v1226, 7
      %v1228 = vsub.s32 %v1225, %v1227
      %v1229 = vrot.slane %v1215, %v1228
      %v1230 = vcombine.low %v1205, %v1213
      %v1231 = vcombine.high %v1205, %v1213
      %v1233 = vunpack.c.l.s4 1934713408
      %v1234 = vunpack.c.0.s8 %v1233
      %v1235 = vlaneseq
      %v1236 = vshrl.u32 %v1235, 7
      %v1237 = vsub.s32 %v1234, %v1236
      %v1238 = vrot.slane %v1230, %v1237
      %v1240 = vunpack.c.l.s4 1934713408
      %v1241 = vunpack.c.0.s8 %v1240
      %v1242 = vlaneseq
      %v1243 = vshrl.u32 %v1242, 7
      %v1244 = vsub.s32 %v1241, %v1243
      %v1245 = vrot.slane %v1231, %v1244
      %v1246 = vcombine.low %v1222, %v1238
      %v1247 = vcombine.high %v1222, %v1238
      %v1248 = vcombine.low %v1229, %v1245
      %v1249 = vcombine.high %v1229, %v1245
      %v1250 = vcombine.low %v1154, %v1161
      %v1252 = vunpack.c.l.s4 1983009808
      %v1253 = vunpack.c.0.s8 %v1252
      %v1254 = vlaneseq
      %v1255 = vshrl.u32 %v1254, 7
      %v1256 = vsub.s32 %v1253, %v1255
      %v1257 = vrot.slane %v1250, %v1256
      %v1258 = vcombine.low %v1178, %v1179
      %v1260 = vunpack.c.l.s4 1983009808
      %v1261 = vunpack.c.0.s8 %v1260
      %v1262 = vlaneseq
      %v1263 = vshrl.u32 %v1262, 7
      %v1264 = vsub.s32 %v1261, %v1263
      %v1265 = vrot.slane %v1258, %v1264
      %v1266 = vcombine.low %v1170, %v1177
      %v1268 = vunpack.c.l.s4 1983009808
      %v1269 = vunpack.c.0.s8 %v1268
      %v1270 = vlaneseq
      %v1271 = vshrl.u32 %v1270, 7
      %v1272 = vsub.s32 %v1269, %v1271
      %v1273 = vrot.slane %v1266, %v1272
      %v1274 = vcombine.low %v1180, %v1181
      %v1276 = vunpack.c.l.s4 1983009808
      %v1277 = vunpack.c.0.s8 %v1276
      %v1278 = vlaneseq
      %v1279 = vshrl.u32 %v1278, 7
      %v1280 = vsub.s32 %v1277, %v1279
      %v1281 = vrot.slane %v1274, %v1280
      %v1282 = vcombine.low %v1257, %v1265
      %v1283 = vcombine.high %v1257, %v1265
      %v1285 = vunpack.c.l.s4 1934713408
      %v1286 = vunpack.c.0.s8 %v1285
      %v1287 = vlaneseq
      %v1288 = vshrl.u32 %v1287, 7
      %v1289 = vsub.s32 %v1286, %v1288
      %v1290 = vrot.slane %v1282, %v1289
      %v1292 = vunpack.c.l.s4 1934713408
      %v1293 = vunpack.c.0.s8 %v1292
      %v1294 = vlaneseq
      %v1295 = vshrl.u32 %v1294, 7
      %v1296 = vsub.s32 %v1293, %v1295
      %v1297 = vrot.slane %v1283, %v1296
      %v1298 = vcombine.low %v1273, %v1281
      %v1299 = vcombine.high %v1273, %v1281
      %v1301 = vunpack.c.l.s4 1934713408
      %v1302 = vunpack.c.0.s8 %v1301
      %v1303 = vlaneseq
      %v1304 = vshrl.u32 %v1303, 7
      %v1305 = vsub.s32 %v1302, %v1304
      %v1306 = vrot.slane %v1298, %v1305
      %v1308 = vunpack.c.l.s4 1934713408
      %v1309 = vunpack.c.0.s8 %v1308
      %v1310 = vlaneseq
      %v1311 = vshrl.u32 %v1310, 7
      %v1312 = vsub.s32 %v1309, %v1311
      %v1313 = vrot.slane %v1299, %v1312
      %v1314 = vcombine.low %v1290, %v1306
      %v1315 = vcombine.high %v1290, %v1306
      %v1316 = vcombine.low %v1297, %v1313
      %v1317 = vcombine.high %v1297, %v1313
      %v1318 = vpack.c.bf16 %v1314, %v1246
      %v1319 = vpack.c.bf16 %v1315, %v1247
      %v1320 = vpack.c.bf16 %v1316, %v1248
      %v1321 = vpack.c.bf16 %v1317, %v1249
      %1322 = vrot.lane.b32.xlu0 %v720, 64
      %v1323 = vpop.permute.xlu0 %1322
      %1324 = vrot.lane.b32.xlu0 %v723, 64
      %v1325 = vpop.permute.xlu0 %1324
      %1326 = vrot.lane.b32.xlu0 %v729, 64
      %v1327 = vpop.permute.xlu0 %1326
      %1328 = vrot.lane.b32.xlu0 %v731, 64
      %v1329 = vpop.permute.xlu0 %1328
      %1330 = vrot.lane.b32.xlu0 %v735, 64
      %v1331 = vpop.permute.xlu0 %1330
      %1332 = vrot.lane.b32.xlu0 %v737, 64
      %v1333 = vpop.permute.xlu0 %1332
      %1334 = vrot.lane.b32.xlu0 %v741, 64
      %v1335 = vpop.permute.xlu0 %1334
      %1336 = vrot.lane.b32.xlu0 %v743, 64
      %v1337 = vpop.permute.xlu0 %1336
      %v1346 = vcombine.low %v1323, %v1331
      %v1347 = vcombine.high %v1323, %v1331
      %v1349 = vunpack.c.l.s4 1983009808
      %v1350 = vunpack.c.0.s8 %v1349
      %v1351 = vlaneseq
      %v1352 = vshrl.u32 %v1351, 7
      %v1353 = vsub.s32 %v1350, %v1352
      %v1354 = vrot.slane %v1346, %v1353
      %v1356 = vunpack.c.l.s4 1983009808
      %v1357 = vunpack.c.0.s8 %v1356
      %v1358 = vlaneseq
      %v1359 = vshrl.u32 %v1358, 7
      %v1360 = vsub.s32 %v1357, %v1359
      %v1361 = vrot.slane %v1347, %v1360
      %v1362 = vcombine.low %v1327, %v1335
      %v1363 = vcombine.high %v1327, %v1335
      %v1365 = vunpack.c.l.s4 1983009808
      %v1366 = vunpack.c.0.s8 %v1365
      %v1367 = vlaneseq
      %v1368 = vshrl.u32 %v1367, 7
      %v1369 = vsub.s32 %v1366, %v1368
      %v1370 = vrot.slane %v1362, %v1369
      %v1372 = vunpack.c.l.s4 1983009808
      %v1373 = vunpack.c.0.s8 %v1372
      %v1374 = vlaneseq
      %v1375 = vshrl.u32 %v1374, 7
      %v1376 = vsub.s32 %v1373, %v1375
      %v1377 = vrot.slane %v1363, %v1376
      %v1378 = vcombine.low %v1354, %v1370
      %v1379 = vcombine.high %v1354, %v1370
      %v1381 = vunpack.c.l.s4 1934713408
      %v1382 = vunpack.c.0.s8 %v1381
      %v1383 = vlaneseq
      %v1384 = vshrl.u32 %v1383, 7
      %v1385 = vsub.s32 %v1382, %v1384
      %v1386 = vrot.slane %v1378, %v1385
      %v1388 = vunpack.c.l.s4 1934713408
      %v1389 = vunpack.c.0.s8 %v1388
      %v1390 = vlaneseq
      %v1391 = vshrl.u32 %v1390, 7
      %v1392 = vsub.s32 %v1389, %v1391
      %v1393 = vrot.slane %v1379, %v1392
      %v1394 = vcombine.low %v1361, %v1377
      %v1395 = vcombine.high %v1361, %v1377
      %v1397 = vunpack.c.l.s4 1934713408
      %v1398 = vunpack.c.0.s8 %v1397
      %v1399 = vlaneseq
      %v1400 = vshrl.u32 %v1399, 7
      %v1401 = vsub.s32 %v1398, %v1400
      %v1402 = vrot.slane %v1394, %v1401
      %v1404 = vunpack.c.l.s4 1934713408
      %v1405 = vunpack.c.0.s8 %v1404
      %v1406 = vlaneseq
      %v1407 = vshrl.u32 %v1406, 7
      %v1408 = vsub.s32 %v1405, %v1407
      %v1409 = vrot.slane %v1395, %v1408
      %v1410 = vcombine.high %v1386, 0.0
      %v1411 = vcombine.high %v1393, 0.0
      %v1412 = vcombine.high %v1402, 0.0
      %v1413 = vcombine.high %v1409, 0.0
      %v1414 = vcombine.low %v1325, %v1333
      %v1415 = vcombine.high %v1325, %v1333
      %v1417 = vunpack.c.l.s4 1983009808
      %v1418 = vunpack.c.0.s8 %v1417
      %v1419 = vlaneseq
      %v1420 = vshrl.u32 %v1419, 7
      %v1421 = vsub.s32 %v1418, %v1420
      %v1422 = vrot.slane %v1414, %v1421
      %v1424 = vunpack.c.l.s4 1983009808
      %v1425 = vunpack.c.0.s8 %v1424
      %v1426 = vlaneseq
      %v1427 = vshrl.u32 %v1426, 7
      %v1428 = vsub.s32 %v1425, %v1427
      %v1429 = vrot.slane %v1415, %v1428
      %v1430 = vcombine.low %v1329, %v1337
      %v1431 = vcombine.high %v1329, %v1337
      %v1433 = vunpack.c.l.s4 1983009808
      %v1434 = vunpack.c.0.s8 %v1433
      %v1435 = vlaneseq
      %v1436 = vshrl.u32 %v1435, 7
      %v1437 = vsub.s32 %v1434, %v1436
      %v1438 = vrot.slane %v1430, %v1437
      %v1440 = vunpack.c.l.s4 1983009808
      %v1441 = vunpack.c.0.s8 %v1440
      %v1442 = vlaneseq
      %v1443 = vshrl.u32 %v1442, 7
      %v1444 = vsub.s32 %v1441, %v1443
      %v1445 = vrot.slane %v1431, %v1444
      %v1446 = vcombine.low %v1422, %v1438
      %v1447 = vcombine.high %v1422, %v1438
      %v1449 = vunpack.c.l.s4 1934713408
      %v1450 = vunpack.c.0.s8 %v1449
      %v1451 = vlaneseq
      %v1452 = vshrl.u32 %v1451, 7
      %v1453 = vsub.s32 %v1450, %v1452
      %v1454 = vrot.slane %v1446, %v1453
      %v1456 = vunpack.c.l.s4 1934713408
      %v1457 = vunpack.c.0.s8 %v1456
      %v1458 = vlaneseq
      %v1459 = vshrl.u32 %v1458, 7
      %v1460 = vsub.s32 %v1457, %v1459
      %v1461 = vrot.slane %v1447, %v1460
      %v1462 = vcombine.low %v1429, %v1445
      %v1463 = vcombine.high %v1429, %v1445
      %v1465 = vunpack.c.l.s4 1934713408
      %v1466 = vunpack.c.0.s8 %v1465
      %v1467 = vlaneseq
      %v1468 = vshrl.u32 %v1467, 7
      %v1469 = vsub.s32 %v1466, %v1468
      %v1470 = vrot.slane %v1462, %v1469
      %v1472 = vunpack.c.l.s4 1934713408
      %v1473 = vunpack.c.0.s8 %v1472
      %v1474 = vlaneseq
      %v1475 = vshrl.u32 %v1474, 7
      %v1476 = vsub.s32 %v1473, %v1475
      %v1477 = vrot.slane %v1463, %v1476
      %v1478 = vcombine.high %v1454, 0.0
      %v1479 = vcombine.high %v1461, 0.0
      %v1480 = vcombine.high %v1470, 0.0
      %v1481 = vcombine.high %v1477, 0.0
      %v1482 = vcombine.low %v1386, %v1393
      %v1484 = vunpack.c.l.s4 1983009808
      %v1485 = vunpack.c.0.s8 %v1484
      %v1486 = vlaneseq
      %v1487 = vshrl.u32 %v1486, 7
      %v1488 = vsub.s32 %v1485, %v1487
      %v1489 = vrot.slane %v1482, %v1488
      %v1490 = vcombine.low %v1410, %v1411
      %v1492 = vunpack.c.l.s4 1983009808
      %v1493 = vunpack.c.0.s8 %v1492
      %v1494 = vlaneseq
      %v1495 = vshrl.u32 %v1494, 7
      %v1496 = vsub.s32 %v1493, %v1495
      %v1497 = vrot.slane %v1490, %v1496
      %v1498 = vcombine.low %v1402, %v1409
      %v1500 = vunpack.c.l.s4 1983009808
      %v1501 = vunpack.c.0.s8 %v1500
      %v1502 = vlaneseq
      %v1503 = vshrl.u32 %v1502, 7
      %v1504 = vsub.s32 %v1501, %v1503
      %v1505 = vrot.slane %v1498, %v1504
      %v1506 = vcombine.low %v1412, %v1413
      %v1508 = vunpack.c.l.s4 1983009808
      %v1509 = vunpack.c.0.s8 %v1508
      %v1510 = vlaneseq
      %v1511 = vshrl.u32 %v1510, 7
      %v1512 = vsub.s32 %v1509, %v1511
      %v1513 = vrot.slane %v1506, %v1512
      %v1514 = vcombine.low %v1489, %v1497
      %v1515 = vcombine.high %v1489, %v1497
      %v1517 = vunpack.c.l.s4 1934713408
      %v1518 = vunpack.c.0.s8 %v1517
      %v1519 = vlaneseq
      %v1520 = vshrl.u32 %v1519, 7
      %v1521 = vsub.s32 %v1518, %v1520
      %v1522 = vrot.slane %v1514, %v1521
      %v1524 = vunpack.c.l.s4 1934713408
      %v1525 = vunpack.c.0.s8 %v1524
      %v1526 = vlaneseq
      %v1527 = vshrl.u32 %v1526, 7
      %v1528 = vsub.s32 %v1525, %v1527
      %v1529 = vrot.slane %v1515, %v1528
      %v1530 = vcombine.low %v1505, %v1513
      %v1531 = vcombine.high %v1505, %v1513
      %v1533 = vunpack.c.l.s4 1934713408
      %v1534 = vunpack.c.0.s8 %v1533
      %v1535 = vlaneseq
      %v1536 = vshrl.u32 %v1535, 7
      %v1537 = vsub.s32 %v1534, %v1536
      %v1538 = vrot.slane %v1530, %v1537
      %v1540 = vunpack.c.l.s4 1934713408
      %v1541 = vunpack.c.0.s8 %v1540
      %v1542 = vlaneseq
      %v1543 = vshrl.u32 %v1542, 7
      %v1544 = vsub.s32 %v1541, %v1543
      %v1545 = vrot.slane %v1531, %v1544
      %v1546 = vcombine.low %v1522, %v1538
      %v1547 = vcombine.high %v1522, %v1538
      %v1548 = vcombine.low %v1529, %v1545
      %v1549 = vcombine.high %v1529, %v1545
      %v1550 = vcombine.low %v1454, %v1461
      %v1552 = vunpack.c.l.s4 1983009808
      %v1553 = vunpack.c.0.s8 %v1552
      %v1554 = vlaneseq
      %v1555 = vshrl.u32 %v1554, 7
      %v1556 = vsub.s32 %v1553, %v1555
      %v1557 = vrot.slane %v1550, %v1556
      %v1558 = vcombine.low %v1478, %v1479
      %v1560 = vunpack.c.l.s4 1983009808
      %v1561 = vunpack.c.0.s8 %v1560
      %v1562 = vlaneseq
      %v1563 = vshrl.u32 %v1562, 7
      %v1564 = vsub.s32 %v1561, %v1563
      %v1565 = vrot.slane %v1558, %v1564
      %v1566 = vcombine.low %v1470, %v1477
      %v1568 = vunpack.c.l.s4 1983009808
      %v1569 = vunpack.c.0.s8 %v1568
      %v1570 = vlaneseq
      %v1571 = vshrl.u32 %v1570, 7
      %v1572 = vsub.s32 %v1569, %v1571
      %v1573 = vrot.slane %v1566, %v1572
      %v1574 = vcombine.low %v1480, %v1481
      %v1576 = vunpack.c.l.s4 1983009808
      %v1577 = vunpack.c.0.s8 %v1576
      %v1578 = vlaneseq
      %v1579 = vshrl.u32 %v1578, 7
      %v1580 = vsub.s32 %v1577, %v1579
      %v1581 = vrot.slane %v1574, %v1580
      %v1582 = vcombine.low %v1557, %v1565
      %v1583 = vcombine.high %v1557, %v1565
      %v1585 = vunpack.c.l.s4 1934713408
      %v1586 = vunpack.c.0.s8 %v1585
      %v1587 = vlaneseq
      %v1588 = vshrl.u32 %v1587, 7
      %v1589 = vsub.s32 %v1586, %v1588
      %v1590 = vrot.slane %v1582, %v1589
      %v1592 = vunpack.c.l.s4 1934713408
      %v1593 = vunpack.c.0.s8 %v1592
      %v1594 = vlaneseq
      %v1595 = vshrl.u32 %v1594, 7
      %v1596 = vsub.s32 %v1593, %v1595
      %v1597 = vrot.slane %v1583, %v1596
      %v1598 = vcombine.low %v1573, %v1581
      %v1599 = vcombine.high %v1573, %v1581
      %v1601 = vunpack.c.l.s4 1934713408
      %v1602 = vunpack.c.0.s8 %v1601
      %v1603 = vlaneseq
      %v1604 = vshrl.u32 %v1603, 7
      %v1605 = vsub.s32 %v1602, %v1604
      %v1606 = vrot.slane %v1598, %v1605
      %v1608 = vunpack.c.l.s4 1934713408
      %v1609 = vunpack.c.0.s8 %v1608
      %v1610 = vlaneseq
      %v1611 = vshrl.u32 %v1610, 7
      %v1612 = vsub.s32 %v1609, %v1611
      %v1613 = vrot.slane %v1599, %v1612
      %v1614 = vcombine.low %v1590, %v1606
      %v1615 = vcombine.high %v1590, %v1606
      %v1616 = vcombine.low %v1597, %v1613
      %v1617 = vcombine.high %v1597, %v1613
      %v1618 = vpack.c.bf16 %v1614, %v1546
      %v1619 = vpack.c.bf16 %v1615, %v1547
      %v1620 = vpack.c.bf16 %v1616, %v1548
      %v1621 = vpack.c.bf16 %v1617, %v1549
      %vm1622 = vcmask 64512
      %v1624 = vsel %vm1622, %v1018, 0
      %v1627 = vsel %vm1622, %v1318, 0
      %1629 = vmatprep.subr.bf16.mxu0 0
      %1630 = vmatpush1.bf16.xpose.msra.mxu0 0
      %1631 = vmatprep.subr.bf16.mxu0 0
      %1632 = vmatpush1.bf16.xpose.msra.mxu0 0
      %1633 = vmatprep.subr.bf16.mxu0 0
      %1634 = vmatpush1.bf16.xpose.msra.mxu0 0
      %1635 = vmatprep.subr.bf16.mxu0 0
      %1636 = vmatpush1.bf16.xpose.msra.mxu0 0
      %1637 = vmatprep.subr.bf16.mxu0 0
      %1638 = vmatpush1.bf16.xpose.msra.mxu0 0
      %1639 = vmatprep.subr.bf16.mxu0 0
      %1640 = vmatpush1.bf16.xpose.msra.mxu0 0
      %1641 = vmatprep.subr.bf16.mxu0 0
      %1642 = vmatpush1.bf16.xpose.msra.mxu0 0
      %1643 = vmatprep.subr.bf16.mxu0 0
      %1644 = vmatpush1.bf16.xpose.msra.mxu0 %v1627
      %1645 = vmatprep.subr.bf16.mxu0 0
      %1646 = vmatpush2.bf16.xpose.msra.mxu0 0
      %1647 = vmatprep.subr.bf16.mxu0 0
      %1648 = vmatpush2.bf16.xpose.msra.mxu0 0
      %1649 = vmatprep.subr.bf16.mxu0 0
      %1650 = vmatpush2.bf16.xpose.msra.mxu0 0
      %1651 = vmatprep.subr.bf16.mxu0 0
      %1652 = vmatpush2.bf16.xpose.msra.mxu0 0
      %1653 = vmatprep.subr.bf16.mxu0 0
      %1654 = vmatpush2.bf16.xpose.msra.mxu0 0
      %1655 = vmatprep.subr.bf16.mxu0 0
      %1656 = vmatpush2.bf16.xpose.msra.mxu0 0
      %1657 = vmatprep.subr.bf16.mxu0 0
      %1658 = vmatpush2.bf16.xpose.msra.mxu0 0
      %1659 = vmatprep.subr.bf16.mxu0 0
      %1660 = vmatpush2.bf16.xpose.msra.mxu0 0
      %1661 = vmatprep.mubr.bf16.mxu0 0
      %1662 = vmatmul.mubr.bf16.gmra.mxu0 %v1624
      %v1663 = vpop.f32.mrf.mxu0
      %v1664 = vadd.f32 0.0, %v1663
      %v1665 = vpop.f32.mrf.mxu0
      %v1666 = vpop.f32.mrf.mxu0
      %v1667 = vadd.f32 0.0, %v1666
      %v1668 = vpop.f32.mrf.mxu0
      %1669 = vdwg.mxu0
      %v1671 = vsel %vm1622, %v1019, 0
      %v1674 = vsel %vm1622, %v1319, 0
      %1676 = vmatprep.subr.bf16.mxu0 0
      %1677 = vmatpush1.bf16.xpose.msra.mxu0 0
      %1678 = vmatprep.subr.bf16.mxu0 0
      %1679 = vmatpush1.bf16.xpose.msra.mxu0 0
      %1680 = vmatprep.subr.bf16.mxu0 0
      %1681 = vmatpush1.bf16.xpose.msra.mxu0 0
      %1682 = vmatprep.subr.bf16.mxu0 0
      %1683 = vmatpush1.bf16.xpose.msra.mxu0 0
      %1684 = vmatprep.subr.bf16.mxu0 0
      %1685 = vmatpush1.bf16.xpose.msra.mxu0 0
      %1686 = vmatprep.subr.bf16.mxu0 0
      %1687 = vmatpush1.bf16.xpose.msra.mxu0 0
      %1688 = vmatprep.subr.bf16.mxu0 0
      %1689 = vmatpush1.bf16.xpose.msra.mxu0 0
      %1690 = vmatprep.subr.bf16.mxu0 0
      %1691 = vmatpush1.bf16.xpose.msra.mxu0 %v1674
      %1692 = vmatprep.subr.bf16.mxu0 0
      %1693 = vmatpush2.bf16.xpose.msra.mxu0 0
      %1694 = vmatprep.subr.bf16.mxu0 0
      %1695 = vmatpush2.bf16.xpose.msra.mxu0 0
      %1696 = vmatprep.subr.bf16.mxu0 0
      %1697 = vmatpush2.bf16.xpose.msra.mxu0 0
      %1698 = vmatprep.subr.bf16.mxu0 0
      %1699 = vmatpush2.bf16.xpose.msra.mxu0 0
      %1700 = vmatprep.subr.bf16.mxu0 0
      %1701 = vmatpush2.bf16.xpose.msra.mxu0 0
      %1702 = vmatprep.subr.bf16.mxu0 0
      %1703 = vmatpush2.bf16.xpose.msra.mxu0 0
      %1704 = vmatprep.subr.bf16.mxu0 0
      %1705 = vmatpush2.bf16.xpose.msra.mxu0 0
      %1706 = vmatprep.subr.bf16.mxu0 0
      %1707 = vmatpush2.bf16.xpose.msra.mxu0 0
      %1708 = vmatprep.mubr.bf16.mxu0 0
      %1709 = vmatmul.mubr.bf16.gmra.mxu0 %v1671
      %v1710 = vpop.f32.mrf.mxu0
      %v1711 = vadd.f32 0.0, %v1710
      %v1712 = vpop.f32.mrf.mxu0
      %v1713 = vpop.f32.mrf.mxu0
      %v1714 = vadd.f32 0.0, %v1713
      %v1715 = vpop.f32.mrf.mxu0
      %1716 = vdwg.mxu0
      %v1718 = vsel %vm1622, %v1020, 0
      %v1721 = vsel %vm1622, %v1320, 0
      %1723 = vmatprep.subr.bf16.mxu0 0
      %1724 = vmatpush1.bf16.xpose.msra.mxu0 0
      %1725 = vmatprep.subr.bf16.mxu0 0
      %1726 = vmatpush1.bf16.xpose.msra.mxu0 0
      %1727 = vmatprep.subr.bf16.mxu0 0
      %1728 = vmatpush1.bf16.xpose.msra.mxu0 0
      %1729 = vmatprep.subr.bf16.mxu0 0
      %1730 = vmatpush1.bf16.xpose.msra.mxu0 0
      %1731 = vmatprep.subr.bf16.mxu0 0
      %1732 = vmatpush1.bf16.xpose.msra.mxu0 0
      %1733 = vmatprep.subr.bf16.mxu0 0
      %1734 = vmatpush1.bf16.xpose.msra.mxu0 0
      %1735 = vmatprep.subr.bf16.mxu0 0
      %1736 = vmatpush1.bf16.xpose.msra.mxu0 0
      %1737 = vmatprep.subr.bf16.mxu0 0
      %1738 = vmatpush1.bf16.xpose.msra.mxu0 %v1721
      %1739 = vmatprep.subr.bf16.mxu0 0
      %1740 = vmatpush2.bf16.xpose.msra.mxu0 0
      %1741 = vmatprep.subr.bf16.mxu0 0
      %1742 = vmatpush2.bf16.xpose.msra.mxu0 0
      %1743 = vmatprep.subr.bf16.mxu0 0
      %1744 = vmatpush2.bf16.xpose.msra.mxu0 0
      %1745 = vmatprep.subr.bf16.mxu0 0
      %1746 = vmatpush2.bf16.xpose.msra.mxu0 0
      %1747 = vmatprep.subr.bf16.mxu0 0
      %1748 = vmatpush2.bf16.xpose.msra.mxu0 0
      %1749 = vmatprep.subr.bf16.mxu0 0
      %1750 = vmatpush2.bf16.xpose.msra.mxu0 0
      %1751 = vmatprep.subr.bf16.mxu0 0
      %1752 = vmatpush2.bf16.xpose.msra.mxu0 0
      %1753 = vmatprep.subr.bf16.mxu0 0
      %1754 = vmatpush2.bf16.xpose.msra.mxu0 0
      %1755 = vmatprep.mubr.bf16.mxu0 0
      %1756 = vmatmul.mubr.bf16.gmra.mxu0 %v1718
      %v1757 = vpop.f32.mrf.mxu0
      %v1758 = vadd.f32 0.0, %v1757
      %v1759 = vpop.f32.mrf.mxu0
      %v1760 = vpop.f32.mrf.mxu0
      %v1761 = vadd.f32 0.0, %v1760
      %v1762 = vpop.f32.mrf.mxu0
      %1763 = vdwg.mxu0
      %v1765 = vsel %vm1622, %v1021, 0
      %v1768 = vsel %vm1622, %v1321, 0
      %1770 = vmatprep.subr.bf16.mxu0 0
      %1771 = vmatpush1.bf16.xpose.msra.mxu0 0
      %1772 = vmatprep.subr.bf16.mxu0 0
      %1773 = vmatpush1.bf16.xpose.msra.mxu0 0
      %1774 = vmatprep.subr.bf16.mxu0 0
      %1775 = vmatpush1.bf16.xpose.msra.mxu0 0
      %1776 = vmatprep.subr.bf16.mxu0 0
      %1777 = vmatpush1.bf16.xpose.msra.mxu0 0
      %1778 = vmatprep.subr.bf16.mxu0 0
      %1779 = vmatpush1.bf16.xpose.msra.mxu0 0
      %1780 = vmatprep.subr.bf16.mxu0 0
      %1781 = vmatpush1.bf16.xpose.msra.mxu0 0
      %1782 = vmatprep.subr.bf16.mxu0 0
      %1783 = vmatpush1.bf16.xpose.msra.mxu0 0
      %1784 = vmatprep.subr.bf16.mxu0 0
      %1785 = vmatpush1.bf16.xpose.msra.mxu0 %v1768
      %1786 = vmatprep.subr.bf16.mxu0 0
      %1787 = vmatpush2.bf16.xpose.msra.mxu0 0
      %1788 = vmatprep.subr.bf16.mxu0 0
      %1789 = vmatpush2.bf16.xpose.msra.mxu0 0
      %1790 = vmatprep.subr.bf16.mxu0 0
      %1791 = vmatpush2.bf16.xpose.msra.mxu0 0
      %1792 = vmatprep.subr.bf16.mxu0 0
      %1793 = vmatpush2.bf16.xpose.msra.mxu0 0
      %1794 = vmatprep.subr.bf16.mxu0 0
      %1795 = vmatpush2.bf16.xpose.msra.mxu0 0
      %1796 = vmatprep.subr.bf16.mxu0 0
      %1797 = vmatpush2.bf16.xpose.msra.mxu0 0
      %1798 = vmatprep.subr.bf16.mxu0 0
      %1799 = vmatpush2.bf16.xpose.msra.mxu0 0
      %1800 = vmatprep.subr.bf16.mxu0 0
      %1801 = vmatpush2.bf16.xpose.msra.mxu0 0
      %1802 = vmatprep.mubr.bf16.mxu0 0
      %1803 = vmatmul.mubr.bf16.gmra.mxu0 %v1765
      %v1804 = vpop.f32.mrf.mxu0
      %v1805 = vadd.f32 0.0, %v1804
      %v1806 = vpop.f32.mrf.mxu0
      %v1807 = vpop.f32.mrf.mxu0
      %v1808 = vadd.f32 0.0, %v1807
      %v1809 = vpop.f32.mrf.mxu0
      %1810 = vdwg.mxu0
      %v1811 = vmul.f32 %v1664, 0.35355338
      %v1812 = vmul.f32 %v1667, 0.35355338
      %v1813 = vmul.f32 %v1711, 0.35355338
      %v1814 = vmul.f32 %v1714, 0.35355338
      %v1815 = vmul.f32 %v1758, 0.35355338
      %v1816 = vmul.f32 %v1761, 0.35355338
      %v1817 = vmul.f32 %v1805, 0.35355338
      %v1818 = vmul.f32 %v1808, 0.35355338
      %vm1819 = vcmask 130048
      %v1820 = vsel %vm1819, %v1811, -inf
      %1821 = vmax.xlane.f32.xlu0 %v1820
      %v1822 = vpop.xlane.xlu0 %1821
      %v1823 = vsel %vm1819, %v1812, -inf
      %1824 = vmax.xlane.f32.xlu0 %v1823
      %v1825 = vpop.xlane.xlu0 %1824
      %v1826 = vsel %vm1819, %v1813, -inf
      %1827 = vmax.xlane.f32.xlu0 %v1826
      %v1828 = vpop.xlane.xlu0 %1827
      %v1829 = vsel %vm1819, %v1814, -inf
      %1830 = vmax.xlane.f32.xlu0 %v1829
      %v1831 = vpop.xlane.xlu0 %1830
      %v1832 = vsel %vm1819, %v1815, -inf
      %1833 = vmax.xlane.f32.xlu0 %v1832
      %v1834 = vpop.xlane.xlu0 %1833
      %v1835 = vsel %vm1819, %v1816, -inf
      %1836 = vmax.xlane.f32.xlu0 %v1835
      %v1837 = vpop.xlane.xlu0 %1836
      %v1838 = vsel %vm1819, %v1817, -inf
      %1839 = vmax.xlane.f32.xlu0 %v1838
      %v1840 = vpop.xlane.xlu0 %1839
      %v1841 = vsel %vm1819, %v1818, -inf
      %1842 = vmax.xlane.f32.xlu0 %v1841
      %v1843 = vpop.xlane.xlu0 %1842
      %v1844 = vsub.f32 %v1811, %v1822
      %v1845 = vsub.f32 %v1812, %v1825
      %v1846 = vsub.f32 %v1813, %v1828
      %v1847 = vsub.f32 %v1814, %v1831
      %v1848 = vsub.f32 %v1815, %v1834
      %v1849 = vsub.f32 %v1816, %v1837
      %v1850 = vsub.f32 %v1817, %v1840
      %v1851 = vsub.f32 %v1818, %v1843
      %v1852 = vmul.f32 %v1844, 1.442695
      %v1853 = vpow.pop %v1852
      %v1854 = vmul.f32 %v1845, 1.442695
      %v1855 = vpow.pop %v1854
      %v1856 = vmul.f32 %v1846, 1.442695
      %v1857 = vpow.pop %v1856
      %v1858 = vmul.f32 %v1847, 1.442695
      %v1859 = vpow.pop %v1858
      %v1860 = vmul.f32 %v1848, 1.442695
      %v1861 = vpow.pop %v1860
      %v1862 = vmul.f32 %v1849, 1.442695
      %v1863 = vpow.pop %v1862
      %v1864 = vmul.f32 %v1850, 1.442695
      %v1865 = vpow.pop %v1864
      %v1866 = vmul.f32 %v1851, 1.442695
      %v1867 = vpow.pop %v1866
      %v1868 = vsel %vm1819, %v1853, 0.0
      %1869 = vadd.xlane.f32.xlu0 %v1868
      %v1870 = vpop.xlane.xlu0 %1869
      %v1871 = vsel %vm1819, %v1855, 0.0
      %1872 = vadd.xlane.f32.xlu0 %v1871
      %v1873 = vpop.xlane.xlu0 %1872
      %v1874 = vsel %vm1819, %v1857, 0.0
      %1875 = vadd.xlane.f32.xlu0 %v1874
      %v1876 = vpop.xlane.xlu0 %1875
      %v1877 = vsel %vm1819, %v1859, 0.0
      %1878 = vadd.xlane.f32.xlu0 %v1877
      %v1879 = vpop.xlane.xlu0 %1878
      %v1880 = vsel %vm1819, %v1861, 0.0
      %1881 = vadd.xlane.f32.xlu0 %v1880
      %v1882 = vpop.xlane.xlu0 %1881
      %v1883 = vsel %vm1819, %v1863, 0.0
      %1884 = vadd.xlane.f32.xlu0 %v1883
      %v1885 = vpop.xlane.xlu0 %1884
      %v1886 = vsel %vm1819, %v1865, 0.0
      %1887 = vadd.xlane.f32.xlu0 %v1886
      %v1888 = vpop.xlane.xlu0 %1887
      %v1889 = vsel %vm1819, %v1867, 0.0
      %1890 = vadd.xlane.f32.xlu0 %v1889
      %v1891 = vpop.xlane.xlu0 %1890
      %v1892 = vpack.c.bf16 %v1855, %v1853
      %v1893 = vpack.c.bf16 %v1859, %v1857
      %v1894 = vpack.c.bf16 %v1863, %v1861
      %v1895 = vpack.c.bf16 %v1867, %v1865
      %v1897 = vsel %vm1819, %v1892, 0
      %1899 = vmatprep.subr.bf16.mxu0 0
      %1900 = vmatpush1.bf16.msra.mxu0 0
      %1901 = vmatprep.subr.bf16.mxu0 0
      %1902 = vmatpush1.bf16.msra.mxu0 0
      %1903 = vmatprep.subr.bf16.mxu0 0
      %1904 = vmatpush1.bf16.msra.mxu0 0
      %1905 = vmatprep.subr.bf16.mxu0 0
      %1906 = vmatpush1.bf16.msra.mxu0 0
      %1907 = vmatprep.subr.bf16.mxu0 0
      %1908 = vmatpush1.bf16.msra.mxu0 0
      %1909 = vmatprep.subr.bf16.mxu0 0
      %1910 = vmatpush1.bf16.msra.mxu0 0
      %1911 = vmatprep.subr.bf16.mxu0 0
      %1912 = vmatpush1.bf16.msra.mxu0 0
      %1913 = vmatprep.subr.bf16.mxu0 0
      %1914 = vmatpush1.bf16.msra.mxu0 %v1618
      %1915 = vmatprep.subr.bf16.mxu0 0
      %1916 = vmatpush2.bf16.msra.mxu0 0
      %1917 = vmatprep.subr.bf16.mxu0 0
      %1918 = vmatpush2.bf16.msra.mxu0 0
      %1919 = vmatprep.subr.bf16.mxu0 0
      %1920 = vmatpush2.bf16.msra.mxu0 0
      %1921 = vmatprep.subr.bf16.mxu0 0
      %1922 = vmatpush2.bf16.msra.mxu0 0
      %1923 = vmatprep.subr.bf16.mxu0 0
      %1924 = vmatpush2.bf16.msra.mxu0 0
      %1925 = vmatprep.subr.bf16.mxu0 0
      %1926 = vmatpush2.bf16.msra.mxu0 0
      %1927 = vmatprep.subr.bf16.mxu0 0
      %1928 = vmatpush2.bf16.msra.mxu0 0
      %1929 = vmatprep.subr.bf16.mxu0 0
      %1930 = vmatpush2.bf16.msra.mxu0 0
      %1931 = vmatprep.mubr.bf16.mxu0 0
      %1932 = vmatmul.mubr.bf16.gmra.mxu0 %v1897
      %v1933 = vpop.f32.mrf.mxu0
      %v1934 = vadd.f32 0.0, %v1933
      %v1935 = vpop.f32.mrf.mxu0
      %v1936 = vpop.f32.mrf.mxu0
      %v1937 = vadd.f32 0.0, %v1936
      %v1938 = vpop.f32.mrf.mxu0
      %1939 = vdwg.mxu0
      %v1941 = vsel %vm1819, %v1893, 0
      %1943 = vmatprep.subr.bf16.mxu0 0
      %1944 = vmatpush1.bf16.msra.mxu0 0
      %1945 = vmatprep.subr.bf16.mxu0 0
      %1946 = vmatpush1.bf16.msra.mxu0 0
      %1947 = vmatprep.subr.bf16.mxu0 0
      %1948 = vmatpush1.bf16.msra.mxu0 0
      %1949 = vmatprep.subr.bf16.mxu0 0
      %1950 = vmatpush1.bf16.msra.mxu0 0
      %1951 = vmatprep.subr.bf16.mxu0 0
      %1952 = vmatpush1.bf16.msra.mxu0 0
      %1953 = vmatprep.subr.bf16.mxu0 0
      %1954 = vmatpush1.bf16.msra.mxu0 0
      %1955 = vmatprep.subr.bf16.mxu0 0
      %1956 = vmatpush1.bf16.msra.mxu0 0
      %1957 = vmatprep.subr.bf16.mxu0 0
      %1958 = vmatpush1.bf16.msra.mxu0 %v1619
      %1959 = vmatprep.subr.bf16.mxu0 0
      %1960 = vmatpush2.bf16.msra.mxu0 0
      %1961 = vmatprep.subr.bf16.mxu0 0
      %1962 = vmatpush2.bf16.msra.mxu0 0
      %1963 = vmatprep.subr.bf16.mxu0 0
      %1964 = vmatpush2.bf16.msra.mxu0 0
      %1965 = vmatprep.subr.bf16.mxu0 0
      %1966 = vmatpush2.bf16.msra.mxu0 0
      %1967 = vmatprep.subr.bf16.mxu0 0
      %1968 = vmatpush2.bf16.msra.mxu0 0
      %1969 = vmatprep.subr.bf16.mxu0 0
      %1970 = vmatpush2.bf16.msra.mxu0 0
      %1971 = vmatprep.subr.bf16.mxu0 0
      %1972 = vmatpush2.bf16.msra.mxu0 0
      %1973 = vmatprep.subr.bf16.mxu0 0
      %1974 = vmatpush2.bf16.msra.mxu0 0
      %1975 = vmatprep.mubr.bf16.mxu0 0
      %1976 = vmatmul.mubr.bf16.gmra.mxu0 %v1941
      %v1977 = vpop.f32.mrf.mxu0
      %v1978 = vadd.f32 0.0, %v1977
      %v1979 = vpop.f32.mrf.mxu0
      %v1980 = vpop.f32.mrf.mxu0
      %v1981 = vadd.f32 0.0, %v1980
      %v1982 = vpop.f32.mrf.mxu0
      %1983 = vdwg.mxu0
      %v1985 = vsel %vm1819, %v1894, 0
      %1987 = vmatprep.subr.bf16.mxu0 0
      %1988 = vmatpush1.bf16.msra.mxu0 0
      %1989 = vmatprep.subr.bf16.mxu0 0
      %1990 = vmatpush1.bf16.msra.mxu0 0
      %1991 = vmatprep.subr.bf16.mxu0 0
      %1992 = vmatpush1.bf16.msra.mxu0 0
      %1993 = vmatprep.subr.bf16.mxu0 0
      %1994 = vmatpush1.bf16.msra.mxu0 0
      %1995 = vmatprep.subr.bf16.mxu0 0
      %1996 = vmatpush1.bf16.msra.mxu0 0
      %1997 = vmatprep.subr.bf16.mxu0 0
      %1998 = vmatpush1.bf16.msra.mxu0 0
      %1999 = vmatprep.subr.bf16.mxu0 0
      %2000 = vmatpush1.bf16.msra.mxu0 0
      %2001 = vmatprep.subr.bf16.mxu0 0
      %2002 = vmatpush1.bf16.msra.mxu0 %v1620
      %2003 = vmatprep.subr.bf16.mxu0 0
      %2004 = vmatpush2.bf16.msra.mxu0 0
      %2005 = vmatprep.subr.bf16.mxu0 0
      %2006 = vmatpush2.bf16.msra.mxu0 0
      %2007 = vmatprep.subr.bf16.mxu0 0
      %2008 = vmatpush2.bf16.msra.mxu0 0
      %2009 = vmatprep.subr.bf16.mxu0 0
      %2010 = vmatpush2.bf16.msra.mxu0 0
      %2011 = vmatprep.subr.bf16.mxu0 0
      %2012 = vmatpush2.bf16.msra.mxu0 0
      %2013 = vmatprep.subr.bf16.mxu0 0
      %2014 = vmatpush2.bf16.msra.mxu0 0
      %2015 = vmatprep.subr.bf16.mxu0 0
      %2016 = vmatpush2.bf16.msra.mxu0 0
      %2017 = vmatprep.subr.bf16.mxu0 0
      %2018 = vmatpush2.bf16.msra.mxu0 0
      %2019 = vmatprep.mubr.bf16.mxu0 0
      %2020 = vmatmul.mubr.bf16.gmra.mxu0 %v1985
      %v2021 = vpop.f32.mrf.mxu0
      %v2022 = vadd.f32 0.0, %v2021
      %v2023 = vpop.f32.mrf.mxu0
      %v2024 = vpop.f32.mrf.mxu0
      %v2025 = vadd.f32 0.0, %v2024
      %v2026 = vpop.f32.mrf.mxu0
      %2027 = vdwg.mxu0
      %v2029 = vsel %vm1819, %v1895, 0
      %2031 = vmatprep.subr.bf16.mxu0 0
      %2032 = vmatpush1.bf16.msra.mxu0 0
      %2033 = vmatprep.subr.bf16.mxu0 0
      %2034 = vmatpush1.bf16.msra.mxu0 0
      %2035 = vmatprep.subr.bf16.mxu0 0
      %2036 = vmatpush1.bf16.msra.mxu0 0
      %2037 = vmatprep.subr.bf16.mxu0 0
      %2038 = vmatpush1.bf16.msra.mxu0 0
      %2039 = vmatprep.subr.bf16.mxu0 0
      %2040 = vmatpush1.bf16.msra.mxu0 0
      %2041 = vmatprep.subr.bf16.mxu0 0
      %2042 = vmatpush1.bf16.msra.mxu0 0
      %2043 = vmatprep.subr.bf16.mxu0 0
      %2044 = vmatpush1.bf16.msra.mxu0 0
      %2045 = vmatprep.subr.bf16.mxu0 0
      %2046 = vmatpush1.bf16.msra.mxu0 %v1621
      %2047 = vmatprep.subr.bf16.mxu0 0
      %2048 = vmatpush2.bf16.msra.mxu0 0
      %2049 = vmatprep.subr.bf16.mxu0 0
      %2050 = vmatpush2.bf16.msra.mxu0 0
      %2051 = vmatprep.subr.bf16.mxu0 0
      %2052 = vmatpush2.bf16.msra.mxu0 0
      %2053 = vmatprep.subr.bf16.mxu0 0
      %2054 = vmatpush2.bf16.msra.mxu0 0
      %2055 = vmatprep.subr.bf16.mxu0 0
      %2056 = vmatpush2.bf16.msra.mxu0 0
      %2057 = vmatprep.subr.bf16.mxu0 0
      %2058 = vmatpush2.bf16.msra.mxu0 0
      %2059 = vmatprep.subr.bf16.mxu0 0
      %2060 = vmatpush2.bf16.msra.mxu0 0
      %2061 = vmatprep.subr.bf16.mxu0 0
      %2062 = vmatpush2.bf16.msra.mxu0 0
      %2063 = vmatprep.mubr.bf16.mxu0 0
      %2064 = vmatmul.mubr.bf16.gmra.mxu0 %v2029
      %v2065 = vpop.f32.mrf.mxu0
      %v2066 = vadd.f32 0.0, %v2065
      %v2067 = vpop.f32.mrf.mxu0
      %v2068 = vpop.f32.mrf.mxu0
      %v2069 = vadd.f32 0.0, %v2068
      %v2070 = vpop.f32.mrf.mxu0
      %2071 = vdwg.mxu0
      %v2072 = vrcp.pop %v1870
      %v2073 = vrcp.pop %v1873
      %v2074 = vrcp.pop %v1876
      %v2075 = vrcp.pop %v1879
      %v2076 = vrcp.pop %v1882
      %v2077 = vrcp.pop %v1885
      %v2078 = vrcp.pop %v1888
      %v2079 = vrcp.pop %v1891
      %v2080 = vmul.f32 %v1934, %v2072
      %v2081 = vmul.f32 %v1937, %v2073
      %v2082 = vmul.f32 %v1978, %v2074
      %v2083 = vmul.f32 %v1981, %v2075
      %v2084 = vmul.f32 %v2022, %v2076
      %v2085 = vmul.f32 %v2025, %v2077
      %v2086 = vmul.f32 %v2066, %v2078
      %v2087 = vmul.f32 %v2069, %v2079
      %v2088 = vcombine.low %v2080, %v2084
      %v2089 = vcombine.high %v2080, %v2084
      %v2091 = vunpack.c.l.s4 1983009808
      %v2092 = vunpack.c.0.s8 %v2091
      %v2093 = vlaneseq
      %v2094 = vshrl.u32 %v2093, 7
      %v2095 = vsub.s32 %v2092, %v2094
      %v2096 = vrot.slane %v2088, %v2095
      %v2098 = vunpack.c.l.s4 1983009808
      %v2099 = vunpack.c.0.s8 %v2098
      %v2100 = vlaneseq
      %v2101 = vshrl.u32 %v2100, 7
      %v2102 = vsub.s32 %v2099, %v2101
      %v2103 = vrot.slane %v2089, %v2102
      %v2104 = vcombine.low %v2082, %v2086
      %v2105 = vcombine.high %v2082, %v2086
      %v2107 = vunpack.c.l.s4 1983009808
      %v2108 = vunpack.c.0.s8 %v2107
      %v2109 = vlaneseq
      %v2110 = vshrl.u32 %v2109, 7
      %v2111 = vsub.s32 %v2108, %v2110
      %v2112 = vrot.slane %v2104, %v2111
      %v2114 = vunpack.c.l.s4 1983009808
      %v2115 = vunpack.c.0.s8 %v2114
      %v2116 = vlaneseq
      %v2117 = vshrl.u32 %v2116, 7
      %v2118 = vsub.s32 %v2115, %v2117
      %v2119 = vrot.slane %v2105, %v2118
      %v2120 = vcombine.low %v2096, %v2112
      %v2121 = vcombine.high %v2096, %v2112
      %v2123 = vunpack.c.l.s4 1934713408
      %v2124 = vunpack.c.0.s8 %v2123
      %v2125 = vlaneseq
      %v2126 = vshrl.u32 %v2125, 7
      %v2127 = vsub.s32 %v2124, %v2126
      %v2128 = vrot.slane %v2120, %v2127
      %v2130 = vunpack.c.l.s4 1934713408
      %v2131 = vunpack.c.0.s8 %v2130
      %v2132 = vlaneseq
      %v2133 = vshrl.u32 %v2132, 7
      %v2134 = vsub.s32 %v2131, %v2133
      %v2135 = vrot.slane %v2121, %v2134
      %v2136 = vcombine.low %v2103, %v2119
      %v2137 = vcombine.high %v2103, %v2119
      %v2139 = vunpack.c.l.s4 1934713408
      %v2140 = vunpack.c.0.s8 %v2139
      %v2141 = vlaneseq
      %v2142 = vshrl.u32 %v2141, 7
      %v2143 = vsub.s32 %v2140, %v2142
      %v2144 = vrot.slane %v2136, %v2143
      %v2146 = vunpack.c.l.s4 1934713408
      %v2147 = vunpack.c.0.s8 %v2146
      %v2148 = vlaneseq
      %v2149 = vshrl.u32 %v2148, 7
      %v2150 = vsub.s32 %v2147, %v2149
      %v2151 = vrot.slane %v2137, %v2150
      %v2152 = vcombine.high %v2128, 0.0
      %v2153 = vcombine.high %v2135, 0.0
      %v2154 = vcombine.high %v2144, 0.0
      %v2155 = vcombine.high %v2151, 0.0
      %v2156 = vcombine.low %v2081, %v2085
      %v2157 = vcombine.high %v2081, %v2085
      %v2159 = vunpack.c.l.s4 1983009808
      %v2160 = vunpack.c.0.s8 %v2159
      %v2161 = vlaneseq
      %v2162 = vshrl.u32 %v2161, 7
      %v2163 = vsub.s32 %v2160, %v2162
      %v2164 = vrot.slane %v2156, %v2163
      %v2166 = vunpack.c.l.s4 1983009808
      %v2167 = vunpack.c.0.s8 %v2166
      %v2168 = vlaneseq
      %v2169 = vshrl.u32 %v2168, 7
      %v2170 = vsub.s32 %v2167, %v2169
      %v2171 = vrot.slane %v2157, %v2170
      %v2172 = vcombine.low %v2083, %v2087
      %v2173 = vcombine.high %v2083, %v2087
      %v2175 = vunpack.c.l.s4 1983009808
      %v2176 = vunpack.c.0.s8 %v2175
      %v2177 = vlaneseq
      %v2178 = vshrl.u32 %v2177, 7
      %v2179 = vsub.s32 %v2176, %v2178
      %v2180 = vrot.slane %v2172, %v2179
      %v2182 = vunpack.c.l.s4 1983009808
      %v2183 = vunpack.c.0.s8 %v2182
      %v2184 = vlaneseq
      %v2185 = vshrl.u32 %v2184, 7
      %v2186 = vsub.s32 %v2183, %v2185
      %v2187 = vrot.slane %v2173, %v2186
      %v2188 = vcombine.low %v2164, %v2180
      %v2189 = vcombine.high %v2164, %v2180
      %v2191 = vunpack.c.l.s4 1934713408
      %v2192 = vunpack.c.0.s8 %v2191
      %v2193 = vlaneseq
      %v2194 = vshrl.u32 %v2193, 7
      %v2195 = vsub.s32 %v2192, %v2194
      %v2196 = vrot.slane %v2188, %v2195
      %v2198 = vunpack.c.l.s4 1934713408
      %v2199 = vunpack.c.0.s8 %v2198
      %v2200 = vlaneseq
      %v2201 = vshrl.u32 %v2200, 7
      %v2202 = vsub.s32 %v2199, %v2201
      %v2203 = vrot.slane %v2189, %v2202
      %v2204 = vcombine.low %v2171, %v2187
      %v2205 = vcombine.high %v2171, %v2187
      %v2207 = vunpack.c.l.s4 1934713408
      %v2208 = vunpack.c.0.s8 %v2207
      %v2209 = vlaneseq
      %v2210 = vshrl.u32 %v2209, 7
      %v2211 = vsub.s32 %v2208, %v2210
      %v2212 = vrot.slane %v2204, %v2211
      %v2214 = vunpack.c.l.s4 1934713408
      %v2215 = vunpack.c.0.s8 %v2214
      %v2216 = vlaneseq
      %v2217 = vshrl.u32 %v2216, 7
      %v2218 = vsub.s32 %v2215, %v2217
      %v2219 = vrot.slane %v2205, %v2218
      %v2220 = vcombine.high %v2196, 0.0
      %v2221 = vcombine.high %v2203, 0.0
      %v2222 = vcombine.high %v2212, 0.0
      %v2223 = vcombine.high %v2219, 0.0
      %v2224 = vcombine.low %v2128, %v2135
      %v2226 = vunpack.c.l.s4 1983009808
      %v2227 = vunpack.c.0.s8 %v2226
      %v2228 = vlaneseq
      %v2229 = vshrl.u32 %v2228, 7
      %v2230 = vsub.s32 %v2227, %v2229
      %v2231 = vrot.slane %v2224, %v2230
      %v2232 = vcombine.low %v2152, %v2153
      %v2234 = vunpack.c.l.s4 1983009808
      %v2235 = vunpack.c.0.s8 %v2234
      %v2236 = vlaneseq
      %v2237 = vshrl.u32 %v2236, 7
      %v2238 = vsub.s32 %v2235, %v2237
      %v2239 = vrot.slane %v2232, %v2238
      %v2240 = vcombine.low %v2144, %v2151
      %v2242 = vunpack.c.l.s4 1983009808
      %v2243 = vunpack.c.0.s8 %v2242
      %v2244 = vlaneseq
      %v2245 = vshrl.u32 %v2244, 7
      %v2246 = vsub.s32 %v2243, %v2245
      %v2247 = vrot.slane %v2240, %v2246
      %v2248 = vcombine.low %v2154, %v2155
      %v2250 = vunpack.c.l.s4 1983009808
      %v2251 = vunpack.c.0.s8 %v2250
      %v2252 = vlaneseq
      %v2253 = vshrl.u32 %v2252, 7
      %v2254 = vsub.s32 %v2251, %v2253
      %v2255 = vrot.slane %v2248, %v2254
      %v2256 = vcombine.low %v2231, %v2239
      %v2257 = vcombine.high %v2231, %v2239
      %v2259 = vunpack.c.l.s4 1934713408
      %v2260 = vunpack.c.0.s8 %v2259
      %v2261 = vlaneseq
      %v2262 = vshrl.u32 %v2261, 7
      %v2263 = vsub.s32 %v2260, %v2262
      %v2264 = vrot.slane %v2256, %v2263
      %v2266 = vunpack.c.l.s4 1934713408
      %v2267 = vunpack.c.0.s8 %v2266
      %v2268 = vlaneseq
      %v2269 = vshrl.u32 %v2268, 7
      %v2270 = vsub.s32 %v2267, %v2269
      %v2271 = vrot.slane %v2257, %v2270
      %v2272 = vcombine.low %v2247, %v2255
      %v2273 = vcombine.high %v2247, %v2255
      %v2275 = vunpack.c.l.s4 1934713408
      %v2276 = vunpack.c.0.s8 %v2275
      %v2277 = vlaneseq
      %v2278 = vshrl.u32 %v2277, 7
      %v2279 = vsub.s32 %v2276, %v2278
      %v2280 = vrot.slane %v2272, %v2279
      %v2282 = vunpack.c.l.s4 1934713408
      %v2283 = vunpack.c.0.s8 %v2282
      %v2284 = vlaneseq
      %v2285 = vshrl.u32 %v2284, 7
      %v2286 = vsub.s32 %v2283, %v2285
      %v2287 = vrot.slane %v2273, %v2286
      %v2288 = vcombine.low %v2264, %v2280
      %v2289 = vcombine.high %v2264, %v2280
      %v2290 = vcombine.low %v2271, %v2287
      %v2291 = vcombine.high %v2271, %v2287
      %v2292 = vcombine.low %v2196, %v2203
      %v2294 = vunpack.c.l.s4 1983009808
      %v2295 = vunpack.c.0.s8 %v2294
      %v2296 = vlaneseq
      %v2297 = vshrl.u32 %v2296, 7
      %v2298 = vsub.s32 %v2295, %v2297
      %v2299 = vrot.slane %v2292, %v2298
      %v2300 = vcombine.low %v2220, %v2221
      %v2302 = vunpack.c.l.s4 1983009808
      %v2303 = vunpack.c.0.s8 %v2302
      %v2304 = vlaneseq
      %v2305 = vshrl.u32 %v2304, 7
      %v2306 = vsub.s32 %v2303, %v2305
      %v2307 = vrot.slane %v2300, %v2306
      %v2308 = vcombine.low %v2212, %v2219
      %v2310 = vunpack.c.l.s4 1983009808
      %v2311 = vunpack.c.0.s8 %v2310
      %v2312 = vlaneseq
      %v2313 = vshrl.u32 %v2312, 7
      %v2314 = vsub.s32 %v2311, %v2313
      %v2315 = vrot.slane %v2308, %v2314
      %v2316 = vcombine.low %v2222, %v2223
      %v2318 = vunpack.c.l.s4 1983009808
      %v2319 = vunpack.c.0.s8 %v2318
      %v2320 = vlaneseq
      %v2321 = vshrl.u32 %v2320, 7
      %v2322 = vsub.s32 %v2319, %v2321
      %v2323 = vrot.slane %v2316, %v2322
      %v2324 = vcombine.low %v2299, %v2307
      %v2325 = vcombine.high %v2299, %v2307
      %v2327 = vunpack.c.l.s4 1934713408
      %v2328 = vunpack.c.0.s8 %v2327
      %v2329 = vlaneseq
      %v2330 = vshrl.u32 %v2329, 7
      %v2331 = vsub.s32 %v2328, %v2330
      %v2332 = vrot.slane %v2324, %v2331
      %v2334 = vunpack.c.l.s4 1934713408
      %v2335 = vunpack.c.0.s8 %v2334
      %v2336 = vlaneseq
      %v2337 = vshrl.u32 %v2336, 7
      %v2338 = vsub.s32 %v2335, %v2337
      %v2339 = vrot.slane %v2325, %v2338
      %v2340 = vcombine.low %v2315, %v2323
      %v2341 = vcombine.high %v2315, %v2323
      %v2343 = vunpack.c.l.s4 1934713408
      %v2344 = vunpack.c.0.s8 %v2343
      %v2345 = vlaneseq
      %v2346 = vshrl.u32 %v2345, 7
      %v2347 = vsub.s32 %v2344, %v2346
      %v2348 = vrot.slane %v2340, %v2347
      %v2350 = vunpack.c.l.s4 1934713408
      %v2351 = vunpack.c.0.s8 %v2350
      %v2352 = vlaneseq
      %v2353 = vshrl.u32 %v2352, 7
      %v2354 = vsub.s32 %v2351, %v2353
      %v2355 = vrot.slane %v2341, %v2354
      %v2356 = vcombine.low %v2332, %v2348
      %v2357 = vcombine.high %v2332, %v2348
      %v2358 = vcombine.low %v2339, %v2355
      %v2359 = vcombine.high %v2339, %v2355
      %2362 = vrot.lane.b32.xlu0 %v2289, 8
      %v2363 = vpop.permute.xlu0 %2362
      %2364 = vrot.lane.b32.xlu0 %v2357, 8
      %v2365 = vpop.permute.xlu0 %2364
      %2370 = vrot.lane.b32.xlu0 %v2290, 16
      %v2371 = vpop.permute.xlu0 %2370
      %2372 = vrot.lane.b32.xlu0 %v2358, 16
      %v2373 = vpop.permute.xlu0 %2372
      %2378 = vrot.lane.b32.xlu0 %v2291, 24
      %v2379 = vpop.permute.xlu0 %2378
      %2380 = vrot.lane.b32.xlu0 %v2359, 24
      %v2381 = vpop.permute.xlu0 %2380
      %v2384 = vsel %vm1622, %v2288, %v2363
      %v2385 = vsel %vm1622, %v2356, %v2365
      %v2386 = vsel %vm1819, %v2384, %v2371
      %v2387 = vsel %vm1819, %v2385, %v2373
      %vm2388 = vcmask 195584
      %v2389 = vsel %vm2388, %v2386, %v2379
      %v2390 = vsel %vm2388, %v2387, %v2381
      %v2391 = vld [vmem:[%s608] sm:$0xf]
      %v2392 = vld [vmem:[%s608 + $0x4] sm:$0xf]
      %v2393 = vld [vmem:[%s608 + $0x8] sm:$0xf]
      %v2394 = vld [vmem:[%s608 + $0xc] sm:$0xf]
      %v2395 = vld [vmem:[%s611] sm:$0x1]
      %v2396 = vpack.c.bf16 %v2390, %v2389
      %v2398 = vlaneseq
      %v2399 = vshrl.u32 %v2398, 7
      %v2400 = vsub.s32 0, %v2399
      %v2401 = vrot.slane %v2395, %v2400
      %v2407 = vunpack.c.l.b16 %v2391
      %v2408 = vunpack.c.l.b16 %v2392
      %v2409 = vunpack.c.l.b16 %v2393
      %v2410 = vunpack.c.l.b16 %v2394
      %v2411 = vpack.c.b16 %v2408, %v2407
      %v2412 = vpack.c.b16 %v2410, %v2409
      %v2416 = vsel %vm681, %v2396, 0
      %2418 = vmatprep.subr.bf16.mxu0 0
      %2419 = vmatpush1.bf16.msra.mxu0 0
      %2420 = vmatprep.subr.bf16.mxu0 0
      %2421 = vmatpush1.bf16.msra.mxu0 0
      %2422 = vmatprep.subr.bf16.mxu0 0
      %2423 = vmatpush1.bf16.msra.mxu0 0
      %2424 = vmatprep.subr.bf16.mxu0 0
      %2425 = vmatpush1.bf16.msra.mxu0 0
      %2426 = vmatprep.subr.bf16.mxu0 0
      %2427 = vmatpush1.bf16.msra.mxu0 0
      %2428 = vmatprep.subr.bf16.mxu0 0
      %2429 = vmatpush1.bf16.msra.mxu0 0
      %2430 = vmatprep.subr.bf16.mxu0 0
      %2431 = vmatpush1.bf16.msra.mxu0 %v2412
      %2432 = vmatprep.subr.bf16.mxu0 0
      %2433 = vmatpush1.bf16.msra.mxu0 %v2411
      %2434 = vmatprep.subr.bf16.mxu0 0
      %2435 = vmatpush2.bf16.msra.mxu0 0
      %2436 = vmatprep.subr.bf16.mxu0 0
      %2437 = vmatpush2.bf16.msra.mxu0 0
      %2438 = vmatprep.subr.bf16.mxu0 0
      %2439 = vmatpush2.bf16.msra.mxu0 0
      %2440 = vmatprep.subr.bf16.mxu0 0
      %2441 = vmatpush2.bf16.msra.mxu0 0
      %2442 = vmatprep.subr.bf16.mxu0 0
      %2443 = vmatpush2.bf16.msra.mxu0 0
      %2444 = vmatprep.subr.bf16.mxu0 0
      %2445 = vmatpush2.bf16.msra.mxu0 0
      %2446 = vmatprep.subr.bf16.mxu0 0
      %2447 = vmatpush2.bf16.msra.mxu0 0
      %2448 = vmatprep.subr.bf16.mxu0 0
      %2449 = vmatpush2.bf16.msra.mxu0 0
      %2450 = vmatprep.mubr.bf16.mxu0 0
      %2451 = vmatmul.mubr.bf16.gmra.mxu0 %v2416
      %v2452 = vpop.f32.mrf.mxu0
      %v2453 = vadd.f32 %v2401, %v2452
      %v2454 = vpop.f32.mrf.mxu0
      %v2455 = vpop.f32.mrf.mxu0
      %v2456 = vadd.f32 %v2401, %v2455
      %v2457 = vpop.f32.mrf.mxu0
      %2458 = vdwg.mxu0
      %v2459 = vadd.f32 %v2453, %v655
      %v2460 = vadd.f32 %v2456, %v656
      %v2461 = vld [vmem:[%s614] sm:$0x1]
      %v2462 = vld [vmem:[%s617] sm:$0x1]
      %v2463 = vsel %vm681, %v2459, 0.0
      %2464 = vadd.xlane.f32.xlu0 %v2463
      %v2465 = vpop.xlane.xlu0 %2464
      %v2466 = vsel %vm681, %v2460, 0.0
      %2467 = vadd.xlane.f32.xlu0 %v2466
      %v2468 = vpop.xlane.xlu0 %2467
      %v2469 = vrcp.pop 32.0
      %v2470 = vmul.f32 %v2465, %v2469
      %v2471 = vmul.f32 %v2468, %v2469
      %v2472 = vsub.f32 %v2459, %v2470
      %v2473 = vsub.f32 %v2460, %v2471
      %v2474 = vmul.f32 %v2472, %v2472
      %v2475 = vmul.f32 %v2473, %v2473
      %v2476 = vsel %vm681, %v2474, 0.0
      %2477 = vadd.xlane.f32.xlu0 %v2476
      %v2478 = vpop.xlane.xlu0 %2477
      %v2479 = vsel %vm681, %v2475, 0.0
      %2480 = vadd.xlane.f32.xlu0 %v2479
      %v2481 = vpop.xlane.xlu0 %2480
      %v2482 = vmul.f32 %v2478, %v2469
      %v2483 = vmul.f32 %v2481, %v2469
      %v2484 = vadd.f32 %v2482, 1e-05
      %v2485 = vadd.f32 %v2483, 1e-05
      %v2486 = vrsqrt.pop %v2484
      %v2487 = vrsqrt.pop %v2485
      %v2488 = vmul.f32 %v2472, %v2486
      %v2489 = vmul.f32 %v2473, %v2487
      %v2491 = vlaneseq
      %v2492 = vshrl.u32 %v2491, 7
      %v2493 = vsub.s32 0, %v2492
      %v2494 = vrot.slane %v2461, %v2493
      %v2496 = vmul.f32 %v2488, %v2494
      %v2497 = vmul.f32 %v2489, %v2494
      %v2499 = vlaneseq
      %v2500 = vshrl.u32 %v2499, 7
      %v2501 = vsub.s32 0, %v2500
      %v2502 = vrot.slane %v2462, %v2501
      %v2504 = vadd.f32 %v2496, %v2502
      %v2505 = vadd.f32 %v2497, %v2502
      %v2506 = vld [vmem:[%s622] sm:$0xf]
      %v2507 = vld [vmem:[%s622 + $0x4] sm:$0xf]
      %v2508 = vld [vmem:[%s622 + $0x8] sm:$0xf]
      %v2509 = vld [vmem:[%s622 + $0xc] sm:$0xf]
      %v2510 = vld [vmem:[%s625] sm:$0x1]
      %v2511 = vld [vmem:[%s630] sm:$0xf]
      %v2512 = vld [vmem:[%s630 + $0x4] sm:$0xf]
      %v2513 = vld [vmem:[%s630 + $0x8] sm:$0xf]
      %v2514 = vld [vmem:[%s630 + $0xc] sm:$0xf]
      %v2515 = vld [vmem:[%s630 + $0x10] sm:$0xf]
      %v2516 = vld [vmem:[%s630 + $0x14] sm:$0xf]
      %v2517 = vld [vmem:[%s630 + $0x18] sm:$0xf]
      %v2518 = vld [vmem:[%s630 + $0x1c] sm:$0xf]
      %v2519 = vld [vmem:[%s633] sm:$0x1]
      %v2520 = vpack.c.bf16 %v2505, %v2504
      %v2522 = vlaneseq
      %v2523 = vshrl.u32 %v2522, 7
      %v2524 = vsub.s32 0, %v2523
      %v2525 = vrot.slane %v2510, %v2524
      %v2531 = vunpack.c.l.b16 %v2506
      %v2532 = vunpack.c.l.b16 %v2507
      %v2533 = vunpack.c.l.b16 %v2508
      %v2534 = vunpack.c.l.b16 %v2509
      %v2535 = vpack.c.b16 %v2532, %v2531
      %v2536 = vpack.c.b16 %v2534, %v2533
      %v2540 = vsel %vm681, %v2520, 0
      %2542 = vmatprep.subr.bf16.mxu0 0
      %2543 = vmatpush1.bf16.msra.mxu0 0
      %2544 = vmatprep.subr.bf16.mxu0 0
      %2545 = vmatpush1.bf16.msra.mxu0 0
      %2546 = vmatprep.subr.bf16.mxu0 0
      %2547 = vmatpush1.bf16.msra.mxu0 0
      %2548 = vmatprep.subr.bf16.mxu0 0
      %2549 = vmatpush1.bf16.msra.mxu0 0
      %2550 = vmatprep.subr.bf16.mxu0 0
      %2551 = vmatpush1.bf16.msra.mxu0 0
      %2552 = vmatprep.subr.bf16.mxu0 0
      %2553 = vmatpush1.bf16.msra.mxu0 0
      %2554 = vmatprep.subr.bf16.mxu0 0
      %2555 = vmatpush1.bf16.msra.mxu0 %v2536
      %2556 = vmatprep.subr.bf16.mxu0 0
      %2557 = vmatpush1.bf16.msra.mxu0 %v2535
      %2558 = vmatprep.subr.bf16.mxu0 0
      %2559 = vmatpush2.bf16.msra.mxu0 0
      %2560 = vmatprep.subr.bf16.mxu0 0
      %2561 = vmatpush2.bf16.msra.mxu0 0
      %2562 = vmatprep.subr.bf16.mxu0 0
      %2563 = vmatpush2.bf16.msra.mxu0 0
      %2564 = vmatprep.subr.bf16.mxu0 0
      %2565 = vmatpush2.bf16.msra.mxu0 0
      %2566 = vmatprep.subr.bf16.mxu0 0
      %2567 = vmatpush2.bf16.msra.mxu0 0
      %2568 = vmatprep.subr.bf16.mxu0 0
      %2569 = vmatpush2.bf16.msra.mxu0 0
      %2570 = vmatprep.subr.bf16.mxu0 0
      %2571 = vmatpush2.bf16.msra.mxu0 0
      %2572 = vmatprep.subr.bf16.mxu0 0
      %2573 = vmatpush2.bf16.msra.mxu0 0
      %2574 = vmatprep.mubr.bf16.mxu0 0
      %2575 = vmatmul.mubr.bf16.gmra.mxu0 %v2540
      %v2576 = vpop.f32.mrf.mxu0
      %v2577 = vadd.f32 %v2525, %v2576
      %v2578 = vpop.f32.mrf.mxu0
      %v2579 = vpop.f32.mrf.mxu0
      %v2580 = vadd.f32 %v2525, %v2579
      %v2581 = vpop.f32.mrf.mxu0
      %2582 = vdwg.mxu0
      %v2583 = vmax.f32 %v2577, 0.0
      %v2584 = vmax.f32 %v2580, 0.0
      %v2585 = vpack.c.bf16 %v2584, %v2583
      %v2587 = vlaneseq
      %v2588 = vshrl.u32 %v2587, 7
      %v2589 = vsub.s32 0, %v2588
      %v2590 = vrot.slane %v2519, %v2589
      %v2600 = vunpack.c.l.b16 %v2511
      %v2601 = vunpack.c.l.b16 %v2512
      %v2602 = vunpack.c.l.b16 %v2513
      %v2603 = vunpack.c.l.b16 %v2514
      %v2604 = vunpack.c.l.b16 %v2515
      %v2605 = vunpack.c.l.b16 %v2516
      %v2606 = vunpack.c.l.b16 %v2517
      %v2607 = vunpack.c.l.b16 %v2518
      %v2608 = vpack.c.b16 %v2601, %v2600
      %v2609 = vpack.c.b16 %v2603, %v2602
      %v2610 = vpack.c.b16 %v2605, %v2604
      %v2611 = vpack.c.b16 %v2607, %v2606
      %vm2616 = vcmask 523264
      %v2618 = vsel %vm2616, %v2585, 0
      %2620 = vmatprep.subr.bf16.mxu0 0
      %2621 = vmatpush1.bf16.msra.mxu0 0
      %2622 = vmatprep.subr.bf16.mxu0 0
      %2623 = vmatpush1.bf16.msra.mxu0 0
      %2624 = vmatprep.subr.bf16.mxu0 0
      %2625 = vmatpush1.bf16.msra.mxu0 0
      %2626 = vmatprep.subr.bf16.mxu0 0
      %2627 = vmatpush1.bf16.msra.mxu0 0
      %2628 = vmatprep.subr.bf16.mxu0 0
      %2629 = vmatpush1.bf16.msra.mxu0 %v2611
      %2630 = vmatprep.subr.bf16.mxu0 0
      %2631 = vmatpush1.bf16.msra.mxu0 %v2610
      %2632 = vmatprep.subr.bf16.mxu0 0
      %2633 = vmatpush1.bf16.msra.mxu0 %v2609
      %2634 = vmatprep.subr.bf16.mxu0 0
      %2635 = vmatpush1.bf16.msra.mxu0 %v2608
      %2636 = vmatprep.subr.bf16.mxu0 0
      %2637 = vmatpush2.bf16.msra.mxu0 0
      %2638 = vmatprep.subr.bf16.mxu0 0
      %2639 = vmatpush2.bf16.msra.mxu0 0
      %2640 = vmatprep.subr.bf16.mxu0 0
      %2641 = vmatpush2.bf16.msra.mxu0 0
      %2642 = vmatprep.subr.bf16.mxu0 0
      %2643 = vmatpush2.bf16.msra.mxu0 0
      %2644 = vmatprep.subr.bf16.mxu0 0
      %2645 = vmatpush2.bf16.msra.mxu0 0
      %2646 = vmatprep.subr.bf16.mxu0 0
      %2647 = vmatpush2.bf16.msra.mxu0 0
      %2648 = vmatprep.subr.bf16.mxu0 0
      %2649 = vmatpush2.bf16.msra.mxu0 0
      %2650 = vmatprep.subr.bf16.mxu0 0
      %2651 = vmatpush2.bf16.msra.mxu0 0
      %2652 = vmatprep.mubr.bf16.mxu0 0
      %2653 = vmatmul.mubr.bf16.gmra.mxu0 %v2618
      %v2654 = vpop.f32.mrf.mxu0
      %v2655 = vadd.f32 %v2590, %v2654
      %v2656 = vpop.f32.mrf.mxu0
      %v2657 = vpop.f32.mrf.mxu0
      %v2658 = vadd.f32 %v2590, %v2657
      %v2659 = vpop.f32.mrf.mxu0
      %2660 = vdwg.mxu0
      %v2661 = vadd.f32 %v2655, %v2504
      %v2662 = vadd.f32 %v2658, %v2505
      %v2663 = vld [vmem:[%s636] sm:$0x1]
      %v2664 = vld [vmem:[%s639] sm:$0x1]
      %v2665 = vsel %vm681, %v2661, 0.0
      %2666 = vadd.xlane.f32.xlu0 %v2665
      %v2667 = vpop.xlane.xlu0 %2666
      %v2668 = vsel %vm681, %v2662, 0.0
      %2669 = vadd.xlane.f32.xlu0 %v2668
      %v2670 = vpop.xlane.xlu0 %2669
      %v2671 = vmul.f32 %v2667, %v2469
      %v2672 = vmul.f32 %v2670, %v2469
      %v2673 = vsub.f32 %v2661, %v2671
      %v2674 = vsub.f32 %v2662, %v2672
      %v2675 = vmul.f32 %v2673, %v2673
      %v2676 = vmul.f32 %v2674, %v2674
      %v2677 = vsel %vm681, %v2675, 0.0
      %2678 = vadd.xlane.f32.xlu0 %v2677
      %v2679 = vpop.xlane.xlu0 %2678
      %v2680 = vsel %vm681, %v2676, 0.0
      %2681 = vadd.xlane.f32.xlu0 %v2680
      %v2682 = vpop.xlane.xlu0 %2681
      %v2683 = vmul.f32 %v2679, %v2469
      %v2684 = vmul.f32 %v2682, %v2469
      %v2685 = vadd.f32 %v2683, 1e-05
      %v2686 = vadd.f32 %v2684, 1e-05
      %v2687 = vrsqrt.pop %v2685
      %v2688 = vrsqrt.pop %v2686
      %v2689 = vmul.f32 %v2673, %v2687
      %v2690 = vmul.f32 %v2674, %v2688
      %v2692 = vlaneseq
      %v2693 = vshrl.u32 %v2692, 7
      %v2694 = vsub.s32 0, %v2693
      %v2695 = vrot.slane %v2663, %v2694
      %v2697 = vmul.f32 %v2689, %v2695
      %v2698 = vmul.f32 %v2690, %v2695
      %v2700 = vlaneseq
      %v2701 = vshrl.u32 %v2700, 7
      %v2702 = vsub.s32 0, %v2701
      %v2703 = vrot.slane %v2664, %v2702
      %v2705 = vadd.f32 %v2697, %v2703
      %v2706 = vadd.f32 %v2698, %v2703
      %2707 = vst.msk [vmem:[#allocation2] sm:$0xff] %vm681, %v2705
      %2708 = vst.msk [vmem:[#allocation2 + $0x8] sm:$0xff] %vm681, %v2706
      %p2709 = scmp.eq.s32.totalorder %s29, 1
      // Predicated region
      $region77: #{sum_transformer_forward.2} parent=71 // pred_check
        %p2710 = pneg %p2709
      $region78: #{sum_transformer_forward.2} parent=71 // pred_check_branch
        %2712 = sbr.rel (%p2710) target = $region80
      $region79: #{sum_transformer_forward.2} parent=71 // pred_region
        %2713 = vst.msk [vmem:[%s644] sm:$0xff] %vm681, %v2705
        %2714 = vst.msk [vmem:[%s644 + $0x8] sm:$0xff] %vm681, %v2706
      $region80: #{sum_transformer_forward.2} parent=71 // pred_fallthru
        _
      %p2715 = scmp.lt.s32.totalorder %s28, 1
      %s2716 = scalar_select %p2715, %s28, 1
      %s2717 = smul.addr %s2716, 2
      %s2718 = smul.addr %s2717, 8
      %s2719 = scalar_lea.vmem %s13, %s2718
      // Predicated region
      $region81: #{sum_transformer_forward.2} parent=71 // pred_check
        %p2720 = pneg %p392
      $region82: #{sum_transformer_forward.2} parent=71 // pred_check_branch
        %2722 = sbr.rel (%p2720) target = $region84
      $region83: #{sum_transformer_forward.2} parent=71 // pred_region
        _
      $region84: #{sum_transformer_forward.2} parent=71 // pred_fallthru
        _
    $region72: #{sum_transformer_forward.2} parent=5 // pred_fallthru
      _
    %p2723 = scmp.le.s32.totalorder 2, %s19
    // Predicated region
    $region85: #{sum_transformer_forward.2} parent=5 // pred_check
      %p2724 = pneg %p2723
    $region86: #{sum_transformer_forward.2} parent=5 // pred_check_branch
      %2726 = sbr.rel (%p2724) target = $region88
    $region87: #{sum_transformer_forward.2} parent=5 // pred_region
      %s2727 = ssub.s32 %s19, 2
      // Predicated region
      $region89: #{sum_transformer_forward.2} parent=87 // pred_check
        %p2728 = pneg %p398
      $region90: #{sum_transformer_forward.2} parent=87 // pred_check_branch
        %2730 = sbr.rel (%p2728) target = $region92
      $region91: #{sum_transformer_forward.2} parent=87 // pred_region
        %p2731 = scmp.lt.s32.totalorder %s30, 1
        %s2732 = scalar_select %p2731, %s30, 1
        %s2733 = smul.addr %s2732, 2
        %s2734 = smul.addr %s2733, 8
        %s2735 = scalar_lea.vmem %s13, %s2734
      $region92: #{sum_transformer_forward.2} parent=87 // pred_fallthru
        _
    $region88: #{sum_transformer_forward.2} parent=5 // pred_fallthru
      _
  $region6: #{sum_transformer_forward.2} parent=0 // loop_footer
    %s23 = sadd.s32 1, %s19
  $region7: #{sum_transformer_forward.2} parent=0 // loop_footer_branch
    %18 = sbr.rel target = $region3
  $region8: #{sum_transformer_forward.2} parent=0 // loop_exit
    _

// kernel: sum_transformer_forward.3
$region0: #{sum_transformer_forward.3}
  #allocation0 [shape = 'u32[]', space=smem, size = 0x4, offset = 0x4, fixed_abs, tag = 'smem constant byte address 0x4 - core index']
  #allocation1 [shape = 'u32[144,128]{1,0:T(1,128)}', space=vmem, size = 0x12000, scoped, tag = 'internal scratch']
  #allocation2 [shape = 'f32[8,32]{1,0:T(8,128)}', space=vmem, size = 0x1000, scoped, tag = 'scratch operand']
  %s0 = inlined_call_operand.vmem [shape: f32[2,8,32], index: 0, kind: input, shape index: {}]
  %s1 = inlined_call_operand.vmem [shape: f32[2,16,32], index: 1, kind: input, shape index: {}]
  %s2 = inlined_call_operand.vmem [shape: bf16[2,32,96], index: 2, kind: input, shape index: {}]
  %s3 = inlined_call_operand.vmem [shape: f32[2,1,96], index: 3, kind: input, shape index: {}]
  %s4 = inlined_call_operand.vmem [shape: bf16[2,32,32], index: 4, kind: input, shape index: {}]
  %s5 = inlined_call_operand.vmem [shape: f32[2,1,32], index: 5, kind: input, shape index: {}]
  %s6 = inlined_call_operand.vmem [shape: f32[2,1,32], index: 6, kind: input, shape index: {}]
  %s7 = inlined_call_operand.vmem [shape: f32[2,1,32], index: 7, kind: input, shape index: {}]
  %s8 = inlined_call_operand.vmem [shape: bf16[2,32,32], index: 8, kind: input, shape index: {}]
  %s9 = inlined_call_operand.vmem [shape: f32[2,1,32], index: 9, kind: input, shape index: {}]
  %s10 = inlined_call_operand.vmem [shape: bf16[2,32,64], index: 10, kind: input, shape index: {}]
  %s11 = inlined_call_operand.vmem [shape: f32[2,1,64], index: 11, kind: input, shape index: {}]
  %s12 = inlined_call_operand.vmem [shape: bf16[2,32,32], index: 12, kind: input, shape index: {}]
  %s13 = inlined_call_operand.vmem [shape: f32[2,1,32], index: 13, kind: input, shape index: {}]
  %s14 = inlined_call_operand.vmem [shape: f32[2,1,32], index: 14, kind: input, shape index: {}]
  %s15 = inlined_call_operand.vmem [shape: f32[2,1,32], index: 15, kind: input, shape index: {}]
  %s16 = inlined_call_operand.vmem [shape: bf16[2,32,64], index: 16, kind: input, shape index: {}]
  %s17 = inlined_call_operand.vmem [shape: f32[2,1,64], index: 17, kind: input, shape index: {}]
  %s18 = inlined_call_operand.vmem [shape: bf16[2,64,32], index: 18, kind: input, shape index: {}]
  %s19 = inlined_call_operand.vmem [shape: f32[2,1,32], index: 19, kind: input, shape index: {}]
  %s20 = inlined_call_operand.vmem [shape: f32[2,1,32], index: 20, kind: input, shape index: {}]
  %s21 = inlined_call_operand.vmem [shape: f32[2,1,32], index: 21, kind: input, shape index: {}]
  %s22 = inlined_call_operand.vmem [shape: bf16[32,128], index: 22, kind: input, shape index: {}]
  %s23 = inlined_call_operand.vmem [shape: f32[1,128], index: 23, kind: input, shape index: {}]
  %s24 = inlined_call_operand.hbm [shape: f32[2,8,128], index: 24, kind: output, shape index: {}]
  %s25 = sld [smem:[#allocation0]]
  $region137: #{sum_transformer_forward.3} parent=0
    _
  %s27 = ssub.s32 1, %s25
  %s28 = scalar_select 0, %s27, %s25
  $region1: #{sum_transformer_forward.3} parent=0
    #allocation3 [shape = 'u8[8192]{0}', space=vmem, size = 0x2000, scoped, tag = 'output window, operand 0']
    #allocation4 [shape = 's32[2]{0}', space=sflag, size = 0x8, scoped, tag = 'scoped memory for sum_transformer_forward.3']
    %29 = vsyncpa [#allocation4], 0
    %s30 = scalar_lea.sflag [#allocation4], 1
    %31 = vsyncpa %s30, 0
    loop: start=0, step=1, limit=6
    $region2: #{sum_transformer_forward.3} parent=1 // loop_pre_header
      _
    $region3: #{sum_transformer_forward.3} parent=1 // loop_header
      %s33 = sphi 0, %s37
      %p34 = scmp.ge.s32.totalorder %s33, 6
      %s40 = sphi 0, %s52
      %s41 = sphi 0, %s48
      %s42 = sphi 0, %s40
      %s43 = sphi 0, %s41
      %s44 = sphi 0, %s42
      %s45 = sphi 0, %s43
      %s55 = sphi 0, %s57
      %s58 = sphi 0, %s55
      %s59 = sphi 0, %s58
      %s75 = sphi 0, %s59
      %s81 = sphi 0, %s83
      %s84 = sphi 0, %s81
      %s85 = sphi 0, %s84
      %s101 = sphi 0, %s85
      %s107 = sphi 0, %s109
      %s110 = sphi 0, %s107
      %s111 = sphi 0, %s110
      %s127 = sphi 0, %s111
      %s133 = sphi 0, %s135
      %s136 = sphi 0, %s133
      %s137 = sphi 0, %s136
      %s153 = sphi 0, %s137
      %s159 = sphi 0, %s161
      %s162 = sphi 0, %s159
      %s163 = sphi 0, %s162
      %s179 = sphi 0, %s163
      %s185 = sphi 0, %s187
      %s188 = sphi 0, %s185
      %s189 = sphi 0, %s188
      %s205 = sphi 0, %s189
      %s211 = sphi 0, %s213
      %s214 = sphi 0, %s211
      %s215 = sphi 0, %s214
      %s231 = sphi 0, %s215
      %s237 = sphi 0, %s239
      %s240 = sphi 0, %s237
      %s241 = sphi 0, %s240
      %s257 = sphi 0, %s241
      %s263 = sphi 0, %s265
      %s266 = sphi 0, %s263
      %s267 = sphi 0, %s266
      %s283 = sphi 0, %s267
      %s289 = sphi 0, %s291
      %s292 = sphi 0, %s289
      %s293 = sphi 0, %s292
      %s309 = sphi 0, %s293
      %s315 = sphi 0, %s317
      %s318 = sphi 0, %s315
      %s319 = sphi 0, %s318
      %s335 = sphi 0, %s319
      %s341 = sphi 0, %s343
      %s344 = sphi 0, %s341
      %s345 = sphi 0, %s344
      %s361 = sphi 0, %s345
      %s367 = sphi 0, %s369
      %s370 = sphi 0, %s367
      %s371 = sphi 0, %s370
      %s387 = sphi 0, %s371
      %s393 = sphi 0, %s395
      %s396 = sphi 0, %s393
      %s397 = sphi 0, %s396
      %s413 = sphi 0, %s397
      %s419 = sphi 0, %s421
      %s422 = sphi 0, %s419
      %s423 = sphi 0, %s422
      %s439 = sphi 0, %s423
      %s445 = sphi 0, %s447
      %s448 = sphi 0, %s445
      %s449 = sphi 0, %s448
      %s465 = sphi 0, %s449
      %s471 = sphi 0, %s473
      %s474 = sphi 0, %s471
      %s475 = sphi 0, %s474
      %s491 = sphi 0, %s475
      %s497 = sphi 0, %s499
      %s500 = sphi 0, %s497
      %s501 = sphi 0, %s500
      %s517 = sphi 0, %s501
      %s523 = sphi 0, %s525
      %s526 = sphi 0, %s523
      %s527 = sphi 0, %s526
      %s543 = sphi 0, %s527
      %s549 = sphi 0, %s551
      %s552 = sphi 0, %s549
      %s553 = sphi 0, %s552
      %s569 = sphi 0, %s553
      %s575 = sphi 0, %s577
      %s578 = sphi 0, %s575
      %s579 = sphi 0, %s578
      %s595 = sphi 0, %s579
      %s601 = sphi 0, %s603
      %s604 = sphi 0, %s601
      %s605 = sphi 0, %s604
      %s621 = sphi 0, %s605
      %s625 = sphi 0, %s625
      %s627 = sphi 0, %s625
      %s628 = sphi 0, %s627
      %s642 = sphi 0, %s628
      %s646 = sphi 0, %s646
      %s648 = sphi 0, %s646
      %s649 = sphi 0, %s648
      %s663 = sphi 0, %s649
      %s669 = sphi 0, %s671
      %s672 = sphi 0, %s669
      %s673 = sphi 0, %s672
      %s689 = sphi 0, %s673
    $region4: #{sum_transformer_forward.3} parent=1 // loop_header_branch
      %36 = sbr.rel (%p34) target = $region8
    $region5: #{sum_transformer_forward.3} parent=1 // loop_body
      %s38 = ssub.s32 %s33, 1
      %s39 = ssub.s32 %s33, 2
      %s46 = sadd.s32 1, %s41
      %p47 = scmp.ge.s32.totalorder %s46, 2
      %s48 = scalar_select %p47, 0, %s46
      %s49 = sadd.s32 1, %s40
      %s50 = scalar_select %p47, %s49, %s40
      %p51 = scmp.ge.s32.totalorder %s50, 2
      %s52 = scalar_select %p51, 0, %s50
      %s53 = ssub.s32 %s40, %s52
      %p54 = scmp.eq.s32.totalorder %s53, 0
      %s56 = sadd.s32 %s55, 1
      %s57 = scalar_select %p54, %s55, %s56
      %p60 = pneg %p54
      %p61 = scmp.eq.s32.totalorder %s33, 3
      %p62 = por %p60, %p61
      %p63 = scmp.ne.s32.totalorder %s55, %s58
      %p64 = scmp.eq.s32.totalorder %s33, 0
      %p65 = por %p63, %p64
      %p66 = scmp.ne.s32.totalorder %s55, %s58
      %p67 = scmp.eq.s32.totalorder %s38, 3
      %p68 = por %p66, %p67
      %p69 = scmp.ne.s32.totalorder %s58, %s59
      %p70 = scmp.eq.s32.totalorder %s38, 0
      %p71 = por %p69, %p70
      %p72 = scmp.ne.s32.totalorder %s58, %s59
      %p73 = scmp.eq.s32.totalorder %s39, 3
      %p74 = por %p72, %p73
      %p76 = scmp.ne.s32.totalorder %s59, %s75
      %p77 = scmp.eq.s32.totalorder %s39, 0
      %p78 = por %p76, %p77
      %s79 = ssub.s32 %s40, %s52
      %p80 = scmp.eq.s32.totalorder %s79, 0
      %s82 = sadd.s32 %s81, 1
      %s83 = scalar_select %p80, %s81, %s82
      %p86 = pneg %p80
      %p87 = scmp.eq.s32.totalorder %s33, 3
      %p88 = por %p86, %p87
      %p89 = scmp.ne.s32.totalorder %s81, %s84
      %p90 = scmp.eq.s32.totalorder %s33, 0
      %p91 = por %p89, %p90
      %p92 = scmp.ne.s32.totalorder %s81, %s84
      %p93 = scmp.eq.s32.totalorder %s38, 3
      %p94 = por %p92, %p93
      %p95 = scmp.ne.s32.totalorder %s84, %s85
      %p96 = scmp.eq.s32.totalorder %s38, 0
      %p97 = por %p95, %p96
      %p98 = scmp.ne.s32.totalorder %s84, %s85
      %p99 = scmp.eq.s32.totalorder %s39, 3
      %p100 = por %p98, %p99
      %p102 = scmp.ne.s32.totalorder %s85, %s101
      %p103 = scmp.eq.s32.totalorder %s39, 0
      %p104 = por %p102, %p103
      %s105 = ssub.s32 %s41, %s48
      %p106 = scmp.eq.s32.totalorder %s105, 0
      %s108 = sadd.s32 %s107, 1
      %s109 = scalar_select %p106, %s107, %s108
      %p112 = pneg %p106
      %p113 = scmp.eq.s32.totalorder %s33, 3
      %p114 = por %p112, %p113
      %p115 = scmp.ne.s32.totalorder %s107, %s110
      %p116 = scmp.eq.s32.totalorder %s33, 0
      %p117 = por %p115, %p116
      %p118 = scmp.ne.s32.totalorder %s107, %s110
      %p119 = scmp.eq.s32.totalorder %s38, 3
      %p120 = por %p118, %p119
      %p121 = scmp.ne.s32.totalorder %s110, %s111
      %p122 = scmp.eq.s32.totalorder %s38, 0
      %p123 = por %p121, %p122
      %p124 = scmp.ne.s32.totalorder %s110, %s111
      %p125 = scmp.eq.s32.totalorder %s39, 3
      %p126 = por %p124, %p125
      %p128 = scmp.ne.s32.totalorder %s111, %s127
      %p129 = scmp.eq.s32.totalorder %s39, 0
      %p130 = por %p128, %p129
      %s131 = ssub.s32 %s41, %s48
      %p132 = scmp.eq.s32.totalorder %s131, 0
      %s134 = sadd.s32 %s133, 1
      %s135 = scalar_select %p132, %s133, %s134
      %p138 = pneg %p132
      %p139 = scmp.eq.s32.totalorder %s33, 3
      %p140 = por %p138, %p139
      %p141 = scmp.ne.s32.totalorder %s133, %s136
      %p142 = scmp.eq.s32.totalorder %s33, 0
      %p143 = por %p141, %p142
      %p144 = scmp.ne.s32.totalorder %s133, %s136
      %p145 = scmp.eq.s32.totalorder %s38, 3
      %p146 = por %p144, %p145
      %p147 = scmp.ne.s32.totalorder %s136, %s137
      %p148 = scmp.eq.s32.totalorder %s38, 0
      %p149 = por %p147, %p148
      %p150 = scmp.ne.s32.totalorder %s136, %s137
      %p151 = scmp.eq.s32.totalorder %s39, 3
      %p152 = por %p150, %p151
      %p154 = scmp.ne.s32.totalorder %s137, %s153
      %p155 = scmp.eq.s32.totalorder %s39, 0
      %p156 = por %p154, %p155
      %s157 = ssub.s32 %s41, %s48
      %p158 = scmp.eq.s32.totalorder %s157, 0
      %s160 = sadd.s32 %s159, 1
      %s161 = scalar_select %p158, %s159, %s160
      %p164 = pneg %p158
      %p165 = scmp.eq.s32.totalorder %s33, 3
      %p166 = por %p164, %p165
      %p167 = scmp.ne.s32.totalorder %s159, %s162
      %p168 = scmp.eq.s32.totalorder %s33, 0
      %p169 = por %p167, %p168
      %p170 = scmp.ne.s32.totalorder %s159, %s162
      %p171 = scmp.eq.s32.totalorder %s38, 3
      %p172 = por %p170, %p171
      %p173 = scmp.ne.s32.totalorder %s162, %s163
      %p174 = scmp.eq.s32.totalorder %s38, 0
      %p175 = por %p173, %p174
      %p176 = scmp.ne.s32.totalorder %s162, %s163
      %p177 = scmp.eq.s32.totalorder %s39, 3
      %p178 = por %p176, %p177
      %p180 = scmp.ne.s32.totalorder %s163, %s179
      %p181 = scmp.eq.s32.totalorder %s39, 0
      %p182 = por %p180, %p181
      %s183 = ssub.s32 %s41, %s48
      %p184 = scmp.eq.s32.totalorder %s183, 0
      %s186 = sadd.s32 %s185, 1
      %s187 = scalar_select %p184, %s185, %s186
      %p190 = pneg %p184
      %p191 = scmp.eq.s32.totalorder %s33, 3
      %p192 = por %p190, %p191
      %p193 = scmp.ne.s32.totalorder %s185, %s188
      %p194 = scmp.eq.s32.totalorder %s33, 0
      %p195 = por %p193, %p194
      %p196 = scmp.ne.s32.totalorder %s185, %s188
      %p197 = scmp.eq.s32.totalorder %s38, 3
      %p198 = por %p196, %p197
      %p199 = scmp.ne.s32.totalorder %s188, %s189
      %p200 = scmp.eq.s32.totalorder %s38, 0
      %p201 = por %p199, %p200
      %p202 = scmp.ne.s32.totalorder %s188, %s189
      %p203 = scmp.eq.s32.totalorder %s39, 3
      %p204 = por %p202, %p203
      %p206 = scmp.ne.s32.totalorder %s189, %s205
      %p207 = scmp.eq.s32.totalorder %s39, 0
      %p208 = por %p206, %p207
      %s209 = ssub.s32 %s41, %s48
      %p210 = scmp.eq.s32.totalorder %s209, 0
      %s212 = sadd.s32 %s211, 1
      %s213 = scalar_select %p210, %s211, %s212
      %p216 = pneg %p210
      %p217 = scmp.eq.s32.totalorder %s33, 3
      %p218 = por %p216, %p217
      %p219 = scmp.ne.s32.totalorder %s211, %s214
      %p220 = scmp.eq.s32.totalorder %s33, 0
      %p221 = por %p219, %p220
      %p222 = scmp.ne.s32.totalorder %s211, %s214
      %p223 = scmp.eq.s32.totalorder %s38, 3
      %p224 = por %p222, %p223
      %p225 = scmp.ne.s32.totalorder %s214, %s215
      %p226 = scmp.eq.s32.totalorder %s38, 0
      %p227 = por %p225, %p226
      %p228 = scmp.ne.s32.totalorder %s214, %s215
      %p229 = scmp.eq.s32.totalorder %s39, 3
      %p230 = por %p228, %p229
      %p232 = scmp.ne.s32.totalorder %s215, %s231
      %p233 = scmp.eq.s32.totalorder %s39, 0
      %p234 = por %p232, %p233
      %s235 = ssub.s32 %s41, %s48
      %p236 = scmp.eq.s32.totalorder %s235, 0
      %s238 = sadd.s32 %s237, 1
      %s239 = scalar_select %p236, %s237, %s238
      %p242 = pneg %p236
      %p243 = scmp.eq.s32.totalorder %s33, 3
      %p244 = por %p242, %p243
      %p245 = scmp.ne.s32.totalorder %s237, %s240
      %p246 = scmp.eq.s32.totalorder %s33, 0
      %p247 = por %p245, %p246
      %p248 = scmp.ne.s32.totalorder %s237, %s240
      %p249 = scmp.eq.s32.totalorder %s38, 3
      %p250 = por %p248, %p249
      %p251 = scmp.ne.s32.totalorder %s240, %s241
      %p252 = scmp.eq.s32.totalorder %s38, 0
      %p253 = por %p251, %p252
      %p254 = scmp.ne.s32.totalorder %s240, %s241
      %p255 = scmp.eq.s32.totalorder %s39, 3
      %p256 = por %p254, %p255
      %p258 = scmp.ne.s32.totalorder %s241, %s257
      %p259 = scmp.eq.s32.totalorder %s39, 0
      %p260 = por %p258, %p259
      %s261 = ssub.s32 %s41, %s48
      %p262 = scmp.eq.s32.totalorder %s261, 0
      %s264 = sadd.s32 %s263, 1
      %s265 = scalar_select %p262, %s263, %s264
      %p268 = pneg %p262
      %p269 = scmp.eq.s32.totalorder %s33, 3
      %p270 = por %p268, %p269
      %p271 = scmp.ne.s32.totalorder %s263, %s266
      %p272 = scmp.eq.s32.totalorder %s33, 0
      %p273 = por %p271, %p272
      %p274 = scmp.ne.s32.totalorder %s263, %s266
      %p275 = scmp.eq.s32.totalorder %s38, 3
      %p276 = por %p274, %p275
      %p277 = scmp.ne.s32.totalorder %s266, %s267
      %p278 = scmp.eq.s32.totalorder %s38, 0
      %p279 = por %p277, %p278
      %p280 = scmp.ne.s32.totalorder %s266, %s267
      %p281 = scmp.eq.s32.totalorder %s39, 3
      %p282 = por %p280, %p281
      %p284 = scmp.ne.s32.totalorder %s267, %s283
      %p285 = scmp.eq.s32.totalorder %s39, 0
      %p286 = por %p284, %p285
      %s287 = ssub.s32 %s41, %s48
      %p288 = scmp.eq.s32.totalorder %s287, 0
      %s290 = sadd.s32 %s289, 1
      %s291 = scalar_select %p288, %s289, %s290
      %p294 = pneg %p288
      %p295 = scmp.eq.s32.totalorder %s33, 3
      %p296 = por %p294, %p295
      %p297 = scmp.ne.s32.totalorder %s289, %s292
      %p298 = scmp.eq.s32.totalorder %s33, 0
      %p299 = por %p297, %p298
      %p300 = scmp.ne.s32.totalorder %s289, %s292
      %p301 = scmp.eq.s32.totalorder %s38, 3
      %p302 = por %p300, %p301
      %p303 = scmp.ne.s32.totalorder %s292, %s293
      %p304 = scmp.eq.s32.totalorder %s38, 0
      %p305 = por %p303, %p304
      %p306 = scmp.ne.s32.totalorder %s292, %s293
      %p307 = scmp.eq.s32.totalorder %s39, 3
      %p308 = por %p306, %p307
      %p310 = scmp.ne.s32.totalorder %s293, %s309
      %p311 = scmp.eq.s32.totalorder %s39, 0
      %p312 = por %p310, %p311
      %s313 = ssub.s32 %s41, %s48
      %p314 = scmp.eq.s32.totalorder %s313, 0
      %s316 = sadd.s32 %s315, 1
      %s317 = scalar_select %p314, %s315, %s316
      %p320 = pneg %p314
      %p321 = scmp.eq.s32.totalorder %s33, 3
      %p322 = por %p320, %p321
      %p323 = scmp.ne.s32.totalorder %s315, %s318
      %p324 = scmp.eq.s32.totalorder %s33, 0
      %p325 = por %p323, %p324
      %p326 = scmp.ne.s32.totalorder %s315, %s318
      %p327 = scmp.eq.s32.totalorder %s38, 3
      %p328 = por %p326, %p327
      %p329 = scmp.ne.s32.totalorder %s318, %s319
      %p330 = scmp.eq.s32.totalorder %s38, 0
      %p331 = por %p329, %p330
      %p332 = scmp.ne.s32.totalorder %s318, %s319
      %p333 = scmp.eq.s32.totalorder %s39, 3
      %p334 = por %p332, %p333
      %p336 = scmp.ne.s32.totalorder %s319, %s335
      %p337 = scmp.eq.s32.totalorder %s39, 0
      %p338 = por %p336, %p337
      %s339 = ssub.s32 %s41, %s48
      %p340 = scmp.eq.s32.totalorder %s339, 0
      %s342 = sadd.s32 %s341, 1
      %s343 = scalar_select %p340, %s341, %s342
      %p346 = pneg %p340
      %p347 = scmp.eq.s32.totalorder %s33, 3
      %p348 = por %p346, %p347
      %p349 = scmp.ne.s32.totalorder %s341, %s344
      %p350 = scmp.eq.s32.totalorder %s33, 0
      %p351 = por %p349, %p350
      %p352 = scmp.ne.s32.totalorder %s341, %s344
      %p353 = scmp.eq.s32.totalorder %s38, 3
      %p354 = por %p352, %p353
      %p355 = scmp.ne.s32.totalorder %s344, %s345
      %p356 = scmp.eq.s32.totalorder %s38, 0
      %p357 = por %p355, %p356
      %p358 = scmp.ne.s32.totalorder %s344, %s345
      %p359 = scmp.eq.s32.totalorder %s39, 3
      %p360 = por %p358, %p359
      %p362 = scmp.ne.s32.totalorder %s345, %s361
      %p363 = scmp.eq.s32.totalorder %s39, 0
      %p364 = por %p362, %p363
      %s365 = ssub.s32 %s41, %s48
      %p366 = scmp.eq.s32.totalorder %s365, 0
      %s368 = sadd.s32 %s367, 1
      %s369 = scalar_select %p366, %s367, %s368
      %p372 = pneg %p366
      %p373 = scmp.eq.s32.totalorder %s33, 3
      %p374 = por %p372, %p373
      %p375 = scmp.ne.s32.totalorder %s367, %s370
      %p376 = scmp.eq.s32.totalorder %s33, 0
      %p377 = por %p375, %p376
      %p378 = scmp.ne.s32.totalorder %s367, %s370
      %p379 = scmp.eq.s32.totalorder %s38, 3
      %p380 = por %p378, %p379
      %p381 = scmp.ne.s32.totalorder %s370, %s371
      %p382 = scmp.eq.s32.totalorder %s38, 0
      %p383 = por %p381, %p382
      %p384 = scmp.ne.s32.totalorder %s370, %s371
      %p385 = scmp.eq.s32.totalorder %s39, 3
      %p386 = por %p384, %p385
      %p388 = scmp.ne.s32.totalorder %s371, %s387
      %p389 = scmp.eq.s32.totalorder %s39, 0
      %p390 = por %p388, %p389
      %s391 = ssub.s32 %s41, %s48
      %p392 = scmp.eq.s32.totalorder %s391, 0
      %s394 = sadd.s32 %s393, 1
      %s395 = scalar_select %p392, %s393, %s394
      %p398 = pneg %p392
      %p399 = scmp.eq.s32.totalorder %s33, 3
      %p400 = por %p398, %p399
      %p401 = scmp.ne.s32.totalorder %s393, %s396
      %p402 = scmp.eq.s32.totalorder %s33, 0
      %p403 = por %p401, %p402
      %p404 = scmp.ne.s32.totalorder %s393, %s396
      %p405 = scmp.eq.s32.totalorder %s38, 3
      %p406 = por %p404, %p405
      %p407 = scmp.ne.s32.totalorder %s396, %s397
      %p408 = scmp.eq.s32.totalorder %s38, 0
      %p409 = por %p407, %p408
      %p410 = scmp.ne.s32.totalorder %s396, %s397
      %p411 = scmp.eq.s32.totalorder %s39, 3
      %p412 = por %p410, %p411
      %p414 = scmp.ne.s32.totalorder %s397, %s413
      %p415 = scmp.eq.s32.totalorder %s39, 0
      %p416 = por %p414, %p415
      %s417 = ssub.s32 %s41, %s48
      %p418 = scmp.eq.s32.totalorder %s417, 0
      %s420 = sadd.s32 %s419, 1
      %s421 = scalar_select %p418, %s419, %s420
      %p424 = pneg %p418
      %p425 = scmp.eq.s32.totalorder %s33, 3
      %p426 = por %p424, %p425
      %p427 = scmp.ne.s32.totalorder %s419, %s422
      %p428 = scmp.eq.s32.totalorder %s33, 0
      %p429 = por %p427, %p428
      %p430 = scmp.ne.s32.totalorder %s419, %s422
      %p431 = scmp.eq.s32.totalorder %s38, 3
      %p432 = por %p430, %p431
      %p433 = scmp.ne.s32.totalorder %s422, %s423
      %p434 = scmp.eq.s32.totalorder %s38, 0
      %p435 = por %p433, %p434
      %p436 = scmp.ne.s32.totalorder %s422, %s423
      %p437 = scmp.eq.s32.totalorder %s39, 3
      %p438 = por %p436, %p437
      %p440 = scmp.ne.s32.totalorder %s423, %s439
      %p441 = scmp.eq.s32.totalorder %s39, 0
      %p442 = por %p440, %p441
      %s443 = ssub.s32 %s41, %s48
      %p444 = scmp.eq.s32.totalorder %s443, 0
      %s446 = sadd.s32 %s445, 1
      %s447 = scalar_select %p444, %s445, %s446
      %p450 = pneg %p444
      %p451 = scmp.eq.s32.totalorder %s33, 3
      %p452 = por %p450, %p451
      %p453 = scmp.ne.s32.totalorder %s445, %s448
      %p454 = scmp.eq.s32.totalorder %s33, 0
      %p455 = por %p453, %p454
      %p456 = scmp.ne.s32.totalorder %s445, %s448
      %p457 = scmp.eq.s32.totalorder %s38, 3
      %p458 = por %p456, %p457
      %p459 = scmp.ne.s32.totalorder %s448, %s449
      %p460 = scmp.eq.s32.totalorder %s38, 0
      %p461 = por %p459, %p460
      %p462 = scmp.ne.s32.totalorder %s448, %s449
      %p463 = scmp.eq.s32.totalorder %s39, 3
      %p464 = por %p462, %p463
      %p466 = scmp.ne.s32.totalorder %s449, %s465
      %p467 = scmp.eq.s32.totalorder %s39, 0
      %p468 = por %p466, %p467
      %s469 = ssub.s32 %s41, %s48
      %p470 = scmp.eq.s32.totalorder %s469, 0
      %s472 = sadd.s32 %s471, 1
      %s473 = scalar_select %p470, %s471, %s472
      %p476 = pneg %p470
      %p477 = scmp.eq.s32.totalorder %s33, 3
      %p478 = por %p476, %p477
      %p479 = scmp.ne.s32.totalorder %s471, %s474
      %p480 = scmp.eq.s32.totalorder %s33, 0
      %p481 = por %p479, %p480
      %p482 = scmp.ne.s32.totalorder %s471, %s474
      %p483 = scmp.eq.s32.totalorder %s38, 3
      %p484 = por %p482, %p483
      %p485 = scmp.ne.s32.totalorder %s474, %s475
      %p486 = scmp.eq.s32.totalorder %s38, 0
      %p487 = por %p485, %p486
      %p488 = scmp.ne.s32.totalorder %s474, %s475
      %p489 = scmp.eq.s32.totalorder %s39, 3
      %p490 = por %p488, %p489
      %p492 = scmp.ne.s32.totalorder %s475, %s491
      %p493 = scmp.eq.s32.totalorder %s39, 0
      %p494 = por %p492, %p493
      %s495 = ssub.s32 %s41, %s48
      %p496 = scmp.eq.s32.totalorder %s495, 0
      %s498 = sadd.s32 %s497, 1
      %s499 = scalar_select %p496, %s497, %s498
      %p502 = pneg %p496
      %p503 = scmp.eq.s32.totalorder %s33, 3
      %p504 = por %p502, %p503
      %p505 = scmp.ne.s32.totalorder %s497, %s500
      %p506 = scmp.eq.s32.totalorder %s33, 0
      %p507 = por %p505, %p506
      %p508 = scmp.ne.s32.totalorder %s497, %s500
      %p509 = scmp.eq.s32.totalorder %s38, 3
      %p510 = por %p508, %p509
      %p511 = scmp.ne.s32.totalorder %s500, %s501
      %p512 = scmp.eq.s32.totalorder %s38, 0
      %p513 = por %p511, %p512
      %p514 = scmp.ne.s32.totalorder %s500, %s501
      %p515 = scmp.eq.s32.totalorder %s39, 3
      %p516 = por %p514, %p515
      %p518 = scmp.ne.s32.totalorder %s501, %s517
      %p519 = scmp.eq.s32.totalorder %s39, 0
      %p520 = por %p518, %p519
      %s521 = ssub.s32 %s41, %s48
      %p522 = scmp.eq.s32.totalorder %s521, 0
      %s524 = sadd.s32 %s523, 1
      %s525 = scalar_select %p522, %s523, %s524
      %p528 = pneg %p522
      %p529 = scmp.eq.s32.totalorder %s33, 3
      %p530 = por %p528, %p529
      %p531 = scmp.ne.s32.totalorder %s523, %s526
      %p532 = scmp.eq.s32.totalorder %s33, 0
      %p533 = por %p531, %p532
      %p534 = scmp.ne.s32.totalorder %s523, %s526
      %p535 = scmp.eq.s32.totalorder %s38, 3
      %p536 = por %p534, %p535
      %p537 = scmp.ne.s32.totalorder %s526, %s527
      %p538 = scmp.eq.s32.totalorder %s38, 0
      %p539 = por %p537, %p538
      %p540 = scmp.ne.s32.totalorder %s526, %s527
      %p541 = scmp.eq.s32.totalorder %s39, 3
      %p542 = por %p540, %p541
      %p544 = scmp.ne.s32.totalorder %s527, %s543
      %p545 = scmp.eq.s32.totalorder %s39, 0
      %p546 = por %p544, %p545
      %s547 = ssub.s32 %s41, %s48
      %p548 = scmp.eq.s32.totalorder %s547, 0
      %s550 = sadd.s32 %s549, 1
      %s551 = scalar_select %p548, %s549, %s550
      %p554 = pneg %p548
      %p555 = scmp.eq.s32.totalorder %s33, 3
      %p556 = por %p554, %p555
      %p557 = scmp.ne.s32.totalorder %s549, %s552
      %p558 = scmp.eq.s32.totalorder %s33, 0
      %p559 = por %p557, %p558
      %p560 = scmp.ne.s32.totalorder %s549, %s552
      %p561 = scmp.eq.s32.totalorder %s38, 3
      %p562 = por %p560, %p561
      %p563 = scmp.ne.s32.totalorder %s552, %s553
      %p564 = scmp.eq.s32.totalorder %s38, 0
      %p565 = por %p563, %p564
      %p566 = scmp.ne.s32.totalorder %s552, %s553
      %p567 = scmp.eq.s32.totalorder %s39, 3
      %p568 = por %p566, %p567
      %p570 = scmp.ne.s32.totalorder %s553, %s569
      %p571 = scmp.eq.s32.totalorder %s39, 0
      %p572 = por %p570, %p571
      %s573 = ssub.s32 %s41, %s48
      %p574 = scmp.eq.s32.totalorder %s573, 0
      %s576 = sadd.s32 %s575, 1
      %s577 = scalar_select %p574, %s575, %s576
      %p580 = pneg %p574
      %p581 = scmp.eq.s32.totalorder %s33, 3
      %p582 = por %p580, %p581
      %p583 = scmp.ne.s32.totalorder %s575, %s578
      %p584 = scmp.eq.s32.totalorder %s33, 0
      %p585 = por %p583, %p584
      %p586 = scmp.ne.s32.totalorder %s575, %s578
      %p587 = scmp.eq.s32.totalorder %s38, 3
      %p588 = por %p586, %p587
      %p589 = scmp.ne.s32.totalorder %s578, %s579
      %p590 = scmp.eq.s32.totalorder %s38, 0
      %p591 = por %p589, %p590
      %p592 = scmp.ne.s32.totalorder %s578, %s579
      %p593 = scmp.eq.s32.totalorder %s39, 3
      %p594 = por %p592, %p593
      %p596 = scmp.ne.s32.totalorder %s579, %s595
      %p597 = scmp.eq.s32.totalorder %s39, 0
      %p598 = por %p596, %p597
      %s599 = ssub.s32 %s41, %s48
      %p600 = scmp.eq.s32.totalorder %s599, 0
      %s602 = sadd.s32 %s601, 1
      %s603 = scalar_select %p600, %s601, %s602
      %p606 = pneg %p600
      %p607 = scmp.eq.s32.totalorder %s33, 3
      %p608 = por %p606, %p607
      %p609 = scmp.ne.s32.totalorder %s601, %s604
      %p610 = scmp.eq.s32.totalorder %s33, 0
      %p611 = por %p609, %p610
      %p612 = scmp.ne.s32.totalorder %s601, %s604
      %p613 = scmp.eq.s32.totalorder %s38, 3
      %p614 = por %p612, %p613
      %p615 = scmp.ne.s32.totalorder %s604, %s605
      %p616 = scmp.eq.s32.totalorder %s38, 0
      %p617 = por %p615, %p616
      %p618 = scmp.ne.s32.totalorder %s604, %s605
      %p619 = scmp.eq.s32.totalorder %s39, 3
      %p620 = por %p618, %p619
      %p622 = scmp.ne.s32.totalorder %s605, %s621
      %p623 = scmp.eq.s32.totalorder %s39, 0
      %p624 = por %p622, %p623
      %s626 = sadd.s32 %s625, 1
      %p629 = scmp.eq.s32.totalorder %s33, 3
      %p630 = scmp.ne.s32.totalorder %s625, %s627
      %p631 = scmp.eq.s32.totalorder %s33, 0
      %p632 = por %p630, %p631
      %p633 = scmp.ne.s32.totalorder %s625, %s627
      %p634 = scmp.eq.s32.totalorder %s38, 3
      %p635 = por %p633, %p634
      %p636 = scmp.ne.s32.totalorder %s627, %s628
      %p637 = scmp.eq.s32.totalorder %s38, 0
      %p638 = por %p636, %p637
      %p639 = scmp.ne.s32.totalorder %s627, %s628
      %p640 = scmp.eq.s32.totalorder %s39, 3
      %p641 = por %p639, %p640
      %p643 = scmp.ne.s32.totalorder %s628, %s642
      %p644 = scmp.eq.s32.totalorder %s39, 0
      %p645 = por %p643, %p644
      %s647 = sadd.s32 %s646, 1
      %p650 = scmp.eq.s32.totalorder %s33, 3
      %p651 = scmp.ne.s32.totalorder %s646, %s648
      %p652 = scmp.eq.s32.totalorder %s33, 0
      %p653 = por %p651, %p652
      %p654 = scmp.ne.s32.totalorder %s646, %s648
      %p655 = scmp.eq.s32.totalorder %s38, 3
      %p656 = por %p654, %p655
      %p657 = scmp.ne.s32.totalorder %s648, %s649
      %p658 = scmp.eq.s32.totalorder %s38, 0
      %p659 = por %p657, %p658
      %p660 = scmp.ne.s32.totalorder %s648, %s649
      %p661 = scmp.eq.s32.totalorder %s39, 3
      %p662 = por %p660, %p661
      %p664 = scmp.ne.s32.totalorder %s649, %s663
      %p665 = scmp.eq.s32.totalorder %s39, 0
      %p666 = por %p664, %p665
      %s667 = ssub.s32 %s40, %s52
      %p668 = scmp.eq.s32.totalorder %s667, 0
      %s670 = sadd.s32 %s669, 1
      %s671 = scalar_select %p668, %s669, %s670
      %p674 = pneg %p668
      %p675 = scmp.eq.s32.totalorder %s33, 3
      %p676 = por %p674, %p675
      %p677 = scmp.ne.s32.totalorder %s669, %s672
      %p678 = scmp.eq.s32.totalorder %s33, 0
      %p679 = por %p677, %p678
      %p680 = scmp.ne.s32.totalorder %s669, %s672
      %p681 = scmp.eq.s32.totalorder %s38, 3
      %p682 = por %p680, %p681
      %p683 = scmp.ne.s32.totalorder %s672, %s673
      %p684 = scmp.eq.s32.totalorder %s38, 0
      %p685 = por %p683, %p684
      %p686 = scmp.ne.s32.totalorder %s672, %s673
      %p687 = scmp.eq.s32.totalorder %s39, 3
      %p688 = por %p686, %p687
      %p690 = scmp.ne.s32.totalorder %s673, %s689
      %p691 = scmp.eq.s32.totalorder %s39, 0
      %p692 = por %p690, %p691
      %p693 = scmp.le.s32.totalorder 1, %s33
      %p694 = scmp.lt.s32.totalorder %s33, 5
      %p695 = pnand %p693, %p694
      %p696 = pneg %p695
      // Predicated region
      $region9: #{sum_transformer_forward.3} parent=5 // pred_check
        _
      $region10: #{sum_transformer_forward.3} parent=5 // pred_check_branch
        %698 = sbr.rel (%p695) target = $region12
      $region11: #{sum_transformer_forward.3} parent=5 // pred_region
        %s699 = ssub.s32 %s33, 1
        // Predicated region
        $region13: #{sum_transformer_forward.3} parent=11 // pred_check
          %p700 = pneg %p638
        $region14: #{sum_transformer_forward.3} parent=11 // pred_check_branch
          %702 = sbr.rel (%p700) target = $region16
        $region15: #{sum_transformer_forward.3} parent=11 // pred_region
          _
        $region16: #{sum_transformer_forward.3} parent=11 // pred_fallthru
          _
        // Predicated region
        $region17: #{sum_transformer_forward.3} parent=11 // pred_check
          %p703 = pneg %p659
        $region18: #{sum_transformer_forward.3} parent=11 // pred_check_branch
          %705 = sbr.rel (%p703) target = $region20
        $region19: #{sum_transformer_forward.3} parent=11 // pred_region
          _
        $region20: #{sum_transformer_forward.3} parent=11 // pred_fallthru
          _
      $region12: #{sum_transformer_forward.3} parent=5 // pred_fallthru
        _
      %p706 = scmp.lt.s32.totalorder %s33, 4
      // Predicated region
      $region21: #{sum_transformer_forward.3} parent=5 // pred_check
        %p707 = pneg %p706
      $region22: #{sum_transformer_forward.3} parent=5 // pred_check_branch
        %709 = sbr.rel (%p707) target = $region24
      $region23: #{sum_transformer_forward.3} parent=5 // pred_region
        // Predicated region
        $region25: #{sum_transformer_forward.3} parent=23 // pred_check
          %p710 = pneg %p65
        $region26: #{sum_transformer_forward.3} parent=23 // pred_check_branch
          %712 = sbr.rel (%p710) target = $region28
        $region27: #{sum_transformer_forward.3} parent=23 // pred_region
          %p713 = scmp.lt.s32.totalorder %s40, 1
          %s714 = scalar_select %p713, %s40, 1
          %s715 = smul.addr %s714, 8
          %s716 = scalar_lea.vmem %s0, %s715
        $region28: #{sum_transformer_forward.3} parent=23 // pred_fallthru
          _
        // Predicated region
        $region29: #{sum_transformer_forward.3} parent=23 // pred_check
          %p717 = pneg %p91
        $region30: #{sum_transformer_forward.3} parent=23 // pred_check_branch
          %719 = sbr.rel (%p717) target = $region32
        $region31: #{sum_transformer_forward.3} parent=23 // pred_region
          %p720 = scmp.lt.s32.totalorder %s40, 1
          %s721 = scalar_select %p720, %s40, 1
          %s722 = smul.addr %s721, 2
          %s723 = smul.addr %s722, 8
          %s724 = scalar_lea.vmem %s1, %s723
        $region32: #{sum_transformer_forward.3} parent=23 // pred_fallthru
          _
        // Predicated region
        $region33: #{sum_transformer_forward.3} parent=23 // pred_check
          %p725 = pneg %p117
        $region34: #{sum_transformer_forward.3} parent=23 // pred_check_branch
          %727 = sbr.rel (%p725) target = $region36
        $region35: #{sum_transformer_forward.3} parent=23 // pred_region
          %p728 = scmp.lt.s32.totalorder %s41, 1
          %s729 = scalar_select %p728, %s41, 1
          %s730 = smul.addr %s729, 4
          %s731 = smul.addr %s730, 4
          %s732 = scalar_lea.vmem %s2, %s731
        $region36: #{sum_transformer_forward.3} parent=23 // pred_fallthru
          _
        // Predicated region
        $region37: #{sum_transformer_forward.3} parent=23 // pred_check
          %p733 = pneg %p143
        $region38: #{sum_transformer_forward.3} parent=23 // pred_check_branch
          %735 = sbr.rel (%p733) target = $region40
        $region39: #{sum_transformer_forward.3} parent=23 // pred_region
          %p736 = scmp.lt.s32.totalorder %s41, 1
          %s737 = scalar_select %p736, %s41, 1
          %s738 = scalar_lea.vmem %s3, %s737
        $region40: #{sum_transformer_forward.3} parent=23 // pred_fallthru
          _
        // Predicated region
        $region41: #{sum_transformer_forward.3} parent=23 // pred_check
          %p739 = pneg %p169
        $region42: #{sum_transformer_forward.3} parent=23 // pred_check_branch
          %741 = sbr.rel (%p739) target = $region44
        $region43: #{sum_transformer_forward.3} parent=23 // pred_region
          %p742 = scmp.lt.s32.totalorder %s41, 1
          %s743 = scalar_select %p742, %s41, 1
          %s744 = smul.addr %s743, 4
          %s745 = smul.addr %s744, 4
          %s746 = scalar_lea.vmem %s4, %s745
        $region44: #{sum_transformer_forward.3} parent=23 // pred_fallthru
          _
        // Predicated region
        $region45: #{sum_transformer_forward.3} parent=23 // pred_check
          %p747 = pneg %p195
        $region46: #{sum_transformer_forward.3} parent=23 // pred_check_branch
          %749 = sbr.rel (%p747) target = $region48
        $region47: #{sum_transformer_forward.3} parent=23 // pred_region
          %p750 = scmp.lt.s32.totalorder %s41, 1
          %s751 = scalar_select %p750, %s41, 1
          %s752 = scalar_lea.vmem %s5, %s751
        $region48: #{sum_transformer_forward.3} parent=23 // pred_fallthru
          _
        // Predicated region
        $region49: #{sum_transformer_forward.3} parent=23 // pred_check
          %p753 = pneg %p221
        $region50: #{sum_transformer_forward.3} parent=23 // pred_check_branch
          %755 = sbr.rel (%p753) target = $region52
        $region51: #{sum_transformer_forward.3} parent=23 // pred_region
          %p756 = scmp.lt.s32.totalorder %s41, 1
          %s757 = scalar_select %p756, %s41, 1
          %s758 = scalar_lea.vmem %s6, %s757
        $region52: #{sum_transformer_forward.3} parent=23 // pred_fallthru
          _
        // Predicated region
        $region53: #{sum_transformer_forward.3} parent=23 // pred_check
          %p759 = pneg %p247
        $region54: #{sum_transformer_forward.3} parent=23 // pred_check_branch
          %761 = sbr.rel (%p759) target = $region56
        $region55: #{sum_transformer_forward.3} parent=23 // pred_region
          %p762 = scmp.lt.s32.totalorder %s41, 1
          %s763 = scalar_select %p762, %s41, 1
          %s764 = scalar_lea.vmem %s7, %s763
        $region56: #{sum_transformer_forward.3} parent=23 // pred_fallthru
          _
        // Predicated region
        $region57: #{sum_transformer_forward.3} parent=23 // pred_check
          %p765 = pneg %p273
        $region58: #{sum_transformer_forward.3} parent=23 // pred_check_branch
          %767 = sbr.rel (%p765) target = $region60
        $region59: #{sum_transformer_forward.3} parent=23 // pred_region
          %p768 = scmp.lt.s32.totalorder %s41, 1
          %s769 = scalar_select %p768, %s41, 1
          %s770 = smul.addr %s769, 4
          %s771 = smul.addr %s770, 4
          %s772 = scalar_lea.vmem %s8, %s771
        $region60: #{sum_transformer_forward.3} parent=23 // pred_fallthru
          _
        // Predicated region
        $region61: #{sum_transformer_forward.3} parent=23 // pred_check
          %p773 = pneg %p299
        $region62: #{sum_transformer_forward.3} parent=23 // pred_check_branch
          %775 = sbr.rel (%p773) target = $region64
        $region63: #{sum_transformer_forward.3} parent=23 // pred_region
          %p776 = scmp.lt.s32.totalorder %s41, 1
          %s777 = scalar_select %p776, %s41, 1
          %s778 = scalar_lea.vmem %s9, %s777
        $region64: #{sum_transformer_forward.3} parent=23 // pred_fallthru
          _
        // Predicated region
        $region65: #{sum_transformer_forward.3} parent=23 // pred_check
          %p779 = pneg %p325
        $region66: #{sum_transformer_forward.3} parent=23 // pred_check_branch
          %781 = sbr.rel (%p779) target = $region68
        $region67: #{sum_transformer_forward.3} parent=23 // pred_region
          %p782 = scmp.lt.s32.totalorder %s41, 1
          %s783 = scalar_select %p782, %s41, 1
          %s784 = smul.addr %s783, 4
          %s785 = smul.addr %s784, 4
          %s786 = scalar_lea.vmem %s10, %s785
        $region68: #{sum_transformer_forward.3} parent=23 // pred_fallthru
          _
        // Predicated region
        $region69: #{sum_transformer_forward.3} parent=23 // pred_check
          %p787 = pneg %p351
        $region70: #{sum_transformer_forward.3} parent=23 // pred_check_branch
          %789 = sbr.rel (%p787) target = $region72
        $region71: #{sum_transformer_forward.3} parent=23 // pred_region
          %p790 = scmp.lt.s32.totalorder %s41, 1
          %s791 = scalar_select %p790, %s41, 1
          %s792 = scalar_lea.vmem %s11, %s791
        $region72: #{sum_transformer_forward.3} parent=23 // pred_fallthru
          _
        // Predicated region
        $region73: #{sum_transformer_forward.3} parent=23 // pred_check
          %p793 = pneg %p377
        $region74: #{sum_transformer_forward.3} parent=23 // pred_check_branch
          %795 = sbr.rel (%p793) target = $region76
        $region75: #{sum_transformer_forward.3} parent=23 // pred_region
          %p796 = scmp.lt.s32.totalorder %s41, 1
          %s797 = scalar_select %p796, %s41, 1
          %s798 = smul.addr %s797, 4
          %s799 = smul.addr %s798, 4
          %s800 = scalar_lea.vmem %s12, %s799
        $region76: #{sum_transformer_forward.3} parent=23 // pred_fallthru
          _
        // Predicated region
        $region77: #{sum_transformer_forward.3} parent=23 // pred_check
          %p801 = pneg %p403
        $region78: #{sum_transformer_forward.3} parent=23 // pred_check_branch
          %803 = sbr.rel (%p801) target = $region80
        $region79: #{sum_transformer_forward.3} parent=23 // pred_region
          %p804 = scmp.lt.s32.totalorder %s41, 1
          %s805 = scalar_select %p804, %s41, 1
          %s806 = scalar_lea.vmem %s13, %s805
        $region80: #{sum_transformer_forward.3} parent=23 // pred_fallthru
          _
        // Predicated region
        $region81: #{sum_transformer_forward.3} parent=23 // pred_check
          %p807 = pneg %p429
        $region82: #{sum_transformer_forward.3} parent=23 // pred_check_branch
          %809 = sbr.rel (%p807) target = $region84
        $region83: #{sum_transformer_forward.3} parent=23 // pred_region
          %p810 = scmp.lt.s32.totalorder %s41, 1
          %s811 = scalar_select %p810, %s41, 1
          %s812 = scalar_lea.vmem %s14, %s811
        $region84: #{sum_transformer_forward.3} parent=23 // pred_fallthru
          _
        // Predicated region
        $region85: #{sum_transformer_forward.3} parent=23 // pred_check
          %p813 = pneg %p455
        $region86: #{sum_transformer_forward.3} parent=23 // pred_check_branch
          %815 = sbr.rel (%p813) target = $region88
        $region87: #{sum_transformer_forward.3} parent=23 // pred_region
          %p816 = scmp.lt.s32.totalorder %s41, 1
          %s817 = scalar_select %p816, %s41, 1
          %s818 = scalar_lea.vmem %s15, %s817
        $region88: #{sum_transformer_forward.3} parent=23 // pred_fallthru
          _
        // Predicated region
        $region89: #{sum_transformer_forward.3} parent=23 // pred_check
          %p819 = pneg %p481
        $region90: #{sum_transformer_forward.3} parent=23 // pred_check_branch
          %821 = sbr.rel (%p819) target = $region92
        $region91: #{sum_transformer_forward.3} parent=23 // pred_region
          %p822 = scmp.lt.s32.totalorder %s41, 1
          %s823 = scalar_select %p822, %s41, 1
          %s824 = smul.addr %s823, 4
          %s825 = smul.addr %s824, 4
          %s826 = scalar_lea.vmem %s16, %s825
        $region92: #{sum_transformer_forward.3} parent=23 // pred_fallthru
          _
        // Predicated region
        $region93: #{sum_transformer_forward.3} parent=23 // pred_check
          %p827 = pneg %p507
        $region94: #{sum_transformer_forward.3} parent=23 // pred_check_branch
          %829 = sbr.rel (%p827) target = $region96
        $region95: #{sum_transformer_forward.3} parent=23 // pred_region
          %p830 = scmp.lt.s32.totalorder %s41, 1
          %s831 = scalar_select %p830, %s41, 1
          %s832 = scalar_lea.vmem %s17, %s831
        $region96: #{sum_transformer_forward.3} parent=23 // pred_fallthru
          _
        // Predicated region
        $region97: #{sum_transformer_forward.3} parent=23 // pred_check
          %p833 = pneg %p533
        $region98: #{sum_transformer_forward.3} parent=23 // pred_check_branch
          %835 = sbr.rel (%p833) target = $region100
        $region99: #{sum_transformer_forward.3} parent=23 // pred_region
          %p836 = scmp.lt.s32.totalorder %s41, 1
          %s837 = scalar_select %p836, %s41, 1
          %s838 = smul.addr %s837, 8
          %s839 = smul.addr %s838, 4
          %s840 = scalar_lea.vmem %s18, %s839
        $region100: #{sum_transformer_forward.3} parent=23 // pred_fallthru
          _
        // Predicated region
        $region101: #{sum_transformer_forward.3} parent=23 // pred_check
          %p841 = pneg %p559
        $region102: #{sum_transformer_forward.3} parent=23 // pred_check_branch
          %843 = sbr.rel (%p841) target = $region104
        $region103: #{sum_transformer_forward.3} parent=23 // pred_region
          %p844 = scmp.lt.s32.totalorder %s41, 1
          %s845 = scalar_select %p844, %s41, 1
          %s846 = scalar_lea.vmem %s19, %s845
        $region104: #{sum_transformer_forward.3} parent=23 // pred_fallthru
          _
        // Predicated region
        $region105: #{sum_transformer_forward.3} parent=23 // pred_check
          %p847 = pneg %p585
        $region106: #{sum_transformer_forward.3} parent=23 // pred_check_branch
          %849 = sbr.rel (%p847) target = $region108
        $region107: #{sum_transformer_forward.3} parent=23 // pred_region
          %p850 = scmp.lt.s32.totalorder %s41, 1
          %s851 = scalar_select %p850, %s41, 1
          %s852 = scalar_lea.vmem %s20, %s851
        $region108: #{sum_transformer_forward.3} parent=23 // pred_fallthru
          _
        // Predicated region
        $region109: #{sum_transformer_forward.3} parent=23 // pred_check
          %p853 = pneg %p611
        $region110: #{sum_transformer_forward.3} parent=23 // pred_check_branch
          %855 = sbr.rel (%p853) target = $region112
        $region111: #{sum_transformer_forward.3} parent=23 // pred_region
          %p856 = scmp.lt.s32.totalorder %s41, 1
          %s857 = scalar_select %p856, %s41, 1
          %s858 = scalar_lea.vmem %s21, %s857
        $region112: #{sum_transformer_forward.3} parent=23 // pred_fallthru
          _
      $region24: #{sum_transformer_forward.3} parent=5 // pred_fallthru
        _
      %p859 = scmp.le.s32.totalorder 1, %s33
      %p860 = scmp.lt.s32.totalorder %s33, 5
      %p861 = pnand %p859, %p860
      %p862 = pneg %p861
      // Predicated region
      $region113: #{sum_transformer_forward.3} parent=5 // pred_check
        _
      $region114: #{sum_transformer_forward.3} parent=5 // pred_check_branch
        %864 = sbr.rel (%p861) target = $region116
      $region115: #{sum_transformer_forward.3} parent=5 // pred_region
        %s865 = ssub.s32 %s33, 1
        %p866 = scmp.lt.s32.totalorder %s42, 1
        %s867 = scalar_select %p866, %s42, 1
        %s868 = smul.addr %s867, 8
        %s869 = scalar_lea.vmem %s0, %s868
        %p870 = pneg %p71
        %p871 = pneg %p68
        %p872 = scmp.lt.s32.totalorder %s42, 1
        %s873 = scalar_select %p872, %s42, 1
        %s874 = smul.addr %s873, 2
        %s875 = smul.addr %s874, 8
        %s876 = scalar_lea.vmem %s1, %s875
        %p877 = pneg %p97
        %p878 = pneg %p94
        %p879 = scmp.lt.s32.totalorder %s43, 1
        %s880 = scalar_select %p879, %s43, 1
        %s881 = smul.addr %s880, 4
        %s882 = smul.addr %s881, 4
        %s883 = scalar_lea.vmem %s2, %s882
        %p884 = pneg %p123
        %p885 = pneg %p120
        %p886 = scmp.lt.s32.totalorder %s43, 1
        %s887 = scalar_select %p886, %s43, 1
        %s888 = scalar_lea.vmem %s3, %s887
        %p889 = pneg %p149
        %p890 = pneg %p146
        %p891 = scmp.lt.s32.totalorder %s43, 1
        %s892 = scalar_select %p891, %s43, 1
        %s893 = smul.addr %s892, 4
        %s894 = smul.addr %s893, 4
        %s895 = scalar_lea.vmem %s4, %s894
        %p896 = pneg %p175
        %p897 = pneg %p172
        %p898 = scmp.lt.s32.totalorder %s43, 1
        %s899 = scalar_select %p898, %s43, 1
        %s900 = scalar_lea.vmem %s5, %s899
        %p901 = pneg %p201
        %p902 = pneg %p198
        %p903 = scmp.lt.s32.totalorder %s43, 1
        %s904 = scalar_select %p903, %s43, 1
        %s905 = scalar_lea.vmem %s6, %s904
        %p906 = pneg %p227
        %p907 = pneg %p224
        %p908 = scmp.lt.s32.totalorder %s43, 1
        %s909 = scalar_select %p908, %s43, 1
        %s910 = scalar_lea.vmem %s7, %s909
        %p911 = pneg %p253
        %p912 = pneg %p250
        %p913 = scmp.lt.s32.totalorder %s43, 1
        %s914 = scalar_select %p913, %s43, 1
        %s915 = smul.addr %s914, 4
        %s916 = smul.addr %s915, 4
        %s917 = scalar_lea.vmem %s8, %s916
        %p918 = pneg %p279
        %p919 = pneg %p276
        %p920 = scmp.lt.s32.totalorder %s43, 1
        %s921 = scalar_select %p920, %s43, 1
        %s922 = scalar_lea.vmem %s9, %s921
        %p923 = pneg %p305
        %p924 = pneg %p302
        %p925 = scmp.lt.s32.totalorder %s43, 1
        %s926 = scalar_select %p925, %s43, 1
        %s927 = smul.addr %s926, 4
        %s928 = smul.addr %s927, 4
        %s929 = scalar_lea.vmem %s10, %s928
        %p930 = pneg %p331
        %p931 = pneg %p328
        %p932 = scmp.lt.s32.totalorder %s43, 1
        %s933 = scalar_select %p932, %s43, 1
        %s934 = scalar_lea.vmem %s11, %s933
        %p935 = pneg %p357
        %p936 = pneg %p354
        %p937 = scmp.lt.s32.totalorder %s43, 1
        %s938 = scalar_select %p937, %s43, 1
        %s939 = smul.addr %s938, 4
        %s940 = smul.addr %s939, 4
        %s941 = scalar_lea.vmem %s12, %s940
        %p942 = pneg %p383
        %p943 = pneg %p380
        %p944 = scmp.lt.s32.totalorder %s43, 1
        %s945 = scalar_select %p944, %s43, 1
        %s946 = scalar_lea.vmem %s13, %s945
        %p947 = pneg %p409
        %p948 = pneg %p406
        %p949 = scmp.lt.s32.totalorder %s43, 1
        %s950 = scalar_select %p949, %s43, 1
        %s951 = scalar_lea.vmem %s14, %s950
        %p952 = pneg %p435
        %p953 = pneg %p432
        %p954 = scmp.lt.s32.totalorder %s43, 1
        %s955 = scalar_select %p954, %s43, 1
        %s956 = scalar_lea.vmem %s15, %s955
        %p957 = pneg %p461
        %p958 = pneg %p458
        %p959 = scmp.lt.s32.totalorder %s43, 1
        %s960 = scalar_select %p959, %s43, 1
        %s961 = smul.addr %s960, 4
        %s962 = smul.addr %s961, 4
        %s963 = scalar_lea.vmem %s16, %s962
        %p964 = pneg %p487
        %p965 = pneg %p484
        %p966 = scmp.lt.s32.totalorder %s43, 1
        %s967 = scalar_select %p966, %s43, 1
        %s968 = scalar_lea.vmem %s17, %s967
        %p969 = pneg %p513
        %p970 = pneg %p510
        %p971 = scmp.lt.s32.totalorder %s43, 1
        %s972 = scalar_select %p971, %s43, 1
        %s973 = smul.addr %s972, 8
        %s974 = smul.addr %s973, 4
        %s975 = scalar_lea.vmem %s18, %s974
        %p976 = pneg %p539
        %p977 = pneg %p536
        %p978 = scmp.lt.s32.totalorder %s43, 1
        %s979 = scalar_select %p978, %s43, 1
        %s980 = scalar_lea.vmem %s19, %s979
        %p981 = pneg %p565
        %p982 = pneg %p562
        %p983 = scmp.lt.s32.totalorder %s43, 1
        %s984 = scalar_select %p983, %s43, 1
        %s985 = scalar_lea.vmem %s20, %s984
        %p986 = pneg %p591
        %p987 = pneg %p588
        %p988 = scmp.lt.s32.totalorder %s43, 1
        %s989 = scalar_select %p988, %s43, 1
        %s990 = scalar_lea.vmem %s21, %s989
        %p991 = pneg %p617
        %p992 = pneg %p614
        %p993 = pneg %p638
        %p994 = pneg %p635
        %p995 = pneg %p659
        %p996 = pneg %p656
        %p997 = pneg %p685
        %p998 = pneg %p682
        %s999 = sand.u32 %s672, 1
        %s1000 = scalar_lea.sflag [#allocation4], %s999
        %s1001 = sand.u32 %s672, 1
        %s1002 = smul.addr %s1001, 8
        %s1003 = scalar_lea.vmem [#allocation3], %s1002
        %p1004 = scmp.lt.s32.totalorder %s42, 1
        %s1005 = scalar_select %p1004, %s42, 1
        %s1006 = smul.addr %s1005, 8
        %s1007 = scalar_lea.vmem %s0, %s1006
        %p1008 = scmp.lt.s32.totalorder %s42, 1
        %s1009 = scalar_select %p1008, %s42, 1
        %s1010 = smul.addr %s1009, 2
        %s1011 = smul.addr %s1010, 8
        %s1012 = scalar_lea.vmem %s1, %s1011
        %p1013 = scmp.lt.s32.totalorder %s43, 1
        %s1014 = scalar_select %p1013, %s43, 1
        %s1015 = smul.addr %s1014, 4
        %s1016 = smul.addr %s1015, 4
        %s1017 = scalar_lea.vmem %s2, %s1016
        %p1018 = scmp.lt.s32.totalorder %s43, 1
        %s1019 = scalar_select %p1018, %s43, 1
        %s1020 = scalar_lea.vmem %s3, %s1019
        %p1021 = scmp.lt.s32.totalorder %s43, 1
        %s1022 = scalar_select %p1021, %s43, 1
        %s1023 = smul.addr %s1022, 4
        %s1024 = smul.addr %s1023, 4
        %s1025 = scalar_lea.vmem %s4, %s1024
        %p1026 = scmp.lt.s32.totalorder %s43, 1
        %s1027 = scalar_select %p1026, %s43, 1
        %s1028 = scalar_lea.vmem %s5, %s1027
        %p1029 = scmp.lt.s32.totalorder %s43, 1
        %s1030 = scalar_select %p1029, %s43, 1
        %s1031 = scalar_lea.vmem %s6, %s1030
        %p1032 = scmp.lt.s32.totalorder %s43, 1
        %s1033 = scalar_select %p1032, %s43, 1
        %s1034 = scalar_lea.vmem %s7, %s1033
        %p1035 = scmp.lt.s32.totalorder %s43, 1
        %s1036 = scalar_select %p1035, %s43, 1
        %s1037 = smul.addr %s1036, 4
        %s1038 = smul.addr %s1037, 4
        %s1039 = scalar_lea.vmem %s8, %s1038
        %p1040 = scmp.lt.s32.totalorder %s43, 1
        %s1041 = scalar_select %p1040, %s43, 1
        %s1042 = scalar_lea.vmem %s9, %s1041
        %p1043 = scmp.lt.s32.totalorder %s43, 1
        %s1044 = scalar_select %p1043, %s43, 1
        %s1045 = smul.addr %s1044, 4
        %s1046 = smul.addr %s1045, 4
        %s1047 = scalar_lea.vmem %s10, %s1046
        %p1048 = scmp.lt.s32.totalorder %s43, 1
        %s1049 = scalar_select %p1048, %s43, 1
        %s1050 = scalar_lea.vmem %s11, %s1049
        %p1051 = scmp.lt.s32.totalorder %s43, 1
        %s1052 = scalar_select %p1051, %s43, 1
        %s1053 = smul.addr %s1052, 4
        %s1054 = smul.addr %s1053, 4
        %s1055 = scalar_lea.vmem %s12, %s1054
        %p1056 = scmp.lt.s32.totalorder %s43, 1
        %s1057 = scalar_select %p1056, %s43, 1
        %s1058 = scalar_lea.vmem %s13, %s1057
        %p1059 = scmp.lt.s32.totalorder %s43, 1
        %s1060 = scalar_select %p1059, %s43, 1
        %s1061 = scalar_lea.vmem %s14, %s1060
        %p1062 = scmp.lt.s32.totalorder %s43, 1
        %s1063 = scalar_select %p1062, %s43, 1
        %s1064 = scalar_lea.vmem %s15, %s1063
        %p1065 = scmp.lt.s32.totalorder %s43, 1
        %s1066 = scalar_select %p1065, %s43, 1
        %s1067 = smul.addr %s1066, 4
        %s1068 = smul.addr %s1067, 4
        %s1069 = scalar_lea.vmem %s16, %s1068
        %p1070 = scmp.lt.s32.totalorder %s43, 1
        %s1071 = scalar_select %p1070, %s43, 1
        %s1072 = scalar_lea.vmem %s17, %s1071
        %p1073 = scmp.lt.s32.totalorder %s43, 1
        %s1074 = scalar_select %p1073, %s43, 1
        %s1075 = smul.addr %s1074, 8
        %s1076 = smul.addr %s1075, 4
        %s1077 = scalar_lea.vmem %s18, %s1076
        %p1078 = scmp.lt.s32.totalorder %s43, 1
        %s1079 = scalar_select %p1078, %s43, 1
        %s1080 = scalar_lea.vmem %s19, %s1079
        %p1081 = scmp.lt.s32.totalorder %s43, 1
        %s1082 = scalar_select %p1081, %s43, 1
        %s1083 = scalar_lea.vmem %s20, %s1082
        %p1084 = scmp.lt.s32.totalorder %s43, 1
        %s1085 = scalar_select %p1084, %s43, 1
        %s1086 = scalar_lea.vmem %s21, %s1085
        %p1088 = scmp.eq.s32.totalorder %s43, 0
        // Predicated region
        $region117: #{sum_transformer_forward.3} parent=115 // pred_check
          %p1089 = pneg %p1088
        $region118: #{sum_transformer_forward.3} parent=115 // pred_check_branch
          %1091 = sbr.rel (%p1089) target = $region120
        $region119: #{sum_transformer_forward.3} parent=115 // pred_region
          %v1092 = vld [vmem:[%s1007] sm:$0xff]
          %vm1093 = vcmask 261120
          %1094 = vst.msk [vmem:[#allocation2] sm:$0xff] %vm1093, %v1092
        $region120: #{sum_transformer_forward.3} parent=115 // pred_fallthru
          _
        %v1095 = vld [vmem:[#allocation2] sm:$0xff]
        %v1096 = vld [vmem:[%s1012] sm:$0xff]
        %v1097 = vld [vmem:[%s1012 + $0x8] sm:$0xff]
        %v1098 = vld [vmem:[%s1017] sm:$0xf]
        %v1099 = vld [vmem:[%s1017 + $0x4] sm:$0xf]
        %v1100 = vld [vmem:[%s1017 + $0x8] sm:$0xf]
        %v1101 = vld [vmem:[%s1017 + $0xc] sm:$0xf]
        %v1102 = vld [vmem:[%s1020] sm:$0x1]
        %v1103 = vpack.c.bf16 %v1095, %v1095
        %v1105 = vlaneseq
        %v1106 = vshrl.u32 %v1105, 7
        %v1107 = vsub.s32 0, %v1106
        %v1108 = vrot.slane %v1102, %v1107
        %v1114 = vunpack.c.l.b16 %v1098
        %v1115 = vunpack.c.l.b16 %v1099
        %v1116 = vunpack.c.l.b16 %v1100
        %v1117 = vunpack.c.l.b16 %v1101
        %v1118 = vpack.c.b16 %v1115, %v1114
        %v1119 = vpack.c.b16 %v1117, %v1116
        %vm1122 = vcmask 261120
        %v1124 = vsel %vm1122, %v1103, 0
        %1126 = vmatprep.subr.bf16.mxu0 0
        %1127 = vmatpush1.bf16.msra.mxu0 0
        %1128 = vmatprep.subr.bf16.mxu0 0
        %1129 = vmatpush1.bf16.msra.mxu0 0
        %1130 = vmatprep.subr.bf16.mxu0 0
        %1131 = vmatpush1.bf16.msra.mxu0 0
        %1132 = vmatprep.subr.bf16.mxu0 0
        %1133 = vmatpush1.bf16.msra.mxu0 0
        %1134 = vmatprep.subr.bf16.mxu0 0
        %1135 = vmatpush1.bf16.msra.mxu0 0
        %1136 = vmatprep.subr.bf16.mxu0 0
        %1137 = vmatpush1.bf16.msra.mxu0 0
        %1138 = vmatprep.subr.bf16.mxu0 0
        %1139 = vmatpush1.bf16.msra.mxu0 %v1119
        %1140 = vmatprep.subr.bf16.mxu0 0
        %1141 = vmatpush1.bf16.msra.mxu0 %v1118
        %1142 = vmatprep.subr.bf16.mxu0 0
        %1143 = vmatpush2.bf16.msra.mxu0 0
        %1144 = vmatprep.subr.bf16.mxu0 0
        %1145 = vmatpush2.bf16.msra.mxu0 0
        %1146 = vmatprep.subr.bf16.mxu0 0
        %1147 = vmatpush2.bf16.msra.mxu0 0
        %1148 = vmatprep.subr.bf16.mxu0 0
        %1149 = vmatpush2.bf16.msra.mxu0 0
        %1150 = vmatprep.subr.bf16.mxu0 0
        %1151 = vmatpush2.bf16.msra.mxu0 0
        %1152 = vmatprep.subr.bf16.mxu0 0
        %1153 = vmatpush2.bf16.msra.mxu0 0
        %1154 = vmatprep.subr.bf16.mxu0 0
        %1155 = vmatpush2.bf16.msra.mxu0 0
        %1156 = vmatprep.subr.bf16.mxu0 0
        %1157 = vmatpush2.bf16.msra.mxu0 0
        %1158 = vmatprep.mubr.bf16.mxu0 0
        %1159 = vmatmul.mubr.bf16.gmra.mxu0 %v1124
        %v1160 = vpop.f32.mrf.mxu0
        %v1161 = vadd.f32 %v1108, %v1160
        %v1162 = vpop.f32.mrf.mxu0
        %v1163 = vpop.f32.mrf.mxu0
        %v1164 = vpop.f32.mrf.mxu0
        %1165 = vdwg.mxu0
        %1167 = vrot.lane.b32.xlu0 %v1161, 120
        %v1168 = vpop.permute.xlu0 %1167
        %1170 = vrot.lane.b32.xlu0 %v1161, 112
        %v1171 = vpop.permute.xlu0 %1170
        %1173 = vrot.lane.b32.xlu0 %v1161, 104
        %v1174 = vpop.permute.xlu0 %1173
        %v1176 = vcombine.low %v1161, %v1171
        %v1177 = vcombine.high %v1161, %v1171
        %v1179 = vunpack.c.l.s4 1983009808
        %v1180 = vunpack.c.0.s8 %v1179
        %v1181 = vlaneseq
        %v1182 = vshrl.u32 %v1181, 7
        %v1183 = vsub.s32 %v1180, %v1182
        %v1184 = vrot.slane %v1176, %v1183
        %v1186 = vunpack.c.l.s4 1983009808
        %v1187 = vunpack.c.0.s8 %v1186
        %v1188 = vlaneseq
        %v1189 = vshrl.u32 %v1188, 7
        %v1190 = vsub.s32 %v1187, %v1189
        %v1191 = vrot.slane %v1177, %v1190
        %v1192 = vcombine.low %v1168, %v1174
        %v1193 = vcombine.high %v1168, %v1174
        %v1195 = vunpack.c.l.s4 1983009808
        %v1196 = vunpack.c.0.s8 %v1195
        %v1197 = vlaneseq
        %v1198 = vshrl.u32 %v1197, 7
        %v1199 = vsub.s32 %v1196, %v1198
        %v1200 = vrot.slane %v1192, %v1199
        %v1202 = vunpack.c.l.s4 1983009808
        %v1203 = vunpack.c.0.s8 %v1202
        %v1204 = vlaneseq
        %v1205 = vshrl.u32 %v1204, 7
        %v1206 = vsub.s32 %v1203, %v1205
        %v1207 = vrot.slane %v1193, %v1206
        %v1208 = vcombine.low %v1184, %v1200
        %v1209 = vcombine.high %v1184, %v1200
        %v1211 = vunpack.c.l.s4 1934713408
        %v1212 = vunpack.c.0.s8 %v1211
        %v1213 = vlaneseq
        %v1214 = vshrl.u32 %v1213, 7
        %v1215 = vsub.s32 %v1212, %v1214
        %v1216 = vrot.slane %v1208, %v1215
        %v1218 = vunpack.c.l.s4 1934713408
        %v1219 = vunpack.c.0.s8 %v1218
        %v1220 = vlaneseq
        %v1221 = vshrl.u32 %v1220, 7
        %v1222 = vsub.s32 %v1219, %v1221
        %v1223 = vrot.slane %v1209, %v1222
        %v1224 = vcombine.low %v1191, %v1207
        %v1225 = vcombine.high %v1191, %v1207
        %v1227 = vunpack.c.l.s4 1934713408
        %v1228 = vunpack.c.0.s8 %v1227
        %v1229 = vlaneseq
        %v1230 = vshrl.u32 %v1229, 7
        %v1231 = vsub.s32 %v1228, %v1230
        %v1232 = vrot.slane %v1224, %v1231
        %v1234 = vunpack.c.l.s4 1934713408
        %v1235 = vunpack.c.0.s8 %v1234
        %v1236 = vlaneseq
        %v1237 = vshrl.u32 %v1236, 7
        %v1238 = vsub.s32 %v1235, %v1237
        %v1239 = vrot.slane %v1225, %v1238
        %v1240 = vcombine.high %v1216, 0.0
        %v1241 = vcombine.high %v1223, 0.0
        %v1242 = vcombine.high %v1232, 0.0
        %v1243 = vcombine.high %v1239, 0.0
        %v1244 = vcombine.low %v1216, %v1223
        %v1246 = vunpack.c.l.s4 1983009808
        %v1247 = vunpack.c.0.s8 %v1246
        %v1248 = vlaneseq
        %v1249 = vshrl.u32 %v1248, 7
        %v1250 = vsub.s32 %v1247, %v1249
        %v1251 = vrot.slane %v1244, %v1250
        %v1252 = vcombine.low %v1240, %v1241
        %v1254 = vunpack.c.l.s4 1983009808
        %v1255 = vunpack.c.0.s8 %v1254
        %v1256 = vlaneseq
        %v1257 = vshrl.u32 %v1256, 7
        %v1258 = vsub.s32 %v1255, %v1257
        %v1259 = vrot.slane %v1252, %v1258
        %v1260 = vcombine.low %v1232, %v1239
        %v1262 = vunpack.c.l.s4 1983009808
        %v1263 = vunpack.c.0.s8 %v1262
        %v1264 = vlaneseq
        %v1265 = vshrl.u32 %v1264, 7
        %v1266 = vsub.s32 %v1263, %v1265
        %v1267 = vrot.slane %v1260, %v1266
        %v1268 = vcombine.low %v1242, %v1243
        %v1270 = vunpack.c.l.s4 1983009808
        %v1271 = vunpack.c.0.s8 %v1270
        %v1272 = vlaneseq
        %v1273 = vshrl.u32 %v1272, 7
        %v1274 = vsub.s32 %v1271, %v1273
        %v1275 = vrot.slane %v1268, %v1274
        %v1276 = vcombine.low %v1251, %v1259
        %v1277 = vcombine.high %v1251, %v1259
        %v1279 = vunpack.c.l.s4 1934713408
        %v1280 = vunpack.c.0.s8 %v1279
        %v1281 = vlaneseq
        %v1282 = vshrl.u32 %v1281, 7
        %v1283 = vsub.s32 %v1280, %v1282
        %v1284 = vrot.slane %v1276, %v1283
        %v1286 = vunpack.c.l.s4 1934713408
        %v1287 = vunpack.c.0.s8 %v1286
        %v1288 = vlaneseq
        %v1289 = vshrl.u32 %v1288, 7
        %v1290 = vsub.s32 %v1287, %v1289
        %v1291 = vrot.slane %v1277, %v1290
        %v1292 = vcombine.low %v1267, %v1275
        %v1293 = vcombine.high %v1267, %v1275
        %v1295 = vunpack.c.l.s4 1934713408
        %v1296 = vunpack.c.0.s8 %v1295
        %v1297 = vlaneseq
        %v1298 = vshrl.u32 %v1297, 7
        %v1299 = vsub.s32 %v1296, %v1298
        %v1300 = vrot.slane %v1292, %v1299
        %v1302 = vunpack.c.l.s4 1934713408
        %v1303 = vunpack.c.0.s8 %v1302
        %v1304 = vlaneseq
        %v1305 = vshrl.u32 %v1304, 7
        %v1306 = vsub.s32 %v1303, %v1305
        %v1307 = vrot.slane %v1293, %v1306
        %v1308 = vcombine.low %v1284, %v1300
        %v1309 = vcombine.high %v1284, %v1300
        %v1310 = vcombine.low %v1291, %v1307
        %v1311 = vcombine.high %v1291, %v1307
        %v1312 = vpack.c.bf16 %v1308, %v1308
        %v1313 = vpack.c.bf16 %v1309, %v1309
        %v1314 = vpack.c.bf16 %v1310, %v1310
        %v1315 = vpack.c.bf16 %v1311, %v1311
        %1316 = vrot.lane.b32.xlu0 %v1161, 96
        %v1317 = vpop.permute.xlu0 %1316
        %1318 = vrot.lane.b32.xlu0 %v1168, 96
        %v1319 = vpop.permute.xlu0 %1318
        %1320 = vrot.lane.b32.xlu0 %v1171, 96
        %v1321 = vpop.permute.xlu0 %1320
        %1322 = vrot.lane.b32.xlu0 %v1174, 96
        %v1323 = vpop.permute.xlu0 %1322
        %v1328 = vcombine.low %v1317, %v1321
        %v1329 = vcombine.high %v1317, %v1321
        %v1331 = vunpack.c.l.s4 1983009808
        %v1332 = vunpack.c.0.s8 %v1331
        %v1333 = vlaneseq
        %v1334 = vshrl.u32 %v1333, 7
        %v1335 = vsub.s32 %v1332, %v1334
        %v1336 = vrot.slane %v1328, %v1335
        %v1338 = vunpack.c.l.s4 1983009808
        %v1339 = vunpack.c.0.s8 %v1338
        %v1340 = vlaneseq
        %v1341 = vshrl.u32 %v1340, 7
        %v1342 = vsub.s32 %v1339, %v1341
        %v1343 = vrot.slane %v1329, %v1342
        %v1344 = vcombine.low %v1319, %v1323
        %v1345 = vcombine.high %v1319, %v1323
        %v1347 = vunpack.c.l.s4 1983009808
        %v1348 = vunpack.c.0.s8 %v1347
        %v1349 = vlaneseq
        %v1350 = vshrl.u32 %v1349, 7
        %v1351 = vsub.s32 %v1348, %v1350
        %v1352 = vrot.slane %v1344, %v1351
        %v1354 = vunpack.c.l.s4 1983009808
        %v1355 = vunpack.c.0.s8 %v1354
        %v1356 = vlaneseq
        %v1357 = vshrl.u32 %v1356, 7
        %v1358 = vsub.s32 %v1355, %v1357
        %v1359 = vrot.slane %v1345, %v1358
        %v1360 = vcombine.low %v1336, %v1352
        %v1361 = vcombine.high %v1336, %v1352
        %v1363 = vunpack.c.l.s4 1934713408
        %v1364 = vunpack.c.0.s8 %v1363
        %v1365 = vlaneseq
        %v1366 = vshrl.u32 %v1365, 7
        %v1367 = vsub.s32 %v1364, %v1366
        %v1368 = vrot.slane %v1360, %v1367
        %v1370 = vunpack.c.l.s4 1934713408
        %v1371 = vunpack.c.0.s8 %v1370
        %v1372 = vlaneseq
        %v1373 = vshrl.u32 %v1372, 7
        %v1374 = vsub.s32 %v1371, %v1373
        %v1375 = vrot.slane %v1361, %v1374
        %v1376 = vcombine.low %v1343, %v1359
        %v1377 = vcombine.high %v1343, %v1359
        %v1379 = vunpack.c.l.s4 1934713408
        %v1380 = vunpack.c.0.s8 %v1379
        %v1381 = vlaneseq
        %v1382 = vshrl.u32 %v1381, 7
        %v1383 = vsub.s32 %v1380, %v1382
        %v1384 = vrot.slane %v1376, %v1383
        %v1386 = vunpack.c.l.s4 1934713408
        %v1387 = vunpack.c.0.s8 %v1386
        %v1388 = vlaneseq
        %v1389 = vshrl.u32 %v1388, 7
        %v1390 = vsub.s32 %v1387, %v1389
        %v1391 = vrot.slane %v1377, %v1390
        %v1392 = vcombine.high %v1368, 0.0
        %v1393 = vcombine.high %v1375, 0.0
        %v1394 = vcombine.high %v1384, 0.0
        %v1395 = vcombine.high %v1391, 0.0
        %v1396 = vcombine.low %v1368, %v1375
        %v1398 = vunpack.c.l.s4 1983009808
        %v1399 = vunpack.c.0.s8 %v1398
        %v1400 = vlaneseq
        %v1401 = vshrl.u32 %v1400, 7
        %v1402 = vsub.s32 %v1399, %v1401
        %v1403 = vrot.slane %v1396, %v1402
        %v1404 = vcombine.low %v1392, %v1393
        %v1406 = vunpack.c.l.s4 1983009808
        %v1407 = vunpack.c.0.s8 %v1406
        %v1408 = vlaneseq
        %v1409 = vshrl.u32 %v1408, 7
        %v1410 = vsub.s32 %v1407, %v1409
        %v1411 = vrot.slane %v1404, %v1410
        %v1412 = vcombine.low %v1384, %v1391
        %v1414 = vunpack.c.l.s4 1983009808
        %v1415 = vunpack.c.0.s8 %v1414
        %v1416 = vlaneseq
        %v1417 = vshrl.u32 %v1416, 7
        %v1418 = vsub.s32 %v1415, %v1417
        %v1419 = vrot.slane %v1412, %v1418
        %v1420 = vcombine.low %v1394, %v1395
        %v1422 = vunpack.c.l.s4 1983009808
        %v1423 = vunpack.c.0.s8 %v1422
        %v1424 = vlaneseq
        %v1425 = vshrl.u32 %v1424, 7
        %v1426 = vsub.s32 %v1423, %v1425
        %v1427 = vrot.slane %v1420, %v1426
        %v1428 = vcombine.low %v1403, %v1411
        %v1429 = vcombine.high %v1403, %v1411
        %v1431 = vunpack.c.l.s4 1934713408
        %v1432 = vunpack.c.0.s8 %v1431
        %v1433 = vlaneseq
        %v1434 = vshrl.u32 %v1433, 7
        %v1435 = vsub.s32 %v1432, %v1434
        %v1436 = vrot.slane %v1428, %v1435
        %v1438 = vunpack.c.l.s4 1934713408
        %v1439 = vunpack.c.0.s8 %v1438
        %v1440 = vlaneseq
        %v1441 = vshrl.u32 %v1440, 7
        %v1442 = vsub.s32 %v1439, %v1441
        %v1443 = vrot.slane %v1429, %v1442
        %v1444 = vcombine.low %v1419, %v1427
        %v1445 = vcombine.high %v1419, %v1427
        %v1447 = vunpack.c.l.s4 1934713408
        %v1448 = vunpack.c.0.s8 %v1447
        %v1449 = vlaneseq
        %v1450 = vshrl.u32 %v1449, 7
        %v1451 = vsub.s32 %v1448, %v1450
        %v1452 = vrot.slane %v1444, %v1451
        %v1454 = vunpack.c.l.s4 1934713408
        %v1455 = vunpack.c.0.s8 %v1454
        %v1456 = vlaneseq
        %v1457 = vshrl.u32 %v1456, 7
        %v1458 = vsub.s32 %v1455, %v1457
        %v1459 = vrot.slane %v1445, %v1458
        %v1460 = vcombine.low %v1436, %v1452
        %v1461 = vcombine.high %v1436, %v1452
        %v1462 = vcombine.low %v1443, %v1459
        %v1463 = vcombine.high %v1443, %v1459
        %v1464 = vpack.c.bf16 %v1460, %v1460
        %v1465 = vpack.c.bf16 %v1461, %v1461
        %v1466 = vpack.c.bf16 %v1462, %v1462
        %v1467 = vpack.c.bf16 %v1463, %v1463
        %1468 = vrot.lane.b32.xlu0 %v1161, 64
        %v1469 = vpop.permute.xlu0 %1468
        %1470 = vrot.lane.b32.xlu0 %v1168, 64
        %v1471 = vpop.permute.xlu0 %1470
        %1472 = vrot.lane.b32.xlu0 %v1171, 64
        %v1473 = vpop.permute.xlu0 %1472
        %1474 = vrot.lane.b32.xlu0 %v1174, 64
        %v1475 = vpop.permute.xlu0 %1474
        %v1480 = vcombine.low %v1469, %v1473
        %v1481 = vcombine.high %v1469, %v1473
        %v1483 = vunpack.c.l.s4 1983009808
        %v1484 = vunpack.c.0.s8 %v1483
        %v1485 = vlaneseq
        %v1486 = vshrl.u32 %v1485, 7
        %v1487 = vsub.s32 %v1484, %v1486
        %v1488 = vrot.slane %v1480, %v1487
        %v1490 = vunpack.c.l.s4 1983009808
        %v1491 = vunpack.c.0.s8 %v1490
        %v1492 = vlaneseq
        %v1493 = vshrl.u32 %v1492, 7
        %v1494 = vsub.s32 %v1491, %v1493
        %v1495 = vrot.slane %v1481, %v1494
        %v1496 = vcombine.low %v1471, %v1475
        %v1497 = vcombine.high %v1471, %v1475
        %v1499 = vunpack.c.l.s4 1983009808
        %v1500 = vunpack.c.0.s8 %v1499
        %v1501 = vlaneseq
        %v1502 = vshrl.u32 %v1501, 7
        %v1503 = vsub.s32 %v1500, %v1502
        %v1504 = vrot.slane %v1496, %v1503
        %v1506 = vunpack.c.l.s4 1983009808
        %v1507 = vunpack.c.0.s8 %v1506
        %v1508 = vlaneseq
        %v1509 = vshrl.u32 %v1508, 7
        %v1510 = vsub.s32 %v1507, %v1509
        %v1511 = vrot.slane %v1497, %v1510
        %v1512 = vcombine.low %v1488, %v1504
        %v1513 = vcombine.high %v1488, %v1504
        %v1515 = vunpack.c.l.s4 1934713408
        %v1516 = vunpack.c.0.s8 %v1515
        %v1517 = vlaneseq
        %v1518 = vshrl.u32 %v1517, 7
        %v1519 = vsub.s32 %v1516, %v1518
        %v1520 = vrot.slane %v1512, %v1519
        %v1522 = vunpack.c.l.s4 1934713408
        %v1523 = vunpack.c.0.s8 %v1522
        %v1524 = vlaneseq
        %v1525 = vshrl.u32 %v1524, 7
        %v1526 = vsub.s32 %v1523, %v1525
        %v1527 = vrot.slane %v1513, %v1526
        %v1528 = vcombine.low %v1495, %v1511
        %v1529 = vcombine.high %v1495, %v1511
        %v1531 = vunpack.c.l.s4 1934713408
        %v1532 = vunpack.c.0.s8 %v1531
        %v1533 = vlaneseq
        %v1534 = vshrl.u32 %v1533, 7
        %v1535 = vsub.s32 %v1532, %v1534
        %v1536 = vrot.slane %v1528, %v1535
        %v1538 = vunpack.c.l.s4 1934713408
        %v1539 = vunpack.c.0.s8 %v1538
        %v1540 = vlaneseq
        %v1541 = vshrl.u32 %v1540, 7
        %v1542 = vsub.s32 %v1539, %v1541
        %v1543 = vrot.slane %v1529, %v1542
        %v1544 = vcombine.high %v1520, 0.0
        %v1545 = vcombine.high %v1527, 0.0
        %v1546 = vcombine.high %v1536, 0.0
        %v1547 = vcombine.high %v1543, 0.0
        %v1548 = vcombine.low %v1520, %v1527
        %v1550 = vunpack.c.l.s4 1983009808
        %v1551 = vunpack.c.0.s8 %v1550
        %v1552 = vlaneseq
        %v1553 = vshrl.u32 %v1552, 7
        %v1554 = vsub.s32 %v1551, %v1553
        %v1555 = vrot.slane %v1548, %v1554
        %v1556 = vcombine.low %v1544, %v1545
        %v1558 = vunpack.c.l.s4 1983009808
        %v1559 = vunpack.c.0.s8 %v1558
        %v1560 = vlaneseq
        %v1561 = vshrl.u32 %v1560, 7
        %v1562 = vsub.s32 %v1559, %v1561
        %v1563 = vrot.slane %v1556, %v1562
        %v1564 = vcombine.low %v1536, %v1543
        %v1566 = vunpack.c.l.s4 1983009808
        %v1567 = vunpack.c.0.s8 %v1566
        %v1568 = vlaneseq
        %v1569 = vshrl.u32 %v1568, 7
        %v1570 = vsub.s32 %v1567, %v1569
        %v1571 = vrot.slane %v1564, %v1570
        %v1572 = vcombine.low %v1546, %v1547
        %v1574 = vunpack.c.l.s4 1983009808
        %v1575 = vunpack.c.0.s8 %v1574
        %v1576 = vlaneseq
        %v1577 = vshrl.u32 %v1576, 7
        %v1578 = vsub.s32 %v1575, %v1577
        %v1579 = vrot.slane %v1572, %v1578
        %v1580 = vcombine.low %v1555, %v1563
        %v1581 = vcombine.high %v1555, %v1563
        %v1583 = vunpack.c.l.s4 1934713408
        %v1584 = vunpack.c.0.s8 %v1583
        %v1585 = vlaneseq
        %v1586 = vshrl.u32 %v1585, 7
        %v1587 = vsub.s32 %v1584, %v1586
        %v1588 = vrot.slane %v1580, %v1587
        %v1590 = vunpack.c.l.s4 1934713408
        %v1591 = vunpack.c.0.s8 %v1590
        %v1592 = vlaneseq
        %v1593 = vshrl.u32 %v1592, 7
        %v1594 = vsub.s32 %v1591, %v1593
        %v1595 = vrot.slane %v1581, %v1594
        %v1596 = vcombine.low %v1571, %v1579
        %v1597 = vcombine.high %v1571, %v1579
        %v1599 = vunpack.c.l.s4 1934713408
        %v1600 = vunpack.c.0.s8 %v1599
        %v1601 = vlaneseq
        %v1602 = vshrl.u32 %v1601, 7
        %v1603 = vsub.s32 %v1600, %v1602
        %v1604 = vrot.slane %v1596, %v1603
        %v1606 = vunpack.c.l.s4 1934713408
        %v1607 = vunpack.c.0.s8 %v1606
        %v1608 = vlaneseq
        %v1609 = vshrl.u32 %v1608, 7
        %v1610 = vsub.s32 %v1607, %v1609
        %v1611 = vrot.slane %v1597, %v1610
        %v1612 = vcombine.low %v1588, %v1604
        %v1613 = vcombine.high %v1588, %v1604
        %v1614 = vcombine.low %v1595, %v1611
        %v1615 = vcombine.high %v1595, %v1611
        %v1616 = vpack.c.bf16 %v1612, %v1612
        %v1617 = vpack.c.bf16 %v1613, %v1613
        %v1618 = vpack.c.bf16 %v1614, %v1614
        %v1619 = vpack.c.bf16 %v1615, %v1615
        %vm1620 = vcmask 64512
        %v1622 = vsel %vm1620, %v1312, 0
        %v1625 = vsel %vm1620, %v1464, 0
        %1627 = vmatprep.subr.bf16.mxu0 0
        %1628 = vmatpush1.bf16.xpose.msra.mxu0 0
        %1629 = vmatprep.subr.bf16.mxu0 0
        %1630 = vmatpush1.bf16.xpose.msra.mxu0 0
        %1631 = vmatprep.subr.bf16.mxu0 0
        %1632 = vmatpush1.bf16.xpose.msra.mxu0 0
        %1633 = vmatprep.subr.bf16.mxu0 0
        %1634 = vmatpush1.bf16.xpose.msra.mxu0 0
        %1635 = vmatprep.subr.bf16.mxu0 0
        %1636 = vmatpush1.bf16.xpose.msra.mxu0 0
        %1637 = vmatprep.subr.bf16.mxu0 0
        %1638 = vmatpush1.bf16.xpose.msra.mxu0 0
        %1639 = vmatprep.subr.bf16.mxu0 0
        %1640 = vmatpush1.bf16.xpose.msra.mxu0 0
        %1641 = vmatprep.subr.bf16.mxu0 0
        %1642 = vmatpush1.bf16.xpose.msra.mxu0 %v1625
        %1643 = vmatprep.subr.bf16.mxu0 0
        %1644 = vmatpush2.bf16.xpose.msra.mxu0 0
        %1645 = vmatprep.subr.bf16.mxu0 0
        %1646 = vmatpush2.bf16.xpose.msra.mxu0 0
        %1647 = vmatprep.subr.bf16.mxu0 0
        %1648 = vmatpush2.bf16.xpose.msra.mxu0 0
        %1649 = vmatprep.subr.bf16.mxu0 0
        %1650 = vmatpush2.bf16.xpose.msra.mxu0 0
        %1651 = vmatprep.subr.bf16.mxu0 0
        %1652 = vmatpush2.bf16.xpose.msra.mxu0 0
        %1653 = vmatprep.subr.bf16.mxu0 0
        %1654 = vmatpush2.bf16.xpose.msra.mxu0 0
        %1655 = vmatprep.subr.bf16.mxu0 0
        %1656 = vmatpush2.bf16.xpose.msra.mxu0 0
        %1657 = vmatprep.subr.bf16.mxu0 0
        %1658 = vmatpush2.bf16.xpose.msra.mxu0 0
        %1659 = vmatprep.mubr.bf16.mxu0 0
        %1660 = vmatmul.mubr.bf16.gmra.mxu0 %v1622
        %v1661 = vpop.f32.mrf.mxu0
        %v1662 = vadd.f32 0.0, %v1661
        %v1663 = vpop.f32.mrf.mxu0
        %v1664 = vpop.f32.mrf.mxu0
        %v1665 = vpop.f32.mrf.mxu0
        %1666 = vdwg.mxu0
        %v1668 = vsel %vm1620, %v1313, 0
        %v1671 = vsel %vm1620, %v1465, 0
        %1673 = vmatprep.subr.bf16.mxu0 0
        %1674 = vmatpush1.bf16.xpose.msra.mxu0 0
        %1675 = vmatprep.subr.bf16.mxu0 0
        %1676 = vmatpush1.bf16.xpose.msra.mxu0 0
        %1677 = vmatprep.subr.bf16.mxu0 0
        %1678 = vmatpush1.bf16.xpose.msra.mxu0 0
        %1679 = vmatprep.subr.bf16.mxu0 0
        %1680 = vmatpush1.bf16.xpose.msra.mxu0 0
        %1681 = vmatprep.subr.bf16.mxu0 0
        %1682 = vmatpush1.bf16.xpose.msra.mxu0 0
        %1683 = vmatprep.subr.bf16.mxu0 0
        %1684 = vmatpush1.bf16.xpose.msra.mxu0 0
        %1685 = vmatprep.subr.bf16.mxu0 0
        %1686 = vmatpush1.bf16.xpose.msra.mxu0 0
        %1687 = vmatprep.subr.bf16.mxu0 0
        %1688 = vmatpush1.bf16.xpose.msra.mxu0 %v1671
        %1689 = vmatprep.subr.bf16.mxu0 0
        %1690 = vmatpush2.bf16.xpose.msra.mxu0 0
        %1691 = vmatprep.subr.bf16.mxu0 0
        %1692 = vmatpush2.bf16.xpose.msra.mxu0 0
        %1693 = vmatprep.subr.bf16.mxu0 0
        %1694 = vmatpush2.bf16.xpose.msra.mxu0 0
        %1695 = vmatprep.subr.bf16.mxu0 0
        %1696 = vmatpush2.bf16.xpose.msra.mxu0 0
        %1697 = vmatprep.subr.bf16.mxu0 0
        %1698 = vmatpush2.bf16.xpose.msra.mxu0 0
        %1699 = vmatprep.subr.bf16.mxu0 0
        %1700 = vmatpush2.bf16.xpose.msra.mxu0 0
        %1701 = vmatprep.subr.bf16.mxu0 0
        %1702 = vmatpush2.bf16.xpose.msra.mxu0 0
        %1703 = vmatprep.subr.bf16.mxu0 0
        %1704 = vmatpush2.bf16.xpose.msra.mxu0 0
        %1705 = vmatprep.mubr.bf16.mxu0 0
        %1706 = vmatmul.mubr.bf16.gmra.mxu0 %v1668
        %v1707 = vpop.f32.mrf.mxu0
        %v1708 = vadd.f32 0.0, %v1707
        %v1709 = vpop.f32.mrf.mxu0
        %v1710 = vpop.f32.mrf.mxu0
        %v1711 = vpop.f32.mrf.mxu0
        %1712 = vdwg.mxu0
        %v1714 = vsel %vm1620, %v1314, 0
        %v1717 = vsel %vm1620, %v1466, 0
        %1719 = vmatprep.subr.bf16.mxu0 0
        %1720 = vmatpush1.bf16.xpose.msra.mxu0 0
        %1721 = vmatprep.subr.bf16.mxu0 0
        %1722 = vmatpush1.bf16.xpose.msra.mxu0 0
        %1723 = vmatprep.subr.bf16.mxu0 0
        %1724 = vmatpush1.bf16.xpose.msra.mxu0 0
        %1725 = vmatprep.subr.bf16.mxu0 0
        %1726 = vmatpush1.bf16.xpose.msra.mxu0 0
        %1727 = vmatprep.subr.bf16.mxu0 0
        %1728 = vmatpush1.bf16.xpose.msra.mxu0 0
        %1729 = vmatprep.subr.bf16.mxu0 0
        %1730 = vmatpush1.bf16.xpose.msra.mxu0 0
        %1731 = vmatprep.subr.bf16.mxu0 0
        %1732 = vmatpush1.bf16.xpose.msra.mxu0 0
        %1733 = vmatprep.subr.bf16.mxu0 0
        %1734 = vmatpush1.bf16.xpose.msra.mxu0 %v1717
        %1735 = vmatprep.subr.bf16.mxu0 0
        %1736 = vmatpush2.bf16.xpose.msra.mxu0 0
        %1737 = vmatprep.subr.bf16.mxu0 0
        %1738 = vmatpush2.bf16.xpose.msra.mxu0 0
        %1739 = vmatprep.subr.bf16.mxu0 0
        %1740 = vmatpush2.bf16.xpose.msra.mxu0 0
        %1741 = vmatprep.subr.bf16.mxu0 0
        %1742 = vmatpush2.bf16.xpose.msra.mxu0 0
        %1743 = vmatprep.subr.bf16.mxu0 0
        %1744 = vmatpush2.bf16.xpose.msra.mxu0 0
        %1745 = vmatprep.subr.bf16.mxu0 0
        %1746 = vmatpush2.bf16.xpose.msra.mxu0 0
        %1747 = vmatprep.subr.bf16.mxu0 0
        %1748 = vmatpush2.bf16.xpose.msra.mxu0 0
        %1749 = vmatprep.subr.bf16.mxu0 0
        %1750 = vmatpush2.bf16.xpose.msra.mxu0 0
        %1751 = vmatprep.mubr.bf16.mxu0 0
        %1752 = vmatmul.mubr.bf16.gmra.mxu0 %v1714
        %v1753 = vpop.f32.mrf.mxu0
        %v1754 = vadd.f32 0.0, %v1753
        %v1755 = vpop.f32.mrf.mxu0
        %v1756 = vpop.f32.mrf.mxu0
        %v1757 = vpop.f32.mrf.mxu0
        %1758 = vdwg.mxu0
        %v1760 = vsel %vm1620, %v1315, 0
        %v1763 = vsel %vm1620, %v1467, 0
        %1765 = vmatprep.subr.bf16.mxu0 0
        %1766 = vmatpush1.bf16.xpose.msra.mxu0 0
        %1767 = vmatprep.subr.bf16.mxu0 0
        %1768 = vmatpush1.bf16.xpose.msra.mxu0 0
        %1769 = vmatprep.subr.bf16.mxu0 0
        %1770 = vmatpush1.bf16.xpose.msra.mxu0 0
        %1771 = vmatprep.subr.bf16.mxu0 0
        %1772 = vmatpush1.bf16.xpose.msra.mxu0 0
        %1773 = vmatprep.subr.bf16.mxu0 0
        %1774 = vmatpush1.bf16.xpose.msra.mxu0 0
        %1775 = vmatprep.subr.bf16.mxu0 0
        %1776 = vmatpush1.bf16.xpose.msra.mxu0 0
        %1777 = vmatprep.subr.bf16.mxu0 0
        %1778 = vmatpush1.bf16.xpose.msra.mxu0 0
        %1779 = vmatprep.subr.bf16.mxu0 0
        %1780 = vmatpush1.bf16.xpose.msra.mxu0 %v1763
        %1781 = vmatprep.subr.bf16.mxu0 0
        %1782 = vmatpush2.bf16.xpose.msra.mxu0 0
        %1783 = vmatprep.subr.bf16.mxu0 0
        %1784 = vmatpush2.bf16.xpose.msra.mxu0 0
        %1785 = vmatprep.subr.bf16.mxu0 0
        %1786 = vmatpush2.bf16.xpose.msra.mxu0 0
        %1787 = vmatprep.subr.bf16.mxu0 0
        %1788 = vmatpush2.bf16.xpose.msra.mxu0 0
        %1789 = vmatprep.subr.bf16.mxu0 0
        %1790 = vmatpush2.bf16.xpose.msra.mxu0 0
        %1791 = vmatprep.subr.bf16.mxu0 0
        %1792 = vmatpush2.bf16.xpose.msra.mxu0 0
        %1793 = vmatprep.subr.bf16.mxu0 0
        %1794 = vmatpush2.bf16.xpose.msra.mxu0 0
        %1795 = vmatprep.subr.bf16.mxu0 0
        %1796 = vmatpush2.bf16.xpose.msra.mxu0 0
        %1797 = vmatprep.mubr.bf16.mxu0 0
        %1798 = vmatmul.mubr.bf16.gmra.mxu0 %v1760
        %v1799 = vpop.f32.mrf.mxu0
        %v1800 = vadd.f32 0.0, %v1799
        %v1801 = vpop.f32.mrf.mxu0
        %v1802 = vpop.f32.mrf.mxu0
        %v1803 = vpop.f32.mrf.mxu0
        %1804 = vdwg.mxu0
        %v1805 = vmul.f32 %v1662, 0.35355338
        %v1806 = vmul.f32 %v1708, 0.35355338
        %v1807 = vmul.f32 %v1754, 0.35355338
        %v1808 = vmul.f32 %v1800, 0.35355338
        %v1809 = vlaneseq
        %v1810 = vshrl.u32 %v1809, 7
        %v1811 = vlaneseq
        %v1812 = vand.u32 %v1811, 127
        %vm1813 = vcmp.le.s32.totalorder %v1812, %v1810
        %v1814 = vsel %vm1813, 1, 0
        %vm1815 = vcmp.eq.s32.totalorder %v1814, 1
        %v1816 = vsel %vm1815, %v1805, -1e+30
        %v1817 = vsel %vm1815, %v1806, -1e+30
        %v1818 = vsel %vm1815, %v1807, -1e+30
        %v1819 = vsel %vm1815, %v1808, -1e+30
        %v1820 = vsel %vm1620, %v1816, -inf
        %1821 = vmax.xlane.f32.xlu0 %v1820
        %v1822 = vpop.xlane.xlu0 %1821
        %v1823 = vsel %vm1620, %v1817, -inf
        %1824 = vmax.xlane.f32.xlu0 %v1823
        %v1825 = vpop.xlane.xlu0 %1824
        %v1826 = vsel %vm1620, %v1818, -inf
        %1827 = vmax.xlane.f32.xlu0 %v1826
        %v1828 = vpop.xlane.xlu0 %1827
        %v1829 = vsel %vm1620, %v1819, -inf
        %1830 = vmax.xlane.f32.xlu0 %v1829
        %v1831 = vpop.xlane.xlu0 %1830
        %v1832 = vsub.f32 %v1816, %v1822
        %v1833 = vsub.f32 %v1817, %v1825
        %v1834 = vsub.f32 %v1818, %v1828
        %v1835 = vsub.f32 %v1819, %v1831
        %v1836 = vmul.f32 %v1832, 1.442695
        %v1837 = vpow.pop %v1836
        %v1838 = vmul.f32 %v1833, 1.442695
        %v1839 = vpow.pop %v1838
        %v1840 = vmul.f32 %v1834, 1.442695
        %v1841 = vpow.pop %v1840
        %v1842 = vmul.f32 %v1835, 1.442695
        %v1843 = vpow.pop %v1842
        %v1844 = vsel %vm1620, %v1837, 0.0
        %1845 = vadd.xlane.f32.xlu0 %v1844
        %v1846 = vpop.xlane.xlu0 %1845
        %v1847 = vsel %vm1620, %v1839, 0.0
        %1848 = vadd.xlane.f32.xlu0 %v1847
        %v1849 = vpop.xlane.xlu0 %1848
        %v1850 = vsel %vm1620, %v1841, 0.0
        %1851 = vadd.xlane.f32.xlu0 %v1850
        %v1852 = vpop.xlane.xlu0 %1851
        %v1853 = vsel %vm1620, %v1843, 0.0
        %1854 = vadd.xlane.f32.xlu0 %v1853
        %v1855 = vpop.xlane.xlu0 %1854
        %v1856 = vpack.c.bf16 %v1837, %v1837
        %v1857 = vpack.c.bf16 %v1839, %v1839
        %v1858 = vpack.c.bf16 %v1841, %v1841
        %v1859 = vpack.c.bf16 %v1843, %v1843
        %v1861 = vsel %vm1620, %v1856, 0
        %vm1863 = vcmask 1043456
        %v1865 = vsel %vm1863, %v1616, 0
        %1867 = vmatprep.subr.bf16.mxu0 0
        %1868 = vmatpush1.bf16.msra.mxu0 0
        %1869 = vmatprep.subr.bf16.mxu0 0
        %1870 = vmatpush1.bf16.msra.mxu0 0
        %1871 = vmatprep.subr.bf16.mxu0 0
        %1872 = vmatpush1.bf16.msra.mxu0 0
        %1873 = vmatprep.subr.bf16.mxu0 0
        %1874 = vmatpush1.bf16.msra.mxu0 0
        %1875 = vmatprep.subr.bf16.mxu0 0
        %1876 = vmatpush1.bf16.msra.mxu0 0
        %1877 = vmatprep.subr.bf16.mxu0 0
        %1878 = vmatpush1.bf16.msra.mxu0 0
        %1879 = vmatprep.subr.bf16.mxu0 0
        %1880 = vmatpush1.bf16.msra.mxu0 0
        %1881 = vmatprep.subr.bf16.mxu0 0
        %1882 = vmatpush1.bf16.msra.mxu0 %v1865
        %1883 = vmatprep.subr.bf16.mxu0 0
        %1884 = vmatpush2.bf16.msra.mxu0 0
        %1885 = vmatprep.subr.bf16.mxu0 0
        %1886 = vmatpush2.bf16.msra.mxu0 0
        %1887 = vmatprep.subr.bf16.mxu0 0
        %1888 = vmatpush2.bf16.msra.mxu0 0
        %1889 = vmatprep.subr.bf16.mxu0 0
        %1890 = vmatpush2.bf16.msra.mxu0 0
        %1891 = vmatprep.subr.bf16.mxu0 0
        %1892 = vmatpush2.bf16.msra.mxu0 0
        %1893 = vmatprep.subr.bf16.mxu0 0
        %1894 = vmatpush2.bf16.msra.mxu0 0
        %1895 = vmatprep.subr.bf16.mxu0 0
        %1896 = vmatpush2.bf16.msra.mxu0 0
        %1897 = vmatprep.subr.bf16.mxu0 0
        %1898 = vmatpush2.bf16.msra.mxu0 0
        %1899 = vmatprep.mubr.bf16.mxu0 0
        %1900 = vmatmul.mubr.bf16.gmra.mxu0 %v1861
        %v1901 = vpop.f32.mrf.mxu0
        %v1902 = vadd.f32 0.0, %v1901
        %v1903 = vpop.f32.mrf.mxu0
        %v1904 = vpop.f32.mrf.mxu0
        %v1905 = vpop.f32.mrf.mxu0
        %1906 = vdwg.mxu0
        %v1908 = vsel %vm1620, %v1857, 0
        %v1911 = vsel %vm1863, %v1617, 0
        %1913 = vmatprep.subr.bf16.mxu0 0
        %1914 = vmatpush1.bf16.msra.mxu0 0
        %1915 = vmatprep.subr.bf16.mxu0 0
        %1916 = vmatpush1.bf16.msra.mxu0 0
        %1917 = vmatprep.subr.bf16.mxu0 0
        %1918 = vmatpush1.bf16.msra.mxu0 0
        %1919 = vmatprep.subr.bf16.mxu0 0
        %1920 = vmatpush1.bf16.msra.mxu0 0
        %1921 = vmatprep.subr.bf16.mxu0 0
        %1922 = vmatpush1.bf16.msra.mxu0 0
        %1923 = vmatprep.subr.bf16.mxu0 0
        %1924 = vmatpush1.bf16.msra.mxu0 0
        %1925 = vmatprep.subr.bf16.mxu0 0
        %1926 = vmatpush1.bf16.msra.mxu0 0
        %1927 = vmatprep.subr.bf16.mxu0 0
        %1928 = vmatpush1.bf16.msra.mxu0 %v1911
        %1929 = vmatprep.subr.bf16.mxu0 0
        %1930 = vmatpush2.bf16.msra.mxu0 0
        %1931 = vmatprep.subr.bf16.mxu0 0
        %1932 = vmatpush2.bf16.msra.mxu0 0
        %1933 = vmatprep.subr.bf16.mxu0 0
        %1934 = vmatpush2.bf16.msra.mxu0 0
        %1935 = vmatprep.subr.bf16.mxu0 0
        %1936 = vmatpush2.bf16.msra.mxu0 0
        %1937 = vmatprep.subr.bf16.mxu0 0
        %1938 = vmatpush2.bf16.msra.mxu0 0
        %1939 = vmatprep.subr.bf16.mxu0 0
        %1940 = vmatpush2.bf16.msra.mxu0 0
        %1941 = vmatprep.subr.bf16.mxu0 0
        %1942 = vmatpush2.bf16.msra.mxu0 0
        %1943 = vmatprep.subr.bf16.mxu0 0
        %1944 = vmatpush2.bf16.msra.mxu0 0
        %1945 = vmatprep.mubr.bf16.mxu0 0
        %1946 = vmatmul.mubr.bf16.gmra.mxu0 %v1908
        %v1947 = vpop.f32.mrf.mxu0
        %v1948 = vadd.f32 0.0, %v1947
        %v1949 = vpop.f32.mrf.mxu0
        %v1950 = vpop.f32.mrf.mxu0
        %v1951 = vpop.f32.mrf.mxu0
        %1952 = vdwg.mxu0
        %v1954 = vsel %vm1620, %v1858, 0
        %v1957 = vsel %vm1863, %v1618, 0
        %1959 = vmatprep.subr.bf16.mxu0 0
        %1960 = vmatpush1.bf16.msra.mxu0 0
        %1961 = vmatprep.subr.bf16.mxu0 0
        %1962 = vmatpush1.bf16.msra.mxu0 0
        %1963 = vmatprep.subr.bf16.mxu0 0
        %1964 = vmatpush1.bf16.msra.mxu0 0
        %1965 = vmatprep.subr.bf16.mxu0 0
        %1966 = vmatpush1.bf16.msra.mxu0 0
        %1967 = vmatprep.subr.bf16.mxu0 0
        %1968 = vmatpush1.bf16.msra.mxu0 0
        %1969 = vmatprep.subr.bf16.mxu0 0
        %1970 = vmatpush1.bf16.msra.mxu0 0
        %1971 = vmatprep.subr.bf16.mxu0 0
        %1972 = vmatpush1.bf16.msra.mxu0 0
        %1973 = vmatprep.subr.bf16.mxu0 0
        %1974 = vmatpush1.bf16.msra.mxu0 %v1957
        %1975 = vmatprep.subr.bf16.mxu0 0
        %1976 = vmatpush2.bf16.msra.mxu0 0
        %1977 = vmatprep.subr.bf16.mxu0 0
        %1978 = vmatpush2.bf16.msra.mxu0 0
        %1979 = vmatprep.subr.bf16.mxu0 0
        %1980 = vmatpush2.bf16.msra.mxu0 0
        %1981 = vmatprep.subr.bf16.mxu0 0
        %1982 = vmatpush2.bf16.msra.mxu0 0
        %1983 = vmatprep.subr.bf16.mxu0 0
        %1984 = vmatpush2.bf16.msra.mxu0 0
        %1985 = vmatprep.subr.bf16.mxu0 0
        %1986 = vmatpush2.bf16.msra.mxu0 0
        %1987 = vmatprep.subr.bf16.mxu0 0
        %1988 = vmatpush2.bf16.msra.mxu0 0
        %1989 = vmatprep.subr.bf16.mxu0 0
        %1990 = vmatpush2.bf16.msra.mxu0 0
        %1991 = vmatprep.mubr.bf16.mxu0 0
        %1992 = vmatmul.mubr.bf16.gmra.mxu0 %v1954
        %v1993 = vpop.f32.mrf.mxu0
        %v1994 = vadd.f32 0.0, %v1993
        %v1995 = vpop.f32.mrf.mxu0
        %v1996 = vpop.f32.mrf.mxu0
        %v1997 = vpop.f32.mrf.mxu0
        %1998 = vdwg.mxu0
        %v2000 = vsel %vm1620, %v1859, 0
        %v2003 = vsel %vm1863, %v1619, 0
        %2005 = vmatprep.subr.bf16.mxu0 0
        %2006 = vmatpush1.bf16.msra.mxu0 0
        %2007 = vmatprep.subr.bf16.mxu0 0
        %2008 = vmatpush1.bf16.msra.mxu0 0
        %2009 = vmatprep.subr.bf16.mxu0 0
        %2010 = vmatpush1.bf16.msra.mxu0 0
        %2011 = vmatprep.subr.bf16.mxu0 0
        %2012 = vmatpush1.bf16.msra.mxu0 0
        %2013 = vmatprep.subr.bf16.mxu0 0
        %2014 = vmatpush1.bf16.msra.mxu0 0
        %2015 = vmatprep.subr.bf16.mxu0 0
        %2016 = vmatpush1.bf16.msra.mxu0 0
        %2017 = vmatprep.subr.bf16.mxu0 0
        %2018 = vmatpush1.bf16.msra.mxu0 0
        %2019 = vmatprep.subr.bf16.mxu0 0
        %2020 = vmatpush1.bf16.msra.mxu0 %v2003
        %2021 = vmatprep.subr.bf16.mxu0 0
        %2022 = vmatpush2.bf16.msra.mxu0 0
        %2023 = vmatprep.subr.bf16.mxu0 0
        %2024 = vmatpush2.bf16.msra.mxu0 0
        %2025 = vmatprep.subr.bf16.mxu0 0
        %2026 = vmatpush2.bf16.msra.mxu0 0
        %2027 = vmatprep.subr.bf16.mxu0 0
        %2028 = vmatpush2.bf16.msra.mxu0 0
        %2029 = vmatprep.subr.bf16.mxu0 0
        %2030 = vmatpush2.bf16.msra.mxu0 0
        %2031 = vmatprep.subr.bf16.mxu0 0
        %2032 = vmatpush2.bf16.msra.mxu0 0
        %2033 = vmatprep.subr.bf16.mxu0 0
        %2034 = vmatpush2.bf16.msra.mxu0 0
        %2035 = vmatprep.subr.bf16.mxu0 0
        %2036 = vmatpush2.bf16.msra.mxu0 0
        %2037 = vmatprep.mubr.bf16.mxu0 0
        %2038 = vmatmul.mubr.bf16.gmra.mxu0 %v2000
        %v2039 = vpop.f32.mrf.mxu0
        %v2040 = vadd.f32 0.0, %v2039
        %v2041 = vpop.f32.mrf.mxu0
        %v2042 = vpop.f32.mrf.mxu0
        %v2043 = vpop.f32.mrf.mxu0
        %2044 = vdwg.mxu0
        %v2045 = vrcp.pop %v1846
        %v2046 = vrcp.pop %v1849
        %v2047 = vrcp.pop %v1852
        %v2048 = vrcp.pop %v1855
        %v2049 = vmul.f32 %v1902, %v2045
        %v2050 = vmul.f32 %v1948, %v2046
        %v2051 = vmul.f32 %v1994, %v2047
        %v2052 = vmul.f32 %v2040, %v2048
        %v2053 = vcombine.low %v2049, %v2051
        %v2054 = vcombine.high %v2049, %v2051
        %v2056 = vunpack.c.l.s4 1983009808
        %v2057 = vunpack.c.0.s8 %v2056
        %v2058 = vlaneseq
        %v2059 = vshrl.u32 %v2058, 7
        %v2060 = vsub.s32 %v2057, %v2059
        %v2061 = vrot.slane %v2053, %v2060
        %v2063 = vunpack.c.l.s4 1983009808
        %v2064 = vunpack.c.0.s8 %v2063
        %v2065 = vlaneseq
        %v2066 = vshrl.u32 %v2065, 7
        %v2067 = vsub.s32 %v2064, %v2066
        %v2068 = vrot.slane %v2054, %v2067
        %v2069 = vcombine.low %v2050, %v2052
        %v2070 = vcombine.high %v2050, %v2052
        %v2072 = vunpack.c.l.s4 1983009808
        %v2073 = vunpack.c.0.s8 %v2072
        %v2074 = vlaneseq
        %v2075 = vshrl.u32 %v2074, 7
        %v2076 = vsub.s32 %v2073, %v2075
        %v2077 = vrot.slane %v2069, %v2076
        %v2079 = vunpack.c.l.s4 1983009808
        %v2080 = vunpack.c.0.s8 %v2079
        %v2081 = vlaneseq
        %v2082 = vshrl.u32 %v2081, 7
        %v2083 = vsub.s32 %v2080, %v2082
        %v2084 = vrot.slane %v2070, %v2083
        %v2085 = vcombine.low %v2061, %v2077
        %v2086 = vcombine.high %v2061, %v2077
        %v2088 = vunpack.c.l.s4 1934713408
        %v2089 = vunpack.c.0.s8 %v2088
        %v2090 = vlaneseq
        %v2091 = vshrl.u32 %v2090, 7
        %v2092 = vsub.s32 %v2089, %v2091
        %v2093 = vrot.slane %v2085, %v2092
        %v2095 = vunpack.c.l.s4 1934713408
        %v2096 = vunpack.c.0.s8 %v2095
        %v2097 = vlaneseq
        %v2098 = vshrl.u32 %v2097, 7
        %v2099 = vsub.s32 %v2096, %v2098
        %v2100 = vrot.slane %v2086, %v2099
        %v2101 = vcombine.low %v2068, %v2084
        %v2102 = vcombine.high %v2068, %v2084
        %v2104 = vunpack.c.l.s4 1934713408
        %v2105 = vunpack.c.0.s8 %v2104
        %v2106 = vlaneseq
        %v2107 = vshrl.u32 %v2106, 7
        %v2108 = vsub.s32 %v2105, %v2107
        %v2109 = vrot.slane %v2101, %v2108
        %v2111 = vunpack.c.l.s4 1934713408
        %v2112 = vunpack.c.0.s8 %v2111
        %v2113 = vlaneseq
        %v2114 = vshrl.u32 %v2113, 7
        %v2115 = vsub.s32 %v2112, %v2114
        %v2116 = vrot.slane %v2102, %v2115
        %v2117 = vcombine.high %v2093, 0.0
        %v2118 = vcombine.high %v2100, 0.0
        %v2119 = vcombine.high %v2109, 0.0
        %v2120 = vcombine.high %v2116, 0.0
        %v2121 = vcombine.low %v2093, %v2100
        %v2123 = vunpack.c.l.s4 1983009808
        %v2124 = vunpack.c.0.s8 %v2123
        %v2125 = vlaneseq
        %v2126 = vshrl.u32 %v2125, 7
        %v2127 = vsub.s32 %v2124, %v2126
        %v2128 = vrot.slane %v2121, %v2127
        %v2129 = vcombine.low %v2117, %v2118
        %v2131 = vunpack.c.l.s4 1983009808
        %v2132 = vunpack.c.0.s8 %v2131
        %v2133 = vlaneseq
        %v2134 = vshrl.u32 %v2133, 7
        %v2135 = vsub.s32 %v2132, %v2134
        %v2136 = vrot.slane %v2129, %v2135
        %v2137 = vcombine.low %v2109, %v2116
        %v2139 = vunpack.c.l.s4 1983009808
        %v2140 = vunpack.c.0.s8 %v2139
        %v2141 = vlaneseq
        %v2142 = vshrl.u32 %v2141, 7
        %v2143 = vsub.s32 %v2140, %v2142
        %v2144 = vrot.slane %v2137, %v2143
        %v2145 = vcombine.low %v2119, %v2120
        %v2147 = vunpack.c.l.s4 1983009808
        %v2148 = vunpack.c.0.s8 %v2147
        %v2149 = vlaneseq
        %v2150 = vshrl.u32 %v2149, 7
        %v2151 = vsub.s32 %v2148, %v2150
        %v2152 = vrot.slane %v2145, %v2151
        %v2153 = vcombine.low %v2128, %v2136
        %v2154 = vcombine.high %v2128, %v2136
        %v2156 = vunpack.c.l.s4 1934713408
        %v2157 = vunpack.c.0.s8 %v2156
        %v2158 = vlaneseq
        %v2159 = vshrl.u32 %v2158, 7
        %v2160 = vsub.s32 %v2157, %v2159
        %v2161 = vrot.slane %v2153, %v2160
        %v2163 = vunpack.c.l.s4 1934713408
        %v2164 = vunpack.c.0.s8 %v2163
        %v2165 = vlaneseq
        %v2166 = vshrl.u32 %v2165, 7
        %v2167 = vsub.s32 %v2164, %v2166
        %v2168 = vrot.slane %v2154, %v2167
        %v2169 = vcombine.low %v2144, %v2152
        %v2170 = vcombine.high %v2144, %v2152
        %v2172 = vunpack.c.l.s4 1934713408
        %v2173 = vunpack.c.0.s8 %v2172
        %v2174 = vlaneseq
        %v2175 = vshrl.u32 %v2174, 7
        %v2176 = vsub.s32 %v2173, %v2175
        %v2177 = vrot.slane %v2169, %v2176
        %v2179 = vunpack.c.l.s4 1934713408
        %v2180 = vunpack.c.0.s8 %v2179
        %v2181 = vlaneseq
        %v2182 = vshrl.u32 %v2181, 7
        %v2183 = vsub.s32 %v2180, %v2182
        %v2184 = vrot.slane %v2170, %v2183
        %v2185 = vcombine.low %v2161, %v2177
        %v2186 = vcombine.high %v2161, %v2177
        %v2187 = vcombine.low %v2168, %v2184
        %v2188 = vcombine.high %v2168, %v2184
        %2190 = vrot.lane.b32.xlu0 %v2186, 8
        %v2191 = vpop.permute.xlu0 %2190
        %2194 = vrot.lane.b32.xlu0 %v2187, 16
        %v2195 = vpop.permute.xlu0 %2194
        %2198 = vrot.lane.b32.xlu0 %v2188, 24
        %v2199 = vpop.permute.xlu0 %2198
        %v2201 = vsel %vm1620, %v2185, %v2191
        %vm2202 = vcmask 130048
        %v2203 = vsel %vm2202, %v2201, %v2195
        %vm2204 = vcmask 195584
        %v2205 = vsel %vm2204, %v2203, %v2199
        %v2206 = vld [vmem:[%s1025] sm:$0xf]
        %v2207 = vld [vmem:[%s1025 + $0x4] sm:$0xf]
        %v2208 = vld [vmem:[%s1025 + $0x8] sm:$0xf]
        %v2209 = vld [vmem:[%s1025 + $0xc] sm:$0xf]
        %v2210 = vld [vmem:[%s1028] sm:$0x1]
        %v2211 = vpack.c.bf16 %v2205, %v2205
        %v2213 = vlaneseq
        %v2214 = vshrl.u32 %v2213, 7
        %v2215 = vsub.s32 0, %v2214
        %v2216 = vrot.slane %v2210, %v2215
        %v2222 = vunpack.c.l.b16 %v2206
        %v2223 = vunpack.c.l.b16 %v2207
        %v2224 = vunpack.c.l.b16 %v2208
        %v2225 = vunpack.c.l.b16 %v2209
        %v2226 = vpack.c.b16 %v2223, %v2222
        %v2227 = vpack.c.b16 %v2225, %v2224
        %v2231 = vsel %vm1122, %v2211, 0
        %2233 = vmatprep.subr.bf16.mxu0 0
        %2234 = vmatpush1.bf16.msra.mxu0 0
        %2235 = vmatprep.subr.bf16.mxu0 0
        %2236 = vmatpush1.bf16.msra.mxu0 0
        %2237 = vmatprep.subr.bf16.mxu0 0
        %2238 = vmatpush1.bf16.msra.mxu0 0
        %2239 = vmatprep.subr.bf16.mxu0 0
        %2240 = vmatpush1.bf16.msra.mxu0 0
        %2241 = vmatprep.subr.bf16.mxu0 0
        %2242 = vmatpush1.bf16.msra.mxu0 0
        %2243 = vmatprep.subr.bf16.mxu0 0
        %2244 = vmatpush1.bf16.msra.mxu0 0
        %2245 = vmatprep.subr.bf16.mxu0 0
        %2246 = vmatpush1.bf16.msra.mxu0 %v2227
        %2247 = vmatprep.subr.bf16.mxu0 0
        %2248 = vmatpush1.bf16.msra.mxu0 %v2226
        %2249 = vmatprep.subr.bf16.mxu0 0
        %2250 = vmatpush2.bf16.msra.mxu0 0
        %2251 = vmatprep.subr.bf16.mxu0 0
        %2252 = vmatpush2.bf16.msra.mxu0 0
        %2253 = vmatprep.subr.bf16.mxu0 0
        %2254 = vmatpush2.bf16.msra.mxu0 0
        %2255 = vmatprep.subr.bf16.mxu0 0
        %2256 = vmatpush2.bf16.msra.mxu0 0
        %2257 = vmatprep.subr.bf16.mxu0 0
        %2258 = vmatpush2.bf16.msra.mxu0 0
        %2259 = vmatprep.subr.bf16.mxu0 0
        %2260 = vmatpush2.bf16.msra.mxu0 0
        %2261 = vmatprep.subr.bf16.mxu0 0
        %2262 = vmatpush2.bf16.msra.mxu0 0
        %2263 = vmatprep.subr.bf16.mxu0 0
        %2264 = vmatpush2.bf16.msra.mxu0 0
        %2265 = vmatprep.mubr.bf16.mxu0 0
        %2266 = vmatmul.mubr.bf16.gmra.mxu0 %v2231
        %v2267 = vpop.f32.mrf.mxu0
        %v2268 = vadd.f32 %v2216, %v2267
        %v2269 = vpop.f32.mrf.mxu0
        %v2270 = vpop.f32.mrf.mxu0
        %v2271 = vpop.f32.mrf.mxu0
        %2272 = vdwg.mxu0
        %v2273 = vadd.f32 %v2268, %v1095
        %v2274 = vld [vmem:[%s1031] sm:$0x1]
        %v2275 = vld [vmem:[%s1034] sm:$0x1]
        %v2276 = vsel %vm1122, %v2273, 0.0
        %2277 = vadd.xlane.f32.xlu0 %v2276
        %v2278 = vpop.xlane.xlu0 %2277
        %v2279 = vrcp.pop 32.0
        %v2280 = vmul.f32 %v2278, %v2279
        %v2281 = vsub.f32 %v2273, %v2280
        %v2282 = vmul.f32 %v2281, %v2281
        %v2283 = vsel %vm1122, %v2282, 0.0
        %2284 = vadd.xlane.f32.xlu0 %v2283
        %v2285 = vpop.xlane.xlu0 %2284
        %v2286 = vmul.f32 %v2285, %v2279
        %v2287 = vadd.f32 %v2286, 1e-05
        %v2288 = vrsqrt.pop %v2287
        %v2289 = vmul.f32 %v2281, %v2288
        %v2291 = vlaneseq
        %v2292 = vshrl.u32 %v2291, 7
        %v2293 = vsub.s32 0, %v2292
        %v2294 = vrot.slane %v2274, %v2293
        %v2296 = vmul.f32 %v2289, %v2294
        %v2298 = vlaneseq
        %v2299 = vshrl.u32 %v2298, 7
        %v2300 = vsub.s32 0, %v2299
        %v2301 = vrot.slane %v2275, %v2300
        %v2303 = vadd.f32 %v2296, %v2301
        %v2304 = vld [vmem:[%s1039] sm:$0xf]
        %v2305 = vld [vmem:[%s1039 + $0x4] sm:$0xf]
        %v2306 = vld [vmem:[%s1039 + $0x8] sm:$0xf]
        %v2307 = vld [vmem:[%s1039 + $0xc] sm:$0xf]
        %v2308 = vld [vmem:[%s1042] sm:$0x1]
        %v2309 = vpack.c.bf16 %v2303, %v2303
        %v2311 = vlaneseq
        %v2312 = vshrl.u32 %v2311, 7
        %v2313 = vsub.s32 0, %v2312
        %v2314 = vrot.slane %v2308, %v2313
        %v2320 = vunpack.c.l.b16 %v2304
        %v2321 = vunpack.c.l.b16 %v2305
        %v2322 = vunpack.c.l.b16 %v2306
        %v2323 = vunpack.c.l.b16 %v2307
        %v2324 = vpack.c.b16 %v2321, %v2320
        %v2325 = vpack.c.b16 %v2323, %v2322
        %v2329 = vsel %vm1122, %v2309, 0
        %2331 = vmatprep.subr.bf16.mxu0 0
        %2332 = vmatpush1.bf16.msra.mxu0 0
        %2333 = vmatprep.subr.bf16.mxu0 0
        %2334 = vmatpush1.bf16.msra.mxu0 0
        %2335 = vmatprep.subr.bf16.mxu0 0
        %2336 = vmatpush1.bf16.msra.mxu0 0
        %2337 = vmatprep.subr.bf16.mxu0 0
        %2338 = vmatpush1.bf16.msra.mxu0 0
        %2339 = vmatprep.subr.bf16.mxu0 0
        %2340 = vmatpush1.bf16.msra.mxu0 0
        %2341 = vmatprep.subr.bf16.mxu0 0
        %2342 = vmatpush1.bf16.msra.mxu0 0
        %2343 = vmatprep.subr.bf16.mxu0 0
        %2344 = vmatpush1.bf16.msra.mxu0 %v2325
        %2345 = vmatprep.subr.bf16.mxu0 0
        %2346 = vmatpush1.bf16.msra.mxu0 %v2324
        %2347 = vmatprep.subr.bf16.mxu0 0
        %2348 = vmatpush2.bf16.msra.mxu0 0
        %2349 = vmatprep.subr.bf16.mxu0 0
        %2350 = vmatpush2.bf16.msra.mxu0 0
        %2351 = vmatprep.subr.bf16.mxu0 0
        %2352 = vmatpush2.bf16.msra.mxu0 0
        %2353 = vmatprep.subr.bf16.mxu0 0
        %2354 = vmatpush2.bf16.msra.mxu0 0
        %2355 = vmatprep.subr.bf16.mxu0 0
        %2356 = vmatpush2.bf16.msra.mxu0 0
        %2357 = vmatprep.subr.bf16.mxu0 0
        %2358 = vmatpush2.bf16.msra.mxu0 0
        %2359 = vmatprep.subr.bf16.mxu0 0
        %2360 = vmatpush2.bf16.msra.mxu0 0
        %2361 = vmatprep.subr.bf16.mxu0 0
        %2362 = vmatpush2.bf16.msra.mxu0 0
        %2363 = vmatprep.mubr.bf16.mxu0 0
        %2364 = vmatmul.mubr.bf16.gmra.mxu0 %v2329
        %v2365 = vpop.f32.mrf.mxu0
        %v2366 = vadd.f32 %v2314, %v2365
        %v2367 = vpop.f32.mrf.mxu0
        %v2368 = vpop.f32.mrf.mxu0
        %v2369 = vpop.f32.mrf.mxu0
        %2370 = vdwg.mxu0
        %v2371 = vld [vmem:[%s1047] sm:$0xf]
        %v2372 = vld [vmem:[%s1047 + $0x4] sm:$0xf]
        %v2373 = vld [vmem:[%s1047 + $0x8] sm:$0xf]
        %v2374 = vld [vmem:[%s1047 + $0xc] sm:$0xf]
        %v2375 = vld [vmem:[%s1050] sm:$0x1]
        %v2376 = vpack.c.bf16 %v1097, %v1096
        %v2378 = vlaneseq
        %v2379 = vshrl.u32 %v2378, 7
        %v2380 = vsub.s32 0, %v2379
        %v2381 = vrot.slane %v2375, %v2380
        %v2387 = vunpack.c.l.b16 %v2371
        %v2388 = vunpack.c.l.b16 %v2372
        %v2389 = vunpack.c.l.b16 %v2373
        %v2390 = vunpack.c.l.b16 %v2374
        %v2391 = vpack.c.b16 %v2388, %v2387
        %v2392 = vpack.c.b16 %v2390, %v2389
        %v2396 = vsel %vm1122, %v2376, 0
        %2398 = vmatprep.subr.bf16.mxu0 0
        %2399 = vmatpush1.bf16.msra.mxu0 0
        %2400 = vmatprep.subr.bf16.mxu0 0
        %2401 = vmatpush1.bf16.msra.mxu0 0
        %2402 = vmatprep.subr.bf16.mxu0 0
        %2403 = vmatpush1.bf16.msra.mxu0 0
        %2404 = vmatprep.subr.bf16.mxu0 0
        %2405 = vmatpush1.bf16.msra.mxu0 0
        %2406 = vmatprep.subr.bf16.mxu0 0
        %2407 = vmatpush1.bf16.msra.mxu0 0
        %2408 = vmatprep.subr.bf16.mxu0 0
        %2409 = vmatpush1.bf16.msra.mxu0 0
        %2410 = vmatprep.subr.bf16.mxu0 0
        %2411 = vmatpush1.bf16.msra.mxu0 %v2392
        %2412 = vmatprep.subr.bf16.mxu0 0
        %2413 = vmatpush1.bf16.msra.mxu0 %v2391
        %2414 = vmatprep.subr.bf16.mxu0 0
        %2415 = vmatpush2.bf16.msra.mxu0 0
        %2416 = vmatprep.subr.bf16.mxu0 0
        %2417 = vmatpush2.bf16.msra.mxu0 0
        %2418 = vmatprep.subr.bf16.mxu0 0
        %2419 = vmatpush2.bf16.msra.mxu0 0
        %2420 = vmatprep.subr.bf16.mxu0 0
        %2421 = vmatpush2.bf16.msra.mxu0 0
        %2422 = vmatprep.subr.bf16.mxu0 0
        %2423 = vmatpush2.bf16.msra.mxu0 0
        %2424 = vmatprep.subr.bf16.mxu0 0
        %2425 = vmatpush2.bf16.msra.mxu0 0
        %2426 = vmatprep.subr.bf16.mxu0 0
        %2427 = vmatpush2.bf16.msra.mxu0 0
        %2428 = vmatprep.subr.bf16.mxu0 0
        %2429 = vmatpush2.bf16.msra.mxu0 0
        %2430 = vmatprep.mubr.bf16.mxu0 0
        %2431 = vmatmul.mubr.bf16.gmra.mxu0 %v2396
        %v2432 = vpop.f32.mrf.mxu0
        %v2433 = vadd.f32 %v2381, %v2432
        %v2434 = vpop.f32.mrf.mxu0
        %v2435 = vpop.f32.mrf.mxu0
        %v2436 = vadd.f32 %v2381, %v2435
        %v2437 = vpop.f32.mrf.mxu0
        %2438 = vdwg.mxu0
        %2440 = vrot.lane.b32.xlu0 %v2366, 120
        %v2441 = vpop.permute.xlu0 %2440
        %2443 = vrot.lane.b32.xlu0 %v2366, 112
        %v2444 = vpop.permute.xlu0 %2443
        %2446 = vrot.lane.b32.xlu0 %v2366, 104
        %v2447 = vpop.permute.xlu0 %2446
        %v2449 = vcombine.low %v2366, %v2444
        %v2450 = vcombine.high %v2366, %v2444
        %v2452 = vunpack.c.l.s4 1983009808
        %v2453 = vunpack.c.0.s8 %v2452
        %v2454 = vlaneseq
        %v2455 = vshrl.u32 %v2454, 7
        %v2456 = vsub.s32 %v2453, %v2455
        %v2457 = vrot.slane %v2449, %v2456
        %v2459 = vunpack.c.l.s4 1983009808
        %v2460 = vunpack.c.0.s8 %v2459
        %v2461 = vlaneseq
        %v2462 = vshrl.u32 %v2461, 7
        %v2463 = vsub.s32 %v2460, %v2462
        %v2464 = vrot.slane %v2450, %v2463
        %v2465 = vcombine.low %v2441, %v2447
        %v2466 = vcombine.high %v2441, %v2447
        %v2468 = vunpack.c.l.s4 1983009808
        %v2469 = vunpack.c.0.s8 %v2468
        %v2470 = vlaneseq
        %v2471 = vshrl.u32 %v2470, 7
        %v2472 = vsub.s32 %v2469, %v2471
        %v2473 = vrot.slane %v2465, %v2472
        %v2475 = vunpack.c.l.s4 1983009808
        %v2476 = vunpack.c.0.s8 %v2475
        %v2477 = vlaneseq
        %v2478 = vshrl.u32 %v2477, 7
        %v2479 = vsub.s32 %v2476, %v2478
        %v2480 = vrot.slane %v2466, %v2479
        %v2481 = vcombine.low %v2457, %v2473
        %v2482 = vcombine.high %v2457, %v2473
        %v2484 = vunpack.c.l.s4 1934713408
        %v2485 = vunpack.c.0.s8 %v2484
        %v2486 = vlaneseq
        %v2487 = vshrl.u32 %v2486, 7
        %v2488 = vsub.s32 %v2485, %v2487
        %v2489 = vrot.slane %v2481, %v2488
        %v2491 = vunpack.c.l.s4 1934713408
        %v2492 = vunpack.c.0.s8 %v2491
        %v2493 = vlaneseq
        %v2494 = vshrl.u32 %v2493, 7
        %v2495 = vsub.s32 %v2492, %v2494
        %v2496 = vrot.slane %v2482, %v2495
        %v2497 = vcombine.low %v2464, %v2480
        %v2498 = vcombine.high %v2464, %v2480
        %v2500 = vunpack.c.l.s4 1934713408
        %v2501 = vunpack.c.0.s8 %v2500
        %v2502 = vlaneseq
        %v2503 = vshrl.u32 %v2502, 7
        %v2504 = vsub.s32 %v2501, %v2503
        %v2505 = vrot.slane %v2497, %v2504
        %v2507 = vunpack.c.l.s4 1934713408
        %v2508 = vunpack.c.0.s8 %v2507
        %v2509 = vlaneseq
        %v2510 = vshrl.u32 %v2509, 7
        %v2511 = vsub.s32 %v2508, %v2510
        %v2512 = vrot.slane %v2498, %v2511
        %v2513 = vcombine.high %v2489, 0.0
        %v2514 = vcombine.high %v2496, 0.0
        %v2515 = vcombine.high %v2505, 0.0
        %v2516 = vcombine.high %v2512, 0.0
        %v2517 = vcombine.low %v2489, %v2496
        %v2519 = vunpack.c.l.s4 1983009808
        %v2520 = vunpack.c.0.s8 %v2519
        %v2521 = vlaneseq
        %v2522 = vshrl.u32 %v2521, 7
        %v2523 = vsub.s32 %v2520, %v2522
        %v2524 = vrot.slane %v2517, %v2523
        %v2525 = vcombine.low %v2513, %v2514
        %v2527 = vunpack.c.l.s4 1983009808
        %v2528 = vunpack.c.0.s8 %v2527
        %v2529 = vlaneseq
        %v2530 = vshrl.u32 %v2529, 7
        %v2531 = vsub.s32 %v2528, %v2530
        %v2532 = vrot.slane %v2525, %v2531
        %v2533 = vcombine.low %v2505, %v2512
        %v2535 = vunpack.c.l.s4 1983009808
        %v2536 = vunpack.c.0.s8 %v2535
        %v2537 = vlaneseq
        %v2538 = vshrl.u32 %v2537, 7
        %v2539 = vsub.s32 %v2536, %v2538
        %v2540 = vrot.slane %v2533, %v2539
        %v2541 = vcombine.low %v2515, %v2516
        %v2543 = vunpack.c.l.s4 1983009808
        %v2544 = vunpack.c.0.s8 %v2543
        %v2545 = vlaneseq
        %v2546 = vshrl.u32 %v2545, 7
        %v2547 = vsub.s32 %v2544, %v2546
        %v2548 = vrot.slane %v2541, %v2547
        %v2549 = vcombine.low %v2524, %v2532
        %v2550 = vcombine.high %v2524, %v2532
        %v2552 = vunpack.c.l.s4 1934713408
        %v2553 = vunpack.c.0.s8 %v2552
        %v2554 = vlaneseq
        %v2555 = vshrl.u32 %v2554, 7
        %v2556 = vsub.s32 %v2553, %v2555
        %v2557 = vrot.slane %v2549, %v2556
        %v2559 = vunpack.c.l.s4 1934713408
        %v2560 = vunpack.c.0.s8 %v2559
        %v2561 = vlaneseq
        %v2562 = vshrl.u32 %v2561, 7
        %v2563 = vsub.s32 %v2560, %v2562
        %v2564 = vrot.slane %v2550, %v2563
        %v2565 = vcombine.low %v2540, %v2548
        %v2566 = vcombine.high %v2540, %v2548
        %v2568 = vunpack.c.l.s4 1934713408
        %v2569 = vunpack.c.0.s8 %v2568
        %v2570 = vlaneseq
        %v2571 = vshrl.u32 %v2570, 7
        %v2572 = vsub.s32 %v2569, %v2571
        %v2573 = vrot.slane %v2565, %v2572
        %v2575 = vunpack.c.l.s4 1934713408
        %v2576 = vunpack.c.0.s8 %v2575
        %v2577 = vlaneseq
        %v2578 = vshrl.u32 %v2577, 7
        %v2579 = vsub.s32 %v2576, %v2578
        %v2580 = vrot.slane %v2566, %v2579
        %v2581 = vcombine.low %v2557, %v2573
        %v2582 = vcombine.high %v2557, %v2573
        %v2583 = vcombine.low %v2564, %v2580
        %v2584 = vcombine.high %v2564, %v2580
        %v2585 = vpack.c.bf16 %v2581, %v2581
        %v2586 = vpack.c.bf16 %v2582, %v2582
        %v2587 = vpack.c.bf16 %v2583, %v2583
        %v2588 = vpack.c.bf16 %v2584, %v2584
        %2591 = vrot.lane.b32.xlu0 %v2433, 120
        %v2592 = vpop.permute.xlu0 %2591
        %2593 = vrot.lane.b32.xlu0 %v2436, 120
        %v2594 = vpop.permute.xlu0 %2593
        %2597 = vrot.lane.b32.xlu0 %v2433, 112
        %v2598 = vpop.permute.xlu0 %2597
        %2599 = vrot.lane.b32.xlu0 %v2436, 112
        %v2600 = vpop.permute.xlu0 %2599
        %2603 = vrot.lane.b32.xlu0 %v2433, 104
        %v2604 = vpop.permute.xlu0 %2603
        %2605 = vrot.lane.b32.xlu0 %v2436, 104
        %v2606 = vpop.permute.xlu0 %2605
        %v2609 = vcombine.low %v2433, %v2598
        %v2610 = vcombine.high %v2433, %v2598
        %v2612 = vunpack.c.l.s4 1983009808
        %v2613 = vunpack.c.0.s8 %v2612
        %v2614 = vlaneseq
        %v2615 = vshrl.u32 %v2614, 7
        %v2616 = vsub.s32 %v2613, %v2615
        %v2617 = vrot.slane %v2609, %v2616
        %v2619 = vunpack.c.l.s4 1983009808
        %v2620 = vunpack.c.0.s8 %v2619
        %v2621 = vlaneseq
        %v2622 = vshrl.u32 %v2621, 7
        %v2623 = vsub.s32 %v2620, %v2622
        %v2624 = vrot.slane %v2610, %v2623
        %v2625 = vcombine.low %v2592, %v2604
        %v2626 = vcombine.high %v2592, %v2604
        %v2628 = vunpack.c.l.s4 1983009808
        %v2629 = vunpack.c.0.s8 %v2628
        %v2630 = vlaneseq
        %v2631 = vshrl.u32 %v2630, 7
        %v2632 = vsub.s32 %v2629, %v2631
        %v2633 = vrot.slane %v2625, %v2632
        %v2635 = vunpack.c.l.s4 1983009808
        %v2636 = vunpack.c.0.s8 %v2635
        %v2637 = vlaneseq
        %v2638 = vshrl.u32 %v2637, 7
        %v2639 = vsub.s32 %v2636, %v2638
        %v2640 = vrot.slane %v2626, %v2639
        %v2641 = vcombine.low %v2617, %v2633
        %v2642 = vcombine.high %v2617, %v2633
        %v2644 = vunpack.c.l.s4 1934713408
        %v2645 = vunpack.c.0.s8 %v2644
        %v2646 = vlaneseq
        %v2647 = vshrl.u32 %v2646, 7
        %v2648 = vsub.s32 %v2645, %v2647
        %v2649 = vrot.slane %v2641, %v2648
        %v2651 = vunpack.c.l.s4 1934713408
        %v2652 = vunpack.c.0.s8 %v2651
        %v2653 = vlaneseq
        %v2654 = vshrl.u32 %v2653, 7
        %v2655 = vsub.s32 %v2652, %v2654
        %v2656 = vrot.slane %v2642, %v2655
        %v2657 = vcombine.low %v2624, %v2640
        %v2658 = vcombine.high %v2624, %v2640
        %v2660 = vunpack.c.l.s4 1934713408
        %v2661 = vunpack.c.0.s8 %v2660
        %v2662 = vlaneseq
        %v2663 = vshrl.u32 %v2662, 7
        %v2664 = vsub.s32 %v2661, %v2663
        %v2665 = vrot.slane %v2657, %v2664
        %v2667 = vunpack.c.l.s4 1934713408
        %v2668 = vunpack.c.0.s8 %v2667
        %v2669 = vlaneseq
        %v2670 = vshrl.u32 %v2669, 7
        %v2671 = vsub.s32 %v2668, %v2670
        %v2672 = vrot.slane %v2658, %v2671
        %v2673 = vcombine.high %v2649, 0.0
        %v2674 = vcombine.high %v2656, 0.0
        %v2675 = vcombine.high %v2665, 0.0
        %v2676 = vcombine.high %v2672, 0.0
        %v2677 = vcombine.low %v2436, %v2600
        %v2678 = vcombine.high %v2436, %v2600
        %v2680 = vunpack.c.l.s4 1983009808
        %v2681 = vunpack.c.0.s8 %v2680
        %v2682 = vlaneseq
        %v2683 = vshrl.u32 %v2682, 7
        %v2684 = vsub.s32 %v2681, %v2683
        %v2685 = vrot.slane %v2677, %v2684
        %v2687 = vunpack.c.l.s4 1983009808
        %v2688 = vunpack.c.0.s8 %v2687
        %v2689 = vlaneseq
        %v2690 = vshrl.u32 %v2689, 7
        %v2691 = vsub.s32 %v2688, %v2690
        %v2692 = vrot.slane %v2678, %v2691
        %v2693 = vcombine.low %v2594, %v2606
        %v2694 = vcombine.high %v2594, %v2606
        %v2696 = vunpack.c.l.s4 1983009808
        %v2697 = vunpack.c.0.s8 %v2696
        %v2698 = vlaneseq
        %v2699 = vshrl.u32 %v2698, 7
        %v2700 = vsub.s32 %v2697, %v2699
        %v2701 = vrot.slane %v2693, %v2700
        %v2703 = vunpack.c.l.s4 1983009808
        %v2704 = vunpack.c.0.s8 %v2703
        %v2705 = vlaneseq
        %v2706 = vshrl.u32 %v2705, 7
        %v2707 = vsub.s32 %v2704, %v2706
        %v2708 = vrot.slane %v2694, %v2707
        %v2709 = vcombine.low %v2685, %v2701
        %v2710 = vcombine.high %v2685, %v2701
        %v2712 = vunpack.c.l.s4 1934713408
        %v2713 = vunpack.c.0.s8 %v2712
        %v2714 = vlaneseq
        %v2715 = vshrl.u32 %v2714, 7
        %v2716 = vsub.s32 %v2713, %v2715
        %v2717 = vrot.slane %v2709, %v2716
        %v2719 = vunpack.c.l.s4 1934713408
        %v2720 = vunpack.c.0.s8 %v2719
        %v2721 = vlaneseq
        %v2722 = vshrl.u32 %v2721, 7
        %v2723 = vsub.s32 %v2720, %v2722
        %v2724 = vrot.slane %v2710, %v2723
        %v2725 = vcombine.low %v2692, %v2708
        %v2726 = vcombine.high %v2692, %v2708
        %v2728 = vunpack.c.l.s4 1934713408
        %v2729 = vunpack.c.0.s8 %v2728
        %v2730 = vlaneseq
        %v2731 = vshrl.u32 %v2730, 7
        %v2732 = vsub.s32 %v2729, %v2731
        %v2733 = vrot.slane %v2725, %v2732
        %v2735 = vunpack.c.l.s4 1934713408
        %v2736 = vunpack.c.0.s8 %v2735
        %v2737 = vlaneseq
        %v2738 = vshrl.u32 %v2737, 7
        %v2739 = vsub.s32 %v2736, %v2738
        %v2740 = vrot.slane %v2726, %v2739
        %v2741 = vcombine.high %v2717, 0.0
        %v2742 = vcombine.high %v2724, 0.0
        %v2743 = vcombine.high %v2733, 0.0
        %v2744 = vcombine.high %v2740, 0.0
        %v2745 = vcombine.low %v2649, %v2656
        %v2747 = vunpack.c.l.s4 1983009808
        %v2748 = vunpack.c.0.s8 %v2747
        %v2749 = vlaneseq
        %v2750 = vshrl.u32 %v2749, 7
        %v2751 = vsub.s32 %v2748, %v2750
        %v2752 = vrot.slane %v2745, %v2751
        %v2753 = vcombine.low %v2673, %v2674
        %v2755 = vunpack.c.l.s4 1983009808
        %v2756 = vunpack.c.0.s8 %v2755
        %v2757 = vlaneseq
        %v2758 = vshrl.u32 %v2757, 7
        %v2759 = vsub.s32 %v2756, %v2758
        %v2760 = vrot.slane %v2753, %v2759
        %v2761 = vcombine.low %v2665, %v2672
        %v2763 = vunpack.c.l.s4 1983009808
        %v2764 = vunpack.c.0.s8 %v2763
        %v2765 = vlaneseq
        %v2766 = vshrl.u32 %v2765, 7
        %v2767 = vsub.s32 %v2764, %v2766
        %v2768 = vrot.slane %v2761, %v2767
        %v2769 = vcombine.low %v2675, %v2676
        %v2771 = vunpack.c.l.s4 1983009808
        %v2772 = vunpack.c.0.s8 %v2771
        %v2773 = vlaneseq
        %v2774 = vshrl.u32 %v2773, 7
        %v2775 = vsub.s32 %v2772, %v2774
        %v2776 = vrot.slane %v2769, %v2775
        %v2777 = vcombine.low %v2752, %v2760
        %v2778 = vcombine.high %v2752, %v2760
        %v2780 = vunpack.c.l.s4 1934713408
        %v2781 = vunpack.c.0.s8 %v2780
        %v2782 = vlaneseq
        %v2783 = vshrl.u32 %v2782, 7
        %v2784 = vsub.s32 %v2781, %v2783
        %v2785 = vrot.slane %v2777, %v2784
        %v2787 = vunpack.c.l.s4 1934713408
        %v2788 = vunpack.c.0.s8 %v2787
        %v2789 = vlaneseq
        %v2790 = vshrl.u32 %v2789, 7
        %v2791 = vsub.s32 %v2788, %v2790
        %v2792 = vrot.slane %v2778, %v2791
        %v2793 = vcombine.low %v2768, %v2776
        %v2794 = vcombine.high %v2768, %v2776
        %v2796 = vunpack.c.l.s4 1934713408
        %v2797 = vunpack.c.0.s8 %v2796
        %v2798 = vlaneseq
        %v2799 = vshrl.u32 %v2798, 7
        %v2800 = vsub.s32 %v2797, %v2799
        %v2801 = vrot.slane %v2793, %v2800
        %v2803 = vunpack.c.l.s4 1934713408
        %v2804 = vunpack.c.0.s8 %v2803
        %v2805 = vlaneseq
        %v2806 = vshrl.u32 %v2805, 7
        %v2807 = vsub.s32 %v2804, %v2806
        %v2808 = vrot.slane %v2794, %v2807
        %v2809 = vcombine.low %v2785, %v2801
        %v2810 = vcombine.high %v2785, %v2801
        %v2811 = vcombine.low %v2792, %v2808
        %v2812 = vcombine.high %v2792, %v2808
        %v2813 = vcombine.low %v2717, %v2724
        %v2815 = vunpack.c.l.s4 1983009808
        %v2816 = vunpack.c.0.s8 %v2815
        %v2817 = vlaneseq
        %v2818 = vshrl.u32 %v2817, 7
        %v2819 = vsub.s32 %v2816, %v2818
        %v2820 = vrot.slane %v2813, %v2819
        %v2821 = vcombine.low %v2741, %v2742
        %v2823 = vunpack.c.l.s4 1983009808
        %v2824 = vunpack.c.0.s8 %v2823
        %v2825 = vlaneseq
        %v2826 = vshrl.u32 %v2825, 7
        %v2827 = vsub.s32 %v2824, %v2826
        %v2828 = vrot.slane %v2821, %v2827
        %v2829 = vcombine.low %v2733, %v2740
        %v2831 = vunpack.c.l.s4 1983009808
        %v2832 = vunpack.c.0.s8 %v2831
        %v2833 = vlaneseq
        %v2834 = vshrl.u32 %v2833, 7
        %v2835 = vsub.s32 %v2832, %v2834
        %v2836 = vrot.slane %v2829, %v2835
        %v2837 = vcombine.low %v2743, %v2744
        %v2839 = vunpack.c.l.s4 1983009808
        %v2840 = vunpack.c.0.s8 %v2839
        %v2841 = vlaneseq
        %v2842 = vshrl.u32 %v2841, 7
        %v2843 = vsub.s32 %v2840, %v2842
        %v2844 = vrot.slane %v2837, %v2843
        %v2845 = vcombine.low %v2820, %v2828
        %v2846 = vcombine.high %v2820, %v2828
        %v2848 = vunpack.c.l.s4 1934713408
        %v2849 = vunpack.c.0.s8 %v2848
        %v2850 = vlaneseq
        %v2851 = vshrl.u32 %v2850, 7
        %v2852 = vsub.s32 %v2849, %v2851
        %v2853 = vrot.slane %v2845, %v2852
        %v2855 = vunpack.c.l.s4 1934713408
        %v2856 = vunpack.c.0.s8 %v2855
        %v2857 = vlaneseq
        %v2858 = vshrl.u32 %v2857, 7
        %v2859 = vsub.s32 %v2856, %v2858
        %v2860 = vrot.slane %v2846, %v2859
        %v2861 = vcombine.low %v2836, %v2844
        %v2862 = vcombine.high %v2836, %v2844
        %v2864 = vunpack.c.l.s4 1934713408
        %v2865 = vunpack.c.0.s8 %v2864
        %v2866 = vlaneseq
        %v2867 = vshrl.u32 %v2866, 7
        %v2868 = vsub.s32 %v2865, %v2867
        %v2869 = vrot.slane %v2861, %v2868
        %v2871 = vunpack.c.l.s4 1934713408
        %v2872 = vunpack.c.0.s8 %v2871
        %v2873 = vlaneseq
        %v2874 = vshrl.u32 %v2873, 7
        %v2875 = vsub.s32 %v2872, %v2874
        %v2876 = vrot.slane %v2862, %v2875
        %v2877 = vcombine.low %v2853, %v2869
        %v2878 = vcombine.high %v2853, %v2869
        %v2879 = vcombine.low %v2860, %v2876
        %v2880 = vcombine.high %v2860, %v2876
        %v2881 = vpack.c.bf16 %v2877, %v2809
        %v2882 = vpack.c.bf16 %v2878, %v2810
        %v2883 = vpack.c.bf16 %v2879, %v2811
        %v2884 = vpack.c.bf16 %v2880, %v2812
        %2885 = vrot.lane.b32.xlu0 %v2433, 96
        %v2886 = vpop.permute.xlu0 %2885
        %2887 = vrot.lane.b32.xlu0 %v2436, 96
        %v2888 = vpop.permute.xlu0 %2887
        %2889 = vrot.lane.b32.xlu0 %v2592, 96
        %v2890 = vpop.permute.xlu0 %2889
        %2891 = vrot.lane.b32.xlu0 %v2594, 96
        %v2892 = vpop.permute.xlu0 %2891
        %2893 = vrot.lane.b32.xlu0 %v2598, 96
        %v2894 = vpop.permute.xlu0 %2893
        %2895 = vrot.lane.b32.xlu0 %v2600, 96
        %v2896 = vpop.permute.xlu0 %2895
        %2897 = vrot.lane.b32.xlu0 %v2604, 96
        %v2898 = vpop.permute.xlu0 %2897
        %2899 = vrot.lane.b32.xlu0 %v2606, 96
        %v2900 = vpop.permute.xlu0 %2899
        %v2909 = vcombine.low %v2886, %v2894
        %v2910 = vcombine.high %v2886, %v2894
        %v2912 = vunpack.c.l.s4 1983009808
        %v2913 = vunpack.c.0.s8 %v2912
        %v2914 = vlaneseq
        %v2915 = vshrl.u32 %v2914, 7
        %v2916 = vsub.s32 %v2913, %v2915
        %v2917 = vrot.slane %v2909, %v2916
        %v2919 = vunpack.c.l.s4 1983009808
        %v2920 = vunpack.c.0.s8 %v2919
        %v2921 = vlaneseq
        %v2922 = vshrl.u32 %v2921, 7
        %v2923 = vsub.s32 %v2920, %v2922
        %v2924 = vrot.slane %v2910, %v2923
        %v2925 = vcombine.low %v2890, %v2898
        %v2926 = vcombine.high %v2890, %v2898
        %v2928 = vunpack.c.l.s4 1983009808
        %v2929 = vunpack.c.0.s8 %v2928
        %v2930 = vlaneseq
        %v2931 = vshrl.u32 %v2930, 7
        %v2932 = vsub.s32 %v2929, %v2931
        %v2933 = vrot.slane %v2925, %v2932
        %v2935 = vunpack.c.l.s4 1983009808
        %v2936 = vunpack.c.0.s8 %v2935
        %v2937 = vlaneseq
        %v2938 = vshrl.u32 %v2937, 7
        %v2939 = vsub.s32 %v2936, %v2938
        %v2940 = vrot.slane %v2926, %v2939
        %v2941 = vcombine.low %v2917, %v2933
        %v2942 = vcombine.high %v2917, %v2933
        %v2944 = vunpack.c.l.s4 1934713408
        %v2945 = vunpack.c.0.s8 %v2944
        %v2946 = vlaneseq
        %v2947 = vshrl.u32 %v2946, 7
        %v2948 = vsub.s32 %v2945, %v2947
        %v2949 = vrot.slane %v2941, %v2948
        %v2951 = vunpack.c.l.s4 1934713408
        %v2952 = vunpack.c.0.s8 %v2951
        %v2953 = vlaneseq
        %v2954 = vshrl.u32 %v2953, 7
        %v2955 = vsub.s32 %v2952, %v2954
        %v2956 = vrot.slane %v2942, %v2955
        %v2957 = vcombine.low %v2924, %v2940
        %v2958 = vcombine.high %v2924, %v2940
        %v2960 = vunpack.c.l.s4 1934713408
        %v2961 = vunpack.c.0.s8 %v2960
        %v2962 = vlaneseq
        %v2963 = vshrl.u32 %v2962, 7
        %v2964 = vsub.s32 %v2961, %v2963
        %v2965 = vrot.slane %v2957, %v2964
        %v2967 = vunpack.c.l.s4 1934713408
        %v2968 = vunpack.c.0.s8 %v2967
        %v2969 = vlaneseq
        %v2970 = vshrl.u32 %v2969, 7
        %v2971 = vsub.s32 %v2968, %v2970
        %v2972 = vrot.slane %v2958, %v2971
        %v2973 = vcombine.high %v2949, 0.0
        %v2974 = vcombine.high %v2956, 0.0
        %v2975 = vcombine.high %v2965, 0.0
        %v2976 = vcombine.high %v2972, 0.0
        %v2977 = vcombine.low %v2888, %v2896
        %v2978 = vcombine.high %v2888, %v2896
        %v2980 = vunpack.c.l.s4 1983009808
        %v2981 = vunpack.c.0.s8 %v2980
        %v2982 = vlaneseq
        %v2983 = vshrl.u32 %v2982, 7
        %v2984 = vsub.s32 %v2981, %v2983
        %v2985 = vrot.slane %v2977, %v2984
        %v2987 = vunpack.c.l.s4 1983009808
        %v2988 = vunpack.c.0.s8 %v2987
        %v2989 = vlaneseq
        %v2990 = vshrl.u32 %v2989, 7
        %v2991 = vsub.s32 %v2988, %v2990
        %v2992 = vrot.slane %v2978, %v2991
        %v2993 = vcombine.low %v2892, %v2900
        %v2994 = vcombine.high %v2892, %v2900
        %v2996 = vunpack.c.l.s4 1983009808
        %v2997 = vunpack.c.0.s8 %v2996
        %v2998 = vlaneseq
        %v2999 = vshrl.u32 %v2998, 7
        %v3000 = vsub.s32 %v2997, %v2999
        %v3001 = vrot.slane %v2993, %v3000
        %v3003 = vunpack.c.l.s4 1983009808
        %v3004 = vunpack.c.0.s8 %v3003
        %v3005 = vlaneseq
        %v3006 = vshrl.u32 %v3005, 7
        %v3007 = vsub.s32 %v3004, %v3006
        %v3008 = vrot.slane %v2994, %v3007
        %v3009 = vcombine.low %v2985, %v3001
        %v3010 = vcombine.high %v2985, %v3001
        %v3012 = vunpack.c.l.s4 1934713408
        %v3013 = vunpack.c.0.s8 %v3012
        %v3014 = vlaneseq
        %v3015 = vshrl.u32 %v3014, 7
        %v3016 = vsub.s32 %v3013, %v3015
        %v3017 = vrot.slane %v3009, %v3016
        %v3019 = vunpack.c.l.s4 1934713408
        %v3020 = vunpack.c.0.s8 %v3019
        %v3021 = vlaneseq
        %v3022 = vshrl.u32 %v3021, 7
        %v3023 = vsub.s32 %v3020, %v3022
        %v3024 = vrot.slane %v3010, %v3023
        %v3025 = vcombine.low %v2992, %v3008
        %v3026 = vcombine.high %v2992, %v3008
        %v3028 = vunpack.c.l.s4 1934713408
        %v3029 = vunpack.c.0.s8 %v3028
        %v3030 = vlaneseq
        %v3031 = vshrl.u32 %v3030, 7
        %v3032 = vsub.s32 %v3029, %v3031
        %v3033 = vrot.slane %v3025, %v3032
        %v3035 = vunpack.c.l.s4 1934713408
        %v3036 = vunpack.c.0.s8 %v3035
        %v3037 = vlaneseq
        %v3038 = vshrl.u32 %v3037, 7
        %v3039 = vsub.s32 %v3036, %v3038
        %v3040 = vrot.slane %v3026, %v3039
        %v3041 = vcombine.high %v3017, 0.0
        %v3042 = vcombine.high %v3024, 0.0
        %v3043 = vcombine.high %v3033, 0.0
        %v3044 = vcombine.high %v3040, 0.0
        %v3045 = vcombine.low %v2949, %v2956
        %v3047 = vunpack.c.l.s4 1983009808
        %v3048 = vunpack.c.0.s8 %v3047
        %v3049 = vlaneseq
        %v3050 = vshrl.u32 %v3049, 7
        %v3051 = vsub.s32 %v3048, %v3050
        %v3052 = vrot.slane %v3045, %v3051
        %v3053 = vcombine.low %v2973, %v2974
        %v3055 = vunpack.c.l.s4 1983009808
        %v3056 = vunpack.c.0.s8 %v3055
        %v3057 = vlaneseq
        %v3058 = vshrl.u32 %v3057, 7
        %v3059 = vsub.s32 %v3056, %v3058
        %v3060 = vrot.slane %v3053, %v3059
        %v3061 = vcombine.low %v2965, %v2972
        %v3063 = vunpack.c.l.s4 1983009808
        %v3064 = vunpack.c.0.s8 %v3063
        %v3065 = vlaneseq
        %v3066 = vshrl.u32 %v3065, 7
        %v3067 = vsub.s32 %v3064, %v3066
        %v3068 = vrot.slane %v3061, %v3067
        %v3069 = vcombine.low %v2975, %v2976
        %v3071 = vunpack.c.l.s4 1983009808
        %v3072 = vunpack.c.0.s8 %v3071
        %v3073 = vlaneseq
        %v3074 = vshrl.u32 %v3073, 7
        %v3075 = vsub.s32 %v3072, %v3074
        %v3076 = vrot.slane %v3069, %v3075
        %v3077 = vcombine.low %v3052, %v3060
        %v3078 = vcombine.high %v3052, %v3060
        %v3080 = vunpack.c.l.s4 1934713408
        %v3081 = vunpack.c.0.s8 %v3080
        %v3082 = vlaneseq
        %v3083 = vshrl.u32 %v3082, 7
        %v3084 = vsub.s32 %v3081, %v3083
        %v3085 = vrot.slane %v3077, %v3084
        %v3087 = vunpack.c.l.s4 1934713408
        %v3088 = vunpack.c.0.s8 %v3087
        %v3089 = vlaneseq
        %v3090 = vshrl.u32 %v3089, 7
        %v3091 = vsub.s32 %v3088, %v3090
        %v3092 = vrot.slane %v3078, %v3091
        %v3093 = vcombine.low %v3068, %v3076
        %v3094 = vcombine.high %v3068, %v3076
        %v3096 = vunpack.c.l.s4 1934713408
        %v3097 = vunpack.c.0.s8 %v3096
        %v3098 = vlaneseq
        %v3099 = vshrl.u32 %v3098, 7
        %v3100 = vsub.s32 %v3097, %v3099
        %v3101 = vrot.slane %v3093, %v3100
        %v3103 = vunpack.c.l.s4 1934713408
        %v3104 = vunpack.c.0.s8 %v3103
        %v3105 = vlaneseq
        %v3106 = vshrl.u32 %v3105, 7
        %v3107 = vsub.s32 %v3104, %v3106
        %v3108 = vrot.slane %v3094, %v3107
        %v3109 = vcombine.low %v3085, %v3101
        %v3110 = vcombine.high %v3085, %v3101
        %v3111 = vcombine.low %v3092, %v3108
        %v3112 = vcombine.high %v3092, %v3108
        %v3113 = vcombine.low %v3017, %v3024
        %v3115 = vunpack.c.l.s4 1983009808
        %v3116 = vunpack.c.0.s8 %v3115
        %v3117 = vlaneseq
        %v3118 = vshrl.u32 %v3117, 7
        %v3119 = vsub.s32 %v3116, %v3118
        %v3120 = vrot.slane %v3113, %v3119
        %v3121 = vcombine.low %v3041, %v3042
        %v3123 = vunpack.c.l.s4 1983009808
        %v3124 = vunpack.c.0.s8 %v3123
        %v3125 = vlaneseq
        %v3126 = vshrl.u32 %v3125, 7
        %v3127 = vsub.s32 %v3124, %v3126
        %v3128 = vrot.slane %v3121, %v3127
        %v3129 = vcombine.low %v3033, %v3040
        %v3131 = vunpack.c.l.s4 1983009808
        %v3132 = vunpack.c.0.s8 %v3131
        %v3133 = vlaneseq
        %v3134 = vshrl.u32 %v3133, 7
        %v3135 = vsub.s32 %v3132, %v3134
        %v3136 = vrot.slane %v3129, %v3135
        %v3137 = vcombine.low %v3043, %v3044
        %v3139 = vunpack.c.l.s4 1983009808
        %v3140 = vunpack.c.0.s8 %v3139
        %v3141 = vlaneseq
        %v3142 = vshrl.u32 %v3141, 7
        %v3143 = vsub.s32 %v3140, %v3142
        %v3144 = vrot.slane %v3137, %v3143
        %v3145 = vcombine.low %v3120, %v3128
        %v3146 = vcombine.high %v3120, %v3128
        %v3148 = vunpack.c.l.s4 1934713408
        %v3149 = vunpack.c.0.s8 %v3148
        %v3150 = vlaneseq
        %v3151 = vshrl.u32 %v3150, 7
        %v3152 = vsub.s32 %v3149, %v3151
        %v3153 = vrot.slane %v3145, %v3152
        %v3155 = vunpack.c.l.s4 1934713408
        %v3156 = vunpack.c.0.s8 %v3155
        %v3157 = vlaneseq
        %v3158 = vshrl.u32 %v3157, 7
        %v3159 = vsub.s32 %v3156, %v3158
        %v3160 = vrot.slane %v3146, %v3159
        %v3161 = vcombine.low %v3136, %v3144
        %v3162 = vcombine.high %v3136, %v3144
        %v3164 = vunpack.c.l.s4 1934713408
        %v3165 = vunpack.c.0.s8 %v3164
        %v3166 = vlaneseq
        %v3167 = vshrl.u32 %v3166, 7
        %v3168 = vsub.s32 %v3165, %v3167
        %v3169 = vrot.slane %v3161, %v3168
        %v3171 = vunpack.c.l.s4 1934713408
        %v3172 = vunpack.c.0.s8 %v3171
        %v3173 = vlaneseq
        %v3174 = vshrl.u32 %v3173, 7
        %v3175 = vsub.s32 %v3172, %v3174
        %v3176 = vrot.slane %v3162, %v3175
        %v3177 = vcombine.low %v3153, %v3169
        %v3178 = vcombine.high %v3153, %v3169
        %v3179 = vcombine.low %v3160, %v3176
        %v3180 = vcombine.high %v3160, %v3176
        %v3181 = vpack.c.bf16 %v3177, %v3109
        %v3182 = vpack.c.bf16 %v3178, %v3110
        %v3183 = vpack.c.bf16 %v3179, %v3111
        %v3184 = vpack.c.bf16 %v3180, %v3112
        %v3186 = vsel %vm1620, %v2585, 0
        %v3189 = vsel %vm1620, %v2881, 0
        %3191 = vmatprep.subr.bf16.mxu0 0
        %3192 = vmatpush1.bf16.xpose.msra.mxu0 0
        %3193 = vmatprep.subr.bf16.mxu0 0
        %3194 = vmatpush1.bf16.xpose.msra.mxu0 0
        %3195 = vmatprep.subr.bf16.mxu0 0
        %3196 = vmatpush1.bf16.xpose.msra.mxu0 0
        %3197 = vmatprep.subr.bf16.mxu0 0
        %3198 = vmatpush1.bf16.xpose.msra.mxu0 0
        %3199 = vmatprep.subr.bf16.mxu0 0
        %3200 = vmatpush1.bf16.xpose.msra.mxu0 0
        %3201 = vmatprep.subr.bf16.mxu0 0
        %3202 = vmatpush1.bf16.xpose.msra.mxu0 0
        %3203 = vmatprep.subr.bf16.mxu0 0
        %3204 = vmatpush1.bf16.xpose.msra.mxu0 0
        %3205 = vmatprep.subr.bf16.mxu0 0
        %3206 = vmatpush1.bf16.xpose.msra.mxu0 %v3189
        %3207 = vmatprep.subr.bf16.mxu0 0
        %3208 = vmatpush2.bf16.xpose.msra.mxu0 0
        %3209 = vmatprep.subr.bf16.mxu0 0
        %3210 = vmatpush2.bf16.xpose.msra.mxu0 0
        %3211 = vmatprep.subr.bf16.mxu0 0
        %3212 = vmatpush2.bf16.xpose.msra.mxu0 0
        %3213 = vmatprep.subr.bf16.mxu0 0
        %3214 = vmatpush2.bf16.xpose.msra.mxu0 0
        %3215 = vmatprep.subr.bf16.mxu0 0
        %3216 = vmatpush2.bf16.xpose.msra.mxu0 0
        %3217 = vmatprep.subr.bf16.mxu0 0
        %3218 = vmatpush2.bf16.xpose.msra.mxu0 0
        %3219 = vmatprep.subr.bf16.mxu0 0
        %3220 = vmatpush2.bf16.xpose.msra.mxu0 0
        %3221 = vmatprep.subr.bf16.mxu0 0
        %3222 = vmatpush2.bf16.xpose.msra.mxu0 0
        %3223 = vmatprep.mubr.bf16.mxu0 0
        %3224 = vmatmul.mubr.bf16.gmra.mxu0 %v3186
        %v3225 = vpop.f32.mrf.mxu0
        %v3226 = vadd.f32 0.0, %v3225
        %v3227 = vpop.f32.mrf.mxu0
        %v3228 = vpop.f32.mrf.mxu0
        %v3229 = vpop.f32.mrf.mxu0
        %3230 = vdwg.mxu0
        %v3232 = vsel %vm1620, %v2586, 0
        %v3235 = vsel %vm1620, %v2882, 0
        %3237 = vmatprep.subr.bf16.mxu0 0
        %3238 = vmatpush1.bf16.xpose.msra.mxu0 0
        %3239 = vmatprep.subr.bf16.mxu0 0
        %3240 = vmatpush1.bf16.xpose.msra.mxu0 0
        %3241 = vmatprep.subr.bf16.mxu0 0
        %3242 = vmatpush1.bf16.xpose.msra.mxu0 0
        %3243 = vmatprep.subr.bf16.mxu0 0
        %3244 = vmatpush1.bf16.xpose.msra.mxu0 0
        %3245 = vmatprep.subr.bf16.mxu0 0
        %3246 = vmatpush1.bf16.xpose.msra.mxu0 0
        %3247 = vmatprep.subr.bf16.mxu0 0
        %3248 = vmatpush1.bf16.xpose.msra.mxu0 0
        %3249 = vmatprep.subr.bf16.mxu0 0
        %3250 = vmatpush1.bf16.xpose.msra.mxu0 0
        %3251 = vmatprep.subr.bf16.mxu0 0
        %3252 = vmatpush1.bf16.xpose.msra.mxu0 %v3235
        %3253 = vmatprep.subr.bf16.mxu0 0
        %3254 = vmatpush2.bf16.xpose.msra.mxu0 0
        %3255 = vmatprep.subr.bf16.mxu0 0
        %3256 = vmatpush2.bf16.xpose.msra.mxu0 0
        %3257 = vmatprep.subr.bf16.mxu0 0
        %3258 = vmatpush2.bf16.xpose.msra.mxu0 0
        %3259 = vmatprep.subr.bf16.mxu0 0
        %3260 = vmatpush2.bf16.xpose.msra.mxu0 0
        %3261 = vmatprep.subr.bf16.mxu0 0
        %3262 = vmatpush2.bf16.xpose.msra.mxu0 0
        %3263 = vmatprep.subr.bf16.mxu0 0
        %3264 = vmatpush2.bf16.xpose.msra.mxu0 0
        %3265 = vmatprep.subr.bf16.mxu0 0
        %3266 = vmatpush2.bf16.xpose.msra.mxu0 0
        %3267 = vmatprep.subr.bf16.mxu0 0
        %3268 = vmatpush2.bf16.xpose.msra.mxu0 0
        %3269 = vmatprep.mubr.bf16.mxu0 0
        %3270 = vmatmul.mubr.bf16.gmra.mxu0 %v3232
        %v3271 = vpop.f32.mrf.mxu0
        %v3272 = vadd.f32 0.0, %v3271
        %v3273 = vpop.f32.mrf.mxu0
        %v3274 = vpop.f32.mrf.mxu0
        %v3275 = vpop.f32.mrf.mxu0
        %3276 = vdwg.mxu0
        %v3278 = vsel %vm1620, %v2587, 0
        %v3281 = vsel %vm1620, %v2883, 0
        %3283 = vmatprep.subr.bf16.mxu0 0
        %3284 = vmatpush1.bf16.xpose.msra.mxu0 0
        %3285 = vmatprep.subr.bf16.mxu0 0
        %3286 = vmatpush1.bf16.xpose.msra.mxu0 0
        %3287 = vmatprep.subr.bf16.mxu0 0
        %3288 = vmatpush1.bf16.xpose.msra.mxu0 0
        %3289 = vmatprep.subr.bf16.mxu0 0
        %3290 = vmatpush1.bf16.xpose.msra.mxu0 0
        %3291 = vmatprep.subr.bf16.mxu0 0
        %3292 = vmatpush1.bf16.xpose.msra.mxu0 0
        %3293 = vmatprep.subr.bf16.mxu0 0
        %3294 = vmatpush1.bf16.xpose.msra.mxu0 0
        %3295 = vmatprep.subr.bf16.mxu0 0
        %3296 = vmatpush1.bf16.xpose.msra.mxu0 0
        %3297 = vmatprep.subr.bf16.mxu0 0
        %3298 = vmatpush1.bf16.xpose.msra.mxu0 %v3281
        %3299 = vmatprep.subr.bf16.mxu0 0
        %3300 = vmatpush2.bf16.xpose.msra.mxu0 0
        %3301 = vmatprep.subr.bf16.mxu0 0
        %3302 = vmatpush2.bf16.xpose.msra.mxu0 0
        %3303 = vmatprep.subr.bf16.mxu0 0
        %3304 = vmatpush2.bf16.xpose.msra.mxu0 0
        %3305 = vmatprep.subr.bf16.mxu0 0
        %3306 = vmatpush2.bf16.xpose.msra.mxu0 0
        %3307 = vmatprep.subr.bf16.mxu0 0
        %3308 = vmatpush2.bf16.xpose.msra.mxu0 0
        %3309 = vmatprep.subr.bf16.mxu0 0
        %3310 = vmatpush2.bf16.xpose.msra.mxu0 0
        %3311 = vmatprep.subr.bf16.mxu0 0
        %3312 = vmatpush2.bf16.xpose.msra.mxu0 0
        %3313 = vmatprep.subr.bf16.mxu0 0
        %3314 = vmatpush2.bf16.xpose.msra.mxu0 0
        %3315 = vmatprep.mubr.bf16.mxu0 0
        %3316 = vmatmul.mubr.bf16.gmra.mxu0 %v3278
        %v3317 = vpop.f32.mrf.mxu0
        %v3318 = vadd.f32 0.0, %v3317
        %v3319 = vpop.f32.mrf.mxu0
        %v3320 = vpop.f32.mrf.mxu0
        %v3321 = vpop.f32.mrf.mxu0
        %3322 = vdwg.mxu0
        %v3324 = vsel %vm1620, %v2588, 0
        %v3327 = vsel %vm1620, %v2884, 0
        %3329 = vmatprep.subr.bf16.mxu0 0
        %3330 = vmatpush1.bf16.xpose.msra.mxu0 0
        %3331 = vmatprep.subr.bf16.mxu0 0
        %3332 = vmatpush1.bf16.xpose.msra.mxu0 0
        %3333 = vmatprep.subr.bf16.mxu0 0
        %3334 = vmatpush1.bf16.xpose.msra.mxu0 0
        %3335 = vmatprep.subr.bf16.mxu0 0
        %3336 = vmatpush1.bf16.xpose.msra.mxu0 0
        %3337 = vmatprep.subr.bf16.mxu0 0
        %3338 = vmatpush1.bf16.xpose.msra.mxu0 0
        %3339 = vmatprep.subr.bf16.mxu0 0
        %3340 = vmatpush1.bf16.xpose.msra.mxu0 0
        %3341 = vmatprep.subr.bf16.mxu0 0
        %3342 = vmatpush1.bf16.xpose.msra.mxu0 0
        %3343 = vmatprep.subr.bf16.mxu0 0
        %3344 = vmatpush1.bf16.xpose.msra.mxu0 %v3327
        %3345 = vmatprep.subr.bf16.mxu0 0
        %3346 = vmatpush2.bf16.xpose.msra.mxu0 0
        %3347 = vmatprep.subr.bf16.mxu0 0
        %3348 = vmatpush2.bf16.xpose.msra.mxu0 0
        %3349 = vmatprep.subr.bf16.mxu0 0
        %3350 = vmatpush2.bf16.xpose.msra.mxu0 0
        %3351 = vmatprep.subr.bf16.mxu0 0
        %3352 = vmatpush2.bf16.xpose.msra.mxu0 0
        %3353 = vmatprep.subr.bf16.mxu0 0
        %3354 = vmatpush2.bf16.xpose.msra.mxu0 0
        %3355 = vmatprep.subr.bf16.mxu0 0
        %3356 = vmatpush2.bf16.xpose.msra.mxu0 0
        %3357 = vmatprep.subr.bf16.mxu0 0
        %3358 = vmatpush2.bf16.xpose.msra.mxu0 0
        %3359 = vmatprep.subr.bf16.mxu0 0
        %3360 = vmatpush2.bf16.xpose.msra.mxu0 0
        %3361 = vmatprep.mubr.bf16.mxu0 0
        %3362 = vmatmul.mubr.bf16.gmra.mxu0 %v3324
        %v3363 = vpop.f32.mrf.mxu0
        %v3364 = vadd.f32 0.0, %v3363
        %v3365 = vpop.f32.mrf.mxu0
        %v3366 = vpop.f32.mrf.mxu0
        %v3367 = vpop.f32.mrf.mxu0
        %3368 = vdwg.mxu0
        %v3369 = vmul.f32 %v3226, 0.35355338
        %v3370 = vmul.f32 %v3272, 0.35355338
        %v3371 = vmul.f32 %v3318, 0.35355338
        %v3372 = vmul.f32 %v3364, 0.35355338
        %v3373 = vsel %vm2202, %v3369, -inf
        %3374 = vmax.xlane.f32.xlu0 %v3373
        %v3375 = vpop.xlane.xlu0 %3374
        %v3376 = vsel %vm2202, %v3370, -inf
        %3377 = vmax.xlane.f32.xlu0 %v3376
        %v3378 = vpop.xlane.xlu0 %3377
        %v3379 = vsel %vm2202, %v3371, -inf
        %3380 = vmax.xlane.f32.xlu0 %v3379
        %v3381 = vpop.xlane.xlu0 %3380
        %v3382 = vsel %vm2202, %v3372, -inf
        %3383 = vmax.xlane.f32.xlu0 %v3382
        %v3384 = vpop.xlane.xlu0 %3383
        %v3385 = vsub.f32 %v3369, %v3375
        %v3386 = vsub.f32 %v3370, %v3378
        %v3387 = vsub.f32 %v3371, %v3381
        %v3388 = vsub.f32 %v3372, %v3384
        %v3389 = vmul.f32 %v3385, 1.442695
        %v3390 = vpow.pop %v3389
        %v3391 = vmul.f32 %v3386, 1.442695
        %v3392 = vpow.pop %v3391
        %v3393 = vmul.f32 %v3387, 1.442695
        %v3394 = vpow.pop %v3393
        %v3395 = vmul.f32 %v3388, 1.442695
        %v3396 = vpow.pop %v3395
        %v3397 = vsel %vm2202, %v3390, 0.0
        %3398 = vadd.xlane.f32.xlu0 %v3397
        %v3399 = vpop.xlane.xlu0 %3398
        %v3400 = vsel %vm2202, %v3392, 0.0
        %3401 = vadd.xlane.f32.xlu0 %v3400
        %v3402 = vpop.xlane.xlu0 %3401
        %v3403 = vsel %vm2202, %v3394, 0.0
        %3404 = vadd.xlane.f32.xlu0 %v3403
        %v3405 = vpop.xlane.xlu0 %3404
        %v3406 = vsel %vm2202, %v3396, 0.0
        %3407 = vadd.xlane.f32.xlu0 %v3406
        %v3408 = vpop.xlane.xlu0 %3407
        %v3409 = vpack.c.bf16 %v3390, %v3390
        %v3410 = vpack.c.bf16 %v3392, %v3392
        %v3411 = vpack.c.bf16 %v3394, %v3394
        %v3412 = vpack.c.bf16 %v3396, %v3396
        %v3414 = vsel %vm2202, %v3409, 0
        %3416 = vmatprep.subr.bf16.mxu0 0
        %3417 = vmatpush1.bf16.msra.mxu0 0
        %3418 = vmatprep.subr.bf16.mxu0 0
        %3419 = vmatpush1.bf16.msra.mxu0 0
        %3420 = vmatprep.subr.bf16.mxu0 0
        %3421 = vmatpush1.bf16.msra.mxu0 0
        %3422 = vmatprep.subr.bf16.mxu0 0
        %3423 = vmatpush1.bf16.msra.mxu0 0
        %3424 = vmatprep.subr.bf16.mxu0 0
        %3425 = vmatpush1.bf16.msra.mxu0 0
        %3426 = vmatprep.subr.bf16.mxu0 0
        %3427 = vmatpush1.bf16.msra.mxu0 0
        %3428 = vmatprep.subr.bf16.mxu0 0
        %3429 = vmatpush1.bf16.msra.mxu0 0
        %3430 = vmatprep.subr.bf16.mxu0 0
        %3431 = vmatpush1.bf16.msra.mxu0 %v3181
        %3432 = vmatprep.subr.bf16.mxu0 0
        %3433 = vmatpush2.bf16.msra.mxu0 0
        %3434 = vmatprep.subr.bf16.mxu0 0
        %3435 = vmatpush2.bf16.msra.mxu0 0
        %3436 = vmatprep.subr.bf16.mxu0 0
        %3437 = vmatpush2.bf16.msra.mxu0 0
        %3438 = vmatprep.subr.bf16.mxu0 0
        %3439 = vmatpush2.bf16.msra.mxu0 0
        %3440 = vmatprep.subr.bf16.mxu0 0
        %3441 = vmatpush2.bf16.msra.mxu0 0
        %3442 = vmatprep.subr.bf16.mxu0 0
        %3443 = vmatpush2.bf16.msra.mxu0 0
        %3444 = vmatprep.subr.bf16.mxu0 0
        %3445 = vmatpush2.bf16.msra.mxu0 0
        %3446 = vmatprep.subr.bf16.mxu0 0
        %3447 = vmatpush2.bf16.msra.mxu0 0
        %3448 = vmatprep.mubr.bf16.mxu0 0
        %3449 = vmatmul.mubr.bf16.gmra.mxu0 %v3414
        %v3450 = vpop.f32.mrf.mxu0
        %v3451 = vadd.f32 0.0, %v3450
        %v3452 = vpop.f32.mrf.mxu0
        %v3453 = vpop.f32.mrf.mxu0
        %v3454 = vpop.f32.mrf.mxu0
        %3455 = vdwg.mxu0
        %v3457 = vsel %vm2202, %v3410, 0
        %3459 = vmatprep.subr.bf16.mxu0 0
        %3460 = vmatpush1.bf16.msra.mxu0 0
        %3461 = vmatprep.subr.bf16.mxu0 0
        %3462 = vmatpush1.bf16.msra.mxu0 0
        %3463 = vmatprep.subr.bf16.mxu0 0
        %3464 = vmatpush1.bf16.msra.mxu0 0
        %3465 = vmatprep.subr.bf16.mxu0 0
        %3466 = vmatpush1.bf16.msra.mxu0 0
        %3467 = vmatprep.subr.bf16.mxu0 0
        %3468 = vmatpush1.bf16.msra.mxu0 0
        %3469 = vmatprep.subr.bf16.mxu0 0
        %3470 = vmatpush1.bf16.msra.mxu0 0
        %3471 = vmatprep.subr.bf16.mxu0 0
        %3472 = vmatpush1.bf16.msra.mxu0 0
        %3473 = vmatprep.subr.bf16.mxu0 0
        %3474 = vmatpush1.bf16.msra.mxu0 %v3182
        %3475 = vmatprep.subr.bf16.mxu0 0
        %3476 = vmatpush2.bf16.msra.mxu0 0
        %3477 = vmatprep.subr.bf16.mxu0 0
        %3478 = vmatpush2.bf16.msra.mxu0 0
        %3479 = vmatprep.subr.bf16.mxu0 0
        %3480 = vmatpush2.bf16.msra.mxu0 0
        %3481 = vmatprep.subr.bf16.mxu0 0
        %3482 = vmatpush2.bf16.msra.mxu0 0
        %3483 = vmatprep.subr.bf16.mxu0 0
        %3484 = vmatpush2.bf16.msra.mxu0 0
        %3485 = vmatprep.subr.bf16.mxu0 0
        %3486 = vmatpush2.bf16.msra.mxu0 0
        %3487 = vmatprep.subr.bf16.mxu0 0
        %3488 = vmatpush2.bf16.msra.mxu0 0
        %3489 = vmatprep.subr.bf16.mxu0 0
        %3490 = vmatpush2.bf16.msra.mxu0 0
        %3491 = vmatprep.mubr.bf16.mxu0 0
        %3492 = vmatmul.mubr.bf16.gmra.mxu0 %v3457
        %v3493 = vpop.f32.mrf.mxu0
        %v3494 = vadd.f32 0.0, %v3493
        %v3495 = vpop.f32.mrf.mxu0
        %v3496 = vpop.f32.mrf.mxu0
        %v3497 = vpop.f32.mrf.mxu0
        %3498 = vdwg.mxu0
        %v3500 = vsel %vm2202, %v3411, 0
        %3502 = vmatprep.subr.bf16.mxu0 0
        %3503 = vmatpush1.bf16.msra.mxu0 0
        %3504 = vmatprep.subr.bf16.mxu0 0
        %3505 = vmatpush1.bf16.msra.mxu0 0
        %3506 = vmatprep.subr.bf16.mxu0 0
        %3507 = vmatpush1.bf16.msra.mxu0 0
        %3508 = vmatprep.subr.bf16.mxu0 0
        %3509 = vmatpush1.bf16.msra.mxu0 0
        %3510 = vmatprep.subr.bf16.mxu0 0
        %3511 = vmatpush1.bf16.msra.mxu0 0
        %3512 = vmatprep.subr.bf16.mxu0 0
        %3513 = vmatpush1.bf16.msra.mxu0 0
        %3514 = vmatprep.subr.bf16.mxu0 0
        %3515 = vmatpush1.bf16.msra.mxu0 0
        %3516 = vmatprep.subr.bf16.mxu0 0
        %3517 = vmatpush1.bf16.msra.mxu0 %v3183
        %3518 = vmatprep.subr.bf16.mxu0 0
        %3519 = vmatpush2.bf16.msra.mxu0 0
        %3520 = vmatprep.subr.bf16.mxu0 0
        %3521 = vmatpush2.bf16.msra.mxu0 0
        %3522 = vmatprep.subr.bf16.mxu0 0
        %3523 = vmatpush2.bf16.msra.mxu0 0
        %3524 = vmatprep.subr.bf16.mxu0 0
        %3525 = vmatpush2.bf16.msra.mxu0 0
        %3526 = vmatprep.subr.bf16.mxu0 0
        %3527 = vmatpush2.bf16.msra.mxu0 0
        %3528 = vmatprep.subr.bf16.mxu0 0
        %3529 = vmatpush2.bf16.msra.mxu0 0
        %3530 = vmatprep.subr.bf16.mxu0 0
        %3531 = vmatpush2.bf16.msra.mxu0 0
        %3532 = vmatprep.subr.bf16.mxu0 0
        %3533 = vmatpush2.bf16.msra.mxu0 0
        %3534 = vmatprep.mubr.bf16.mxu0 0
        %3535 = vmatmul.mubr.bf16.gmra.mxu0 %v3500
        %v3536 = vpop.f32.mrf.mxu0
        %v3537 = vadd.f32 0.0, %v3536
        %v3538 = vpop.f32.mrf.mxu0
        %v3539 = vpop.f32.mrf.mxu0
        %v3540 = vpop.f32.mrf.mxu0
        %3541 = vdwg.mxu0
        %v3543 = vsel %vm2202, %v3412, 0
        %3545 = vmatprep.subr.bf16.mxu0 0
        %3546 = vmatpush1.bf16.msra.mxu0 0
        %3547 = vmatprep.subr.bf16.mxu0 0
        %3548 = vmatpush1.bf16.msra.mxu0 0
        %3549 = vmatprep.subr.bf16.mxu0 0
        %3550 = vmatpush1.bf16.msra.mxu0 0
        %3551 = vmatprep.subr.bf16.mxu0 0
        %3552 = vmatpush1.bf16.msra.mxu0 0
        %3553 = vmatprep.subr.bf16.mxu0 0
        %3554 = vmatpush1.bf16.msra.mxu0 0
        %3555 = vmatprep.subr.bf16.mxu0 0
        %3556 = vmatpush1.bf16.msra.mxu0 0
        %3557 = vmatprep.subr.bf16.mxu0 0
        %3558 = vmatpush1.bf16.msra.mxu0 0
        %3559 = vmatprep.subr.bf16.mxu0 0
        %3560 = vmatpush1.bf16.msra.mxu0 %v3184
        %3561 = vmatprep.subr.bf16.mxu0 0
        %3562 = vmatpush2.bf16.msra.mxu0 0
        %3563 = vmatprep.subr.bf16.mxu0 0
        %3564 = vmatpush2.bf16.msra.mxu0 0
        %3565 = vmatprep.subr.bf16.mxu0 0
        %3566 = vmatpush2.bf16.msra.mxu0 0
        %3567 = vmatprep.subr.bf16.mxu0 0
        %3568 = vmatpush2.bf16.msra.mxu0 0
        %3569 = vmatprep.subr.bf16.mxu0 0
        %3570 = vmatpush2.bf16.msra.mxu0 0
        %3571 = vmatprep.subr.bf16.mxu0 0
        %3572 = vmatpush2.bf16.msra.mxu0 0
        %3573 = vmatprep.subr.bf16.mxu0 0
        %3574 = vmatpush2.bf16.msra.mxu0 0
        %3575 = vmatprep.subr.bf16.mxu0 0
        %3576 = vmatpush2.bf16.msra.mxu0 0
        %3577 = vmatprep.mubr.bf16.mxu0 0
        %3578 = vmatmul.mubr.bf16.gmra.mxu0 %v3543
        %v3579 = vpop.f32.mrf.mxu0
        %v3580 = vadd.f32 0.0, %v3579
        %v3581 = vpop.f32.mrf.mxu0
        %v3582 = vpop.f32.mrf.mxu0
        %v3583 = vpop.f32.mrf.mxu0
        %3584 = vdwg.mxu0
        %v3585 = vrcp.pop %v3399
        %v3586 = vrcp.pop %v3402
        %v3587 = vrcp.pop %v3405
        %v3588 = vrcp.pop %v3408
        %v3589 = vmul.f32 %v3451, %v3585
        %v3590 = vmul.f32 %v3494, %v3586
        %v3591 = vmul.f32 %v3537, %v3587
        %v3592 = vmul.f32 %v3580, %v3588
        %v3593 = vcombine.low %v3589, %v3591
        %v3594 = vcombine.high %v3589, %v3591
        %v3596 = vunpack.c.l.s4 1983009808
        %v3597 = vunpack.c.0.s8 %v3596
        %v3598 = vlaneseq
        %v3599 = vshrl.u32 %v3598, 7
        %v3600 = vsub.s32 %v3597, %v3599
        %v3601 = vrot.slane %v3593, %v3600
        %v3603 = vunpack.c.l.s4 1983009808
        %v3604 = vunpack.c.0.s8 %v3603
        %v3605 = vlaneseq
        %v3606 = vshrl.u32 %v3605, 7
        %v3607 = vsub.s32 %v3604, %v3606
        %v3608 = vrot.slane %v3594, %v3607
        %v3609 = vcombine.low %v3590, %v3592
        %v3610 = vcombine.high %v3590, %v3592
        %v3612 = vunpack.c.l.s4 1983009808
        %v3613 = vunpack.c.0.s8 %v3612
        %v3614 = vlaneseq
        %v3615 = vshrl.u32 %v3614, 7
        %v3616 = vsub.s32 %v3613, %v3615
        %v3617 = vrot.slane %v3609, %v3616
        %v3619 = vunpack.c.l.s4 1983009808
        %v3620 = vunpack.c.0.s8 %v3619
        %v3621 = vlaneseq
        %v3622 = vshrl.u32 %v3621, 7
        %v3623 = vsub.s32 %v3620, %v3622
        %v3624 = vrot.slane %v3610, %v3623
        %v3625 = vcombine.low %v3601, %v3617
        %v3626 = vcombine.high %v3601, %v3617
        %v3628 = vunpack.c.l.s4 1934713408
        %v3629 = vunpack.c.0.s8 %v3628
        %v3630 = vlaneseq
        %v3631 = vshrl.u32 %v3630, 7
        %v3632 = vsub.s32 %v3629, %v3631
        %v3633 = vrot.slane %v3625, %v3632
        %v3635 = vunpack.c.l.s4 1934713408
        %v3636 = vunpack.c.0.s8 %v3635
        %v3637 = vlaneseq
        %v3638 = vshrl.u32 %v3637, 7
        %v3639 = vsub.s32 %v3636, %v3638
        %v3640 = vrot.slane %v3626, %v3639
        %v3641 = vcombine.low %v3608, %v3624
        %v3642 = vcombine.high %v3608, %v3624
        %v3644 = vunpack.c.l.s4 1934713408
        %v3645 = vunpack.c.0.s8 %v3644
        %v3646 = vlaneseq
        %v3647 = vshrl.u32 %v3646, 7
        %v3648 = vsub.s32 %v3645, %v3647
        %v3649 = vrot.slane %v3641, %v3648
        %v3651 = vunpack.c.l.s4 1934713408
        %v3652 = vunpack.c.0.s8 %v3651
        %v3653 = vlaneseq
        %v3654 = vshrl.u32 %v3653, 7
        %v3655 = vsub.s32 %v3652, %v3654
        %v3656 = vrot.slane %v3642, %v3655
        %v3657 = vcombine.high %v3633, 0.0
        %v3658 = vcombine.high %v3640, 0.0
        %v3659 = vcombine.high %v3649, 0.0
        %v3660 = vcombine.high %v3656, 0.0
        %v3661 = vcombine.low %v3633, %v3640
        %v3663 = vunpack.c.l.s4 1983009808
        %v3664 = vunpack.c.0.s8 %v3663
        %v3665 = vlaneseq
        %v3666 = vshrl.u32 %v3665, 7
        %v3667 = vsub.s32 %v3664, %v3666
        %v3668 = vrot.slane %v3661, %v3667
        %v3669 = vcombine.low %v3657, %v3658
        %v3671 = vunpack.c.l.s4 1983009808
        %v3672 = vunpack.c.0.s8 %v3671
        %v3673 = vlaneseq
        %v3674 = vshrl.u32 %v3673, 7
        %v3675 = vsub.s32 %v3672, %v3674
        %v3676 = vrot.slane %v3669, %v3675
        %v3677 = vcombine.low %v3649, %v3656
        %v3679 = vunpack.c.l.s4 1983009808
        %v3680 = vunpack.c.0.s8 %v3679
        %v3681 = vlaneseq
        %v3682 = vshrl.u32 %v3681, 7
        %v3683 = vsub.s32 %v3680, %v3682
        %v3684 = vrot.slane %v3677, %v3683
        %v3685 = vcombine.low %v3659, %v3660
        %v3687 = vunpack.c.l.s4 1983009808
        %v3688 = vunpack.c.0.s8 %v3687
        %v3689 = vlaneseq
        %v3690 = vshrl.u32 %v3689, 7
        %v3691 = vsub.s32 %v3688, %v3690
        %v3692 = vrot.slane %v3685, %v3691
        %v3693 = vcombine.low %v3668, %v3676
        %v3694 = vcombine.high %v3668, %v3676
        %v3696 = vunpack.c.l.s4 1934713408
        %v3697 = vunpack.c.0.s8 %v3696
        %v3698 = vlaneseq
        %v3699 = vshrl.u32 %v3698, 7
        %v3700 = vsub.s32 %v3697, %v3699
        %v3701 = vrot.slane %v3693, %v3700
        %v3703 = vunpack.c.l.s4 1934713408
        %v3704 = vunpack.c.0.s8 %v3703
        %v3705 = vlaneseq
        %v3706 = vshrl.u32 %v3705, 7
        %v3707 = vsub.s32 %v3704, %v3706
        %v3708 = vrot.slane %v3694, %v3707
        %v3709 = vcombine.low %v3684, %v3692
        %v3710 = vcombine.high %v3684, %v3692
        %v3712 = vunpack.c.l.s4 1934713408
        %v3713 = vunpack.c.0.s8 %v3712
        %v3714 = vlaneseq
        %v3715 = vshrl.u32 %v3714, 7
        %v3716 = vsub.s32 %v3713, %v3715
        %v3717 = vrot.slane %v3709, %v3716
        %v3719 = vunpack.c.l.s4 1934713408
        %v3720 = vunpack.c.0.s8 %v3719
        %v3721 = vlaneseq
        %v3722 = vshrl.u32 %v3721, 7
        %v3723 = vsub.s32 %v3720, %v3722
        %v3724 = vrot.slane %v3710, %v3723
        %v3725 = vcombine.low %v3701, %v3717
        %v3726 = vcombine.high %v3701, %v3717
        %v3727 = vcombine.low %v3708, %v3724
        %v3728 = vcombine.high %v3708, %v3724
        %3730 = vrot.lane.b32.xlu0 %v3726, 8
        %v3731 = vpop.permute.xlu0 %3730
        %3734 = vrot.lane.b32.xlu0 %v3727, 16
        %v3735 = vpop.permute.xlu0 %3734
        %3738 = vrot.lane.b32.xlu0 %v3728, 24
        %v3739 = vpop.permute.xlu0 %3738
        %v3741 = vsel %vm1620, %v3725, %v3731
        %v3742 = vsel %vm2202, %v3741, %v3735
        %v3743 = vsel %vm2204, %v3742, %v3739
        %v3744 = vld [vmem:[%s1055] sm:$0xf]
        %v3745 = vld [vmem:[%s1055 + $0x4] sm:$0xf]
        %v3746 = vld [vmem:[%s1055 + $0x8] sm:$0xf]
        %v3747 = vld [vmem:[%s1055 + $0xc] sm:$0xf]
        %v3748 = vld [vmem:[%s1058] sm:$0x1]
        %v3749 = vpack.c.bf16 %v3743, %v3743
        %v3751 = vlaneseq
        %v3752 = vshrl.u32 %v3751, 7
        %v3753 = vsub.s32 0, %v3752
        %v3754 = vrot.slane %v3748, %v3753
        %v3760 = vunpack.c.l.b16 %v3744
        %v3761 = vunpack.c.l.b16 %v3745
        %v3762 = vunpack.c.l.b16 %v3746
        %v3763 = vunpack.c.l.b16 %v3747
        %v3764 = vpack.c.b16 %v3761, %v3760
        %v3765 = vpack.c.b16 %v3763, %v3762
        %v3769 = vsel %vm1122, %v3749, 0
        %3771 = vmatprep.subr.bf16.mxu0 0
        %3772 = vmatpush1.bf16.msra.mxu0 0
        %3773 = vmatprep.subr.bf16.mxu0 0
        %3774 = vmatpush1.bf16.msra.mxu0 0
        %3775 = vmatprep.subr.bf16.mxu0 0
        %3776 = vmatpush1.bf16.msra.mxu0 0
        %3777 = vmatprep.subr.bf16.mxu0 0
        %3778 = vmatpush1.bf16.msra.mxu0 0
        %3779 = vmatprep.subr.bf16.mxu0 0
        %3780 = vmatpush1.bf16.msra.mxu0 0
        %3781 = vmatprep.subr.bf16.mxu0 0
        %3782 = vmatpush1.bf16.msra.mxu0 0
        %3783 = vmatprep.subr.bf16.mxu0 0
        %3784 = vmatpush1.bf16.msra.mxu0 %v3765
        %3785 = vmatprep.subr.bf16.mxu0 0
        %3786 = vmatpush1.bf16.msra.mxu0 %v3764
        %3787 = vmatprep.subr.bf16.mxu0 0
        %3788 = vmatpush2.bf16.msra.mxu0 0
        %3789 = vmatprep.subr.bf16.mxu0 0
        %3790 = vmatpush2.bf16.msra.mxu0 0
        %3791 = vmatprep.subr.bf16.mxu0 0
        %3792 = vmatpush2.bf16.msra.mxu0 0
        %3793 = vmatprep.subr.bf16.mxu0 0
        %3794 = vmatpush2.bf16.msra.mxu0 0
        %3795 = vmatprep.subr.bf16.mxu0 0
        %3796 = vmatpush2.bf16.msra.mxu0 0
        %3797 = vmatprep.subr.bf16.mxu0 0
        %3798 = vmatpush2.bf16.msra.mxu0 0
        %3799 = vmatprep.subr.bf16.mxu0 0
        %3800 = vmatpush2.bf16.msra.mxu0 0
        %3801 = vmatprep.subr.bf16.mxu0 0
        %3802 = vmatpush2.bf16.msra.mxu0 0
        %3803 = vmatprep.mubr.bf16.mxu0 0
        %3804 = vmatmul.mubr.bf16.gmra.mxu0 %v3769
        %v3805 = vpop.f32.mrf.mxu0
        %v3806 = vadd.f32 %v3754, %v3805
        %v3807 = vpop.f32.mrf.mxu0
        %v3808 = vpop.f32.mrf.mxu0
        %v3809 = vpop.f32.mrf.mxu0
        %3810 = vdwg.mxu0
        %v3811 = vadd.f32 %v3806, %v2303
        %v3812 = vld [vmem:[%s1061] sm:$0x1]
        %v3813 = vld [vmem:[%s1064] sm:$0x1]
        %v3814 = vsel %vm1122, %v3811, 0.0
        %3815 = vadd.xlane.f32.xlu0 %v3814
        %v3816 = vpop.xlane.xlu0 %3815
        %v3817 = vmul.f32 %v3816, %v2279
        %v3818 = vsub.f32 %v3811, %v3817
        %v3819 = vmul.f32 %v3818, %v3818
        %v3820 = vsel %vm1122, %v3819, 0.0
        %3821 = vadd.xlane.f32.xlu0 %v3820
        %v3822 = vpop.xlane.xlu0 %3821
        %v3823 = vmul.f32 %v3822, %v2279
        %v3824 = vadd.f32 %v3823, 1e-05
        %v3825 = vrsqrt.pop %v3824
        %v3826 = vmul.f32 %v3818, %v3825
        %v3828 = vlaneseq
        %v3829 = vshrl.u32 %v3828, 7
        %v3830 = vsub.s32 0, %v3829
        %v3831 = vrot.slane %v3812, %v3830
        %v3833 = vmul.f32 %v3826, %v3831
        %v3835 = vlaneseq
        %v3836 = vshrl.u32 %v3835, 7
        %v3837 = vsub.s32 0, %v3836
        %v3838 = vrot.slane %v3813, %v3837
        %v3840 = vadd.f32 %v3833, %v3838
        %v3841 = vld [vmem:[%s1069] sm:$0xf]
        %v3842 = vld [vmem:[%s1069 + $0x4] sm:$0xf]
        %v3843 = vld [vmem:[%s1069 + $0x8] sm:$0xf]
        %v3844 = vld [vmem:[%s1069 + $0xc] sm:$0xf]
        %v3845 = vld [vmem:[%s1072] sm:$0x1]
        %v3846 = vld [vmem:[%s1077] sm:$0xf]
        %v3847 = vld [vmem:[%s1077 + $0x4] sm:$0xf]
        %v3848 = vld [vmem:[%s1077 + $0x8] sm:$0xf]
        %v3849 = vld [vmem:[%s1077 + $0xc] sm:$0xf]
        %v3850 = vld [vmem:[%s1077 + $0x10] sm:$0xf]
        %v3851 = vld [vmem:[%s1077 + $0x14] sm:$0xf]
        %v3852 = vld [vmem:[%s1077 + $0x18] sm:$0xf]
        %v3853 = vld [vmem:[%s1077 + $0x1c] sm:$0xf]
        %v3854 = vld [vmem:[%s1080] sm:$0x1]
        %v3855 = vpack.c.bf16 %v3840, %v3840
        %v3857 = vlaneseq
        %v3858 = vshrl.u32 %v3857, 7
        %v3859 = vsub.s32 0, %v3858
        %v3860 = vrot.slane %v3845, %v3859
        %v3866 = vunpack.c.l.b16 %v3841
        %v3867 = vunpack.c.l.b16 %v3842
        %v3868 = vunpack.c.l.b16 %v3843
        %v3869 = vunpack.c.l.b16 %v3844
        %v3870 = vpack.c.b16 %v3867, %v3866
        %v3871 = vpack.c.b16 %v3869, %v3868
        %v3875 = vsel %vm1122, %v3855, 0
        %3877 = vmatprep.subr.bf16.mxu0 0
        %3878 = vmatpush1.bf16.msra.mxu0 0
        %3879 = vmatprep.subr.bf16.mxu0 0
        %3880 = vmatpush1.bf16.msra.mxu0 0
        %3881 = vmatprep.subr.bf16.mxu0 0
        %3882 = vmatpush1.bf16.msra.mxu0 0
        %3883 = vmatprep.subr.bf16.mxu0 0
        %3884 = vmatpush1.bf16.msra.mxu0 0
        %3885 = vmatprep.subr.bf16.mxu0 0
        %3886 = vmatpush1.bf16.msra.mxu0 0
        %3887 = vmatprep.subr.bf16.mxu0 0
        %3888 = vmatpush1.bf16.msra.mxu0 0
        %3889 = vmatprep.subr.bf16.mxu0 0
        %3890 = vmatpush1.bf16.msra.mxu0 %v3871
        %3891 = vmatprep.subr.bf16.mxu0 0
        %3892 = vmatpush1.bf16.msra.mxu0 %v3870
        %3893 = vmatprep.subr.bf16.mxu0 0
        %3894 = vmatpush2.bf16.msra.mxu0 0
        %3895 = vmatprep.subr.bf16.mxu0 0
        %3896 = vmatpush2.bf16.msra.mxu0 0
        %3897 = vmatprep.subr.bf16.mxu0 0
        %3898 = vmatpush2.bf16.msra.mxu0 0
        %3899 = vmatprep.subr.bf16.mxu0 0
        %3900 = vmatpush2.bf16.msra.mxu0 0
        %3901 = vmatprep.subr.bf16.mxu0 0
        %3902 = vmatpush2.bf16.msra.mxu0 0
        %3903 = vmatprep.subr.bf16.mxu0 0
        %3904 = vmatpush2.bf16.msra.mxu0 0
        %3905 = vmatprep.subr.bf16.mxu0 0
        %3906 = vmatpush2.bf16.msra.mxu0 0
        %3907 = vmatprep.subr.bf16.mxu0 0
        %3908 = vmatpush2.bf16.msra.mxu0 0
        %3909 = vmatprep.mubr.bf16.mxu0 0
        %3910 = vmatmul.mubr.bf16.gmra.mxu0 %v3875
        %v3911 = vpop.f32.mrf.mxu0
        %v3912 = vadd.f32 %v3860, %v3911
        %v3913 = vpop.f32.mrf.mxu0
        %v3914 = vpop.f32.mrf.mxu0
        %v3915 = vpop.f32.mrf.mxu0
        %3916 = vdwg.mxu0
        %v3917 = vmax.f32 %v3912, 0.0
        %v3918 = vpack.c.bf16 %v3917, %v3917
        %v3920 = vlaneseq
        %v3921 = vshrl.u32 %v3920, 7
        %v3922 = vsub.s32 0, %v3921
        %v3923 = vrot.slane %v3854, %v3922
        %v3933 = vunpack.c.l.b16 %v3846
        %v3934 = vunpack.c.l.b16 %v3847
        %v3935 = vunpack.c.l.b16 %v3848
        %v3936 = vunpack.c.l.b16 %v3849
        %v3937 = vunpack.c.l.b16 %v3850
        %v3938 = vunpack.c.l.b16 %v3851
        %v3939 = vunpack.c.l.b16 %v3852
        %v3940 = vunpack.c.l.b16 %v3853
        %v3941 = vpack.c.b16 %v3934, %v3933
        %v3942 = vpack.c.b16 %v3936, %v3935
        %v3943 = vpack.c.b16 %v3938, %v3937
        %v3944 = vpack.c.b16 %v3940, %v3939
        %vm3949 = vcmask 523264
        %v3951 = vsel %vm3949, %v3918, 0
        %3953 = vmatprep.subr.bf16.mxu0 0
        %3954 = vmatpush1.bf16.msra.mxu0 0
        %3955 = vmatprep.subr.bf16.mxu0 0
        %3956 = vmatpush1.bf16.msra.mxu0 0
        %3957 = vmatprep.subr.bf16.mxu0 0
        %3958 = vmatpush1.bf16.msra.mxu0 0
        %3959 = vmatprep.subr.bf16.mxu0 0
        %3960 = vmatpush1.bf16.msra.mxu0 0
        %3961 = vmatprep.subr.bf16.mxu0 0
        %3962 = vmatpush1.bf16.msra.mxu0 %v3944
        %3963 = vmatprep.subr.bf16.mxu0 0
        %3964 = vmatpush1.bf16.msra.mxu0 %v3943
        %3965 = vmatprep.subr.bf16.mxu0 0
        %3966 = vmatpush1.bf16.msra.mxu0 %v3942
        %3967 = vmatprep.subr.bf16.mxu0 0
        %3968 = vmatpush1.bf16.msra.mxu0 %v3941
        %3969 = vmatprep.subr.bf16.mxu0 0
        %3970 = vmatpush2.bf16.msra.mxu0 0
        %3971 = vmatprep.subr.bf16.mxu0 0
        %3972 = vmatpush2.bf16.msra.mxu0 0
        %3973 = vmatprep.subr.bf16.mxu0 0
        %3974 = vmatpush2.bf16.msra.mxu0 0
        %3975 = vmatprep.subr.bf16.mxu0 0
        %3976 = vmatpush2.bf16.msra.mxu0 0
        %3977 = vmatprep.subr.bf16.mxu0 0
        %3978 = vmatpush2.bf16.msra.mxu0 0
        %3979 = vmatprep.subr.bf16.mxu0 0
        %3980 = vmatpush2.bf16.msra.mxu0 0
        %3981 = vmatprep.subr.bf16.mxu0 0
        %3982 = vmatpush2.bf16.msra.mxu0 0
        %3983 = vmatprep.subr.bf16.mxu0 0
        %3984 = vmatpush2.bf16.msra.mxu0 0
        %3985 = vmatprep.mubr.bf16.mxu0 0
        %3986 = vmatmul.mubr.bf16.gmra.mxu0 %v3951
        %v3987 = vpop.f32.mrf.mxu0
        %v3988 = vadd.f32 %v3923, %v3987
        %v3989 = vpop.f32.mrf.mxu0
        %v3990 = vpop.f32.mrf.mxu0
        %v3991 = vpop.f32.mrf.mxu0
        %3992 = vdwg.mxu0
        %v3993 = vadd.f32 %v3988, %v3840
        %v3994 = vld [vmem:[%s1083] sm:$0x1]
        %v3995 = vld [vmem:[%s1086] sm:$0x1]
        %v3996 = vsel %vm1122, %v3993, 0.0
        %3997 = vadd.xlane.f32.xlu0 %v3996
        %v3998 = vpop.xlane.xlu0 %3997
        %v3999 = vmul.f32 %v3998, %v2279
        %v4000 = vsub.f32 %v3993, %v3999
        %v4001 = vmul.f32 %v4000, %v4000
        %v4002 = vsel %vm1122, %v4001, 0.0
        %4003 = vadd.xlane.f32.xlu0 %v4002
        %v4004 = vpop.xlane.xlu0 %4003
        %v4005 = vmul.f32 %v4004, %v2279
        %v4006 = vadd.f32 %v4005, 1e-05
        %v4007 = vrsqrt.pop %v4006
        %v4008 = vmul.f32 %v4000, %v4007
        %v4010 = vlaneseq
        %v4011 = vshrl.u32 %v4010, 7
        %v4012 = vsub.s32 0, %v4011
        %v4013 = vrot.slane %v3994, %v4012
        %v4015 = vmul.f32 %v4008, %v4013
        %v4017 = vlaneseq
        %v4018 = vshrl.u32 %v4017, 7
        %v4019 = vsub.s32 0, %v4018
        %v4020 = vrot.slane %v3995, %v4019
        %v4022 = vadd.f32 %v4015, %v4020
        %4023 = vst.msk [vmem:[#allocation2] sm:$0xff] %vm1122, %v4022
        %p4024 = scmp.eq.s32.totalorder %s43, 1
        // Predicated region
        $region121: #{sum_transformer_forward.3} parent=115 // pred_check
          %p4025 = pneg %p4024
        $region122: #{sum_transformer_forward.3} parent=115 // pred_check_branch
          %4027 = sbr.rel (%p4025) target = $region124
        $region123: #{sum_transformer_forward.3} parent=115 // pred_region
          %v4028 = vld [vmem:[%s22] sm:$0xf]
          %v4029 = vld [vmem:[%s22 + $0x4] sm:$0xf]
          %v4030 = vld [vmem:[%s22 + $0x8] sm:$0xf]
          %v4031 = vld [vmem:[%s22 + $0xc] sm:$0xf]
          %v4032 = vld [vmem:[%s23] sm:$0x1]
          %v4033 = vpack.c.bf16 %v4022, %v4022
          %v4035 = vlaneseq
          %v4036 = vshrl.u32 %v4035, 7
          %v4037 = vsub.s32 0, %v4036
          %v4038 = vrot.slane %v4032, %v4037
          %v4044 = vunpack.c.l.b16 %v4028
          %v4045 = vunpack.c.l.b16 %v4029
          %v4046 = vunpack.c.l.b16 %v4030
          %v4047 = vunpack.c.l.b16 %v4031
          %v4048 = vpack.c.b16 %v4045, %v4044
          %v4049 = vpack.c.b16 %v4047, %v4046
          %v4053 = vsel %vm1122, %v4033, 0
          %4055 = vmatprep.subr.bf16.mxu0 0
          %4056 = vmatpush1.bf16.msra.mxu0 0
          %4057 = vmatprep.subr.bf16.mxu0 0
          %4058 = vmatpush1.bf16.msra.mxu0 0
          %4059 = vmatprep.subr.bf16.mxu0 0
          %4060 = vmatpush1.bf16.msra.mxu0 0
          %4061 = vmatprep.subr.bf16.mxu0 0
          %4062 = vmatpush1.bf16.msra.mxu0 0
          %4063 = vmatprep.subr.bf16.mxu0 0
          %4064 = vmatpush1.bf16.msra.mxu0 0
          %4065 = vmatprep.subr.bf16.mxu0 0
          %4066 = vmatpush1.bf16.msra.mxu0 0
          %4067 = vmatprep.subr.bf16.mxu0 0
          %4068 = vmatpush1.bf16.msra.mxu0 %v4049
          %4069 = vmatprep.subr.bf16.mxu0 0
          %4070 = vmatpush1.bf16.msra.mxu0 %v4048
          %4071 = vmatprep.subr.bf16.mxu0 0
          %4072 = vmatpush2.bf16.msra.mxu0 0
          %4073 = vmatprep.subr.bf16.mxu0 0
          %4074 = vmatpush2.bf16.msra.mxu0 0
          %4075 = vmatprep.subr.bf16.mxu0 0
          %4076 = vmatpush2.bf16.msra.mxu0 0
          %4077 = vmatprep.subr.bf16.mxu0 0
          %4078 = vmatpush2.bf16.msra.mxu0 0
          %4079 = vmatprep.subr.bf16.mxu0 0
          %4080 = vmatpush2.bf16.msra.mxu0 0
          %4081 = vmatprep.subr.bf16.mxu0 0
          %4082 = vmatpush2.bf16.msra.mxu0 0
          %4083 = vmatprep.subr.bf16.mxu0 0
          %4084 = vmatpush2.bf16.msra.mxu0 0
          %4085 = vmatprep.subr.bf16.mxu0 0
          %4086 = vmatpush2.bf16.msra.mxu0 0
          %4087 = vmatprep.mubr.bf16.mxu0 0
          %4088 = vmatmul.mubr.bf16.gmra.mxu0 %v4053
          %v4089 = vpop.f32.mrf.mxu0
          %v4090 = vadd.f32 %v4038, %v4089
          %v4091 = vpop.f32.mrf.mxu0
          %v4092 = vpop.f32.mrf.mxu0
          %v4093 = vpop.f32.mrf.mxu0
          %4094 = vdwg.mxu0
          %4095 = vst [vmem:[%s1003] sm:$0xff] %v4090
        $region124: #{sum_transformer_forward.3} parent=115 // pred_fallthru
          _
        %s4096 = sand.u32 %s672, 1
        %s4097 = scalar_lea.sflag [#allocation4], %s4096
        %s4098 = sand.u32 %s672, 1
        %s4099 = smul.addr %s4098, 8
        %s4100 = scalar_lea.vmem [#allocation3], %s4099
        // Predicated region
        $region125: #{sum_transformer_forward.3} parent=115 // pred_check
          %p4101 = pneg %p682
        $region126: #{sum_transformer_forward.3} parent=115 // pred_check_branch
          %4103 = sbr.rel (%p4101) target = $region128
        $region127: #{sum_transformer_forward.3} parent=115 // pred_region
          %s4105 = ssub.s32 128, 128
          %4106 = vsyncadd %s4097, %s4105
          %s4107 = smul.addr %s42, 128
          %s4108 = scalar_lea.hbm %s24, %s4107
          %s4110 = sshll.u32 %s4100, 4
          %s4111 = int_to_ptr.vmem [resolvable:$true] %s4110
          %4113 = dma.vmem_to_hbm [thread:$0]  %s4111, 128, %s4108, %s4097
        $region128: #{sum_transformer_forward.3} parent=115 // pred_fallthru
          _
      $region116: #{sum_transformer_forward.3} parent=5 // pred_fallthru
        _
      %p4114 = scmp.le.s32.totalorder 2, %s33
      // Predicated region
      $region129: #{sum_transformer_forward.3} parent=5 // pred_check
        %p4115 = pneg %p4114
      $region130: #{sum_transformer_forward.3} parent=5 // pred_check_branch
        %4117 = sbr.rel (%p4115) target = $region132
      $region131: #{sum_transformer_forward.3} parent=5 // pred_region
        %s4118 = ssub.s32 %s33, 2
        // Predicated region
        $region133: #{sum_transformer_forward.3} parent=131 // pred_check
          %p4119 = pneg %p688
        $region134: #{sum_transformer_forward.3} parent=131 // pred_check_branch
          %4121 = sbr.rel (%p4119) target = $region136
        $region135: #{sum_transformer_forward.3} parent=131 // pred_region
          %s4122 = sand.u32 %s673, 1
          %s4123 = scalar_lea.sflag [#allocation4], %s4122
          %s4124 = sand.u32 %s673, 1
          %s4125 = smul.addr %s4124, 8
          %s4126 = scalar_lea.vmem [#allocation3], %s4125
          %4127 = dma.done %s4123, 128
        $region136: #{sum_transformer_forward.3} parent=131 // pred_fallthru
          _
      $region132: #{sum_transformer_forward.3} parent=5 // pred_fallthru
        _
    $region6: #{sum_transformer_forward.3} parent=1 // loop_footer
      %s37 = sadd.s32 1, %s33
    $region7: #{sum_transformer_forward.3} parent=1 // loop_footer_branch
      %32 = sbr.rel target = $region3
    $region8: #{sum_transformer_forward.3} parent=1 // loop_exit
      _
    %4128 = vsyncpa [#allocation4], 1
    %s4129 = scalar_lea.sflag [#allocation4], 1
    %4130 = vsyncpa %s4129, 1

</llo_original>
